<compile_context>
chip_gen: v7x
topology: tpu7x:2x2x1
jax: 0.10.0
libtpu: 0.0.40
codegen_flags: <defaults>
</compile_context>

<pallas_src>
import functools

import jax
import jax.numpy as jnp
from jax.experimental import pallas as pl
from jax.experimental.pallas import tpu as pltpu


def _round_up(x, m):
    return ((x + m - 1) // m) * m


# ----------------------------------------------------------------------------
# Pallas kernels
# ----------------------------------------------------------------------------
def _matmul_bias_act_kernel(x_ref, w_ref, b_ref, o_ref, *, relu):
    # x: (TM, K) bf16, w: (K, N) bf16, b: (1, N) f32 -> o: (TM, N) out dtype
    y = jnp.dot(x_ref[...], w_ref[...], preferred_element_type=jnp.float32)
    y = y + b_ref[...]
    if relu:
        y = jnp.maximum(y, 0.0)
    o_ref[...] = y.astype(o_ref.dtype)


def fused_matmul(x, w, b, relu, out_dtype=jnp.bfloat16):
    """y = x @ w + b (optional ReLU).  x: (M, K) bf16, w: (K, N) bf16, b: (1, N)."""
    M, K = x.shape
    N = w.shape[1]
    # Tile M: big enough to amortize per-step overhead, grid length >= 2 on
    # the large layers (v7x has 2 TensorCores), full-M single tile otherwise.
    if M >= 1024:
        tm = 512
    elif M >= 256:
        tm = 256
    else:
        tm = _round_up(M, 8)
    Mp = _round_up(M, tm)
    if Mp != M:
        x = jnp.pad(x, ((0, Mp - M), (0, 0)))

    out_bytes = Mp * N * jnp.dtype(out_dtype).itemsize
    cost = pl.CostEstimate(
        flops=2 * Mp * K * N,
        transcendentals=0,
        bytes_accessed=(Mp * K * x.dtype.itemsize + K * N * w.dtype.itemsize
                        + N * b.dtype.itemsize + out_bytes),
    )

    out = pl.pallas_call(
        functools.partial(_matmul_bias_act_kernel, relu=relu),
        out_shape=jax.ShapeDtypeStruct((Mp, N), out_dtype),
        grid=(Mp // tm,),
        in_specs=[
            pl.BlockSpec((tm, K), lambda i: (i, 0)),
            pl.BlockSpec((K, N), lambda i: (0, 0)),
            pl.BlockSpec((1, N), lambda i: (0, 0)),
        ],
        out_specs=pl.BlockSpec((tm, N), lambda i: (i, 0)),
        compiler_params=pltpu.CompilerParams(
            dimension_semantics=("parallel",)),
        cost_estimate=cost,
    )(x, w, b)
    if Mp != M:
        out = out[:M]
    return out


def _bottleneck_kernel(x_ref, w5_ref, b5_ref, wm_ref, bm_ref, ws_ref, bs_ref,
                       noise_ref, wd_ref, bd_ref, wd1_ref, bd1_ref,
                       mean_ref, logstd_ref, h1_ref):
    # Fused: e_conv5 (as matmul) -> fc_mean / fc_log_std -> reparam sample ->
    # d_fc1 -> d_conv1 (1x1 input, as matmul).  Everything M=B (tiny).
    y5 = jnp.dot(x_ref[...], w5_ref[...],
                 preferred_element_type=jnp.float32) + b5_ref[...]
    y5 = jnp.maximum(y5, 0.0).astype(jnp.bfloat16)

    mean = jnp.dot(y5, wm_ref[...],
                   preferred_element_type=jnp.float32) + bm_ref[...]
    log_std = jnp.dot(y5, ws_ref[...],
                      preferred_element_type=jnp.float32) + bs_ref[...]
    z = mean + jnp.exp(log_std) * noise_ref[...]

    h = jnp.dot(z.astype(jnp.bfloat16), wd_ref[...],
                preferred_element_type=jnp.float32) + bd_ref[...]
    h = jnp.maximum(h, 0.0).astype(jnp.bfloat16)

    h1 = jnp.dot(h, wd1_ref[...],
                 preferred_element_type=jnp.float32) + bd1_ref[...]
    h1 = jnp.maximum(h1, 0.0)

    mean_ref[...] = mean
    logstd_ref[...] = log_std
    h1_ref[...] = h1.astype(h1_ref.dtype)


def bottleneck(p, x5, noise):
    B = x5.shape[0]
    L = p["e_fc_mean_w"].shape[1]
    out_shape = (jax.ShapeDtypeStruct((B, L), jnp.float32),       # mean
                 jax.ShapeDtypeStruct((B, L), jnp.float32),       # log_std
                 jax.ShapeDtypeStruct((B, 1024), jnp.bfloat16))   # d_conv1 out
    return pl.pallas_call(_bottleneck_kernel, out_shape=out_shape)(
        x5.astype(jnp.bfloat16),
        p["e_conv5_w"], p["e_conv5_b"],
        p["e_fc_mean_w"], p["e_fc_mean_b"],
        p["e_fc_log_std_w"], p["e_fc_log_std_b"],
        noise,
        p["d_fc1_w"], p["d_fc1_b"],
        p["d_conv1_w"], p["d_conv1_b"])


# ----------------------------------------------------------------------------
# Conv layers (im2col is pure NHWC slicing; hot path is the Pallas matmul)
# ----------------------------------------------------------------------------
def conv2d_nhwc(x, wm, b, stride, padding, relu, k=4, out_dtype=jnp.bfloat16):
    """x: (B, H, W, C) NHWC; wm: (k*k*C, O) matmul-layout weight; b: (1, O)."""
    B, H, W, C = x.shape
    O = wm.shape[1]
    xp = jnp.pad(x, ((0, 0), (padding, padding), (padding, padding), (0, 0)))
    Ho = (H + 2 * padding - k) // stride + 1
    Wo = (W + 2 * padding - k) // stride + 1
    cols = [xp[:, ki:ki + stride * Ho:stride, kj:kj + stride * Wo:stride, :]
            for ki in range(k) for kj in range(k)]
    patches = jnp.stack(cols, axis=3).reshape(B * Ho * Wo, k * k * C)
    y = fused_matmul(patches, wm, b, relu, out_dtype)
    return y.reshape(B, Ho, Wo, O)


def deconv_s2_nhwc(x, w_comb, b_comb, relu, out_dtype=jnp.bfloat16):
    """ConvTranspose2d(k=4, s=2, p=1) via output-parity decomposition.

    A stride-1 conv with a 3x3 window over the 1-padded NHWC input produces
    all 4 output parities at once: out has N = 4*C_out columns ordered
    (ry, rx, c_out), interleaved back into the (2H, 2W) output.
    """
    B, H, W, C = x.shape
    Cout = w_comb.shape[1] // 4
    xp = jnp.pad(x, ((0, 0), (1, 1), (1, 1), (0, 0)))
    cols = [xp[:, ty:ty + H, tx:tx + W, :]
            for ty in range(3) for tx in range(3)]
    patches = jnp.stack(cols, axis=3).reshape(B * H * W, 9 * C)
    y = fused_matmul(patches, w_comb, b_comb, relu, out_dtype)   # (B*H*W, 4*Cout)
    y = y.reshape(B, H, W, 2, 2, Cout).transpose(0, 1, 3, 2, 4, 5)
    return y.reshape(B, 2 * H, 2 * W, Cout)


# ----------------------------------------------------------------------------
# Parameters: PyTorch-style init, then one-time conversion to matmul layouts
# ----------------------------------------------------------------------------
def _uniform(key, shape, fan_in):
    bound = 1.0 / jnp.sqrt(jnp.float32(fan_in))
    return jax.random.uniform(key, shape, jnp.float32, -bound, bound)


def init_params(key, latent_dim=16, n_channels=3):
    conv_specs = [
        ("e_conv1", n_channels, 32, 4),
        ("e_conv2", 32, 32, 4),
        ("e_conv3", 32, 64, 4),
        ("e_conv4", 64, 64, 4),
        ("e_conv5", 64, 256, 4),
    ]
    deconv_specs = [
        ("d_conv1", 256, 64, 4),
        ("d_conv2", 64, 64, 4),
        ("d_conv3", 64, 32, 4),
        ("d_conv4", 32, 32, 4),
        ("d_conv5", 32, n_channels, 4),
    ]
    fc_specs = [
        ("e_fc_mean", 256, latent_dim),
        ("e_fc_log_std", 256, latent_dim),
        ("d_fc1", latent_dim, 256),
    ]
    n_keys = 2 * (len(conv_specs) + len(deconv_specs) + len(fc_specs))
    keys = iter(jax.random.split(key, n_keys))
    params = {}
    for name, cin, cout, k in conv_specs:
        fan = cin * k * k
        params[name + "_w"] = _uniform(next(keys), (cout, cin, k, k), fan)
        params[name + "_b"] = _uniform(next(keys), (cout,), fan)
    for name, cin, cout, k in deconv_specs:
        fan = cin * k * k
        params[name + "_w"] = _uniform(next(keys), (cin, cout, k, k), fan)
        params[name + "_b"] = _uniform(next(keys), (cout,), fan)
    for name, fin, fout in fc_specs:
        params[name + "_w"] = _uniform(next(keys), (fout, fin), fin)
        params[name + "_b"] = _uniform(next(keys), (fout,), fin)
    return params


def _conv_weight_matrix(w):
    """(O, C, kh, kw) PyTorch Conv2d -> (kh*kw*C, O) bf16, rows ordered (ki,kj,c)."""
    O, C, kh, kw = w.shape
    return w.transpose(2, 3, 1, 0).reshape(kh * kw * C, O).astype(jnp.bfloat16)


def _deconv_combined_weight(w):
    """(Cin, Cout, 4, 4) ConvTranspose2d(k=4,s=2,p=1) -> (9*Cin, 4*Cout) bf16.

    Rows ordered (ty, tx, cin) over a 3x3 window of the 1-padded input;
    columns ordered (ry, rx, cout) over the 4 output parities.  Tap (ty, tx)
    contributes to parity (ry, rx) iff 0 <= ty-ry <= 1 and 0 <= tx-rx <= 1,
    with original kernel indices ky = 3 + ry - 2*ty, kx = 3 + rx - 2*tx.
    """
    Cin, Cout = w.shape[0], w.shape[1]
    wc = jnp.zeros((3, 3, Cin, 2, 2, Cout), jnp.float32)
    for ty in range(3):
        for ry in range(2):
            if not 0 <= ty - ry <= 1:
                continue
            ky = 3 + ry - 2 * ty
            for tx in range(3):
                for rx in range(2):
                    if not 0 <= tx - rx <= 1:
                        continue
                    kx = 3 + rx - 2 * tx
                    wc = wc.at[ty, tx, :, ry, rx, :].set(w[:, :, ky, kx])
    return wc.reshape(9 * Cin, 4 * Cout).astype(jnp.bfloat16)


def prepare_params(p):
    """One-time conversion of PyTorch-layout params to kernel-ready layouts."""
    q = {}
    for name in ("e_conv1", "e_conv2", "e_conv3", "e_conv4", "e_conv5"):
        q[name + "_w"] = _conv_weight_matrix(p[name + "_w"])
        q[name + "_b"] = p[name + "_b"].astype(jnp.float32).reshape(1, -1)
    for name in ("e_fc_mean", "e_fc_log_std", "d_fc1"):
        q[name + "_w"] = p[name + "_w"].T.astype(jnp.bfloat16)
        q[name + "_b"] = p[name + "_b"].astype(jnp.float32).reshape(1, -1)
    # d_conv1: k=4, s=1, p=0 applied to a 1x1 input -> pure matmul
    # (256 -> 4*4*64), output columns ordered (ky, kx, cout) = NHWC flat.
    w = p["d_conv1_w"]                                    # (256, 64, 4, 4)
    q["d_conv1_w"] = w.transpose(0, 2, 3, 1).reshape(256, 16 * 64).astype(jnp.bfloat16)
    q["d_conv1_b"] = jnp.tile(p["d_conv1_b"].astype(jnp.float32), 16).reshape(1, -1)
    # d_conv2..5: k=4, s=2, p=1 -> combined parity weights.
    for name in ("d_conv2", "d_conv3", "d_conv4", "d_conv5"):
        q[name + "_w"] = _deconv_combined_weight(p[name + "_w"])
        q[name + "_b"] = jnp.tile(p[name + "_b"].astype(jnp.float32), 4).reshape(1, -1)
    return q


# ----------------------------------------------------------------------------
# VAE forward (matches VAEConv.forward: encode -> sample -> decode)
# ----------------------------------------------------------------------------
def vae_forward(params, x, noise_key):
    B = x.shape[0]
    latent_dim = params["e_fc_mean_w"].shape[1]

    # ---- encode (NHWC, bf16) ----
    h = jnp.transpose(x, (0, 2, 3, 1)).astype(jnp.bfloat16)
    h = conv2d_nhwc(h, params["e_conv1_w"], params["e_conv1_b"], 2, 1, True)
    h = conv2d_nhwc(h, params["e_conv2_w"], params["e_conv2_b"], 2, 1, True)
    h = conv2d_nhwc(h, params["e_conv3_w"], params["e_conv3_b"], 2, 1, True)
    h = conv2d_nhwc(h, params["e_conv4_w"], params["e_conv4_b"], 2, 1, True)
    x5 = h.reshape(B, 4 * 4 * 64)   # e_conv5's 4x4 window == full spatial extent

    # ---- fused bottleneck: e_conv5, fc_mean, fc_log_std, sample, d_fc1, d_conv1
    noise = jax.random.normal(noise_key, (B, latent_dim), jnp.float32)
    mean, log_std, h1 = bottleneck(params, x5, noise)

    # ---- decode ----
    h = h1.reshape(B, 4, 4, 64)
    h = deconv_s2_nhwc(h, params["d_conv2_w"], params["d_conv2_b"], True)
    h = deconv_s2_nhwc(h, params["d_conv3_w"], params["d_conv3_b"], True)
    h = deconv_s2_nhwc(h, params["d_conv4_w"], params["d_conv4_b"], True)
    y = deconv_s2_nhwc(h, params["d_conv5_w"], params["d_conv5_b"], False,
                       out_dtype=jnp.float32)
    x_hat = jnp.transpose(y, (0, 3, 1, 2))   # NHWC -> NCHW
    return x_hat, mean, log_std


if __name__ == "__main__":
    latent_dim, n_channels, im = 16, 3, 64   # architecture requires 64x64 input
    key = jax.random.PRNGKey(0)
    pkey, xkey, nkey = jax.random.split(key, 3)

    params_torch_layout = init_params(pkey, latent_dim=latent_dim,
                                      n_channels=n_channels)
    params = prepare_params(params_torch_layout)   # one-time layout conversion
    x = jax.random.normal(xkey, (2, n_channels, im, im), jnp.float32)

    fwd = jax.jit(vae_forward)
    x_hat, mean, log_std = fwd(params, x, nkey)
    jax.block_until_ready((x_hat, mean, log_std))

    assert x_hat.shape == (2, n_channels, im, im), x_hat.shape
    assert mean.shape == (2, latent_dim), mean.shape
    assert log_std.shape == (2, latent_dim), log_std.shape
    assert bool(jnp.all(jnp.isfinite(x_hat)))
    assert bool(jnp.all(jnp.isfinite(mean))) and bool(jnp.all(jnp.isfinite(log_std)))
    print("KERNEL_OK")
</pallas_src>

<mosaic_0001>
module attributes {stable_mosaic.version = 11 : i64} {
  func.func @_matmul_bias_act_kernel(%arg0: i32, %arg1: memref<512x48xbf16, #tpu.memory_space<vmem>>, %arg2: memref<48x32xbf16, #tpu.memory_space<vmem>>, %arg3: memref<1x32xf32, #tpu.memory_space<vmem>>, %arg4: memref<512x32xbf16, #tpu.memory_space<vmem>>) attributes {dimension_semantics = [#tpu.dimension_semantics<parallel>], iteration_bounds = array<i64: 4>, scalar_prefetch = 0 : i64, scratch_operands = 0 : i64, tpu.core_type = #tpu.core_type<tc>, window_params = [{transform_indices = @transform_0, window_bounds = array<i64: 512, 48>}, {pipeline_mode = #tpu.pipeline_mode<synchronous>, transform_indices = @transform_1, window_bounds = array<i64: 48, 32>}, {pipeline_mode = #tpu.pipeline_mode<synchronous>, transform_indices = @transform_2, window_bounds = array<i64: 1, 32>}, {transform_indices = @transform_3, window_bounds = array<i64: 512, 32>}]} {
    %c0 = arith.constant 0 : index
    %c0_0 = arith.constant 0 : index
    %0 = vector.load %arg1[%c0, %c0_0] : memref<512x48xbf16, #tpu.memory_space<vmem>>, vector<512x48xbf16>
    %c0_1 = arith.constant 0 : index
    %c0_2 = arith.constant 0 : index
    %1 = vector.load %arg2[%c0_1, %c0_2] : memref<48x32xbf16, #tpu.memory_space<vmem>>, vector<48x32xbf16>
    %cst = arith.constant dense<0.000000e+00> : vector<512x32xf32>
    %2 = tpu.matmul %0, %1, %cst {dimension_numbers = #tpu.dot_dimension_numbers<[1], [0], [0], [1], [0, 0, 1, 1], [], []>} : vector<512x48xbf16>, vector<48x32xbf16>, vector<512x32xf32> -> vector<512x32xf32>
    %c0_3 = arith.constant 0 : index
    %c0_4 = arith.constant 0 : index
    %3 = vector.load %arg3[%c0_3, %c0_4] : memref<1x32xf32, #tpu.memory_space<vmem>>, vector<1x32xf32>
    %4 = vector.broadcast %3 : vector<1x32xf32> to vector<512x32xf32>
    %5 = arith.addf %2, %4 : vector<512x32xf32>
    %cst_5 = arith.constant 0.000000e+00 : f32
    %6 = vector.broadcast %cst_5 : f32 to vector<512x32xf32>
    %7 = arith.maximumf %5, %6 : vector<512x32xf32>
    %8 = arith.truncf %7 : vector<512x32xf32> to vector<512x32xbf16>
    %c0_6 = arith.constant 0 : index
    %c0_7 = arith.constant 0 : index
    %9 = vector.load %arg4[%c0_6, %c0_7] : memref<512x32xbf16, #tpu.memory_space<vmem>>, vector<512x32xbf16>
    tpu.vector_store %arg4[%c0_6, %c0_7], %8 {strides = array<i32>} : memref<512x32xbf16, #tpu.memory_space<vmem>>, vector<512x32xbf16>,
    return
  }
  func.func @transform_0(%arg0: i32) -> (i32, i32) {
    %c0_i32 = arith.constant 0 : i32
    %c0_i32_0 = arith.constant 0 : i32
    return %arg0, %c0_i32 : i32, i32
  }
  func.func @transform_1(%arg0: i32) -> (i32, i32) {
    %c0_i32 = arith.constant 0 : i32
    %c0_i32_0 = arith.constant 0 : i32
    %c0_i32_1 = arith.constant 0 : i32
    return %c0_i32, %c0_i32_0 : i32, i32
  }
  func.func @transform_2(%arg0: i32) -> (i32, i32) {
    %c0_i32 = arith.constant 0 : i32
    %c0_i32_0 = arith.constant 0 : i32
    %c0_i32_1 = arith.constant 0 : i32
    return %c0_i32, %c0_i32_0 : i32, i32
  }
  func.func @transform_3(%arg0: i32) -> (i32, i32) {
    %c0_i32 = arith.constant 0 : i32
    %c0_i32_0 = arith.constant 0 : i32
    return %arg0, %c0_i32 : i32, i32
  }
}

module attributes {stable_mosaic.version = 11 : i64} {
  func.func @_matmul_bias_act_kernel(%arg0: i32, %arg1: memref<256x512xbf16, #tpu.memory_space<vmem>>, %arg2: memref<512x32xbf16, #tpu.memory_space<vmem>>, %arg3: memref<1x32xf32, #tpu.memory_space<vmem>>, %arg4: memref<256x32xbf16, #tpu.memory_space<vmem>>) attributes {dimension_semantics = [#tpu.dimension_semantics<parallel>], iteration_bounds = array<i64: 2>, scalar_prefetch = 0 : i64, scratch_operands = 0 : i64, tpu.core_type = #tpu.core_type<tc>, window_params = [{transform_indices = @transform_0, window_bounds = array<i64: 256, 512>}, {pipeline_mode = #tpu.pipeline_mode<synchronous>, transform_indices = @transform_1, window_bounds = array<i64: 512, 32>}, {pipeline_mode = #tpu.pipeline_mode<synchronous>, transform_indices = @transform_2, window_bounds = array<i64: 1, 32>}, {transform_indices = @transform_3, window_bounds = array<i64: 256, 32>}]} {
    %c0 = arith.constant 0 : index
    %c0_0 = arith.constant 0 : index
    %0 = vector.load %arg1[%c0, %c0_0] : memref<256x512xbf16, #tpu.memory_space<vmem>>, vector<256x512xbf16>
    %c0_1 = arith.constant 0 : index
    %c0_2 = arith.constant 0 : index
    %1 = vector.load %arg2[%c0_1, %c0_2] : memref<512x32xbf16, #tpu.memory_space<vmem>>, vector<512x32xbf16>
    %cst = arith.constant dense<0.000000e+00> : vector<256x32xf32>
    %2 = tpu.matmul %0, %1, %cst {dimension_numbers = #tpu.dot_dimension_numbers<[1], [0], [0], [1], [0, 0, 1, 1], [], []>} : vector<256x512xbf16>, vector<512x32xbf16>, vector<256x32xf32> -> vector<256x32xf32>
    %c0_3 = arith.constant 0 : index
    %c0_4 = arith.constant 0 : index
    %3 = vector.load %arg3[%c0_3, %c0_4] : memref<1x32xf32, #tpu.memory_space<vmem>>, vector<1x32xf32>
    %4 = vector.broadcast %3 : vector<1x32xf32> to vector<256x32xf32>
    %5 = arith.addf %2, %4 : vector<256x32xf32>
    %cst_5 = arith.constant 0.000000e+00 : f32
    %6 = vector.broadcast %cst_5 : f32 to vector<256x32xf32>
    %7 = arith.maximumf %5, %6 : vector<256x32xf32>
    %8 = arith.truncf %7 : vector<256x32xf32> to vector<256x32xbf16>
    %c0_6 = arith.constant 0 : index
    %c0_7 = arith.constant 0 : index
    %9 = vector.load %arg4[%c0_6, %c0_7] : memref<256x32xbf16, #tpu.memory_space<vmem>>, vector<256x32xbf16>
    tpu.vector_store %arg4[%c0_6, %c0_7], %8 {strides = array<i32>} : memref<256x32xbf16, #tpu.memory_space<vmem>>, vector<256x32xbf16>,
    return
  }
  func.func @transform_0(%arg0: i32) -> (i32, i32) {
    %c0_i32 = arith.constant 0 : i32
    %c0_i32_0 = arith.constant 0 : i32
    return %arg0, %c0_i32 : i32, i32
  }
  func.func @transform_1(%arg0: i32) -> (i32, i32) {
    %c0_i32 = arith.constant 0 : i32
    %c0_i32_0 = arith.constant 0 : i32
    %c0_i32_1 = arith.constant 0 : i32
    return %c0_i32, %c0_i32_0 : i32, i32
  }
  func.func @transform_2(%arg0: i32) -> (i32, i32) {
    %c0_i32 = arith.constant 0 : i32
    %c0_i32_0 = arith.constant 0 : i32
    %c0_i32_1 = arith.constant 0 : i32
    return %c0_i32, %c0_i32_0 : i32, i32
  }
  func.func @transform_3(%arg0: i32) -> (i32, i32) {
    %c0_i32 = arith.constant 0 : i32
    %c0_i32_0 = arith.constant 0 : i32
    return %arg0, %c0_i32 : i32, i32
  }
}

module attributes {stable_mosaic.version = 11 : i64} {
  func.func @_matmul_bias_act_kernel(%arg0: i32, %arg1: memref<128x512xbf16, #tpu.memory_space<vmem>>, %arg2: memref<512x64xbf16, #tpu.memory_space<vmem>>, %arg3: memref<1x64xf32, #tpu.memory_space<vmem>>, %arg4: memref<128x64xbf16, #tpu.memory_space<vmem>>) attributes {dimension_semantics = [#tpu.dimension_semantics<parallel>], iteration_bounds = array<i64: 1>, scalar_prefetch = 0 : i64, scratch_operands = 0 : i64, tpu.core_type = #tpu.core_type<tc>, window_params = [{transform_indices = @transform_0, window_bounds = array<i64: 128, 512>}, {pipeline_mode = #tpu.pipeline_mode<synchronous>, transform_indices = @transform_1, window_bounds = array<i64: 512, 64>}, {pipeline_mode = #tpu.pipeline_mode<synchronous>, transform_indices = @transform_2, window_bounds = array<i64: 1, 64>}, {transform_indices = @transform_3, window_bounds = array<i64: 128, 64>}]} {
    %c0 = arith.constant 0 : index
    %c0_0 = arith.constant 0 : index
    %0 = vector.load %arg1[%c0, %c0_0] : memref<128x512xbf16, #tpu.memory_space<vmem>>, vector<128x512xbf16>
    %c0_1 = arith.constant 0 : index
    %c0_2 = arith.constant 0 : index
    %1 = vector.load %arg2[%c0_1, %c0_2] : memref<512x64xbf16, #tpu.memory_space<vmem>>, vector<512x64xbf16>
    %cst = arith.constant dense<0.000000e+00> : vector<128x64xf32>
    %2 = tpu.matmul %0, %1, %cst {dimension_numbers = #tpu.dot_dimension_numbers<[1], [0], [0], [1], [0, 0, 1, 1], [], []>} : vector<128x512xbf16>, vector<512x64xbf16>, vector<128x64xf32> -> vector<128x64xf32>
    %c0_3 = arith.constant 0 : index
    %c0_4 = arith.constant 0 : index
    %3 = vector.load %arg3[%c0_3, %c0_4] : memref<1x64xf32, #tpu.memory_space<vmem>>, vector<1x64xf32>
    %4 = vector.broadcast %3 : vector<1x64xf32> to vector<128x64xf32>
    %5 = arith.addf %2, %4 : vector<128x64xf32>
    %cst_5 = arith.constant 0.000000e+00 : f32
    %6 = vector.broadcast %cst_5 : f32 to vector<128x64xf32>
    %7 = arith.maximumf %5, %6 : vector<128x64xf32>
    %8 = arith.truncf %7 : vector<128x64xf32> to vector<128x64xbf16>
    %c0_6 = arith.constant 0 : index
    %c0_7 = arith.constant 0 : index
    %9 = vector.load %arg4[%c0_6, %c0_7] : memref<128x64xbf16, #tpu.memory_space<vmem>>, vector<128x64xbf16>
    tpu.vector_store %arg4[%c0_6, %c0_7], %8 {strides = array<i32>} : memref<128x64xbf16, #tpu.memory_space<vmem>>, vector<128x64xbf16>,
    return
  }
  func.func @transform_0(%arg0: i32) -> (i32, i32) {
    %c0_i32 = arith.constant 0 : i32
    %c0_i32_0 = arith.constant 0 : i32
    return %arg0, %c0_i32 : i32, i32
  }
  func.func @transform_1(%arg0: i32) -> (i32, i32) {
    %c0_i32 = arith.constant 0 : i32
    %c0_i32_0 = arith.constant 0 : i32
    %c0_i32_1 = arith.constant 0 : i32
    return %c0_i32, %c0_i32_0 : i32, i32
  }
  func.func @transform_2(%arg0: i32) -> (i32, i32) {
    %c0_i32 = arith.constant 0 : i32
    %c0_i32_0 = arith.constant 0 : i32
    %c0_i32_1 = arith.constant 0 : i32
    return %c0_i32, %c0_i32_0 : i32, i32
  }
  func.func @transform_3(%arg0: i32) -> (i32, i32) {
    %c0_i32 = arith.constant 0 : i32
    %c0_i32_0 = arith.constant 0 : i32
    return %arg0, %c0_i32 : i32, i32
  }
}

module attributes {stable_mosaic.version = 11 : i64} {
  func.func @_matmul_bias_act_kernel(%arg0: i32, %arg1: memref<32x1024xbf16, #tpu.memory_space<vmem>>, %arg2: memref<1024x64xbf16, #tpu.memory_space<vmem>>, %arg3: memref<1x64xf32, #tpu.memory_space<vmem>>, %arg4: memref<32x64xbf16, #tpu.memory_space<vmem>>) attributes {dimension_semantics = [#tpu.dimension_semantics<parallel>], iteration_bounds = array<i64: 1>, scalar_prefetch = 0 : i64, scratch_operands = 0 : i64, tpu.core_type = #tpu.core_type<tc>, window_params = [{transform_indices = @transform_0, window_bounds = array<i64: 32, 1024>}, {pipeline_mode = #tpu.pipeline_mode<synchronous>, transform_indices = @transform_1, window_bounds = array<i64: 1024, 64>}, {pipeline_mode = #tpu.pipeline_mode<synchronous>, transform_indices = @transform_2, window_bounds = array<i64: 1, 64>}, {transform_indices = @transform_3, window_bounds = array<i64: 32, 64>}]} {
    %c0 = arith.constant 0 : index
    %c0_0 = arith.constant 0 : index
    %0 = vector.load %arg1[%c0, %c0_0] : memref<32x1024xbf16, #tpu.memory_space<vmem>>, vector<32x1024xbf16>
    %c0_1 = arith.constant 0 : index
    %c0_2 = arith.constant 0 : index
    %1 = vector.load %arg2[%c0_1, %c0_2] : memref<1024x64xbf16, #tpu.memory_space<vmem>>, vector<1024x64xbf16>
    %cst = arith.constant dense<0.000000e+00> : vector<32x64xf32>
    %2 = tpu.matmul %0, %1, %cst {dimension_numbers = #tpu.dot_dimension_numbers<[1], [0], [0], [1], [0, 0, 1, 1], [], []>} : vector<32x1024xbf16>, vector<1024x64xbf16>, vector<32x64xf32> -> vector<32x64xf32>
    %c0_3 = arith.constant 0 : index
    %c0_4 = arith.constant 0 : index
    %3 = vector.load %arg3[%c0_3, %c0_4] : memref<1x64xf32, #tpu.memory_space<vmem>>, vector<1x64xf32>
    %4 = vector.broadcast %3 : vector<1x64xf32> to vector<32x64xf32>
    %5 = arith.addf %2, %4 : vector<32x64xf32>
    %cst_5 = arith.constant 0.000000e+00 : f32
    %6 = vector.broadcast %cst_5 : f32 to vector<32x64xf32>
    %7 = arith.maximumf %5, %6 : vector<32x64xf32>
    %8 = arith.truncf %7 : vector<32x64xf32> to vector<32x64xbf16>
    %c0_6 = arith.constant 0 : index
    %c0_7 = arith.constant 0 : index
    %9 = vector.load %arg4[%c0_6, %c0_7] : memref<32x64xbf16, #tpu.memory_space<vmem>>, vector<32x64xbf16>
    tpu.vector_store %arg4[%c0_6, %c0_7], %8 {strides = array<i32>} : memref<32x64xbf16, #tpu.memory_space<vmem>>, vector<32x64xbf16>,
    return
  }
  func.func @transform_0(%arg0: i32) -> (i32, i32) {
    %c0_i32 = arith.constant 0 : i32
    %c0_i32_0 = arith.constant 0 : i32
    return %arg0, %c0_i32 : i32, i32
  }
  func.func @transform_1(%arg0: i32) -> (i32, i32) {
    %c0_i32 = arith.constant 0 : i32
    %c0_i32_0 = arith.constant 0 : i32
    %c0_i32_1 = arith.constant 0 : i32
    return %c0_i32, %c0_i32_0 : i32, i32
  }
  func.func @transform_2(%arg0: i32) -> (i32, i32) {
    %c0_i32 = arith.constant 0 : i32
    %c0_i32_0 = arith.constant 0 : i32
    %c0_i32_1 = arith.constant 0 : i32
    return %c0_i32, %c0_i32_0 : i32, i32
  }
  func.func @transform_3(%arg0: i32) -> (i32, i32) {
    %c0_i32 = arith.constant 0 : i32
    %c0_i32_0 = arith.constant 0 : i32
    return %arg0, %c0_i32 : i32, i32
  }
}

module attributes {stable_mosaic.version = 11 : i64} {
  func.func @_bottleneck_kernel(%arg0: memref<2x1024xbf16, #tpu.memory_space<vmem>>, %arg1: memref<1024x256xbf16, #tpu.memory_space<vmem>>, %arg2: memref<1x256xf32, #tpu.memory_space<vmem>>, %arg3: memref<256x16xbf16, #tpu.memory_space<vmem>>, %arg4: memref<1x16xf32, #tpu.memory_space<vmem>>, %arg5: memref<256x16xbf16, #tpu.memory_space<vmem>>, %arg6: memref<1x16xf32, #tpu.memory_space<vmem>>, %arg7: memref<2x16xf32, #tpu.memory_space<vmem>>, %arg8: memref<16x256xbf16, #tpu.memory_space<vmem>>, %arg9: memref<1x256xf32, #tpu.memory_space<vmem>>, %arg10: memref<256x1024xbf16, #tpu.memory_space<vmem>>, %arg11: memref<1x1024xf32, #tpu.memory_space<vmem>>, %arg12: memref<2x16xf32, #tpu.memory_space<vmem>>, %arg13: memref<2x16xf32, #tpu.memory_space<vmem>>, %arg14: memref<2x1024xbf16, #tpu.memory_space<vmem>>) attributes {dimension_semantics = [], scalar_prefetch = 0 : i64, scratch_operands = 0 : i64, tpu.core_type = #tpu.core_type<tc>} {
    %c0 = arith.constant 0 : index
    %c0_0 = arith.constant 0 : index
    %0 = vector.load %arg0[%c0, %c0_0] : memref<2x1024xbf16, #tpu.memory_space<vmem>>, vector<2x1024xbf16>
    %c0_1 = arith.constant 0 : index
    %c0_2 = arith.constant 0 : index
    %1 = vector.load %arg1[%c0_1, %c0_2] : memref<1024x256xbf16, #tpu.memory_space<vmem>>, vector<1024x256xbf16>
    %cst = arith.constant dense<0.000000e+00> : vector<2x256xf32>
    %2 = tpu.matmul %0, %1, %cst {dimension_numbers = #tpu.dot_dimension_numbers<[1], [0], [0], [1], [0, 0, 1, 1], [], []>} : vector<2x1024xbf16>, vector<1024x256xbf16>, vector<2x256xf32> -> vector<2x256xf32>
    %c0_3 = arith.constant 0 : index
    %c0_4 = arith.constant 0 : index
    %3 = vector.load %arg2[%c0_3, %c0_4] : memref<1x256xf32, #tpu.memory_space<vmem>>, vector<1x256xf32>
    %4 = vector.broadcast %3 : vector<1x256xf32> to vector<2x256xf32>
    %5 = arith.addf %2, %4 : vector<2x256xf32>
    %cst_5 = arith.constant 0.000000e+00 : f32
    %6 = vector.broadcast %cst_5 : f32 to vector<2x256xf32>
    %7 = arith.maximumf %5, %6 : vector<2x256xf32>
    %8 = arith.truncf %7 : vector<2x256xf32> to vector<2x256xbf16>
    %c0_6 = arith.constant 0 : index
    %c0_7 = arith.constant 0 : index
    %9 = vector.load %arg3[%c0_6, %c0_7] : memref<256x16xbf16, #tpu.memory_space<vmem>>, vector<256x16xbf16>
    %cst_8 = arith.constant dense<0.000000e+00> : vector<2x16xf32>
    %10 = tpu.matmul %8, %9, %cst_8 {dimension_numbers = #tpu.dot_dimension_numbers<[1], [0], [0], [1], [0, 0, 1, 1], [], []>} : vector<2x256xbf16>, vector<256x16xbf16>, vector<2x16xf32> -> vector<2x16xf32>
    %c0_9 = arith.constant 0 : index
    %c0_10 = arith.constant 0 : index
    %11 = vector.load %arg4[%c0_9, %c0_10] : memref<1x16xf32, #tpu.memory_space<vmem>>, vector<1x16xf32>
    %12 = vector.broadcast %11 : vector<1x16xf32> to vector<2x16xf32>
    %13 = arith.addf %10, %12 : vector<2x16xf32>
    %c0_11 = arith.constant 0 : index
    %c0_12 = arith.constant 0 : index
    %14 = vector.load %arg5[%c0_11, %c0_12] : memref<256x16xbf16, #tpu.memory_space<vmem>>, vector<256x16xbf16>
    %cst_13 = arith.constant dense<0.000000e+00> : vector<2x16xf32>
    %15 = tpu.matmul %8, %14, %cst_13 {dimension_numbers = #tpu.dot_dimension_numbers<[1], [0], [0], [1], [0, 0, 1, 1], [], []>} : vector<2x256xbf16>, vector<256x16xbf16>, vector<2x16xf32> -> vector<2x16xf32>
    %c0_14 = arith.constant 0 : index
    %c0_15 = arith.constant 0 : index
    %16 = vector.load %arg6[%c0_14, %c0_15] : memref<1x16xf32, #tpu.memory_space<vmem>>, vector<1x16xf32>
    %17 = vector.broadcast %16 : vector<1x16xf32> to vector<2x16xf32>
    %18 = arith.addf %15, %17 : vector<2x16xf32>
    %19 = math.exp %18 : vector<2x16xf32>
    %c0_16 = arith.constant 0 : index
    %c0_17 = arith.constant 0 : index
    %20 = vector.load %arg7[%c0_16, %c0_17] : memref<2x16xf32, #tpu.memory_space<vmem>>, vector<2x16xf32>
    %21 = arith.mulf %19, %20 : vector<2x16xf32>
    %22 = arith.addf %13, %21 : vector<2x16xf32>
    %23 = arith.truncf %22 : vector<2x16xf32> to vector<2x16xbf16>
    %c0_18 = arith.constant 0 : index
    %c0_19 = arith.constant 0 : index
    %24 = vector.load %arg8[%c0_18, %c0_19] : memref<16x256xbf16, #tpu.memory_space<vmem>>, vector<16x256xbf16>
    %cst_20 = arith.constant dense<0.000000e+00> : vector<2x256xf32>
    %25 = tpu.matmul %23, %24, %cst_20 {dimension_numbers = #tpu.dot_dimension_numbers<[1], [0], [0], [1], [0, 0, 1, 1], [], []>} : vector<2x16xbf16>, vector<16x256xbf16>, vector<2x256xf32> -> vector<2x256xf32>
    %c0_21 = arith.constant 0 : index
    %c0_22 = arith.constant 0 : index
    %26 = vector.load %arg9[%c0_21, %c0_22] : memref<1x256xf32, #tpu.memory_space<vmem>>, vector<1x256xf32>
    %27 = vector.broadcast %26 : vector<1x256xf32> to vector<2x256xf32>
    %28 = arith.addf %25, %27 : vector<2x256xf32>
    %cst_23 = arith.constant 0.000000e+00 : f32
    %29 = vector.broadcast %cst_23 : f32 to vector<2x256xf32>
    %30 = arith.maximumf %28, %29 : vector<2x256xf32>
    %31 = arith.truncf %30 : vector<2x256xf32> to vector<2x256xbf16>
    %c0_24 = arith.constant 0 : index
    %c0_25 = arith.constant 0 : index
    %32 = vector.load %arg10[%c0_24, %c0_25] : memref<256x1024xbf16, #tpu.memory_space<vmem>>, vector<256x1024xbf16>
    %cst_26 = arith.constant dense<0.000000e+00> : vector<2x1024xf32>
    %33 = tpu.matmul %31, %32, %cst_26 {dimension_numbers = #tpu.dot_dimension_numbers<[1], [0], [0], [1], [0, 0, 1, 1], [], []>} : vector<2x256xbf16>, vector<256x1024xbf16>, vector<2x1024xf32> -> vector<2x1024xf32>
    %c0_27 = arith.constant 0 : index
    %c0_28 = arith.constant 0 : index
    %34 = vector.load %arg11[%c0_27, %c0_28] : memref<1x1024xf32, #tpu.memory_space<vmem>>, vector<1x1024xf32>
    %35 = vector.broadcast %34 : vector<1x1024xf32> to vector<2x1024xf32>
    %36 = arith.addf %33, %35 : vector<2x1024xf32>
    %cst_29 = arith.constant 0.000000e+00 : f32
    %37 = vector.broadcast %cst_29 : f32 to vector<2x1024xf32>
    %38 = arith.maximumf %36, %37 : vector<2x1024xf32>
    %c0_30 = arith.constant 0 : index
    %c0_31 = arith.constant 0 : index
    %39 = vector.load %arg12[%c0_30, %c0_31] : memref<2x16xf32, #tpu.memory_space<vmem>>, vector<2x16xf32>
    tpu.vector_store %arg12[%c0_30, %c0_31], %13 {strides = array<i32>} : memref<2x16xf32, #tpu.memory_space<vmem>>, vector<2x16xf32>,
    %c0_32 = arith.constant 0 : index
    %c0_33 = arith.constant 0 : index
    %40 = vector.load %arg13[%c0_32, %c0_33] : memref<2x16xf32, #tpu.memory_space<vmem>>, vector<2x16xf32>
    tpu.vector_store %arg13[%c0_32, %c0_33], %18 {strides = array<i32>} : memref<2x16xf32, #tpu.memory_space<vmem>>, vector<2x16xf32>,
    %41 = arith.truncf %38 : vector<2x1024xf32> to vector<2x1024xbf16>
    %c0_34 = arith.constant 0 : index
    %c0_35 = arith.constant 0 : index
    %42 = vector.load %arg14[%c0_34, %c0_35] : memref<2x1024xbf16, #tpu.memory_space<vmem>>, vector<2x1024xbf16>
    tpu.vector_store %arg14[%c0_34, %c0_35], %41 {strides = array<i32>} : memref<2x1024xbf16, #tpu.memory_space<vmem>>, vector<2x1024xbf16>,
    return
  }
}

module attributes {stable_mosaic.version = 11 : i64} {
  func.func @_matmul_bias_act_kernel(%arg0: i32, %arg1: memref<32x576xbf16, #tpu.memory_space<vmem>>, %arg2: memref<576x256xbf16, #tpu.memory_space<vmem>>, %arg3: memref<1x256xf32, #tpu.memory_space<vmem>>, %arg4: memref<32x256xbf16, #tpu.memory_space<vmem>>) attributes {dimension_semantics = [#tpu.dimension_semantics<parallel>], iteration_bounds = array<i64: 1>, scalar_prefetch = 0 : i64, scratch_operands = 0 : i64, tpu.core_type = #tpu.core_type<tc>, window_params = [{transform_indices = @transform_0, window_bounds = array<i64: 32, 576>}, {pipeline_mode = #tpu.pipeline_mode<synchronous>, transform_indices = @transform_1, window_bounds = array<i64: 576, 256>}, {pipeline_mode = #tpu.pipeline_mode<synchronous>, transform_indices = @transform_2, window_bounds = array<i64: 1, 256>}, {transform_indices = @transform_3, window_bounds = array<i64: 32, 256>}]} {
    %c0 = arith.constant 0 : index
    %c0_0 = arith.constant 0 : index
    %0 = vector.load %arg1[%c0, %c0_0] : memref<32x576xbf16, #tpu.memory_space<vmem>>, vector<32x576xbf16>
    %c0_1 = arith.constant 0 : index
    %c0_2 = arith.constant 0 : index
    %1 = vector.load %arg2[%c0_1, %c0_2] : memref<576x256xbf16, #tpu.memory_space<vmem>>, vector<576x256xbf16>
    %cst = arith.constant dense<0.000000e+00> : vector<32x256xf32>
    %2 = tpu.matmul %0, %1, %cst {dimension_numbers = #tpu.dot_dimension_numbers<[1], [0], [0], [1], [0, 0, 1, 1], [], []>} : vector<32x576xbf16>, vector<576x256xbf16>, vector<32x256xf32> -> vector<32x256xf32>
    %c0_3 = arith.constant 0 : index
    %c0_4 = arith.constant 0 : index
    %3 = vector.load %arg3[%c0_3, %c0_4] : memref<1x256xf32, #tpu.memory_space<vmem>>, vector<1x256xf32>
    %4 = vector.broadcast %3 : vector<1x256xf32> to vector<32x256xf32>
    %5 = arith.addf %2, %4 : vector<32x256xf32>
    %cst_5 = arith.constant 0.000000e+00 : f32
    %6 = vector.broadcast %cst_5 : f32 to vector<32x256xf32>
    %7 = arith.maximumf %5, %6 : vector<32x256xf32>
    %8 = arith.truncf %7 : vector<32x256xf32> to vector<32x256xbf16>
    %c0_6 = arith.constant 0 : index
    %c0_7 = arith.constant 0 : index
    %9 = vector.load %arg4[%c0_6, %c0_7] : memref<32x256xbf16, #tpu.memory_space<vmem>>, vector<32x256xbf16>
    tpu.vector_store %arg4[%c0_6, %c0_7], %8 {strides = array<i32>} : memref<32x256xbf16, #tpu.memory_space<vmem>>, vector<32x256xbf16>,
    return
  }
  func.func @transform_0(%arg0: i32) -> (i32, i32) {
    %c0_i32 = arith.constant 0 : i32
    %c0_i32_0 = arith.constant 0 : i32
    return %arg0, %c0_i32 : i32, i32
  }
  func.func @transform_1(%arg0: i32) -> (i32, i32) {
    %c0_i32 = arith.constant 0 : i32
    %c0_i32_0 = arith.constant 0 : i32
    %c0_i32_1 = arith.constant 0 : i32
    return %c0_i32, %c0_i32_0 : i32, i32
  }
  func.func @transform_2(%arg0: i32) -> (i32, i32) {
    %c0_i32 = arith.constant 0 : i32
    %c0_i32_0 = arith.constant 0 : i32
    %c0_i32_1 = arith.constant 0 : i32
    return %c0_i32, %c0_i32_0 : i32, i32
  }
  func.func @transform_3(%arg0: i32) -> (i32, i32) {
    %c0_i32 = arith.constant 0 : i32
    %c0_i32_0 = arith.constant 0 : i32
    return %arg0, %c0_i32 : i32, i32
  }
}

module attributes {stable_mosaic.version = 11 : i64} {
  func.func @_matmul_bias_act_kernel(%arg0: i32, %arg1: memref<128x576xbf16, #tpu.memory_space<vmem>>, %arg2: memref<576x128xbf16, #tpu.memory_space<vmem>>, %arg3: memref<1x128xf32, #tpu.memory_space<vmem>>, %arg4: memref<128x128xbf16, #tpu.memory_space<vmem>>) attributes {dimension_semantics = [#tpu.dimension_semantics<parallel>], iteration_bounds = array<i64: 1>, scalar_prefetch = 0 : i64, scratch_operands = 0 : i64, tpu.core_type = #tpu.core_type<tc>, window_params = [{transform_indices = @transform_0, window_bounds = array<i64: 128, 576>}, {pipeline_mode = #tpu.pipeline_mode<synchronous>, transform_indices = @transform_1, window_bounds = array<i64: 576, 128>}, {pipeline_mode = #tpu.pipeline_mode<synchronous>, transform_indices = @transform_2, window_bounds = array<i64: 1, 128>}, {transform_indices = @transform_3, window_bounds = array<i64: 128, 128>}]} {
    %c0 = arith.constant 0 : index
    %c0_0 = arith.constant 0 : index
    %0 = vector.load %arg1[%c0, %c0_0] : memref<128x576xbf16, #tpu.memory_space<vmem>>, vector<128x576xbf16>
    %c0_1 = arith.constant 0 : index
    %c0_2 = arith.constant 0 : index
    %1 = vector.load %arg2[%c0_1, %c0_2] : memref<576x128xbf16, #tpu.memory_space<vmem>>, vector<576x128xbf16>
    %cst = arith.constant dense<0.000000e+00> : vector<128x128xf32>
    %2 = tpu.matmul %0, %1, %cst {dimension_numbers = #tpu.dot_dimension_numbers<[1], [0], [0], [1], [0, 0, 1, 1], [], []>} : vector<128x576xbf16>, vector<576x128xbf16>, vector<128x128xf32> -> vector<128x128xf32>
    %c0_3 = arith.constant 0 : index
    %c0_4 = arith.constant 0 : index
    %3 = vector.load %arg3[%c0_3, %c0_4] : memref<1x128xf32, #tpu.memory_space<vmem>>, vector<1x128xf32>
    %4 = vector.broadcast %3 : vector<1x128xf32> to vector<128x128xf32>
    %5 = arith.addf %2, %4 : vector<128x128xf32>
    %cst_5 = arith.constant 0.000000e+00 : f32
    %6 = vector.broadcast %cst_5 : f32 to vector<128x128xf32>
    %7 = arith.maximumf %5, %6 : vector<128x128xf32>
    %8 = arith.truncf %7 : vector<128x128xf32> to vector<128x128xbf16>
    %c0_6 = arith.constant 0 : index
    %c0_7 = arith.constant 0 : index
    %9 = vector.load %arg4[%c0_6, %c0_7] : memref<128x128xbf16, #tpu.memory_space<vmem>>, vector<128x128xbf16>
    tpu.vector_store %arg4[%c0_6, %c0_7], %8 {strides = array<i32>} : memref<128x128xbf16, #tpu.memory_space<vmem>>, vector<128x128xbf16>,
    return
  }
  func.func @transform_0(%arg0: i32) -> (i32, i32) {
    %c0_i32 = arith.constant 0 : i32
    %c0_i32_0 = arith.constant 0 : i32
    return %arg0, %c0_i32 : i32, i32
  }
  func.func @transform_1(%arg0: i32) -> (i32, i32) {
    %c0_i32 = arith.constant 0 : i32
    %c0_i32_0 = arith.constant 0 : i32
    %c0_i32_1 = arith.constant 0 : i32
    return %c0_i32, %c0_i32_0 : i32, i32
  }
  func.func @transform_2(%arg0: i32) -> (i32, i32) {
    %c0_i32 = arith.constant 0 : i32
    %c0_i32_0 = arith.constant 0 : i32
    %c0_i32_1 = arith.constant 0 : i32
    return %c0_i32, %c0_i32_0 : i32, i32
  }
  func.func @transform_3(%arg0: i32) -> (i32, i32) {
    %c0_i32 = arith.constant 0 : i32
    %c0_i32_0 = arith.constant 0 : i32
    return %arg0, %c0_i32 : i32, i32
  }
}

module attributes {stable_mosaic.version = 11 : i64} {
  func.func @_matmul_bias_act_kernel(%arg0: i32, %arg1: memref<256x288xbf16, #tpu.memory_space<vmem>>, %arg2: memref<288x128xbf16, #tpu.memory_space<vmem>>, %arg3: memref<1x128xf32, #tpu.memory_space<vmem>>, %arg4: memref<256x128xbf16, #tpu.memory_space<vmem>>) attributes {dimension_semantics = [#tpu.dimension_semantics<parallel>], iteration_bounds = array<i64: 2>, scalar_prefetch = 0 : i64, scratch_operands = 0 : i64, tpu.core_type = #tpu.core_type<tc>, window_params = [{transform_indices = @transform_0, window_bounds = array<i64: 256, 288>}, {pipeline_mode = #tpu.pipeline_mode<synchronous>, transform_indices = @transform_1, window_bounds = array<i64: 288, 128>}, {pipeline_mode = #tpu.pipeline_mode<synchronous>, transform_indices = @transform_2, window_bounds = array<i64: 1, 128>}, {transform_indices = @transform_3, window_bounds = array<i64: 256, 128>}]} {
    %c0 = arith.constant 0 : index
    %c0_0 = arith.constant 0 : index
    %0 = vector.load %arg1[%c0, %c0_0] : memref<256x288xbf16, #tpu.memory_space<vmem>>, vector<256x288xbf16>
    %c0_1 = arith.constant 0 : index
    %c0_2 = arith.constant 0 : index
    %1 = vector.load %arg2[%c0_1, %c0_2] : memref<288x128xbf16, #tpu.memory_space<vmem>>, vector<288x128xbf16>
    %cst = arith.constant dense<0.000000e+00> : vector<256x128xf32>
    %2 = tpu.matmul %0, %1, %cst {dimension_numbers = #tpu.dot_dimension_numbers<[1], [0], [0], [1], [0, 0, 1, 1], [], []>} : vector<256x288xbf16>, vector<288x128xbf16>, vector<256x128xf32> -> vector<256x128xf32>
    %c0_3 = arith.constant 0 : index
    %c0_4 = arith.constant 0 : index
    %3 = vector.load %arg3[%c0_3, %c0_4] : memref<1x128xf32, #tpu.memory_space<vmem>>, vector<1x128xf32>
    %4 = vector.broadcast %3 : vector<1x128xf32> to vector<256x128xf32>
    %5 = arith.addf %2, %4 : vector<256x128xf32>
    %cst_5 = arith.constant 0.000000e+00 : f32
    %6 = vector.broadcast %cst_5 : f32 to vector<256x128xf32>
    %7 = arith.maximumf %5, %6 : vector<256x128xf32>
    %8 = arith.truncf %7 : vector<256x128xf32> to vector<256x128xbf16>
    %c0_6 = arith.constant 0 : index
    %c0_7 = arith.constant 0 : index
    %9 = vector.load %arg4[%c0_6, %c0_7] : memref<256x128xbf16, #tpu.memory_space<vmem>>, vector<256x128xbf16>
    tpu.vector_store %arg4[%c0_6, %c0_7], %8 {strides = array<i32>} : memref<256x128xbf16, #tpu.memory_space<vmem>>, vector<256x128xbf16>,
    return
  }
  func.func @transform_0(%arg0: i32) -> (i32, i32) {
    %c0_i32 = arith.constant 0 : i32
    %c0_i32_0 = arith.constant 0 : i32
    return %arg0, %c0_i32 : i32, i32
  }
  func.func @transform_1(%arg0: i32) -> (i32, i32) {
    %c0_i32 = arith.constant 0 : i32
    %c0_i32_0 = arith.constant 0 : i32
    %c0_i32_1 = arith.constant 0 : i32
    return %c0_i32, %c0_i32_0 : i32, i32
  }
  func.func @transform_2(%arg0: i32) -> (i32, i32) {
    %c0_i32 = arith.constant 0 : i32
    %c0_i32_0 = arith.constant 0 : i32
    %c0_i32_1 = arith.constant 0 : i32
    return %c0_i32, %c0_i32_0 : i32, i32
  }
  func.func @transform_3(%arg0: i32) -> (i32, i32) {
    %c0_i32 = arith.constant 0 : i32
    %c0_i32_0 = arith.constant 0 : i32
    return %arg0, %c0_i32 : i32, i32
  }
}

module attributes {stable_mosaic.version = 11 : i64} {
  func.func @_matmul_bias_act_kernel(%arg0: i32, %arg1: memref<512x288xbf16, #tpu.memory_space<vmem>>, %arg2: memref<288x12xbf16, #tpu.memory_space<vmem>>, %arg3: memref<1x12xf32, #tpu.memory_space<vmem>>, %arg4: memref<512x12xf32, #tpu.memory_space<vmem>>) attributes {dimension_semantics = [#tpu.dimension_semantics<parallel>], iteration_bounds = array<i64: 4>, scalar_prefetch = 0 : i64, scratch_operands = 0 : i64, tpu.core_type = #tpu.core_type<tc>, window_params = [{transform_indices = @transform_0, window_bounds = array<i64: 512, 288>}, {pipeline_mode = #tpu.pipeline_mode<synchronous>, transform_indices = @transform_1, window_bounds = array<i64: 288, 12>}, {pipeline_mode = #tpu.pipeline_mode<synchronous>, transform_indices = @transform_2, window_bounds = array<i64: 1, 12>}, {transform_indices = @transform_3, window_bounds = array<i64: 512, 12>}]} {
    %c0 = arith.constant 0 : index
    %c0_0 = arith.constant 0 : index
    %0 = vector.load %arg1[%c0, %c0_0] : memref<512x288xbf16, #tpu.memory_space<vmem>>, vector<512x288xbf16>
    %c0_1 = arith.constant 0 : index
    %c0_2 = arith.constant 0 : index
    %1 = vector.load %arg2[%c0_1, %c0_2] : memref<288x12xbf16, #tpu.memory_space<vmem>>, vector<288x12xbf16>
    %cst = arith.constant dense<0.000000e+00> : vector<512x12xf32>
    %2 = tpu.matmul %0, %1, %cst {dimension_numbers = #tpu.dot_dimension_numbers<[1], [0], [0], [1], [0, 0, 1, 1], [], []>} : vector<512x288xbf16>, vector<288x12xbf16>, vector<512x12xf32> -> vector<512x12xf32>
    %c0_3 = arith.constant 0 : index
    %c0_4 = arith.constant 0 : index
    %3 = vector.load %arg3[%c0_3, %c0_4] : memref<1x12xf32, #tpu.memory_space<vmem>>, vector<1x12xf32>
    %4 = vector.broadcast %3 : vector<1x12xf32> to vector<512x12xf32>
    %5 = arith.addf %2, %4 : vector<512x12xf32>
    %c0_5 = arith.constant 0 : index
    %c0_6 = arith.constant 0 : index
    %6 = vector.load %arg4[%c0_5, %c0_6] : memref<512x12xf32, #tpu.memory_space<vmem>>, vector<512x12xf32>
    tpu.vector_store %arg4[%c0_5, %c0_6], %5 {strides = array<i32>} : memref<512x12xf32, #tpu.memory_space<vmem>>, vector<512x12xf32>,
    return
  }
  func.func @transform_0(%arg0: i32) -> (i32, i32) {
    %c0_i32 = arith.constant 0 : i32
    %c0_i32_0 = arith.constant 0 : i32
    return %arg0, %c0_i32 : i32, i32
  }
  func.func @transform_1(%arg0: i32) -> (i32, i32) {
    %c0_i32 = arith.constant 0 : i32
    %c0_i32_0 = arith.constant 0 : i32
    %c0_i32_1 = arith.constant 0 : i32
    return %c0_i32, %c0_i32_0 : i32, i32
  }
  func.func @transform_2(%arg0: i32) -> (i32, i32) {
    %c0_i32 = arith.constant 0 : i32
    %c0_i32_0 = arith.constant 0 : i32
    %c0_i32_1 = arith.constant 0 : i32
    return %c0_i32, %c0_i32_0 : i32, i32
  }
  func.func @transform_3(%arg0: i32) -> (i32, i32) {
    %c0_i32 = arith.constant 0 : i32
    %c0_i32_0 = arith.constant 0 : i32
    return %arg0, %c0_i32 : i32, i32
  }
}

</mosaic_0001>

<llo_original>
// kernel: vae_forward.9
$region0: #{vae_forward.9}
  #allocation0 [shape = 'u32[]', space=smem, size = 0x4, offset = 0x4, fixed_abs, tag = 'smem constant byte address 0x4 - core index']
  #allocation1 [shape = 'u32[144,128]{1,0:T(1,128)}', space=vmem, size = 0x12000, scoped, tag = 'internal scratch']
  %s0 = inlined_call_operand.vmem [shape: bf16[2048,48], index: 0, kind: input, shape index: {}]
  %s1 = inlined_call_operand.vmem [shape: bf16[48,32], index: 1, kind: input, shape index: {}]
  %s2 = inlined_call_operand.vmem [shape: f32[1,32], index: 2, kind: input, shape index: {}]
  %s3 = inlined_call_operand.vmem [shape: bf16[2048,32], index: 3, kind: output, shape index: {}]
  %s4 = sld [smem:[#allocation0]]
  $region45: #{vae_forward.9} parent=0
    _
  %s6 = ssub.s32 1, %s4
  %s7 = scalar_select 0, %s6, %s4
  loop: start=0, step=1, limit=6
  $region2: #{vae_forward.9} parent=0 // loop_pre_header
    _
  $region3: #{vae_forward.9} parent=0 // loop_header
    %s9 = sphi 0, %s13
    %p10 = scmp.ge.s32.totalorder %s9, 6
    %s19 = sphi 0, %s21
    %s22 = sphi 0, %s19
    %s23 = sphi 0, %s22
    %s39 = sphi 0, %s23
    %s43 = sphi 0, %s43
    %s45 = sphi 0, %s43
    %s46 = sphi 0, %s45
    %s60 = sphi 0, %s46
    %s64 = sphi 0, %s64
    %s66 = sphi 0, %s64
    %s67 = sphi 0, %s66
    %s81 = sphi 0, %s67
    %s87 = sphi 0, %s89
    %s90 = sphi 0, %s87
    %s91 = sphi 0, %s90
    %s107 = sphi 0, %s91
  $region4: #{vae_forward.9} parent=0 // loop_header_branch
    %12 = sbr.rel (%p10) target = $region8
  $region5: #{vae_forward.9} parent=0 // loop_body
    %s14 = ssub.s32 %s9, 1
    %s15 = ssub.s32 %s9, 2
    %s16 = sadd.s32 %s9, 1
    %s17 = ssub.s32 %s9, %s16
    %p18 = scmp.eq.s32.totalorder %s17, 0
    %s20 = sadd.s32 %s19, 1
    %s21 = scalar_select %p18, %s19, %s20
    %p24 = pneg %p18
    %p25 = scmp.eq.s32.totalorder %s9, 3
    %p26 = por %p24, %p25
    %p27 = scmp.ne.s32.totalorder %s19, %s22
    %p28 = scmp.eq.s32.totalorder %s9, 0
    %p29 = por %p27, %p28
    %p30 = scmp.ne.s32.totalorder %s19, %s22
    %p31 = scmp.eq.s32.totalorder %s14, 3
    %p32 = por %p30, %p31
    %p33 = scmp.ne.s32.totalorder %s22, %s23
    %p34 = scmp.eq.s32.totalorder %s14, 0
    %p35 = por %p33, %p34
    %p36 = scmp.ne.s32.totalorder %s22, %s23
    %p37 = scmp.eq.s32.totalorder %s15, 3
    %p38 = por %p36, %p37
    %p40 = scmp.ne.s32.totalorder %s23, %s39
    %p41 = scmp.eq.s32.totalorder %s15, 0
    %p42 = por %p40, %p41
    %s44 = sadd.s32 %s43, 1
    %p47 = scmp.eq.s32.totalorder %s9, 3
    %p48 = scmp.ne.s32.totalorder %s43, %s45
    %p49 = scmp.eq.s32.totalorder %s9, 0
    %p50 = por %p48, %p49
    %p51 = scmp.ne.s32.totalorder %s43, %s45
    %p52 = scmp.eq.s32.totalorder %s14, 3
    %p53 = por %p51, %p52
    %p54 = scmp.ne.s32.totalorder %s45, %s46
    %p55 = scmp.eq.s32.totalorder %s14, 0
    %p56 = por %p54, %p55
    %p57 = scmp.ne.s32.totalorder %s45, %s46
    %p58 = scmp.eq.s32.totalorder %s15, 3
    %p59 = por %p57, %p58
    %p61 = scmp.ne.s32.totalorder %s46, %s60
    %p62 = scmp.eq.s32.totalorder %s15, 0
    %p63 = por %p61, %p62
    %s65 = sadd.s32 %s64, 1
    %p68 = scmp.eq.s32.totalorder %s9, 3
    %p69 = scmp.ne.s32.totalorder %s64, %s66
    %p70 = scmp.eq.s32.totalorder %s9, 0
    %p71 = por %p69, %p70
    %p72 = scmp.ne.s32.totalorder %s64, %s66
    %p73 = scmp.eq.s32.totalorder %s14, 3
    %p74 = por %p72, %p73
    %p75 = scmp.ne.s32.totalorder %s66, %s67
    %p76 = scmp.eq.s32.totalorder %s14, 0
    %p77 = por %p75, %p76
    %p78 = scmp.ne.s32.totalorder %s66, %s67
    %p79 = scmp.eq.s32.totalorder %s15, 3
    %p80 = por %p78, %p79
    %p82 = scmp.ne.s32.totalorder %s67, %s81
    %p83 = scmp.eq.s32.totalorder %s15, 0
    %p84 = por %p82, %p83
    %s85 = ssub.s32 %s9, %s16
    %p86 = scmp.eq.s32.totalorder %s85, 0
    %s88 = sadd.s32 %s87, 1
    %s89 = scalar_select %p86, %s87, %s88
    %p92 = pneg %p86
    %p93 = scmp.eq.s32.totalorder %s9, 3
    %p94 = por %p92, %p93
    %p95 = scmp.ne.s32.totalorder %s87, %s90
    %p96 = scmp.eq.s32.totalorder %s9, 0
    %p97 = por %p95, %p96
    %p98 = scmp.ne.s32.totalorder %s87, %s90
    %p99 = scmp.eq.s32.totalorder %s14, 3
    %p100 = por %p98, %p99
    %p101 = scmp.ne.s32.totalorder %s90, %s91
    %p102 = scmp.eq.s32.totalorder %s14, 0
    %p103 = por %p101, %p102
    %p104 = scmp.ne.s32.totalorder %s90, %s91
    %p105 = scmp.eq.s32.totalorder %s15, 3
    %p106 = por %p104, %p105
    %p108 = scmp.ne.s32.totalorder %s91, %s107
    %p109 = scmp.eq.s32.totalorder %s15, 0
    %p110 = por %p108, %p109
    %p111 = scmp.le.s32.totalorder 1, %s9
    %p112 = scmp.lt.s32.totalorder %s9, 5
    %p113 = pnand %p111, %p112
    %p114 = pneg %p113
    // Predicated region
    $region9: #{vae_forward.9} parent=5 // pred_check
      _
    $region10: #{vae_forward.9} parent=5 // pred_check_branch
      %116 = sbr.rel (%p113) target = $region12
    $region11: #{vae_forward.9} parent=5 // pred_region
      %s117 = ssub.s32 %s9, 1
      // Predicated region
      $region13: #{vae_forward.9} parent=11 // pred_check
        %p118 = pneg %p56
      $region14: #{vae_forward.9} parent=11 // pred_check_branch
        %120 = sbr.rel (%p118) target = $region16
      $region15: #{vae_forward.9} parent=11 // pred_region
        _
      $region16: #{vae_forward.9} parent=11 // pred_fallthru
        _
      // Predicated region
      $region17: #{vae_forward.9} parent=11 // pred_check
        %p121 = pneg %p77
      $region18: #{vae_forward.9} parent=11 // pred_check_branch
        %123 = sbr.rel (%p121) target = $region20
      $region19: #{vae_forward.9} parent=11 // pred_region
        _
      $region20: #{vae_forward.9} parent=11 // pred_fallthru
        _
    $region12: #{vae_forward.9} parent=5 // pred_fallthru
      _
    %p124 = scmp.lt.s32.totalorder %s9, 4
    // Predicated region
    $region21: #{vae_forward.9} parent=5 // pred_check
      %p125 = pneg %p124
    $region22: #{vae_forward.9} parent=5 // pred_check_branch
      %127 = sbr.rel (%p125) target = $region24
    $region23: #{vae_forward.9} parent=5 // pred_region
      // Predicated region
      $region25: #{vae_forward.9} parent=23 // pred_check
        %p128 = pneg %p29
      $region26: #{vae_forward.9} parent=23 // pred_check_branch
        %130 = sbr.rel (%p128) target = $region28
      $region27: #{vae_forward.9} parent=23 // pred_region
        %s131 = smul.u32 64, %s9
        %p132 = scmp.lt.s32.totalorder %s131, 255
        %s133 = scalar_select %p132, %s131, 255
        %s134 = smul.addr %s133, 4
        %s135 = scalar_lea.vmem %s0, %s134
        %s136 = smul.u32 64, %s9
      $region28: #{vae_forward.9} parent=23 // pred_fallthru
        _
    $region24: #{vae_forward.9} parent=5 // pred_fallthru
      _
    %p137 = scmp.le.s32.totalorder 1, %s9
    %p138 = scmp.lt.s32.totalorder %s9, 5
    %p139 = pnand %p137, %p138
    %p140 = pneg %p139
    // Predicated region
    $region29: #{vae_forward.9} parent=5 // pred_check
      _
    $region30: #{vae_forward.9} parent=5 // pred_check_branch
      %142 = sbr.rel (%p139) target = $region32
    $region31: #{vae_forward.9} parent=5 // pred_region
      %s143 = ssub.s32 %s9, 1
      %s144 = smul.u32 64, %s14
      %p145 = scmp.lt.s32.totalorder %s144, 255
      %s146 = scalar_select %p145, %s144, 255
      %s147 = smul.addr %s146, 4
      %s148 = scalar_lea.vmem %s0, %s147
      %p149 = pneg %p35
      %p150 = pneg %p32
      %p151 = pneg %p56
      %p152 = pneg %p53
      %p153 = pneg %p77
      %p154 = pneg %p74
      %p155 = pneg %p103
      %p156 = pneg %p100
      %s157 = smul.u32 64, %s14
      %p158 = scmp.lt.s32.totalorder %s157, 255
      %s159 = scalar_select %p158, %s157, 255
      %s160 = smul.addr %s159, 4
      %s161 = scalar_lea.vmem %s3, %s160
      %s162 = smul.u32 64, %s14
      %p163 = scmp.lt.s32.totalorder %s162, 255
      %s164 = scalar_select %p163, %s162, 255
      %s165 = smul.addr %s164, 4
      %s166 = scalar_lea.vmem %s0, %s165
      %s167 = smul.u32 64, %s14
      %s168 = smul.u32 64, %s14
      %p169 = scmp.lt.s32.totalorder %s168, 255
      %s170 = scalar_select %p169, %s168, 255
      %s171 = smul.addr %s170, 4
      %s172 = scalar_lea.vmem %s3, %s171
      %s173 = smul.u32 64, %s14
      %v175 = vld [vmem:[%s166] sm:$0xf]
      %v176 = vld [vmem:[%s166 + $0x4] sm:$0xf]
      %v177 = vld [vmem:[%s166 + $0x8] sm:$0xf]
      %v178 = vld [vmem:[%s166 + $0xc] sm:$0xf]
      %v179 = vld [vmem:[%s166 + $0x10] sm:$0xf]
      %v180 = vld [vmem:[%s166 + $0x14] sm:$0xf]
      %v181 = vld [vmem:[%s166 + $0x18] sm:$0xf]
      %v182 = vld [vmem:[%s166 + $0x1c] sm:$0xf]
      %v183 = vld [vmem:[%s166 + $0x20] sm:$0xf]
      %v184 = vld [vmem:[%s166 + $0x24] sm:$0xf]
      %v185 = vld [vmem:[%s166 + $0x28] sm:$0xf]
      %v186 = vld [vmem:[%s166 + $0x2c] sm:$0xf]
      %v187 = vld [vmem:[%s166 + $0x30] sm:$0xf]
      %v188 = vld [vmem:[%s166 + $0x34] sm:$0xf]
      %v189 = vld [vmem:[%s166 + $0x38] sm:$0xf]
      %v190 = vld [vmem:[%s166 + $0x3c] sm:$0xf]
      %v191 = vld [vmem:[%s166 + $0x40] sm:$0xf]
      %v192 = vld [vmem:[%s166 + $0x44] sm:$0xf]
      %v193 = vld [vmem:[%s166 + $0x48] sm:$0xf]
      %v194 = vld [vmem:[%s166 + $0x4c] sm:$0xf]
      %v195 = vld [vmem:[%s166 + $0x50] sm:$0xf]
      %v196 = vld [vmem:[%s166 + $0x54] sm:$0xf]
      %v197 = vld [vmem:[%s166 + $0x58] sm:$0xf]
      %v198 = vld [vmem:[%s166 + $0x5c] sm:$0xf]
      %v199 = vld [vmem:[%s166 + $0x60] sm:$0xf]
      %v200 = vld [vmem:[%s166 + $0x64] sm:$0xf]
      %v201 = vld [vmem:[%s166 + $0x68] sm:$0xf]
      %v202 = vld [vmem:[%s166 + $0x6c] sm:$0xf]
      %v203 = vld [vmem:[%s166 + $0x70] sm:$0xf]
      %v204 = vld [vmem:[%s166 + $0x74] sm:$0xf]
      %v205 = vld [vmem:[%s166 + $0x78] sm:$0xf]
      %v206 = vld [vmem:[%s166 + $0x7c] sm:$0xf]
      %v207 = vld [vmem:[%s166 + $0x80] sm:$0xf]
      %v208 = vld [vmem:[%s166 + $0x84] sm:$0xf]
      %v209 = vld [vmem:[%s166 + $0x88] sm:$0xf]
      %v210 = vld [vmem:[%s166 + $0x8c] sm:$0xf]
      %v211 = vld [vmem:[%s166 + $0x90] sm:$0xf]
      %v212 = vld [vmem:[%s166 + $0x94] sm:$0xf]
      %v213 = vld [vmem:[%s166 + $0x98] sm:$0xf]
      %v214 = vld [vmem:[%s166 + $0x9c] sm:$0xf]
      %v215 = vld [vmem:[%s166 + $0xa0] sm:$0xf]
      %v216 = vld [vmem:[%s166 + $0xa4] sm:$0xf]
      %v217 = vld [vmem:[%s166 + $0xa8] sm:$0xf]
      %v218 = vld [vmem:[%s166 + $0xac] sm:$0xf]
      %v219 = vld [vmem:[%s166 + $0xb0] sm:$0xf]
      %v220 = vld [vmem:[%s166 + $0xb4] sm:$0xf]
      %v221 = vld [vmem:[%s166 + $0xb8] sm:$0xf]
      %v222 = vld [vmem:[%s166 + $0xbc] sm:$0xf]
      %v223 = vld [vmem:[%s166 + $0xc0] sm:$0xf]
      %v224 = vld [vmem:[%s166 + $0xc4] sm:$0xf]
      %v225 = vld [vmem:[%s166 + $0xc8] sm:$0xf]
      %v226 = vld [vmem:[%s166 + $0xcc] sm:$0xf]
      %v227 = vld [vmem:[%s166 + $0xd0] sm:$0xf]
      %v228 = vld [vmem:[%s166 + $0xd4] sm:$0xf]
      %v229 = vld [vmem:[%s166 + $0xd8] sm:$0xf]
      %v230 = vld [vmem:[%s166 + $0xdc] sm:$0xf]
      %v231 = vld [vmem:[%s166 + $0xe0] sm:$0xf]
      %v232 = vld [vmem:[%s166 + $0xe4] sm:$0xf]
      %v233 = vld [vmem:[%s166 + $0xe8] sm:$0xf]
      %v234 = vld [vmem:[%s166 + $0xec] sm:$0xf]
      %v235 = vld [vmem:[%s166 + $0xf0] sm:$0xf]
      %v236 = vld [vmem:[%s166 + $0xf4] sm:$0xf]
      %v237 = vld [vmem:[%s166 + $0xf8] sm:$0xf]
      %v238 = vld [vmem:[%s166 + $0xfc] sm:$0xf]
      %v239 = vld [vmem:[%s1] sm:$0xf]
      %v240 = vld [vmem:[%s1 + $0x4] sm:$0xf]
      %v241 = vld [vmem:[%s1 + $0x8] sm:$0xf]
      %v242 = vld [vmem:[%s1 + $0xc] sm:$0xf]
      %v243 = vld [vmem:[%s1 + $0x10] sm:$0xf]
      %v244 = vld [vmem:[%s1 + $0x14] sm:$0xf]
      %v245 = vld [vmem:[%s2] sm:$0x1]
      %v247 = vlaneseq
      %v248 = vshrl.u32 %v247, 7
      %v249 = vsub.s32 0, %v248
      %v250 = vrot.slane %v245, %v249
      %v316 = vunpack.c.l.b16 %v175
      %v317 = vunpack.c.l.b16 %v176
      %v318 = vunpack.c.l.b16 %v177
      %v319 = vunpack.c.l.b16 %v178
      %v320 = vunpack.c.l.b16 %v179
      %v321 = vunpack.c.l.b16 %v180
      %v322 = vunpack.c.l.b16 %v181
      %v323 = vunpack.c.l.b16 %v182
      %v324 = vunpack.c.l.b16 %v183
      %v325 = vunpack.c.l.b16 %v184
      %v326 = vunpack.c.l.b16 %v185
      %v327 = vunpack.c.l.b16 %v186
      %v328 = vunpack.c.l.b16 %v187
      %v329 = vunpack.c.l.b16 %v188
      %v330 = vunpack.c.l.b16 %v189
      %v331 = vunpack.c.l.b16 %v190
      %v332 = vunpack.c.l.b16 %v191
      %v333 = vunpack.c.l.b16 %v192
      %v334 = vunpack.c.l.b16 %v193
      %v335 = vunpack.c.l.b16 %v194
      %v336 = vunpack.c.l.b16 %v195
      %v337 = vunpack.c.l.b16 %v196
      %v338 = vunpack.c.l.b16 %v197
      %v339 = vunpack.c.l.b16 %v198
      %v340 = vunpack.c.l.b16 %v199
      %v341 = vunpack.c.l.b16 %v200
      %v342 = vunpack.c.l.b16 %v201
      %v343 = vunpack.c.l.b16 %v202
      %v344 = vunpack.c.l.b16 %v203
      %v345 = vunpack.c.l.b16 %v204
      %v346 = vunpack.c.l.b16 %v205
      %v347 = vunpack.c.l.b16 %v206
      %v348 = vunpack.c.l.b16 %v207
      %v349 = vunpack.c.l.b16 %v208
      %v350 = vunpack.c.l.b16 %v209
      %v351 = vunpack.c.l.b16 %v210
      %v352 = vunpack.c.l.b16 %v211
      %v353 = vunpack.c.l.b16 %v212
      %v354 = vunpack.c.l.b16 %v213
      %v355 = vunpack.c.l.b16 %v214
      %v356 = vunpack.c.l.b16 %v215
      %v357 = vunpack.c.l.b16 %v216
      %v358 = vunpack.c.l.b16 %v217
      %v359 = vunpack.c.l.b16 %v218
      %v360 = vunpack.c.l.b16 %v219
      %v361 = vunpack.c.l.b16 %v220
      %v362 = vunpack.c.l.b16 %v221
      %v363 = vunpack.c.l.b16 %v222
      %v364 = vunpack.c.l.b16 %v223
      %v365 = vunpack.c.l.b16 %v224
      %v366 = vunpack.c.l.b16 %v225
      %v367 = vunpack.c.l.b16 %v226
      %v368 = vunpack.c.l.b16 %v227
      %v369 = vunpack.c.l.b16 %v228
      %v370 = vunpack.c.l.b16 %v229
      %v371 = vunpack.c.l.b16 %v230
      %v372 = vunpack.c.l.b16 %v231
      %v373 = vunpack.c.l.b16 %v232
      %v374 = vunpack.c.l.b16 %v233
      %v375 = vunpack.c.l.b16 %v234
      %v376 = vunpack.c.l.b16 %v235
      %v377 = vunpack.c.l.b16 %v236
      %v378 = vunpack.c.l.b16 %v237
      %v379 = vunpack.c.l.b16 %v238
      %v380 = vpack.c.b16 %v317, %v316
      %v381 = vpack.c.b16 %v319, %v318
      %v382 = vpack.c.b16 %v321, %v320
      %v383 = vpack.c.b16 %v323, %v322
      %v384 = vpack.c.b16 %v325, %v324
      %v385 = vpack.c.b16 %v327, %v326
      %v386 = vpack.c.b16 %v329, %v328
      %v387 = vpack.c.b16 %v331, %v330
      %v388 = vpack.c.b16 %v333, %v332
      %v389 = vpack.c.b16 %v335, %v334
      %v390 = vpack.c.b16 %v337, %v336
      %v391 = vpack.c.b16 %v339, %v338
      %v392 = vpack.c.b16 %v341, %v340
      %v393 = vpack.c.b16 %v343, %v342
      %v394 = vpack.c.b16 %v345, %v344
      %v395 = vpack.c.b16 %v347, %v346
      %v396 = vpack.c.b16 %v349, %v348
      %v397 = vpack.c.b16 %v351, %v350
      %v398 = vpack.c.b16 %v353, %v352
      %v399 = vpack.c.b16 %v355, %v354
      %v400 = vpack.c.b16 %v357, %v356
      %v401 = vpack.c.b16 %v359, %v358
      %v402 = vpack.c.b16 %v361, %v360
      %v403 = vpack.c.b16 %v363, %v362
      %v404 = vpack.c.b16 %v365, %v364
      %v405 = vpack.c.b16 %v367, %v366
      %v406 = vpack.c.b16 %v369, %v368
      %v407 = vpack.c.b16 %v371, %v370
      %v408 = vpack.c.b16 %v373, %v372
      %v409 = vpack.c.b16 %v375, %v374
      %v410 = vpack.c.b16 %v377, %v376
      %v411 = vpack.c.b16 %v379, %v378
      %v418 = vunpack.c.l.b16 %v239
      %v419 = vunpack.c.l.b16 %v240
      %v420 = vunpack.c.l.b16 %v241
      %v421 = vunpack.c.l.b16 %v242
      %v422 = vunpack.c.l.b16 %v243
      %v423 = vunpack.c.l.b16 %v244
      %v424 = vpack.c.b16 %v419, %v418
      %v425 = vpack.c.b16 %v421, %v420
      %v426 = vpack.c.b16 %v423, %v422
      %vm430 = vcmask 392192
      %v432 = vsel %vm430, %v380, 0
      %v435 = vsel %vm430, %v381, 0
      %v438 = vsel %vm430, %v382, 0
      %v441 = vsel %vm430, %v383, 0
      %v444 = vsel %vm430, %v384, 0
      %v447 = vsel %vm430, %v385, 0
      %v450 = vsel %vm430, %v386, 0
      %v453 = vsel %vm430, %v387, 0
      %v456 = vsel %vm430, %v388, 0
      %v459 = vsel %vm430, %v389, 0
      %v462 = vsel %vm430, %v390, 0
      %v465 = vsel %vm430, %v391, 0
      %v468 = vsel %vm430, %v392, 0
      %v471 = vsel %vm430, %v393, 0
      %v474 = vsel %vm430, %v394, 0
      %v477 = vsel %vm430, %v395, 0
      %v480 = vsel %vm430, %v396, 0
      %v483 = vsel %vm430, %v397, 0
      %v486 = vsel %vm430, %v398, 0
      %v489 = vsel %vm430, %v399, 0
      %v492 = vsel %vm430, %v400, 0
      %v495 = vsel %vm430, %v401, 0
      %v498 = vsel %vm430, %v402, 0
      %v501 = vsel %vm430, %v403, 0
      %v504 = vsel %vm430, %v404, 0
      %v507 = vsel %vm430, %v405, 0
      %v510 = vsel %vm430, %v406, 0
      %v513 = vsel %vm430, %v407, 0
      %v516 = vsel %vm430, %v408, 0
      %v519 = vsel %vm430, %v409, 0
      %v522 = vsel %vm430, %v410, 0
      %v525 = vsel %vm430, %v411, 0
      %527 = vmatprep.subr.bf16.mxu0 0
      %528 = vmatpush1.bf16.msra.mxu0 %v424
      %529 = vmatprep.subr.bf16.mxu0 0
      %530 = vmatpush1.bf16.msra.mxu0 %v425
      %531 = vmatprep.subr.bf16.mxu0 0
      %532 = vmatpush1.bf16.msra.mxu0 %v426
      %533 = vmatprep.subr.bf16.mxu0 0
      %534 = vmatpush1.bf16.msra.mxu0 0
      %535 = vmatprep.subr.bf16.mxu0 0
      %536 = vmatpush1.bf16.msra.mxu0 0
      %537 = vmatprep.subr.bf16.mxu0 0
      %538 = vmatpush1.bf16.msra.mxu0 0
      %539 = vmatprep.subr.bf16.mxu0 0
      %540 = vmatpush1.bf16.msra.mxu0 0
      %541 = vmatprep.subr.bf16.mxu0 0
      %542 = vmatpush1.bf16.msra.mxu0 0
      %543 = vmatprep.subr.bf16.mxu0 0
      %544 = vmatpush1.bf16.msra.mxu0 0
      %545 = vmatprep.subr.bf16.mxu0 0
      %546 = vmatpush1.bf16.msra.mxu0 0
      %547 = vmatprep.subr.bf16.mxu0 0
      %548 = vmatpush1.bf16.msra.mxu0 0
      %549 = vmatprep.subr.bf16.mxu0 0
      %550 = vmatpush1.bf16.msra.mxu0 0
      %551 = vmatprep.subr.bf16.mxu0 0
      %552 = vmatpush1.bf16.msra.mxu0 0
      %553 = vmatprep.subr.bf16.mxu0 0
      %554 = vmatpush1.bf16.msra.mxu0 0
      %555 = vmatprep.subr.bf16.mxu0 0
      %556 = vmatpush1.bf16.msra.mxu0 0
      %557 = vmatprep.subr.bf16.mxu0 0
      %558 = vmatpush1.bf16.msra.mxu0 0
      %559 = vmatprep.mubr.bf16.mxu0 0
      %560 = vmatmul.mubr.bf16.gmra.mrb[0].mxu0 %v432
      %v561 = vpop.f32.mrb[0].mxu0
      %v562 = vadd.f32 %v250, %v561
      %v563 = vpop.f32.mrb[0].mxu0
      %v564 = vpop.f32.mrb[0].mxu0
      %v565 = vadd.f32 %v250, %v564
      %v566 = vpop.f32.mrb[0].mxu0
      %567 = vmatprep.mubr.bf16.mxu0 0
      %568 = vmatmul.mubr.bf16.gmra.mrb[0].mxu0 %v435
      %v569 = vpop.f32.mrb[0].mxu0
      %v570 = vadd.f32 %v250, %v569
      %v571 = vpop.f32.mrb[0].mxu0
      %v572 = vpop.f32.mrb[0].mxu0
      %v573 = vadd.f32 %v250, %v572
      %v574 = vpop.f32.mrb[0].mxu0
      %575 = vmatprep.mubr.bf16.mxu0 0
      %576 = vmatmul.mubr.bf16.gmra.mrb[0].mxu0 %v438
      %v577 = vpop.f32.mrb[0].mxu0
      %v578 = vadd.f32 %v250, %v577
      %v579 = vpop.f32.mrb[0].mxu0
      %v580 = vpop.f32.mrb[0].mxu0
      %v581 = vadd.f32 %v250, %v580
      %v582 = vpop.f32.mrb[0].mxu0
      %583 = vmatprep.mubr.bf16.mxu0 0
      %584 = vmatmul.mubr.bf16.gmra.mrb[0].mxu0 %v441
      %v585 = vpop.f32.mrb[0].mxu0
      %v586 = vadd.f32 %v250, %v585
      %v587 = vpop.f32.mrb[0].mxu0
      %v588 = vpop.f32.mrb[0].mxu0
      %v589 = vadd.f32 %v250, %v588
      %v590 = vpop.f32.mrb[0].mxu0
      %591 = vmatprep.mubr.bf16.mxu0 0
      %592 = vmatmul.mubr.bf16.gmra.mrb[0].mxu0 %v444
      %v593 = vpop.f32.mrb[0].mxu0
      %v594 = vadd.f32 %v250, %v593
      %v595 = vpop.f32.mrb[0].mxu0
      %v596 = vpop.f32.mrb[0].mxu0
      %v597 = vadd.f32 %v250, %v596
      %v598 = vpop.f32.mrb[0].mxu0
      %599 = vmatprep.mubr.bf16.mxu0 0
      %600 = vmatmul.mubr.bf16.gmra.mrb[0].mxu0 %v447
      %v601 = vpop.f32.mrb[0].mxu0
      %v602 = vadd.f32 %v250, %v601
      %v603 = vpop.f32.mrb[0].mxu0
      %v604 = vpop.f32.mrb[0].mxu0
      %v605 = vadd.f32 %v250, %v604
      %v606 = vpop.f32.mrb[0].mxu0
      %607 = vmatprep.mubr.bf16.mxu0 0
      %608 = vmatmul.mubr.bf16.gmra.mrb[0].mxu0 %v450
      %v609 = vpop.f32.mrb[0].mxu0
      %v610 = vadd.f32 %v250, %v609
      %v611 = vpop.f32.mrb[0].mxu0
      %v612 = vpop.f32.mrb[0].mxu0
      %v613 = vadd.f32 %v250, %v612
      %v614 = vpop.f32.mrb[0].mxu0
      %615 = vmatprep.mubr.bf16.mxu0 0
      %616 = vmatmul.mubr.bf16.gmra.mrb[0].mxu0 %v453
      %v617 = vpop.f32.mrb[0].mxu0
      %v618 = vadd.f32 %v250, %v617
      %v619 = vpop.f32.mrb[0].mxu0
      %v620 = vpop.f32.mrb[0].mxu0
      %v621 = vadd.f32 %v250, %v620
      %v622 = vpop.f32.mrb[0].mxu0
      %623 = vmatprep.mubr.bf16.mxu0 0
      %624 = vmatmul.mubr.bf16.gmra.mrb[0].mxu0 %v456
      %v625 = vpop.f32.mrb[0].mxu0
      %v626 = vadd.f32 %v250, %v625
      %v627 = vpop.f32.mrb[0].mxu0
      %v628 = vpop.f32.mrb[0].mxu0
      %v629 = vadd.f32 %v250, %v628
      %v630 = vpop.f32.mrb[0].mxu0
      %631 = vmatprep.mubr.bf16.mxu0 0
      %632 = vmatmul.mubr.bf16.gmra.mrb[0].mxu0 %v459
      %v633 = vpop.f32.mrb[0].mxu0
      %v634 = vadd.f32 %v250, %v633
      %v635 = vpop.f32.mrb[0].mxu0
      %v636 = vpop.f32.mrb[0].mxu0
      %v637 = vadd.f32 %v250, %v636
      %v638 = vpop.f32.mrb[0].mxu0
      %639 = vmatprep.mubr.bf16.mxu0 0
      %640 = vmatmul.mubr.bf16.gmra.mrb[0].mxu0 %v462
      %v641 = vpop.f32.mrb[0].mxu0
      %v642 = vadd.f32 %v250, %v641
      %v643 = vpop.f32.mrb[0].mxu0
      %v644 = vpop.f32.mrb[0].mxu0
      %v645 = vadd.f32 %v250, %v644
      %v646 = vpop.f32.mrb[0].mxu0
      %647 = vmatprep.mubr.bf16.mxu0 0
      %648 = vmatmul.mubr.bf16.gmra.mrb[0].mxu0 %v465
      %v649 = vpop.f32.mrb[0].mxu0
      %v650 = vadd.f32 %v250, %v649
      %v651 = vpop.f32.mrb[0].mxu0
      %v652 = vpop.f32.mrb[0].mxu0
      %v653 = vadd.f32 %v250, %v652
      %v654 = vpop.f32.mrb[0].mxu0
      %655 = vmatprep.mubr.bf16.mxu0 0
      %656 = vmatmul.mubr.bf16.gmra.mrb[0].mxu0 %v468
      %v657 = vpop.f32.mrb[0].mxu0
      %v658 = vadd.f32 %v250, %v657
      %v659 = vpop.f32.mrb[0].mxu0
      %v660 = vpop.f32.mrb[0].mxu0
      %v661 = vadd.f32 %v250, %v660
      %v662 = vpop.f32.mrb[0].mxu0
      %663 = vmatprep.mubr.bf16.mxu0 0
      %664 = vmatmul.mubr.bf16.gmra.mrb[0].mxu0 %v471
      %v665 = vpop.f32.mrb[0].mxu0
      %v666 = vadd.f32 %v250, %v665
      %v667 = vpop.f32.mrb[0].mxu0
      %v668 = vpop.f32.mrb[0].mxu0
      %v669 = vadd.f32 %v250, %v668
      %v670 = vpop.f32.mrb[0].mxu0
      %671 = vmatprep.mubr.bf16.mxu0 0
      %672 = vmatmul.mubr.bf16.gmra.mrb[0].mxu0 %v474
      %v673 = vpop.f32.mrb[0].mxu0
      %v674 = vadd.f32 %v250, %v673
      %v675 = vpop.f32.mrb[0].mxu0
      %v676 = vpop.f32.mrb[0].mxu0
      %v677 = vadd.f32 %v250, %v676
      %v678 = vpop.f32.mrb[0].mxu0
      %679 = vmatprep.mubr.bf16.mxu0 0
      %680 = vmatmul.mubr.bf16.gmra.mrb[0].mxu0 %v477
      %v681 = vpop.f32.mrb[0].mxu0
      %v682 = vadd.f32 %v250, %v681
      %v683 = vpop.f32.mrb[0].mxu0
      %v684 = vpop.f32.mrb[0].mxu0
      %v685 = vadd.f32 %v250, %v684
      %v686 = vpop.f32.mrb[0].mxu0
      %687 = vmatprep.mubr.bf16.mxu0 0
      %688 = vmatmul.mubr.bf16.gmra.mrb[0].mxu0 %v480
      %v689 = vpop.f32.mrb[0].mxu0
      %v690 = vadd.f32 %v250, %v689
      %v691 = vpop.f32.mrb[0].mxu0
      %v692 = vpop.f32.mrb[0].mxu0
      %v693 = vadd.f32 %v250, %v692
      %v694 = vpop.f32.mrb[0].mxu0
      %695 = vmatprep.mubr.bf16.mxu0 0
      %696 = vmatmul.mubr.bf16.gmra.mrb[0].mxu0 %v483
      %v697 = vpop.f32.mrb[0].mxu0
      %v698 = vadd.f32 %v250, %v697
      %v699 = vpop.f32.mrb[0].mxu0
      %v700 = vpop.f32.mrb[0].mxu0
      %v701 = vadd.f32 %v250, %v700
      %v702 = vpop.f32.mrb[0].mxu0
      %703 = vmatprep.mubr.bf16.mxu0 0
      %704 = vmatmul.mubr.bf16.gmra.mrb[0].mxu0 %v486
      %v705 = vpop.f32.mrb[0].mxu0
      %v706 = vadd.f32 %v250, %v705
      %v707 = vpop.f32.mrb[0].mxu0
      %v708 = vpop.f32.mrb[0].mxu0
      %v709 = vadd.f32 %v250, %v708
      %v710 = vpop.f32.mrb[0].mxu0
      %711 = vmatprep.mubr.bf16.mxu0 0
      %712 = vmatmul.mubr.bf16.gmra.mrb[0].mxu0 %v489
      %v713 = vpop.f32.mrb[0].mxu0
      %v714 = vadd.f32 %v250, %v713
      %v715 = vpop.f32.mrb[0].mxu0
      %v716 = vpop.f32.mrb[0].mxu0
      %v717 = vadd.f32 %v250, %v716
      %v718 = vpop.f32.mrb[0].mxu0
      %719 = vmatprep.mubr.bf16.mxu0 0
      %720 = vmatmul.mubr.bf16.gmra.mrb[0].mxu0 %v492
      %v721 = vpop.f32.mrb[0].mxu0
      %v722 = vadd.f32 %v250, %v721
      %v723 = vpop.f32.mrb[0].mxu0
      %v724 = vpop.f32.mrb[0].mxu0
      %v725 = vadd.f32 %v250, %v724
      %v726 = vpop.f32.mrb[0].mxu0
      %727 = vmatprep.mubr.bf16.mxu0 0
      %728 = vmatmul.mubr.bf16.gmra.mrb[0].mxu0 %v495
      %v729 = vpop.f32.mrb[0].mxu0
      %v730 = vadd.f32 %v250, %v729
      %v731 = vpop.f32.mrb[0].mxu0
      %v732 = vpop.f32.mrb[0].mxu0
      %v733 = vadd.f32 %v250, %v732
      %v734 = vpop.f32.mrb[0].mxu0
      %735 = vmatprep.mubr.bf16.mxu0 0
      %736 = vmatmul.mubr.bf16.gmra.mrb[0].mxu0 %v498
      %v737 = vpop.f32.mrb[0].mxu0
      %v738 = vadd.f32 %v250, %v737
      %v739 = vpop.f32.mrb[0].mxu0
      %v740 = vpop.f32.mrb[0].mxu0
      %v741 = vadd.f32 %v250, %v740
      %v742 = vpop.f32.mrb[0].mxu0
      %743 = vmatprep.mubr.bf16.mxu0 0
      %744 = vmatmul.mubr.bf16.gmra.mrb[0].mxu0 %v501
      %v745 = vpop.f32.mrb[0].mxu0
      %v746 = vadd.f32 %v250, %v745
      %v747 = vpop.f32.mrb[0].mxu0
      %v748 = vpop.f32.mrb[0].mxu0
      %v749 = vadd.f32 %v250, %v748
      %v750 = vpop.f32.mrb[0].mxu0
      %751 = vmatprep.mubr.bf16.mxu0 0
      %752 = vmatmul.mubr.bf16.gmra.mrb[0].mxu0 %v504
      %v753 = vpop.f32.mrb[0].mxu0
      %v754 = vadd.f32 %v250, %v753
      %v755 = vpop.f32.mrb[0].mxu0
      %v756 = vpop.f32.mrb[0].mxu0
      %v757 = vadd.f32 %v250, %v756
      %v758 = vpop.f32.mrb[0].mxu0
      %759 = vmatprep.mubr.bf16.mxu0 0
      %760 = vmatmul.mubr.bf16.gmra.mrb[0].mxu0 %v507
      %v761 = vpop.f32.mrb[0].mxu0
      %v762 = vadd.f32 %v250, %v761
      %v763 = vpop.f32.mrb[0].mxu0
      %v764 = vpop.f32.mrb[0].mxu0
      %v765 = vadd.f32 %v250, %v764
      %v766 = vpop.f32.mrb[0].mxu0
      %767 = vmatprep.mubr.bf16.mxu0 0
      %768 = vmatmul.mubr.bf16.gmra.mrb[0].mxu0 %v510
      %v769 = vpop.f32.mrb[0].mxu0
      %v770 = vadd.f32 %v250, %v769
      %v771 = vpop.f32.mrb[0].mxu0
      %v772 = vpop.f32.mrb[0].mxu0
      %v773 = vadd.f32 %v250, %v772
      %v774 = vpop.f32.mrb[0].mxu0
      %775 = vmatprep.mubr.bf16.mxu0 0
      %776 = vmatmul.mubr.bf16.gmra.mrb[0].mxu0 %v513
      %v777 = vpop.f32.mrb[0].mxu0
      %v778 = vadd.f32 %v250, %v777
      %v779 = vpop.f32.mrb[0].mxu0
      %v780 = vpop.f32.mrb[0].mxu0
      %v781 = vadd.f32 %v250, %v780
      %v782 = vpop.f32.mrb[0].mxu0
      %783 = vmatprep.mubr.bf16.mxu0 0
      %784 = vmatmul.mubr.bf16.gmra.mrb[0].mxu0 %v516
      %v785 = vpop.f32.mrb[0].mxu0
      %v786 = vadd.f32 %v250, %v785
      %v787 = vpop.f32.mrb[0].mxu0
      %v788 = vpop.f32.mrb[0].mxu0
      %v789 = vadd.f32 %v250, %v788
      %v790 = vpop.f32.mrb[0].mxu0
      %791 = vmatprep.mubr.bf16.mxu0 0
      %792 = vmatmul.mubr.bf16.gmra.mrb[0].mxu0 %v519
      %v793 = vpop.f32.mrb[0].mxu0
      %v794 = vadd.f32 %v250, %v793
      %v795 = vpop.f32.mrb[0].mxu0
      %v796 = vpop.f32.mrb[0].mxu0
      %v797 = vadd.f32 %v250, %v796
      %v798 = vpop.f32.mrb[0].mxu0
      %799 = vmatprep.mubr.bf16.mxu0 0
      %800 = vmatmul.mubr.bf16.gmra.mrb[0].mxu0 %v522
      %v801 = vpop.f32.mrb[0].mxu0
      %v802 = vadd.f32 %v250, %v801
      %v803 = vpop.f32.mrb[0].mxu0
      %v804 = vpop.f32.mrb[0].mxu0
      %v805 = vadd.f32 %v250, %v804
      %v806 = vpop.f32.mrb[0].mxu0
      %807 = vmatprep.mubr.bf16.mxu0 0
      %808 = vmatmul.mubr.bf16.gmra.mrb[0].mxu0 %v525
      %v809 = vpop.f32.mrb[0].mxu0
      %v810 = vadd.f32 %v250, %v809
      %v811 = vpop.f32.mrb[0].mxu0
      %v812 = vpop.f32.mrb[0].mxu0
      %v813 = vadd.f32 %v250, %v812
      %v814 = vpop.f32.mrb[0].mxu0
      %815 = vdwg.mxu0
      %v816 = vmax.f32 %v562, 0.0
      %v817 = vmax.f32 %v565, 0.0
      %v818 = vmax.f32 %v570, 0.0
      %v819 = vmax.f32 %v573, 0.0
      %v820 = vmax.f32 %v578, 0.0
      %v821 = vmax.f32 %v581, 0.0
      %v822 = vmax.f32 %v586, 0.0
      %v823 = vmax.f32 %v589, 0.0
      %v824 = vmax.f32 %v594, 0.0
      %v825 = vmax.f32 %v597, 0.0
      %v826 = vmax.f32 %v602, 0.0
      %v827 = vmax.f32 %v605, 0.0
      %v828 = vmax.f32 %v610, 0.0
      %v829 = vmax.f32 %v613, 0.0
      %v830 = vmax.f32 %v618, 0.0
      %v831 = vmax.f32 %v621, 0.0
      %v832 = vmax.f32 %v626, 0.0
      %v833 = vmax.f32 %v629, 0.0
      %v834 = vmax.f32 %v634, 0.0
      %v835 = vmax.f32 %v637, 0.0
      %v836 = vmax.f32 %v642, 0.0
      %v837 = vmax.f32 %v645, 0.0
      %v838 = vmax.f32 %v650, 0.0
      %v839 = vmax.f32 %v653, 0.0
      %v840 = vmax.f32 %v658, 0.0
      %v841 = vmax.f32 %v661, 0.0
      %v842 = vmax.f32 %v666, 0.0
      %v843 = vmax.f32 %v669, 0.0
      %v844 = vmax.f32 %v674, 0.0
      %v845 = vmax.f32 %v677, 0.0
      %v846 = vmax.f32 %v682, 0.0
      %v847 = vmax.f32 %v685, 0.0
      %v848 = vmax.f32 %v690, 0.0
      %v849 = vmax.f32 %v693, 0.0
      %v850 = vmax.f32 %v698, 0.0
      %v851 = vmax.f32 %v701, 0.0
      %v852 = vmax.f32 %v706, 0.0
      %v853 = vmax.f32 %v709, 0.0
      %v854 = vmax.f32 %v714, 0.0
      %v855 = vmax.f32 %v717, 0.0
      %v856 = vmax.f32 %v722, 0.0
      %v857 = vmax.f32 %v725, 0.0
      %v858 = vmax.f32 %v730, 0.0
      %v859 = vmax.f32 %v733, 0.0
      %v860 = vmax.f32 %v738, 0.0
      %v861 = vmax.f32 %v741, 0.0
      %v862 = vmax.f32 %v746, 0.0
      %v863 = vmax.f32 %v749, 0.0
      %v864 = vmax.f32 %v754, 0.0
      %v865 = vmax.f32 %v757, 0.0
      %v866 = vmax.f32 %v762, 0.0
      %v867 = vmax.f32 %v765, 0.0
      %v868 = vmax.f32 %v770, 0.0
      %v869 = vmax.f32 %v773, 0.0
      %v870 = vmax.f32 %v778, 0.0
      %v871 = vmax.f32 %v781, 0.0
      %v872 = vmax.f32 %v786, 0.0
      %v873 = vmax.f32 %v789, 0.0
      %v874 = vmax.f32 %v794, 0.0
      %v875 = vmax.f32 %v797, 0.0
      %v876 = vmax.f32 %v802, 0.0
      %v877 = vmax.f32 %v805, 0.0
      %v878 = vmax.f32 %v810, 0.0
      %v879 = vmax.f32 %v813, 0.0
      %v880 = vpack.c.bf16 %v817, %v816
      %v881 = vpack.c.bf16 %v819, %v818
      %v882 = vpack.c.bf16 %v821, %v820
      %v883 = vpack.c.bf16 %v823, %v822
      %v884 = vpack.c.bf16 %v825, %v824
      %v885 = vpack.c.bf16 %v827, %v826
      %v886 = vpack.c.bf16 %v829, %v828
      %v887 = vpack.c.bf16 %v831, %v830
      %v888 = vpack.c.bf16 %v833, %v832
      %v889 = vpack.c.bf16 %v835, %v834
      %v890 = vpack.c.bf16 %v837, %v836
      %v891 = vpack.c.bf16 %v839, %v838
      %v892 = vpack.c.bf16 %v841, %v840
      %v893 = vpack.c.bf16 %v843, %v842
      %v894 = vpack.c.bf16 %v845, %v844
      %v895 = vpack.c.bf16 %v847, %v846
      %v896 = vpack.c.bf16 %v849, %v848
      %v897 = vpack.c.bf16 %v851, %v850
      %v898 = vpack.c.bf16 %v853, %v852
      %v899 = vpack.c.bf16 %v855, %v854
      %v900 = vpack.c.bf16 %v857, %v856
      %v901 = vpack.c.bf16 %v859, %v858
      %v902 = vpack.c.bf16 %v861, %v860
      %v903 = vpack.c.bf16 %v863, %v862
      %v904 = vpack.c.bf16 %v865, %v864
      %v905 = vpack.c.bf16 %v867, %v866
      %v906 = vpack.c.bf16 %v869, %v868
      %v907 = vpack.c.bf16 %v871, %v870
      %v908 = vpack.c.bf16 %v873, %v872
      %v909 = vpack.c.bf16 %v875, %v874
      %v910 = vpack.c.bf16 %v877, %v876
      %v911 = vpack.c.bf16 %v879, %v878
      %v944 = vunpack.c.l.b16 %v880
      %v945 = vunpack.c.h.b16 %v880
      %v946 = vunpack.c.l.b16 %v881
      %v947 = vunpack.c.h.b16 %v881
      %v948 = vunpack.c.l.b16 %v882
      %v949 = vunpack.c.h.b16 %v882
      %v950 = vunpack.c.l.b16 %v883
      %v951 = vunpack.c.h.b16 %v883
      %v952 = vunpack.c.l.b16 %v884
      %v953 = vunpack.c.h.b16 %v884
      %v954 = vunpack.c.l.b16 %v885
      %v955 = vunpack.c.h.b16 %v885
      %v956 = vunpack.c.l.b16 %v886
      %v957 = vunpack.c.h.b16 %v886
      %v958 = vunpack.c.l.b16 %v887
      %v959 = vunpack.c.h.b16 %v887
      %v960 = vunpack.c.l.b16 %v888
      %v961 = vunpack.c.h.b16 %v888
      %v962 = vunpack.c.l.b16 %v889
      %v963 = vunpack.c.h.b16 %v889
      %v964 = vunpack.c.l.b16 %v890
      %v965 = vunpack.c.h.b16 %v890
      %v966 = vunpack.c.l.b16 %v891
      %v967 = vunpack.c.h.b16 %v891
      %v968 = vunpack.c.l.b16 %v892
      %v969 = vunpack.c.h.b16 %v892
      %v970 = vunpack.c.l.b16 %v893
      %v971 = vunpack.c.h.b16 %v893
      %v972 = vunpack.c.l.b16 %v894
      %v973 = vunpack.c.h.b16 %v894
      %v974 = vunpack.c.l.b16 %v895
      %v975 = vunpack.c.h.b16 %v895
      %v976 = vunpack.c.l.b16 %v896
      %v977 = vunpack.c.h.b16 %v896
      %v978 = vunpack.c.l.b16 %v897
      %v979 = vunpack.c.h.b16 %v897
      %v980 = vunpack.c.l.b16 %v898
      %v981 = vunpack.c.h.b16 %v898
      %v982 = vunpack.c.l.b16 %v899
      %v983 = vunpack.c.h.b16 %v899
      %v984 = vunpack.c.l.b16 %v900
      %v985 = vunpack.c.h.b16 %v900
      %v986 = vunpack.c.l.b16 %v901
      %v987 = vunpack.c.h.b16 %v901
      %v988 = vunpack.c.l.b16 %v902
      %v989 = vunpack.c.h.b16 %v902
      %v990 = vunpack.c.l.b16 %v903
      %v991 = vunpack.c.h.b16 %v903
      %v992 = vunpack.c.l.b16 %v904
      %v993 = vunpack.c.h.b16 %v904
      %v994 = vunpack.c.l.b16 %v905
      %v995 = vunpack.c.h.b16 %v905
      %v996 = vunpack.c.l.b16 %v906
      %v997 = vunpack.c.h.b16 %v906
      %v998 = vunpack.c.l.b16 %v907
      %v999 = vunpack.c.h.b16 %v907
      %v1000 = vunpack.c.l.b16 %v908
      %v1001 = vunpack.c.h.b16 %v908
      %v1002 = vunpack.c.l.b16 %v909
      %v1003 = vunpack.c.h.b16 %v909
      %v1004 = vunpack.c.l.b16 %v910
      %v1005 = vunpack.c.h.b16 %v910
      %v1006 = vunpack.c.l.b16 %v911
      %v1007 = vunpack.c.h.b16 %v911
      %v1008 = vpack.c.b16 %v944, %v944
      %v1009 = vpack.c.b16 %v945, %v945
      %v1010 = vpack.c.b16 %v946, %v946
      %v1011 = vpack.c.b16 %v947, %v947
      %v1012 = vpack.c.b16 %v948, %v948
      %v1013 = vpack.c.b16 %v949, %v949
      %v1014 = vpack.c.b16 %v950, %v950
      %v1015 = vpack.c.b16 %v951, %v951
      %v1016 = vpack.c.b16 %v952, %v952
      %v1017 = vpack.c.b16 %v953, %v953
      %v1018 = vpack.c.b16 %v954, %v954
      %v1019 = vpack.c.b16 %v955, %v955
      %v1020 = vpack.c.b16 %v956, %v956
      %v1021 = vpack.c.b16 %v957, %v957
      %v1022 = vpack.c.b16 %v958, %v958
      %v1023 = vpack.c.b16 %v959, %v959
      %v1024 = vpack.c.b16 %v960, %v960
      %v1025 = vpack.c.b16 %v961, %v961
      %v1026 = vpack.c.b16 %v962, %v962
      %v1027 = vpack.c.b16 %v963, %v963
      %v1028 = vpack.c.b16 %v964, %v964
      %v1029 = vpack.c.b16 %v965, %v965
      %v1030 = vpack.c.b16 %v966, %v966
      %v1031 = vpack.c.b16 %v967, %v967
      %v1032 = vpack.c.b16 %v968, %v968
      %v1033 = vpack.c.b16 %v969, %v969
      %v1034 = vpack.c.b16 %v970, %v970
      %v1035 = vpack.c.b16 %v971, %v971
      %v1036 = vpack.c.b16 %v972, %v972
      %v1037 = vpack.c.b16 %v973, %v973
      %v1038 = vpack.c.b16 %v974, %v974
      %v1039 = vpack.c.b16 %v975, %v975
      %v1040 = vpack.c.b16 %v976, %v976
      %v1041 = vpack.c.b16 %v977, %v977
      %v1042 = vpack.c.b16 %v978, %v978
      %v1043 = vpack.c.b16 %v979, %v979
      %v1044 = vpack.c.b16 %v980, %v980
      %v1045 = vpack.c.b16 %v981, %v981
      %v1046 = vpack.c.b16 %v982, %v982
      %v1047 = vpack.c.b16 %v983, %v983
      %v1048 = vpack.c.b16 %v984, %v984
      %v1049 = vpack.c.b16 %v985, %v985
      %v1050 = vpack.c.b16 %v986, %v986
      %v1051 = vpack.c.b16 %v987, %v987
      %v1052 = vpack.c.b16 %v988, %v988
      %v1053 = vpack.c.b16 %v989, %v989
      %v1054 = vpack.c.b16 %v990, %v990
      %v1055 = vpack.c.b16 %v991, %v991
      %v1056 = vpack.c.b16 %v992, %v992
      %v1057 = vpack.c.b16 %v993, %v993
      %v1058 = vpack.c.b16 %v994, %v994
      %v1059 = vpack.c.b16 %v995, %v995
      %v1060 = vpack.c.b16 %v996, %v996
      %v1061 = vpack.c.b16 %v997, %v997
      %v1062 = vpack.c.b16 %v998, %v998
      %v1063 = vpack.c.b16 %v999, %v999
      %v1064 = vpack.c.b16 %v1000, %v1000
      %v1065 = vpack.c.b16 %v1001, %v1001
      %v1066 = vpack.c.b16 %v1002, %v1002
      %v1067 = vpack.c.b16 %v1003, %v1003
      %v1068 = vpack.c.b16 %v1004, %v1004
      %v1069 = vpack.c.b16 %v1005, %v1005
      %v1070 = vpack.c.b16 %v1006, %v1006
      %v1071 = vpack.c.b16 %v1007, %v1007
      %vm1136 = vcmask 257024
      %1137 = vst.msk [vmem:[%s172] sm:$0xf] %vm1136, %v1008
      %1138 = vst.msk [vmem:[%s172 + $0x4] sm:$0xf] %vm1136, %v1009
      %1139 = vst.msk [vmem:[%s172 + $0x8] sm:$0xf] %vm1136, %v1010
      %1140 = vst.msk [vmem:[%s172 + $0xc] sm:$0xf] %vm1136, %v1011
      %1141 = vst.msk [vmem:[%s172 + $0x10] sm:$0xf] %vm1136, %v1012
      %1142 = vst.msk [vmem:[%s172 + $0x14] sm:$0xf] %vm1136, %v1013
      %1143 = vst.msk [vmem:[%s172 + $0x18] sm:$0xf] %vm1136, %v1014
      %1144 = vst.msk [vmem:[%s172 + $0x1c] sm:$0xf] %vm1136, %v1015
      %1145 = vst.msk [vmem:[%s172 + $0x20] sm:$0xf] %vm1136, %v1016
      %1146 = vst.msk [vmem:[%s172 + $0x24] sm:$0xf] %vm1136, %v1017
      %1147 = vst.msk [vmem:[%s172 + $0x28] sm:$0xf] %vm1136, %v1018
      %1148 = vst.msk [vmem:[%s172 + $0x2c] sm:$0xf] %vm1136, %v1019
      %1149 = vst.msk [vmem:[%s172 + $0x30] sm:$0xf] %vm1136, %v1020
      %1150 = vst.msk [vmem:[%s172 + $0x34] sm:$0xf] %vm1136, %v1021
      %1151 = vst.msk [vmem:[%s172 + $0x38] sm:$0xf] %vm1136, %v1022
      %1152 = vst.msk [vmem:[%s172 + $0x3c] sm:$0xf] %vm1136, %v1023
      %1153 = vst.msk [vmem:[%s172 + $0x40] sm:$0xf] %vm1136, %v1024
      %1154 = vst.msk [vmem:[%s172 + $0x44] sm:$0xf] %vm1136, %v1025
      %1155 = vst.msk [vmem:[%s172 + $0x48] sm:$0xf] %vm1136, %v1026
      %1156 = vst.msk [vmem:[%s172 + $0x4c] sm:$0xf] %vm1136, %v1027
      %1157 = vst.msk [vmem:[%s172 + $0x50] sm:$0xf] %vm1136, %v1028
      %1158 = vst.msk [vmem:[%s172 + $0x54] sm:$0xf] %vm1136, %v1029
      %1159 = vst.msk [vmem:[%s172 + $0x58] sm:$0xf] %vm1136, %v1030
      %1160 = vst.msk [vmem:[%s172 + $0x5c] sm:$0xf] %vm1136, %v1031
      %1161 = vst.msk [vmem:[%s172 + $0x60] sm:$0xf] %vm1136, %v1032
      %1162 = vst.msk [vmem:[%s172 + $0x64] sm:$0xf] %vm1136, %v1033
      %1163 = vst.msk [vmem:[%s172 + $0x68] sm:$0xf] %vm1136, %v1034
      %1164 = vst.msk [vmem:[%s172 + $0x6c] sm:$0xf] %vm1136, %v1035
      %1165 = vst.msk [vmem:[%s172 + $0x70] sm:$0xf] %vm1136, %v1036
      %1166 = vst.msk [vmem:[%s172 + $0x74] sm:$0xf] %vm1136, %v1037
      %1167 = vst.msk [vmem:[%s172 + $0x78] sm:$0xf] %vm1136, %v1038
      %1168 = vst.msk [vmem:[%s172 + $0x7c] sm:$0xf] %vm1136, %v1039
      %1169 = vst.msk [vmem:[%s172 + $0x80] sm:$0xf] %vm1136, %v1040
      %1170 = vst.msk [vmem:[%s172 + $0x84] sm:$0xf] %vm1136, %v1041
      %1171 = vst.msk [vmem:[%s172 + $0x88] sm:$0xf] %vm1136, %v1042
      %1172 = vst.msk [vmem:[%s172 + $0x8c] sm:$0xf] %vm1136, %v1043
      %1173 = vst.msk [vmem:[%s172 + $0x90] sm:$0xf] %vm1136, %v1044
      %1174 = vst.msk [vmem:[%s172 + $0x94] sm:$0xf] %vm1136, %v1045
      %1175 = vst.msk [vmem:[%s172 + $0x98] sm:$0xf] %vm1136, %v1046
      %1176 = vst.msk [vmem:[%s172 + $0x9c] sm:$0xf] %vm1136, %v1047
      %1177 = vst.msk [vmem:[%s172 + $0xa0] sm:$0xf] %vm1136, %v1048
      %1178 = vst.msk [vmem:[%s172 + $0xa4] sm:$0xf] %vm1136, %v1049
      %1179 = vst.msk [vmem:[%s172 + $0xa8] sm:$0xf] %vm1136, %v1050
      %1180 = vst.msk [vmem:[%s172 + $0xac] sm:$0xf] %vm1136, %v1051
      %1181 = vst.msk [vmem:[%s172 + $0xb0] sm:$0xf] %vm1136, %v1052
      %1182 = vst.msk [vmem:[%s172 + $0xb4] sm:$0xf] %vm1136, %v1053
      %1183 = vst.msk [vmem:[%s172 + $0xb8] sm:$0xf] %vm1136, %v1054
      %1184 = vst.msk [vmem:[%s172 + $0xbc] sm:$0xf] %vm1136, %v1055
      %1185 = vst.msk [vmem:[%s172 + $0xc0] sm:$0xf] %vm1136, %v1056
      %1186 = vst.msk [vmem:[%s172 + $0xc4] sm:$0xf] %vm1136, %v1057
      %1187 = vst.msk [vmem:[%s172 + $0xc8] sm:$0xf] %vm1136, %v1058
      %1188 = vst.msk [vmem:[%s172 + $0xcc] sm:$0xf] %vm1136, %v1059
      %1189 = vst.msk [vmem:[%s172 + $0xd0] sm:$0xf] %vm1136, %v1060
      %1190 = vst.msk [vmem:[%s172 + $0xd4] sm:$0xf] %vm1136, %v1061
      %1191 = vst.msk [vmem:[%s172 + $0xd8] sm:$0xf] %vm1136, %v1062
      %1192 = vst.msk [vmem:[%s172 + $0xdc] sm:$0xf] %vm1136, %v1063
      %1193 = vst.msk [vmem:[%s172 + $0xe0] sm:$0xf] %vm1136, %v1064
      %1194 = vst.msk [vmem:[%s172 + $0xe4] sm:$0xf] %vm1136, %v1065
      %1195 = vst.msk [vmem:[%s172 + $0xe8] sm:$0xf] %vm1136, %v1066
      %1196 = vst.msk [vmem:[%s172 + $0xec] sm:$0xf] %vm1136, %v1067
      %1197 = vst.msk [vmem:[%s172 + $0xf0] sm:$0xf] %vm1136, %v1068
      %1198 = vst.msk [vmem:[%s172 + $0xf4] sm:$0xf] %vm1136, %v1069
      %1199 = vst.msk [vmem:[%s172 + $0xf8] sm:$0xf] %vm1136, %v1070
      %1200 = vst.msk [vmem:[%s172 + $0xfc] sm:$0xf] %vm1136, %v1071
      %s1201 = smul.u32 64, %s14
      %p1202 = scmp.lt.s32.totalorder %s1201, 255
      %s1203 = scalar_select %p1202, %s1201, 255
      %s1204 = smul.addr %s1203, 4
      %s1205 = scalar_lea.vmem %s3, %s1204
      // Predicated region
      $region33: #{vae_forward.9} parent=31 // pred_check
        %p1206 = pneg %p100
      $region34: #{vae_forward.9} parent=31 // pred_check_branch
        %1208 = sbr.rel (%p1206) target = $region36
      $region35: #{vae_forward.9} parent=31 // pred_region
        %s1209 = smul.u32 64, %s14
      $region36: #{vae_forward.9} parent=31 // pred_fallthru
        _
    $region32: #{vae_forward.9} parent=5 // pred_fallthru
      _
    %p1210 = scmp.le.s32.totalorder 2, %s9
    // Predicated region
    $region37: #{vae_forward.9} parent=5 // pred_check
      %p1211 = pneg %p1210
    $region38: #{vae_forward.9} parent=5 // pred_check_branch
      %1213 = sbr.rel (%p1211) target = $region40
    $region39: #{vae_forward.9} parent=5 // pred_region
      %s1214 = ssub.s32 %s9, 2
      // Predicated region
      $region41: #{vae_forward.9} parent=39 // pred_check
        %p1215 = pneg %p106
      $region42: #{vae_forward.9} parent=39 // pred_check_branch
        %1217 = sbr.rel (%p1215) target = $region44
      $region43: #{vae_forward.9} parent=39 // pred_region
        %s1218 = smul.u32 64, %s15
        %p1219 = scmp.lt.s32.totalorder %s1218, 255
        %s1220 = scalar_select %p1219, %s1218, 255
        %s1221 = smul.addr %s1220, 4
        %s1222 = scalar_lea.vmem %s3, %s1221
      $region44: #{vae_forward.9} parent=39 // pred_fallthru
        _
    $region40: #{vae_forward.9} parent=5 // pred_fallthru
      _
  $region6: #{vae_forward.9} parent=0 // loop_footer
    %s13 = sadd.s32 1, %s9
  $region7: #{vae_forward.9} parent=0 // loop_footer_branch
    %8 = sbr.rel target = $region3
  $region8: #{vae_forward.9} parent=0 // loop_exit
    _

// kernel: vae_forward.10
$region0: #{vae_forward.10}
  #allocation0 [shape = 'u32[]', space=smem, size = 0x4, offset = 0x4, fixed_abs, tag = 'smem constant byte address 0x4 - core index']
  #allocation1 [shape = 'u32[144,128]{1,0:T(1,128)}', space=vmem, size = 0x12000, scoped, tag = 'internal scratch']
  %s0 = inlined_call_operand.vmem [shape: bf16[512,512], index: 0, kind: input, shape index: {}]
  %s1 = inlined_call_operand.vmem [shape: bf16[512,32], index: 1, kind: input, shape index: {}]
  %s2 = inlined_call_operand.vmem [shape: f32[1,32], index: 2, kind: input, shape index: {}]
  %s3 = inlined_call_operand.vmem [shape: bf16[512,32], index: 3, kind: output, shape index: {}]
  %s4 = sld [smem:[#allocation0]]
  $region45: #{vae_forward.10} parent=0
    _
  %s6 = ssub.s32 1, %s4
  %s7 = scalar_select 0, %s6, %s4
  loop: start=0, step=1, limit=4
  $region2: #{vae_forward.10} parent=0 // loop_pre_header
    _
  $region3: #{vae_forward.10} parent=0 // loop_header
    %s9 = sphi 0, %s13
    %p10 = scmp.ge.s32.totalorder %s9, 4
    %s19 = sphi 0, %s21
    %s22 = sphi 0, %s19
    %s23 = sphi 0, %s22
    %s39 = sphi 0, %s23
    %s43 = sphi 0, %s43
    %s45 = sphi 0, %s43
    %s46 = sphi 0, %s45
    %s60 = sphi 0, %s46
    %s64 = sphi 0, %s64
    %s66 = sphi 0, %s64
    %s67 = sphi 0, %s66
    %s81 = sphi 0, %s67
    %s87 = sphi 0, %s89
    %s90 = sphi 0, %s87
    %s91 = sphi 0, %s90
    %s107 = sphi 0, %s91
  $region4: #{vae_forward.10} parent=0 // loop_header_branch
    %12 = sbr.rel (%p10) target = $region8
  $region5: #{vae_forward.10} parent=0 // loop_body
    %s14 = ssub.s32 %s9, 1
    %s15 = ssub.s32 %s9, 2
    %s16 = sadd.s32 %s9, 1
    %s17 = ssub.s32 %s9, %s16
    %p18 = scmp.eq.s32.totalorder %s17, 0
    %s20 = sadd.s32 %s19, 1
    %s21 = scalar_select %p18, %s19, %s20
    %p24 = pneg %p18
    %p25 = scmp.eq.s32.totalorder %s9, 1
    %p26 = por %p24, %p25
    %p27 = scmp.ne.s32.totalorder %s19, %s22
    %p28 = scmp.eq.s32.totalorder %s9, 0
    %p29 = por %p27, %p28
    %p30 = scmp.ne.s32.totalorder %s19, %s22
    %p31 = scmp.eq.s32.totalorder %s14, 1
    %p32 = por %p30, %p31
    %p33 = scmp.ne.s32.totalorder %s22, %s23
    %p34 = scmp.eq.s32.totalorder %s14, 0
    %p35 = por %p33, %p34
    %p36 = scmp.ne.s32.totalorder %s22, %s23
    %p37 = scmp.eq.s32.totalorder %s15, 1
    %p38 = por %p36, %p37
    %p40 = scmp.ne.s32.totalorder %s23, %s39
    %p41 = scmp.eq.s32.totalorder %s15, 0
    %p42 = por %p40, %p41
    %s44 = sadd.s32 %s43, 1
    %p47 = scmp.eq.s32.totalorder %s9, 1
    %p48 = scmp.ne.s32.totalorder %s43, %s45
    %p49 = scmp.eq.s32.totalorder %s9, 0
    %p50 = por %p48, %p49
    %p51 = scmp.ne.s32.totalorder %s43, %s45
    %p52 = scmp.eq.s32.totalorder %s14, 1
    %p53 = por %p51, %p52
    %p54 = scmp.ne.s32.totalorder %s45, %s46
    %p55 = scmp.eq.s32.totalorder %s14, 0
    %p56 = por %p54, %p55
    %p57 = scmp.ne.s32.totalorder %s45, %s46
    %p58 = scmp.eq.s32.totalorder %s15, 1
    %p59 = por %p57, %p58
    %p61 = scmp.ne.s32.totalorder %s46, %s60
    %p62 = scmp.eq.s32.totalorder %s15, 0
    %p63 = por %p61, %p62
    %s65 = sadd.s32 %s64, 1
    %p68 = scmp.eq.s32.totalorder %s9, 1
    %p69 = scmp.ne.s32.totalorder %s64, %s66
    %p70 = scmp.eq.s32.totalorder %s9, 0
    %p71 = por %p69, %p70
    %p72 = scmp.ne.s32.totalorder %s64, %s66
    %p73 = scmp.eq.s32.totalorder %s14, 1
    %p74 = por %p72, %p73
    %p75 = scmp.ne.s32.totalorder %s66, %s67
    %p76 = scmp.eq.s32.totalorder %s14, 0
    %p77 = por %p75, %p76
    %p78 = scmp.ne.s32.totalorder %s66, %s67
    %p79 = scmp.eq.s32.totalorder %s15, 1
    %p80 = por %p78, %p79
    %p82 = scmp.ne.s32.totalorder %s67, %s81
    %p83 = scmp.eq.s32.totalorder %s15, 0
    %p84 = por %p82, %p83
    %s85 = ssub.s32 %s9, %s16
    %p86 = scmp.eq.s32.totalorder %s85, 0
    %s88 = sadd.s32 %s87, 1
    %s89 = scalar_select %p86, %s87, %s88
    %p92 = pneg %p86
    %p93 = scmp.eq.s32.totalorder %s9, 1
    %p94 = por %p92, %p93
    %p95 = scmp.ne.s32.totalorder %s87, %s90
    %p96 = scmp.eq.s32.totalorder %s9, 0
    %p97 = por %p95, %p96
    %p98 = scmp.ne.s32.totalorder %s87, %s90
    %p99 = scmp.eq.s32.totalorder %s14, 1
    %p100 = por %p98, %p99
    %p101 = scmp.ne.s32.totalorder %s90, %s91
    %p102 = scmp.eq.s32.totalorder %s14, 0
    %p103 = por %p101, %p102
    %p104 = scmp.ne.s32.totalorder %s90, %s91
    %p105 = scmp.eq.s32.totalorder %s15, 1
    %p106 = por %p104, %p105
    %p108 = scmp.ne.s32.totalorder %s91, %s107
    %p109 = scmp.eq.s32.totalorder %s15, 0
    %p110 = por %p108, %p109
    %p111 = scmp.le.s32.totalorder 1, %s9
    %p112 = scmp.lt.s32.totalorder %s9, 3
    %p113 = pnand %p111, %p112
    %p114 = pneg %p113
    // Predicated region
    $region9: #{vae_forward.10} parent=5 // pred_check
      _
    $region10: #{vae_forward.10} parent=5 // pred_check_branch
      %116 = sbr.rel (%p113) target = $region12
    $region11: #{vae_forward.10} parent=5 // pred_region
      %s117 = ssub.s32 %s9, 1
      // Predicated region
      $region13: #{vae_forward.10} parent=11 // pred_check
        %p118 = pneg %p56
      $region14: #{vae_forward.10} parent=11 // pred_check_branch
        %120 = sbr.rel (%p118) target = $region16
      $region15: #{vae_forward.10} parent=11 // pred_region
        _
      $region16: #{vae_forward.10} parent=11 // pred_fallthru
        _
      // Predicated region
      $region17: #{vae_forward.10} parent=11 // pred_check
        %p121 = pneg %p77
      $region18: #{vae_forward.10} parent=11 // pred_check_branch
        %123 = sbr.rel (%p121) target = $region20
      $region19: #{vae_forward.10} parent=11 // pred_region
        _
      $region20: #{vae_forward.10} parent=11 // pred_fallthru
        _
    $region12: #{vae_forward.10} parent=5 // pred_fallthru
      _
    %p124 = scmp.lt.s32.totalorder %s9, 2
    // Predicated region
    $region21: #{vae_forward.10} parent=5 // pred_check
      %p125 = pneg %p124
    $region22: #{vae_forward.10} parent=5 // pred_check_branch
      %127 = sbr.rel (%p125) target = $region24
    $region23: #{vae_forward.10} parent=5 // pred_region
      // Predicated region
      $region25: #{vae_forward.10} parent=23 // pred_check
        %p128 = pneg %p29
      $region26: #{vae_forward.10} parent=23 // pred_check_branch
        %130 = sbr.rel (%p128) target = $region28
      $region27: #{vae_forward.10} parent=23 // pred_region
        %s131 = smul.u32 32, %s9
        %p132 = scmp.lt.s32.totalorder %s131, 63
        %s133 = scalar_select %p132, %s131, 63
        %s134 = smul.addr %s133, 4
        %s135 = smul.addr %s134, 4
        %s136 = scalar_lea.vmem %s0, %s135
        %s137 = smul.u32 32, %s9
      $region28: #{vae_forward.10} parent=23 // pred_fallthru
        _
    $region24: #{vae_forward.10} parent=5 // pred_fallthru
      _
    %p138 = scmp.le.s32.totalorder 1, %s9
    %p139 = scmp.lt.s32.totalorder %s9, 3
    %p140 = pnand %p138, %p139
    %p141 = pneg %p140
    // Predicated region
    $region29: #{vae_forward.10} parent=5 // pred_check
      _
    $region30: #{vae_forward.10} parent=5 // pred_check_branch
      %143 = sbr.rel (%p140) target = $region32
    $region31: #{vae_forward.10} parent=5 // pred_region
      %s144 = ssub.s32 %s9, 1
      %s145 = smul.u32 32, %s14
      %p146 = scmp.lt.s32.totalorder %s145, 63
      %s147 = scalar_select %p146, %s145, 63
      %s148 = smul.addr %s147, 4
      %s149 = smul.addr %s148, 4
      %s150 = scalar_lea.vmem %s0, %s149
      %p151 = pneg %p35
      %p152 = pneg %p32
      %p153 = pneg %p56
      %p154 = pneg %p53
      %p155 = pneg %p77
      %p156 = pneg %p74
      %p157 = pneg %p103
      %p158 = pneg %p100
      %s159 = smul.u32 32, %s14
      %p160 = scmp.lt.s32.totalorder %s159, 63
      %s161 = scalar_select %p160, %s159, 63
      %s162 = smul.addr %s161, 4
      %s163 = scalar_lea.vmem %s3, %s162
      %s164 = smul.u32 32, %s14
      %p165 = scmp.lt.s32.totalorder %s164, 63
      %s166 = scalar_select %p165, %s164, 63
      %s167 = smul.addr %s166, 4
      %s168 = smul.addr %s167, 4
      %s169 = scalar_lea.vmem %s0, %s168
      %s170 = smul.u32 32, %s14
      %s171 = smul.u32 32, %s14
      %p172 = scmp.lt.s32.totalorder %s171, 63
      %s173 = scalar_select %p172, %s171, 63
      %s174 = smul.addr %s173, 4
      %s175 = scalar_lea.vmem %s3, %s174
      %s176 = smul.u32 32, %s14
      %v178 = vld [vmem:[%s169] sm:$0xff]
      %v179 = vld [vmem:[%s169 + $0x8] sm:$0xff]
      %v180 = vld [vmem:[%s169 + $0x10] sm:$0xff]
      %v181 = vld [vmem:[%s169 + $0x18] sm:$0xff]
      %v182 = vld [vmem:[%s169 + $0x20] sm:$0xff]
      %v183 = vld [vmem:[%s169 + $0x28] sm:$0xff]
      %v184 = vld [vmem:[%s169 + $0x30] sm:$0xff]
      %v185 = vld [vmem:[%s169 + $0x38] sm:$0xff]
      %v186 = vld [vmem:[%s169 + $0x40] sm:$0xff]
      %v187 = vld [vmem:[%s169 + $0x48] sm:$0xff]
      %v188 = vld [vmem:[%s169 + $0x50] sm:$0xff]
      %v189 = vld [vmem:[%s169 + $0x58] sm:$0xff]
      %v190 = vld [vmem:[%s169 + $0x60] sm:$0xff]
      %v191 = vld [vmem:[%s169 + $0x68] sm:$0xff]
      %v192 = vld [vmem:[%s169 + $0x70] sm:$0xff]
      %v193 = vld [vmem:[%s169 + $0x78] sm:$0xff]
      %v194 = vld [vmem:[%s169 + $0x80] sm:$0xff]
      %v195 = vld [vmem:[%s169 + $0x88] sm:$0xff]
      %v196 = vld [vmem:[%s169 + $0x90] sm:$0xff]
      %v197 = vld [vmem:[%s169 + $0x98] sm:$0xff]
      %v198 = vld [vmem:[%s169 + $0xa0] sm:$0xff]
      %v199 = vld [vmem:[%s169 + $0xa8] sm:$0xff]
      %v200 = vld [vmem:[%s169 + $0xb0] sm:$0xff]
      %v201 = vld [vmem:[%s169 + $0xb8] sm:$0xff]
      %v202 = vld [vmem:[%s169 + $0xc0] sm:$0xff]
      %v203 = vld [vmem:[%s169 + $0xc8] sm:$0xff]
      %v204 = vld [vmem:[%s169 + $0xd0] sm:$0xff]
      %v205 = vld [vmem:[%s169 + $0xd8] sm:$0xff]
      %v206 = vld [vmem:[%s169 + $0xe0] sm:$0xff]
      %v207 = vld [vmem:[%s169 + $0xe8] sm:$0xff]
      %v208 = vld [vmem:[%s169 + $0xf0] sm:$0xff]
      %v209 = vld [vmem:[%s169 + $0xf8] sm:$0xff]
      %v210 = vld [vmem:[%s169 + $0x100] sm:$0xff]
      %v211 = vld [vmem:[%s169 + $0x108] sm:$0xff]
      %v212 = vld [vmem:[%s169 + $0x110] sm:$0xff]
      %v213 = vld [vmem:[%s169 + $0x118] sm:$0xff]
      %v214 = vld [vmem:[%s169 + $0x120] sm:$0xff]
      %v215 = vld [vmem:[%s169 + $0x128] sm:$0xff]
      %v216 = vld [vmem:[%s169 + $0x130] sm:$0xff]
      %v217 = vld [vmem:[%s169 + $0x138] sm:$0xff]
      %v218 = vld [vmem:[%s169 + $0x140] sm:$0xff]
      %v219 = vld [vmem:[%s169 + $0x148] sm:$0xff]
      %v220 = vld [vmem:[%s169 + $0x150] sm:$0xff]
      %v221 = vld [vmem:[%s169 + $0x158] sm:$0xff]
      %v222 = vld [vmem:[%s169 + $0x160] sm:$0xff]
      %v223 = vld [vmem:[%s169 + $0x168] sm:$0xff]
      %v224 = vld [vmem:[%s169 + $0x170] sm:$0xff]
      %v225 = vld [vmem:[%s169 + $0x178] sm:$0xff]
      %v226 = vld [vmem:[%s169 + $0x180] sm:$0xff]
      %v227 = vld [vmem:[%s169 + $0x188] sm:$0xff]
      %v228 = vld [vmem:[%s169 + $0x190] sm:$0xff]
      %v229 = vld [vmem:[%s169 + $0x198] sm:$0xff]
      %v230 = vld [vmem:[%s169 + $0x1a0] sm:$0xff]
      %v231 = vld [vmem:[%s169 + $0x1a8] sm:$0xff]
      %v232 = vld [vmem:[%s169 + $0x1b0] sm:$0xff]
      %v233 = vld [vmem:[%s169 + $0x1b8] sm:$0xff]
      %v234 = vld [vmem:[%s169 + $0x1c0] sm:$0xff]
      %v235 = vld [vmem:[%s169 + $0x1c8] sm:$0xff]
      %v236 = vld [vmem:[%s169 + $0x1d0] sm:$0xff]
      %v237 = vld [vmem:[%s169 + $0x1d8] sm:$0xff]
      %v238 = vld [vmem:[%s169 + $0x1e0] sm:$0xff]
      %v239 = vld [vmem:[%s169 + $0x1e8] sm:$0xff]
      %v240 = vld [vmem:[%s169 + $0x1f0] sm:$0xff]
      %v241 = vld [vmem:[%s169 + $0x1f8] sm:$0xff]
      %v242 = vld [vmem:[%s1] sm:$0xf]
      %v243 = vld [vmem:[%s1 + $0x4] sm:$0xf]
      %v244 = vld [vmem:[%s1 + $0x8] sm:$0xf]
      %v245 = vld [vmem:[%s1 + $0xc] sm:$0xf]
      %v246 = vld [vmem:[%s1 + $0x10] sm:$0xf]
      %v247 = vld [vmem:[%s1 + $0x14] sm:$0xf]
      %v248 = vld [vmem:[%s1 + $0x18] sm:$0xf]
      %v249 = vld [vmem:[%s1 + $0x1c] sm:$0xf]
      %v250 = vld [vmem:[%s1 + $0x20] sm:$0xf]
      %v251 = vld [vmem:[%s1 + $0x24] sm:$0xf]
      %v252 = vld [vmem:[%s1 + $0x28] sm:$0xf]
      %v253 = vld [vmem:[%s1 + $0x2c] sm:$0xf]
      %v254 = vld [vmem:[%s1 + $0x30] sm:$0xf]
      %v255 = vld [vmem:[%s1 + $0x34] sm:$0xf]
      %v256 = vld [vmem:[%s1 + $0x38] sm:$0xf]
      %v257 = vld [vmem:[%s1 + $0x3c] sm:$0xf]
      %v258 = vld [vmem:[%s1 + $0x40] sm:$0xf]
      %v259 = vld [vmem:[%s1 + $0x44] sm:$0xf]
      %v260 = vld [vmem:[%s1 + $0x48] sm:$0xf]
      %v261 = vld [vmem:[%s1 + $0x4c] sm:$0xf]
      %v262 = vld [vmem:[%s1 + $0x50] sm:$0xf]
      %v263 = vld [vmem:[%s1 + $0x54] sm:$0xf]
      %v264 = vld [vmem:[%s1 + $0x58] sm:$0xf]
      %v265 = vld [vmem:[%s1 + $0x5c] sm:$0xf]
      %v266 = vld [vmem:[%s1 + $0x60] sm:$0xf]
      %v267 = vld [vmem:[%s1 + $0x64] sm:$0xf]
      %v268 = vld [vmem:[%s1 + $0x68] sm:$0xf]
      %v269 = vld [vmem:[%s1 + $0x6c] sm:$0xf]
      %v270 = vld [vmem:[%s1 + $0x70] sm:$0xf]
      %v271 = vld [vmem:[%s1 + $0x74] sm:$0xf]
      %v272 = vld [vmem:[%s1 + $0x78] sm:$0xf]
      %v273 = vld [vmem:[%s1 + $0x7c] sm:$0xf]
      %v274 = vld [vmem:[%s1 + $0x80] sm:$0xf]
      %v275 = vld [vmem:[%s1 + $0x84] sm:$0xf]
      %v276 = vld [vmem:[%s1 + $0x88] sm:$0xf]
      %v277 = vld [vmem:[%s1 + $0x8c] sm:$0xf]
      %v278 = vld [vmem:[%s1 + $0x90] sm:$0xf]
      %v279 = vld [vmem:[%s1 + $0x94] sm:$0xf]
      %v280 = vld [vmem:[%s1 + $0x98] sm:$0xf]
      %v281 = vld [vmem:[%s1 + $0x9c] sm:$0xf]
      %v282 = vld [vmem:[%s1 + $0xa0] sm:$0xf]
      %v283 = vld [vmem:[%s1 + $0xa4] sm:$0xf]
      %v284 = vld [vmem:[%s1 + $0xa8] sm:$0xf]
      %v285 = vld [vmem:[%s1 + $0xac] sm:$0xf]
      %v286 = vld [vmem:[%s1 + $0xb0] sm:$0xf]
      %v287 = vld [vmem:[%s1 + $0xb4] sm:$0xf]
      %v288 = vld [vmem:[%s1 + $0xb8] sm:$0xf]
      %v289 = vld [vmem:[%s1 + $0xbc] sm:$0xf]
      %v290 = vld [vmem:[%s1 + $0xc0] sm:$0xf]
      %v291 = vld [vmem:[%s1 + $0xc4] sm:$0xf]
      %v292 = vld [vmem:[%s1 + $0xc8] sm:$0xf]
      %v293 = vld [vmem:[%s1 + $0xcc] sm:$0xf]
      %v294 = vld [vmem:[%s1 + $0xd0] sm:$0xf]
      %v295 = vld [vmem:[%s1 + $0xd4] sm:$0xf]
      %v296 = vld [vmem:[%s1 + $0xd8] sm:$0xf]
      %v297 = vld [vmem:[%s1 + $0xdc] sm:$0xf]
      %v298 = vld [vmem:[%s1 + $0xe0] sm:$0xf]
      %v299 = vld [vmem:[%s1 + $0xe4] sm:$0xf]
      %v300 = vld [vmem:[%s1 + $0xe8] sm:$0xf]
      %v301 = vld [vmem:[%s1 + $0xec] sm:$0xf]
      %v302 = vld [vmem:[%s1 + $0xf0] sm:$0xf]
      %v303 = vld [vmem:[%s1 + $0xf4] sm:$0xf]
      %v304 = vld [vmem:[%s1 + $0xf8] sm:$0xf]
      %v305 = vld [vmem:[%s1 + $0xfc] sm:$0xf]
      %v306 = vld [vmem:[%s2] sm:$0x1]
      %v308 = vlaneseq
      %v309 = vshrl.u32 %v308, 7
      %v310 = vsub.s32 0, %v309
      %v311 = vrot.slane %v306, %v310
      %v377 = vunpack.c.l.b16 %v178
      %v378 = vunpack.c.h.b16 %v178
      %v379 = vunpack.c.l.b16 %v179
      %v380 = vunpack.c.h.b16 %v179
      %v381 = vunpack.c.l.b16 %v180
      %v382 = vunpack.c.h.b16 %v180
      %v383 = vunpack.c.l.b16 %v181
      %v384 = vunpack.c.h.b16 %v181
      %v385 = vunpack.c.l.b16 %v182
      %v386 = vunpack.c.h.b16 %v182
      %v387 = vunpack.c.l.b16 %v183
      %v388 = vunpack.c.h.b16 %v183
      %v389 = vunpack.c.l.b16 %v184
      %v390 = vunpack.c.h.b16 %v184
      %v391 = vunpack.c.l.b16 %v185
      %v392 = vunpack.c.h.b16 %v185
      %v393 = vunpack.c.l.b16 %v186
      %v394 = vunpack.c.h.b16 %v186
      %v395 = vunpack.c.l.b16 %v187
      %v396 = vunpack.c.h.b16 %v187
      %v397 = vunpack.c.l.b16 %v188
      %v398 = vunpack.c.h.b16 %v188
      %v399 = vunpack.c.l.b16 %v189
      %v400 = vunpack.c.h.b16 %v189
      %v401 = vunpack.c.l.b16 %v190
      %v402 = vunpack.c.h.b16 %v190
      %v403 = vunpack.c.l.b16 %v191
      %v404 = vunpack.c.h.b16 %v191
      %v405 = vunpack.c.l.b16 %v192
      %v406 = vunpack.c.h.b16 %v192
      %v407 = vunpack.c.l.b16 %v193
      %v408 = vunpack.c.h.b16 %v193
      %v409 = vunpack.c.l.b16 %v194
      %v410 = vunpack.c.h.b16 %v194
      %v411 = vunpack.c.l.b16 %v195
      %v412 = vunpack.c.h.b16 %v195
      %v413 = vunpack.c.l.b16 %v196
      %v414 = vunpack.c.h.b16 %v196
      %v415 = vunpack.c.l.b16 %v197
      %v416 = vunpack.c.h.b16 %v197
      %v417 = vunpack.c.l.b16 %v198
      %v418 = vunpack.c.h.b16 %v198
      %v419 = vunpack.c.l.b16 %v199
      %v420 = vunpack.c.h.b16 %v199
      %v421 = vunpack.c.l.b16 %v200
      %v422 = vunpack.c.h.b16 %v200
      %v423 = vunpack.c.l.b16 %v201
      %v424 = vunpack.c.h.b16 %v201
      %v425 = vunpack.c.l.b16 %v202
      %v426 = vunpack.c.h.b16 %v202
      %v427 = vunpack.c.l.b16 %v203
      %v428 = vunpack.c.h.b16 %v203
      %v429 = vunpack.c.l.b16 %v204
      %v430 = vunpack.c.h.b16 %v204
      %v431 = vunpack.c.l.b16 %v205
      %v432 = vunpack.c.h.b16 %v205
      %v433 = vunpack.c.l.b16 %v206
      %v434 = vunpack.c.h.b16 %v206
      %v435 = vunpack.c.l.b16 %v207
      %v436 = vunpack.c.h.b16 %v207
      %v437 = vunpack.c.l.b16 %v208
      %v438 = vunpack.c.h.b16 %v208
      %v439 = vunpack.c.l.b16 %v209
      %v440 = vunpack.c.h.b16 %v209
      %v441 = vunpack.c.l.b16 %v210
      %v442 = vunpack.c.h.b16 %v210
      %v443 = vunpack.c.l.b16 %v211
      %v444 = vunpack.c.h.b16 %v211
      %v445 = vunpack.c.l.b16 %v212
      %v446 = vunpack.c.h.b16 %v212
      %v447 = vunpack.c.l.b16 %v213
      %v448 = vunpack.c.h.b16 %v213
      %v449 = vunpack.c.l.b16 %v214
      %v450 = vunpack.c.h.b16 %v214
      %v451 = vunpack.c.l.b16 %v215
      %v452 = vunpack.c.h.b16 %v215
      %v453 = vunpack.c.l.b16 %v216
      %v454 = vunpack.c.h.b16 %v216
      %v455 = vunpack.c.l.b16 %v217
      %v456 = vunpack.c.h.b16 %v217
      %v457 = vunpack.c.l.b16 %v218
      %v458 = vunpack.c.h.b16 %v218
      %v459 = vunpack.c.l.b16 %v219
      %v460 = vunpack.c.h.b16 %v219
      %v461 = vunpack.c.l.b16 %v220
      %v462 = vunpack.c.h.b16 %v220
      %v463 = vunpack.c.l.b16 %v221
      %v464 = vunpack.c.h.b16 %v221
      %v465 = vunpack.c.l.b16 %v222
      %v466 = vunpack.c.h.b16 %v222
      %v467 = vunpack.c.l.b16 %v223
      %v468 = vunpack.c.h.b16 %v223
      %v469 = vunpack.c.l.b16 %v224
      %v470 = vunpack.c.h.b16 %v224
      %v471 = vunpack.c.l.b16 %v225
      %v472 = vunpack.c.h.b16 %v225
      %v473 = vunpack.c.l.b16 %v226
      %v474 = vunpack.c.h.b16 %v226
      %v475 = vunpack.c.l.b16 %v227
      %v476 = vunpack.c.h.b16 %v227
      %v477 = vunpack.c.l.b16 %v228
      %v478 = vunpack.c.h.b16 %v228
      %v479 = vunpack.c.l.b16 %v229
      %v480 = vunpack.c.h.b16 %v229
      %v481 = vunpack.c.l.b16 %v230
      %v482 = vunpack.c.h.b16 %v230
      %v483 = vunpack.c.l.b16 %v231
      %v484 = vunpack.c.h.b16 %v231
      %v485 = vunpack.c.l.b16 %v232
      %v486 = vunpack.c.h.b16 %v232
      %v487 = vunpack.c.l.b16 %v233
      %v488 = vunpack.c.h.b16 %v233
      %v489 = vunpack.c.l.b16 %v234
      %v490 = vunpack.c.h.b16 %v234
      %v491 = vunpack.c.l.b16 %v235
      %v492 = vunpack.c.h.b16 %v235
      %v493 = vunpack.c.l.b16 %v236
      %v494 = vunpack.c.h.b16 %v236
      %v495 = vunpack.c.l.b16 %v237
      %v496 = vunpack.c.h.b16 %v237
      %v497 = vunpack.c.l.b16 %v238
      %v498 = vunpack.c.h.b16 %v238
      %v499 = vunpack.c.l.b16 %v239
      %v500 = vunpack.c.h.b16 %v239
      %v501 = vunpack.c.l.b16 %v240
      %v502 = vunpack.c.h.b16 %v240
      %v503 = vunpack.c.l.b16 %v241
      %v504 = vunpack.c.h.b16 %v241
      %v505 = vpack.c.b16 %v381, %v377
      %v506 = vpack.c.b16 %v382, %v378
      %v507 = vpack.c.b16 %v383, %v379
      %v508 = vpack.c.b16 %v384, %v380
      %v509 = vpack.c.b16 %v389, %v385
      %v510 = vpack.c.b16 %v390, %v386
      %v511 = vpack.c.b16 %v391, %v387
      %v512 = vpack.c.b16 %v392, %v388
      %v513 = vpack.c.b16 %v397, %v393
      %v514 = vpack.c.b16 %v398, %v394
      %v515 = vpack.c.b16 %v399, %v395
      %v516 = vpack.c.b16 %v400, %v396
      %v517 = vpack.c.b16 %v405, %v401
      %v518 = vpack.c.b16 %v406, %v402
      %v519 = vpack.c.b16 %v407, %v403
      %v520 = vpack.c.b16 %v408, %v404
      %v521 = vpack.c.b16 %v413, %v409
      %v522 = vpack.c.b16 %v414, %v410
      %v523 = vpack.c.b16 %v415, %v411
      %v524 = vpack.c.b16 %v416, %v412
      %v525 = vpack.c.b16 %v421, %v417
      %v526 = vpack.c.b16 %v422, %v418
      %v527 = vpack.c.b16 %v423, %v419
      %v528 = vpack.c.b16 %v424, %v420
      %v529 = vpack.c.b16 %v429, %v425
      %v530 = vpack.c.b16 %v430, %v426
      %v531 = vpack.c.b16 %v431, %v427
      %v532 = vpack.c.b16 %v432, %v428
      %v533 = vpack.c.b16 %v437, %v433
      %v534 = vpack.c.b16 %v438, %v434
      %v535 = vpack.c.b16 %v439, %v435
      %v536 = vpack.c.b16 %v440, %v436
      %v537 = vpack.c.b16 %v445, %v441
      %v538 = vpack.c.b16 %v446, %v442
      %v539 = vpack.c.b16 %v447, %v443
      %v540 = vpack.c.b16 %v448, %v444
      %v541 = vpack.c.b16 %v453, %v449
      %v542 = vpack.c.b16 %v454, %v450
      %v543 = vpack.c.b16 %v455, %v451
      %v544 = vpack.c.b16 %v456, %v452
      %v545 = vpack.c.b16 %v461, %v457
      %v546 = vpack.c.b16 %v462, %v458
      %v547 = vpack.c.b16 %v463, %v459
      %v548 = vpack.c.b16 %v464, %v460
      %v549 = vpack.c.b16 %v469, %v465
      %v550 = vpack.c.b16 %v470, %v466
      %v551 = vpack.c.b16 %v471, %v467
      %v552 = vpack.c.b16 %v472, %v468
      %v553 = vpack.c.b16 %v477, %v473
      %v554 = vpack.c.b16 %v478, %v474
      %v555 = vpack.c.b16 %v479, %v475
      %v556 = vpack.c.b16 %v480, %v476
      %v557 = vpack.c.b16 %v485, %v481
      %v558 = vpack.c.b16 %v486, %v482
      %v559 = vpack.c.b16 %v487, %v483
      %v560 = vpack.c.b16 %v488, %v484
      %v561 = vpack.c.b16 %v493, %v489
      %v562 = vpack.c.b16 %v494, %v490
      %v563 = vpack.c.b16 %v495, %v491
      %v564 = vpack.c.b16 %v496, %v492
      %v565 = vpack.c.b16 %v501, %v497
      %v566 = vpack.c.b16 %v502, %v498
      %v567 = vpack.c.b16 %v503, %v499
      %v568 = vpack.c.b16 %v504, %v500
      %v697 = vunpack.c.l.b16 %v242
      %v698 = vunpack.c.l.b16 %v243
      %v699 = vunpack.c.l.b16 %v244
      %v700 = vunpack.c.l.b16 %v245
      %v701 = vunpack.c.l.b16 %v246
      %v702 = vunpack.c.l.b16 %v247
      %v703 = vunpack.c.l.b16 %v248
      %v704 = vunpack.c.l.b16 %v249
      %v705 = vunpack.c.l.b16 %v250
      %v706 = vunpack.c.l.b16 %v251
      %v707 = vunpack.c.l.b16 %v252
      %v708 = vunpack.c.l.b16 %v253
      %v709 = vunpack.c.l.b16 %v254
      %v710 = vunpack.c.l.b16 %v255
      %v711 = vunpack.c.l.b16 %v256
      %v712 = vunpack.c.l.b16 %v257
      %v713 = vunpack.c.l.b16 %v258
      %v714 = vunpack.c.l.b16 %v259
      %v715 = vunpack.c.l.b16 %v260
      %v716 = vunpack.c.l.b16 %v261
      %v717 = vunpack.c.l.b16 %v262
      %v718 = vunpack.c.l.b16 %v263
      %v719 = vunpack.c.l.b16 %v264
      %v720 = vunpack.c.l.b16 %v265
      %v721 = vunpack.c.l.b16 %v266
      %v722 = vunpack.c.l.b16 %v267
      %v723 = vunpack.c.l.b16 %v268
      %v724 = vunpack.c.l.b16 %v269
      %v725 = vunpack.c.l.b16 %v270
      %v726 = vunpack.c.l.b16 %v271
      %v727 = vunpack.c.l.b16 %v272
      %v728 = vunpack.c.l.b16 %v273
      %v729 = vunpack.c.l.b16 %v274
      %v730 = vunpack.c.l.b16 %v275
      %v731 = vunpack.c.l.b16 %v276
      %v732 = vunpack.c.l.b16 %v277
      %v733 = vunpack.c.l.b16 %v278
      %v734 = vunpack.c.l.b16 %v279
      %v735 = vunpack.c.l.b16 %v280
      %v736 = vunpack.c.l.b16 %v281
      %v737 = vunpack.c.l.b16 %v282
      %v738 = vunpack.c.l.b16 %v283
      %v739 = vunpack.c.l.b16 %v284
      %v740 = vunpack.c.l.b16 %v285
      %v741 = vunpack.c.l.b16 %v286
      %v742 = vunpack.c.l.b16 %v287
      %v743 = vunpack.c.l.b16 %v288
      %v744 = vunpack.c.l.b16 %v289
      %v745 = vunpack.c.l.b16 %v290
      %v746 = vunpack.c.l.b16 %v291
      %v747 = vunpack.c.l.b16 %v292
      %v748 = vunpack.c.l.b16 %v293
      %v749 = vunpack.c.l.b16 %v294
      %v750 = vunpack.c.l.b16 %v295
      %v751 = vunpack.c.l.b16 %v296
      %v752 = vunpack.c.l.b16 %v297
      %v753 = vunpack.c.l.b16 %v298
      %v754 = vunpack.c.l.b16 %v299
      %v755 = vunpack.c.l.b16 %v300
      %v756 = vunpack.c.l.b16 %v301
      %v757 = vunpack.c.l.b16 %v302
      %v758 = vunpack.c.l.b16 %v303
      %v759 = vunpack.c.l.b16 %v304
      %v760 = vunpack.c.l.b16 %v305
      %v761 = vpack.c.b16 %v698, %v697
      %v762 = vpack.c.b16 %v700, %v699
      %v763 = vpack.c.b16 %v702, %v701
      %v764 = vpack.c.b16 %v704, %v703
      %v765 = vpack.c.b16 %v706, %v705
      %v766 = vpack.c.b16 %v708, %v707
      %v767 = vpack.c.b16 %v710, %v709
      %v768 = vpack.c.b16 %v712, %v711
      %v769 = vpack.c.b16 %v714, %v713
      %v770 = vpack.c.b16 %v716, %v715
      %v771 = vpack.c.b16 %v718, %v717
      %v772 = vpack.c.b16 %v720, %v719
      %v773 = vpack.c.b16 %v722, %v721
      %v774 = vpack.c.b16 %v724, %v723
      %v775 = vpack.c.b16 %v726, %v725
      %v776 = vpack.c.b16 %v728, %v727
      %v777 = vpack.c.b16 %v730, %v729
      %v778 = vpack.c.b16 %v732, %v731
      %v779 = vpack.c.b16 %v734, %v733
      %v780 = vpack.c.b16 %v736, %v735
      %v781 = vpack.c.b16 %v738, %v737
      %v782 = vpack.c.b16 %v740, %v739
      %v783 = vpack.c.b16 %v742, %v741
      %v784 = vpack.c.b16 %v744, %v743
      %v785 = vpack.c.b16 %v746, %v745
      %v786 = vpack.c.b16 %v748, %v747
      %v787 = vpack.c.b16 %v750, %v749
      %v788 = vpack.c.b16 %v752, %v751
      %v789 = vpack.c.b16 %v754, %v753
      %v790 = vpack.c.b16 %v756, %v755
      %v791 = vpack.c.b16 %v758, %v757
      %v792 = vpack.c.b16 %v760, %v759
      %825 = vmatprep.subr.bf16.mxu0 0
      %826 = vmatpush1.bf16.msra.mxu0 %v761
      %827 = vmatprep.subr.bf16.mxu0 0
      %828 = vmatpush1.bf16.msra.mxu0 %v762
      %829 = vmatprep.subr.bf16.mxu0 0
      %830 = vmatpush1.bf16.msra.mxu0 %v763
      %831 = vmatprep.subr.bf16.mxu0 0
      %832 = vmatpush1.bf16.msra.mxu0 %v764
      %833 = vmatprep.subr.bf16.mxu0 0
      %834 = vmatpush1.bf16.msra.mxu0 %v765
      %835 = vmatprep.subr.bf16.mxu0 0
      %836 = vmatpush1.bf16.msra.mxu0 %v766
      %837 = vmatprep.subr.bf16.mxu0 0
      %838 = vmatpush1.bf16.msra.mxu0 %v767
      %839 = vmatprep.subr.bf16.mxu0 0
      %840 = vmatpush1.bf16.msra.mxu0 %v768
      %841 = vmatprep.subr.bf16.mxu0 0
      %842 = vmatpush1.bf16.msra.mxu0 %v769
      %843 = vmatprep.subr.bf16.mxu0 0
      %844 = vmatpush1.bf16.msra.mxu0 %v770
      %845 = vmatprep.subr.bf16.mxu0 0
      %846 = vmatpush1.bf16.msra.mxu0 %v771
      %847 = vmatprep.subr.bf16.mxu0 0
      %848 = vmatpush1.bf16.msra.mxu0 %v772
      %849 = vmatprep.subr.bf16.mxu0 0
      %850 = vmatpush1.bf16.msra.mxu0 %v773
      %851 = vmatprep.subr.bf16.mxu0 0
      %852 = vmatpush1.bf16.msra.mxu0 %v774
      %853 = vmatprep.subr.bf16.mxu0 0
      %854 = vmatpush1.bf16.msra.mxu0 %v775
      %855 = vmatprep.subr.bf16.mxu0 0
      %856 = vmatpush1.bf16.msra.mxu0 %v776
      %857 = vmatprep.mubr.bf16.mxu0 %v506
      %858 = vmatmul.mubr.bf16.gmra.mrb[0].mxu0 %v505
      %v859 = vpop.f32.mrb[0].mxu0
      %v860 = vadd.f32 %v311, %v859
      %v861 = vpop.f32.mrb[0].mxu0
      %v862 = vpop.f32.mrb[0].mxu0
      %v863 = vadd.f32 %v311, %v862
      %v864 = vpop.f32.mrb[0].mxu0
      %865 = vmatprep.mubr.bf16.mxu0 %v510
      %866 = vmatmul.mubr.bf16.gmra.mrb[0].mxu0 %v509
      %v867 = vpop.f32.mrb[0].mxu0
      %v868 = vadd.f32 %v311, %v867
      %v869 = vpop.f32.mrb[0].mxu0
      %v870 = vpop.f32.mrb[0].mxu0
      %v871 = vadd.f32 %v311, %v870
      %v872 = vpop.f32.mrb[0].mxu0
      %873 = vmatprep.mubr.bf16.mxu0 %v514
      %874 = vmatmul.mubr.bf16.gmra.mrb[0].mxu0 %v513
      %v875 = vpop.f32.mrb[0].mxu0
      %v876 = vadd.f32 %v311, %v875
      %v877 = vpop.f32.mrb[0].mxu0
      %v878 = vpop.f32.mrb[0].mxu0
      %v879 = vadd.f32 %v311, %v878
      %v880 = vpop.f32.mrb[0].mxu0
      %881 = vmatprep.mubr.bf16.mxu0 %v518
      %882 = vmatmul.mubr.bf16.gmra.mrb[0].mxu0 %v517
      %v883 = vpop.f32.mrb[0].mxu0
      %v884 = vadd.f32 %v311, %v883
      %v885 = vpop.f32.mrb[0].mxu0
      %v886 = vpop.f32.mrb[0].mxu0
      %v887 = vadd.f32 %v311, %v886
      %v888 = vpop.f32.mrb[0].mxu0
      %889 = vmatprep.mubr.bf16.mxu0 %v522
      %890 = vmatmul.mubr.bf16.gmra.mrb[0].mxu0 %v521
      %v891 = vpop.f32.mrb[0].mxu0
      %v892 = vadd.f32 %v311, %v891
      %v893 = vpop.f32.mrb[0].mxu0
      %v894 = vpop.f32.mrb[0].mxu0
      %v895 = vadd.f32 %v311, %v894
      %v896 = vpop.f32.mrb[0].mxu0
      %897 = vmatprep.mubr.bf16.mxu0 %v526
      %898 = vmatmul.mubr.bf16.gmra.mrb[0].mxu0 %v525
      %v899 = vpop.f32.mrb[0].mxu0
      %v900 = vadd.f32 %v311, %v899
      %v901 = vpop.f32.mrb[0].mxu0
      %v902 = vpop.f32.mrb[0].mxu0
      %v903 = vadd.f32 %v311, %v902
      %v904 = vpop.f32.mrb[0].mxu0
      %905 = vmatprep.mubr.bf16.mxu0 %v530
      %906 = vmatmul.mubr.bf16.gmra.mrb[0].mxu0 %v529
      %v907 = vpop.f32.mrb[0].mxu0
      %v908 = vadd.f32 %v311, %v907
      %v909 = vpop.f32.mrb[0].mxu0
      %v910 = vpop.f32.mrb[0].mxu0
      %v911 = vadd.f32 %v311, %v910
      %v912 = vpop.f32.mrb[0].mxu0
      %913 = vmatprep.mubr.bf16.mxu0 %v534
      %914 = vmatmul.mubr.bf16.gmra.mrb[0].mxu0 %v533
      %v915 = vpop.f32.mrb[0].mxu0
      %v916 = vadd.f32 %v311, %v915
      %v917 = vpop.f32.mrb[0].mxu0
      %v918 = vpop.f32.mrb[0].mxu0
      %v919 = vadd.f32 %v311, %v918
      %v920 = vpop.f32.mrb[0].mxu0
      %921 = vmatprep.mubr.bf16.mxu0 %v538
      %922 = vmatmul.mubr.bf16.gmra.mrb[0].mxu0 %v537
      %v923 = vpop.f32.mrb[0].mxu0
      %v924 = vadd.f32 %v311, %v923
      %v925 = vpop.f32.mrb[0].mxu0
      %v926 = vpop.f32.mrb[0].mxu0
      %v927 = vadd.f32 %v311, %v926
      %v928 = vpop.f32.mrb[0].mxu0
      %929 = vmatprep.mubr.bf16.mxu0 %v542
      %930 = vmatmul.mubr.bf16.gmra.mrb[0].mxu0 %v541
      %v931 = vpop.f32.mrb[0].mxu0
      %v932 = vadd.f32 %v311, %v931
      %v933 = vpop.f32.mrb[0].mxu0
      %v934 = vpop.f32.mrb[0].mxu0
      %v935 = vadd.f32 %v311, %v934
      %v936 = vpop.f32.mrb[0].mxu0
      %937 = vmatprep.mubr.bf16.mxu0 %v546
      %938 = vmatmul.mubr.bf16.gmra.mrb[0].mxu0 %v545
      %v939 = vpop.f32.mrb[0].mxu0
      %v940 = vadd.f32 %v311, %v939
      %v941 = vpop.f32.mrb[0].mxu0
      %v942 = vpop.f32.mrb[0].mxu0
      %v943 = vadd.f32 %v311, %v942
      %v944 = vpop.f32.mrb[0].mxu0
      %945 = vmatprep.mubr.bf16.mxu0 %v550
      %946 = vmatmul.mubr.bf16.gmra.mrb[0].mxu0 %v549
      %v947 = vpop.f32.mrb[0].mxu0
      %v948 = vadd.f32 %v311, %v947
      %v949 = vpop.f32.mrb[0].mxu0
      %v950 = vpop.f32.mrb[0].mxu0
      %v951 = vadd.f32 %v311, %v950
      %v952 = vpop.f32.mrb[0].mxu0
      %953 = vmatprep.mubr.bf16.mxu0 %v554
      %954 = vmatmul.mubr.bf16.gmra.mrb[0].mxu0 %v553
      %v955 = vpop.f32.mrb[0].mxu0
      %v956 = vadd.f32 %v311, %v955
      %v957 = vpop.f32.mrb[0].mxu0
      %v958 = vpop.f32.mrb[0].mxu0
      %v959 = vadd.f32 %v311, %v958
      %v960 = vpop.f32.mrb[0].mxu0
      %961 = vmatprep.mubr.bf16.mxu0 %v558
      %962 = vmatmul.mubr.bf16.gmra.mrb[0].mxu0 %v557
      %v963 = vpop.f32.mrb[0].mxu0
      %v964 = vadd.f32 %v311, %v963
      %v965 = vpop.f32.mrb[0].mxu0
      %v966 = vpop.f32.mrb[0].mxu0
      %v967 = vadd.f32 %v311, %v966
      %v968 = vpop.f32.mrb[0].mxu0
      %969 = vmatprep.mubr.bf16.mxu0 %v562
      %970 = vmatmul.mubr.bf16.gmra.mrb[0].mxu0 %v561
      %v971 = vpop.f32.mrb[0].mxu0
      %v972 = vadd.f32 %v311, %v971
      %v973 = vpop.f32.mrb[0].mxu0
      %v974 = vpop.f32.mrb[0].mxu0
      %v975 = vadd.f32 %v311, %v974
      %v976 = vpop.f32.mrb[0].mxu0
      %977 = vmatprep.mubr.bf16.mxu0 %v566
      %978 = vmatmul.mubr.bf16.gmra.mrb[0].mxu0 %v565
      %v979 = vpop.f32.mrb[0].mxu0
      %v980 = vadd.f32 %v311, %v979
      %v981 = vpop.f32.mrb[0].mxu0
      %v982 = vpop.f32.mrb[0].mxu0
      %v983 = vadd.f32 %v311, %v982
      %v984 = vpop.f32.mrb[0].mxu0
      %985 = vdwg.mxu0
      %986 = vmatprep.subr.bf16.mxu0 0
      %987 = vmatpush1.bf16.msra.mxu0 %v777
      %988 = vmatprep.subr.bf16.mxu0 0
      %989 = vmatpush1.bf16.msra.mxu0 %v778
      %990 = vmatprep.subr.bf16.mxu0 0
      %991 = vmatpush1.bf16.msra.mxu0 %v779
      %992 = vmatprep.subr.bf16.mxu0 0
      %993 = vmatpush1.bf16.msra.mxu0 %v780
      %994 = vmatprep.subr.bf16.mxu0 0
      %995 = vmatpush1.bf16.msra.mxu0 %v781
      %996 = vmatprep.subr.bf16.mxu0 0
      %997 = vmatpush1.bf16.msra.mxu0 %v782
      %998 = vmatprep.subr.bf16.mxu0 0
      %999 = vmatpush1.bf16.msra.mxu0 %v783
      %1000 = vmatprep.subr.bf16.mxu0 0
      %1001 = vmatpush1.bf16.msra.mxu0 %v784
      %1002 = vmatprep.subr.bf16.mxu0 0
      %1003 = vmatpush1.bf16.msra.mxu0 %v785
      %1004 = vmatprep.subr.bf16.mxu0 0
      %1005 = vmatpush1.bf16.msra.mxu0 %v786
      %1006 = vmatprep.subr.bf16.mxu0 0
      %1007 = vmatpush1.bf16.msra.mxu0 %v787
      %1008 = vmatprep.subr.bf16.mxu0 0
      %1009 = vmatpush1.bf16.msra.mxu0 %v788
      %1010 = vmatprep.subr.bf16.mxu0 0
      %1011 = vmatpush1.bf16.msra.mxu0 %v789
      %1012 = vmatprep.subr.bf16.mxu0 0
      %1013 = vmatpush1.bf16.msra.mxu0 %v790
      %1014 = vmatprep.subr.bf16.mxu0 0
      %1015 = vmatpush1.bf16.msra.mxu0 %v791
      %1016 = vmatprep.subr.bf16.mxu0 0
      %1017 = vmatpush1.bf16.msra.mxu0 %v792
      %1018 = vmatprep.mubr.bf16.mxu0 %v508
      %1019 = vmatmul.mubr.bf16.gmra.mrb[0].mxu0 %v507
      %v1020 = vpop.f32.mrb[0].mxu0
      %v1021 = vadd.f32 %v860, %v1020
      %v1022 = vpop.f32.mrb[0].mxu0
      %v1023 = vpop.f32.mrb[0].mxu0
      %v1024 = vadd.f32 %v863, %v1023
      %v1025 = vpop.f32.mrb[0].mxu0
      %1026 = vmatprep.mubr.bf16.mxu0 %v512
      %1027 = vmatmul.mubr.bf16.gmra.mrb[0].mxu0 %v511
      %v1028 = vpop.f32.mrb[0].mxu0
      %v1029 = vadd.f32 %v868, %v1028
      %v1030 = vpop.f32.mrb[0].mxu0
      %v1031 = vpop.f32.mrb[0].mxu0
      %v1032 = vadd.f32 %v871, %v1031
      %v1033 = vpop.f32.mrb[0].mxu0
      %1034 = vmatprep.mubr.bf16.mxu0 %v516
      %1035 = vmatmul.mubr.bf16.gmra.mrb[0].mxu0 %v515
      %v1036 = vpop.f32.mrb[0].mxu0
      %v1037 = vadd.f32 %v876, %v1036
      %v1038 = vpop.f32.mrb[0].mxu0
      %v1039 = vpop.f32.mrb[0].mxu0
      %v1040 = vadd.f32 %v879, %v1039
      %v1041 = vpop.f32.mrb[0].mxu0
      %1042 = vmatprep.mubr.bf16.mxu0 %v520
      %1043 = vmatmul.mubr.bf16.gmra.mrb[0].mxu0 %v519
      %v1044 = vpop.f32.mrb[0].mxu0
      %v1045 = vadd.f32 %v884, %v1044
      %v1046 = vpop.f32.mrb[0].mxu0
      %v1047 = vpop.f32.mrb[0].mxu0
      %v1048 = vadd.f32 %v887, %v1047
      %v1049 = vpop.f32.mrb[0].mxu0
      %1050 = vmatprep.mubr.bf16.mxu0 %v524
      %1051 = vmatmul.mubr.bf16.gmra.mrb[0].mxu0 %v523
      %v1052 = vpop.f32.mrb[0].mxu0
      %v1053 = vadd.f32 %v892, %v1052
      %v1054 = vpop.f32.mrb[0].mxu0
      %v1055 = vpop.f32.mrb[0].mxu0
      %v1056 = vadd.f32 %v895, %v1055
      %v1057 = vpop.f32.mrb[0].mxu0
      %1058 = vmatprep.mubr.bf16.mxu0 %v528
      %1059 = vmatmul.mubr.bf16.gmra.mrb[0].mxu0 %v527
      %v1060 = vpop.f32.mrb[0].mxu0
      %v1061 = vadd.f32 %v900, %v1060
      %v1062 = vpop.f32.mrb[0].mxu0
      %v1063 = vpop.f32.mrb[0].mxu0
      %v1064 = vadd.f32 %v903, %v1063
      %v1065 = vpop.f32.mrb[0].mxu0
      %1066 = vmatprep.mubr.bf16.mxu0 %v532
      %1067 = vmatmul.mubr.bf16.gmra.mrb[0].mxu0 %v531
      %v1068 = vpop.f32.mrb[0].mxu0
      %v1069 = vadd.f32 %v908, %v1068
      %v1070 = vpop.f32.mrb[0].mxu0
      %v1071 = vpop.f32.mrb[0].mxu0
      %v1072 = vadd.f32 %v911, %v1071
      %v1073 = vpop.f32.mrb[0].mxu0
      %1074 = vmatprep.mubr.bf16.mxu0 %v536
      %1075 = vmatmul.mubr.bf16.gmra.mrb[0].mxu0 %v535
      %v1076 = vpop.f32.mrb[0].mxu0
      %v1077 = vadd.f32 %v916, %v1076
      %v1078 = vpop.f32.mrb[0].mxu0
      %v1079 = vpop.f32.mrb[0].mxu0
      %v1080 = vadd.f32 %v919, %v1079
      %v1081 = vpop.f32.mrb[0].mxu0
      %1082 = vmatprep.mubr.bf16.mxu0 %v540
      %1083 = vmatmul.mubr.bf16.gmra.mrb[0].mxu0 %v539
      %v1084 = vpop.f32.mrb[0].mxu0
      %v1085 = vadd.f32 %v924, %v1084
      %v1086 = vpop.f32.mrb[0].mxu0
      %v1087 = vpop.f32.mrb[0].mxu0
      %v1088 = vadd.f32 %v927, %v1087
      %v1089 = vpop.f32.mrb[0].mxu0
      %1090 = vmatprep.mubr.bf16.mxu0 %v544
      %1091 = vmatmul.mubr.bf16.gmra.mrb[0].mxu0 %v543
      %v1092 = vpop.f32.mrb[0].mxu0
      %v1093 = vadd.f32 %v932, %v1092
      %v1094 = vpop.f32.mrb[0].mxu0
      %v1095 = vpop.f32.mrb[0].mxu0
      %v1096 = vadd.f32 %v935, %v1095
      %v1097 = vpop.f32.mrb[0].mxu0
      %1098 = vmatprep.mubr.bf16.mxu0 %v548
      %1099 = vmatmul.mubr.bf16.gmra.mrb[0].mxu0 %v547
      %v1100 = vpop.f32.mrb[0].mxu0
      %v1101 = vadd.f32 %v940, %v1100
      %v1102 = vpop.f32.mrb[0].mxu0
      %v1103 = vpop.f32.mrb[0].mxu0
      %v1104 = vadd.f32 %v943, %v1103
      %v1105 = vpop.f32.mrb[0].mxu0
      %1106 = vmatprep.mubr.bf16.mxu0 %v552
      %1107 = vmatmul.mubr.bf16.gmra.mrb[0].mxu0 %v551
      %v1108 = vpop.f32.mrb[0].mxu0
      %v1109 = vadd.f32 %v948, %v1108
      %v1110 = vpop.f32.mrb[0].mxu0
      %v1111 = vpop.f32.mrb[0].mxu0
      %v1112 = vadd.f32 %v951, %v1111
      %v1113 = vpop.f32.mrb[0].mxu0
      %1114 = vmatprep.mubr.bf16.mxu0 %v556
      %1115 = vmatmul.mubr.bf16.gmra.mrb[0].mxu0 %v555
      %v1116 = vpop.f32.mrb[0].mxu0
      %v1117 = vadd.f32 %v956, %v1116
      %v1118 = vpop.f32.mrb[0].mxu0
      %v1119 = vpop.f32.mrb[0].mxu0
      %v1120 = vadd.f32 %v959, %v1119
      %v1121 = vpop.f32.mrb[0].mxu0
      %1122 = vmatprep.mubr.bf16.mxu0 %v560
      %1123 = vmatmul.mubr.bf16.gmra.mrb[0].mxu0 %v559
      %v1124 = vpop.f32.mrb[0].mxu0
      %v1125 = vadd.f32 %v964, %v1124
      %v1126 = vpop.f32.mrb[0].mxu0
      %v1127 = vpop.f32.mrb[0].mxu0
      %v1128 = vadd.f32 %v967, %v1127
      %v1129 = vpop.f32.mrb[0].mxu0
      %1130 = vmatprep.mubr.bf16.mxu0 %v564
      %1131 = vmatmul.mubr.bf16.gmra.mrb[0].mxu0 %v563
      %v1132 = vpop.f32.mrb[0].mxu0
      %v1133 = vadd.f32 %v972, %v1132
      %v1134 = vpop.f32.mrb[0].mxu0
      %v1135 = vpop.f32.mrb[0].mxu0
      %v1136 = vadd.f32 %v975, %v1135
      %v1137 = vpop.f32.mrb[0].mxu0
      %1138 = vmatprep.mubr.bf16.mxu0 %v568
      %1139 = vmatmul.mubr.bf16.gmra.mrb[0].mxu0 %v567
      %v1140 = vpop.f32.mrb[0].mxu0
      %v1141 = vadd.f32 %v980, %v1140
      %v1142 = vpop.f32.mrb[0].mxu0
      %v1143 = vpop.f32.mrb[0].mxu0
      %v1144 = vadd.f32 %v983, %v1143
      %v1145 = vpop.f32.mrb[0].mxu0
      %1146 = vdwg.mxu0
      %v1147 = vmax.f32 %v1021, 0.0
      %v1148 = vmax.f32 %v1024, 0.0
      %v1149 = vmax.f32 %v1029, 0.0
      %v1150 = vmax.f32 %v1032, 0.0
      %v1151 = vmax.f32 %v1037, 0.0
      %v1152 = vmax.f32 %v1040, 0.0
      %v1153 = vmax.f32 %v1045, 0.0
      %v1154 = vmax.f32 %v1048, 0.0
      %v1155 = vmax.f32 %v1053, 0.0
      %v1156 = vmax.f32 %v1056, 0.0
      %v1157 = vmax.f32 %v1061, 0.0
      %v1158 = vmax.f32 %v1064, 0.0
      %v1159 = vmax.f32 %v1069, 0.0
      %v1160 = vmax.f32 %v1072, 0.0
      %v1161 = vmax.f32 %v1077, 0.0
      %v1162 = vmax.f32 %v1080, 0.0
      %v1163 = vmax.f32 %v1085, 0.0
      %v1164 = vmax.f32 %v1088, 0.0
      %v1165 = vmax.f32 %v1093, 0.0
      %v1166 = vmax.f32 %v1096, 0.0
      %v1167 = vmax.f32 %v1101, 0.0
      %v1168 = vmax.f32 %v1104, 0.0
      %v1169 = vmax.f32 %v1109, 0.0
      %v1170 = vmax.f32 %v1112, 0.0
      %v1171 = vmax.f32 %v1117, 0.0
      %v1172 = vmax.f32 %v1120, 0.0
      %v1173 = vmax.f32 %v1125, 0.0
      %v1174 = vmax.f32 %v1128, 0.0
      %v1175 = vmax.f32 %v1133, 0.0
      %v1176 = vmax.f32 %v1136, 0.0
      %v1177 = vmax.f32 %v1141, 0.0
      %v1178 = vmax.f32 %v1144, 0.0
      %v1179 = vpack.c.bf16 %v1148, %v1147
      %v1180 = vpack.c.bf16 %v1150, %v1149
      %v1181 = vpack.c.bf16 %v1152, %v1151
      %v1182 = vpack.c.bf16 %v1154, %v1153
      %v1183 = vpack.c.bf16 %v1156, %v1155
      %v1184 = vpack.c.bf16 %v1158, %v1157
      %v1185 = vpack.c.bf16 %v1160, %v1159
      %v1186 = vpack.c.bf16 %v1162, %v1161
      %v1187 = vpack.c.bf16 %v1164, %v1163
      %v1188 = vpack.c.bf16 %v1166, %v1165
      %v1189 = vpack.c.bf16 %v1168, %v1167
      %v1190 = vpack.c.bf16 %v1170, %v1169
      %v1191 = vpack.c.bf16 %v1172, %v1171
      %v1192 = vpack.c.bf16 %v1174, %v1173
      %v1193 = vpack.c.bf16 %v1176, %v1175
      %v1194 = vpack.c.bf16 %v1178, %v1177
      %v1211 = vunpack.c.l.b16 %v1179
      %v1212 = vunpack.c.h.b16 %v1179
      %v1213 = vunpack.c.l.b16 %v1180
      %v1214 = vunpack.c.h.b16 %v1180
      %v1215 = vunpack.c.l.b16 %v1181
      %v1216 = vunpack.c.h.b16 %v1181
      %v1217 = vunpack.c.l.b16 %v1182
      %v1218 = vunpack.c.h.b16 %v1182
      %v1219 = vunpack.c.l.b16 %v1183
      %v1220 = vunpack.c.h.b16 %v1183
      %v1221 = vunpack.c.l.b16 %v1184
      %v1222 = vunpack.c.h.b16 %v1184
      %v1223 = vunpack.c.l.b16 %v1185
      %v1224 = vunpack.c.h.b16 %v1185
      %v1225 = vunpack.c.l.b16 %v1186
      %v1226 = vunpack.c.h.b16 %v1186
      %v1227 = vunpack.c.l.b16 %v1187
      %v1228 = vunpack.c.h.b16 %v1187
      %v1229 = vunpack.c.l.b16 %v1188
      %v1230 = vunpack.c.h.b16 %v1188
      %v1231 = vunpack.c.l.b16 %v1189
      %v1232 = vunpack.c.h.b16 %v1189
      %v1233 = vunpack.c.l.b16 %v1190
      %v1234 = vunpack.c.h.b16 %v1190
      %v1235 = vunpack.c.l.b16 %v1191
      %v1236 = vunpack.c.h.b16 %v1191
      %v1237 = vunpack.c.l.b16 %v1192
      %v1238 = vunpack.c.h.b16 %v1192
      %v1239 = vunpack.c.l.b16 %v1193
      %v1240 = vunpack.c.h.b16 %v1193
      %v1241 = vunpack.c.l.b16 %v1194
      %v1242 = vunpack.c.h.b16 %v1194
      %v1243 = vpack.c.b16 %v1211, %v1211
      %v1244 = vpack.c.b16 %v1212, %v1212
      %v1245 = vpack.c.b16 %v1213, %v1213
      %v1246 = vpack.c.b16 %v1214, %v1214
      %v1247 = vpack.c.b16 %v1215, %v1215
      %v1248 = vpack.c.b16 %v1216, %v1216
      %v1249 = vpack.c.b16 %v1217, %v1217
      %v1250 = vpack.c.b16 %v1218, %v1218
      %v1251 = vpack.c.b16 %v1219, %v1219
      %v1252 = vpack.c.b16 %v1220, %v1220
      %v1253 = vpack.c.b16 %v1221, %v1221
      %v1254 = vpack.c.b16 %v1222, %v1222
      %v1255 = vpack.c.b16 %v1223, %v1223
      %v1256 = vpack.c.b16 %v1224, %v1224
      %v1257 = vpack.c.b16 %v1225, %v1225
      %v1258 = vpack.c.b16 %v1226, %v1226
      %v1259 = vpack.c.b16 %v1227, %v1227
      %v1260 = vpack.c.b16 %v1228, %v1228
      %v1261 = vpack.c.b16 %v1229, %v1229
      %v1262 = vpack.c.b16 %v1230, %v1230
      %v1263 = vpack.c.b16 %v1231, %v1231
      %v1264 = vpack.c.b16 %v1232, %v1232
      %v1265 = vpack.c.b16 %v1233, %v1233
      %v1266 = vpack.c.b16 %v1234, %v1234
      %v1267 = vpack.c.b16 %v1235, %v1235
      %v1268 = vpack.c.b16 %v1236, %v1236
      %v1269 = vpack.c.b16 %v1237, %v1237
      %v1270 = vpack.c.b16 %v1238, %v1238
      %v1271 = vpack.c.b16 %v1239, %v1239
      %v1272 = vpack.c.b16 %v1240, %v1240
      %v1273 = vpack.c.b16 %v1241, %v1241
      %v1274 = vpack.c.b16 %v1242, %v1242
      %vm1307 = vcmask 257024
      %1308 = vst.msk [vmem:[%s175] sm:$0xf] %vm1307, %v1243
      %1309 = vst.msk [vmem:[%s175 + $0x4] sm:$0xf] %vm1307, %v1244
      %1310 = vst.msk [vmem:[%s175 + $0x8] sm:$0xf] %vm1307, %v1245
      %1311 = vst.msk [vmem:[%s175 + $0xc] sm:$0xf] %vm1307, %v1246
      %1312 = vst.msk [vmem:[%s175 + $0x10] sm:$0xf] %vm1307, %v1247
      %1313 = vst.msk [vmem:[%s175 + $0x14] sm:$0xf] %vm1307, %v1248
      %1314 = vst.msk [vmem:[%s175 + $0x18] sm:$0xf] %vm1307, %v1249
      %1315 = vst.msk [vmem:[%s175 + $0x1c] sm:$0xf] %vm1307, %v1250
      %1316 = vst.msk [vmem:[%s175 + $0x20] sm:$0xf] %vm1307, %v1251
      %1317 = vst.msk [vmem:[%s175 + $0x24] sm:$0xf] %vm1307, %v1252
      %1318 = vst.msk [vmem:[%s175 + $0x28] sm:$0xf] %vm1307, %v1253
      %1319 = vst.msk [vmem:[%s175 + $0x2c] sm:$0xf] %vm1307, %v1254
      %1320 = vst.msk [vmem:[%s175 + $0x30] sm:$0xf] %vm1307, %v1255
      %1321 = vst.msk [vmem:[%s175 + $0x34] sm:$0xf] %vm1307, %v1256
      %1322 = vst.msk [vmem:[%s175 + $0x38] sm:$0xf] %vm1307, %v1257
      %1323 = vst.msk [vmem:[%s175 + $0x3c] sm:$0xf] %vm1307, %v1258
      %1324 = vst.msk [vmem:[%s175 + $0x40] sm:$0xf] %vm1307, %v1259
      %1325 = vst.msk [vmem:[%s175 + $0x44] sm:$0xf] %vm1307, %v1260
      %1326 = vst.msk [vmem:[%s175 + $0x48] sm:$0xf] %vm1307, %v1261
      %1327 = vst.msk [vmem:[%s175 + $0x4c] sm:$0xf] %vm1307, %v1262
      %1328 = vst.msk [vmem:[%s175 + $0x50] sm:$0xf] %vm1307, %v1263
      %1329 = vst.msk [vmem:[%s175 + $0x54] sm:$0xf] %vm1307, %v1264
      %1330 = vst.msk [vmem:[%s175 + $0x58] sm:$0xf] %vm1307, %v1265
      %1331 = vst.msk [vmem:[%s175 + $0x5c] sm:$0xf] %vm1307, %v1266
      %1332 = vst.msk [vmem:[%s175 + $0x60] sm:$0xf] %vm1307, %v1267
      %1333 = vst.msk [vmem:[%s175 + $0x64] sm:$0xf] %vm1307, %v1268
      %1334 = vst.msk [vmem:[%s175 + $0x68] sm:$0xf] %vm1307, %v1269
      %1335 = vst.msk [vmem:[%s175 + $0x6c] sm:$0xf] %vm1307, %v1270
      %1336 = vst.msk [vmem:[%s175 + $0x70] sm:$0xf] %vm1307, %v1271
      %1337 = vst.msk [vmem:[%s175 + $0x74] sm:$0xf] %vm1307, %v1272
      %1338 = vst.msk [vmem:[%s175 + $0x78] sm:$0xf] %vm1307, %v1273
      %1339 = vst.msk [vmem:[%s175 + $0x7c] sm:$0xf] %vm1307, %v1274
      %s1340 = smul.u32 32, %s14
      %p1341 = scmp.lt.s32.totalorder %s1340, 63
      %s1342 = scalar_select %p1341, %s1340, 63
      %s1343 = smul.addr %s1342, 4
      %s1344 = scalar_lea.vmem %s3, %s1343
      // Predicated region
      $region33: #{vae_forward.10} parent=31 // pred_check
        %p1345 = pneg %p100
      $region34: #{vae_forward.10} parent=31 // pred_check_branch
        %1347 = sbr.rel (%p1345) target = $region36
      $region35: #{vae_forward.10} parent=31 // pred_region
        %s1348 = smul.u32 32, %s14
      $region36: #{vae_forward.10} parent=31 // pred_fallthru
        _
    $region32: #{vae_forward.10} parent=5 // pred_fallthru
      _
    %p1349 = scmp.le.s32.totalorder 2, %s9
    // Predicated region
    $region37: #{vae_forward.10} parent=5 // pred_check
      %p1350 = pneg %p1349
    $region38: #{vae_forward.10} parent=5 // pred_check_branch
      %1352 = sbr.rel (%p1350) target = $region40
    $region39: #{vae_forward.10} parent=5 // pred_region
      %s1353 = ssub.s32 %s9, 2
      // Predicated region
      $region41: #{vae_forward.10} parent=39 // pred_check
        %p1354 = pneg %p106
      $region42: #{vae_forward.10} parent=39 // pred_check_branch
        %1356 = sbr.rel (%p1354) target = $region44
      $region43: #{vae_forward.10} parent=39 // pred_region
        %s1357 = smul.u32 32, %s15
        %p1358 = scmp.lt.s32.totalorder %s1357, 63
        %s1359 = scalar_select %p1358, %s1357, 63
        %s1360 = smul.addr %s1359, 4
        %s1361 = scalar_lea.vmem %s3, %s1360
      $region44: #{vae_forward.10} parent=39 // pred_fallthru
        _
    $region40: #{vae_forward.10} parent=5 // pred_fallthru
      _
  $region6: #{vae_forward.10} parent=0 // loop_footer
    %s13 = sadd.s32 1, %s9
  $region7: #{vae_forward.10} parent=0 // loop_footer_branch
    %8 = sbr.rel target = $region3
  $region8: #{vae_forward.10} parent=0 // loop_exit
    _

// kernel: vae_forward.11
$region0: #{vae_forward.11}
  #allocation0 [shape = 'u32[]', space=smem, size = 0x4, offset = 0x4, fixed_abs, tag = 'smem constant byte address 0x4 - core index']
  #allocation1 [shape = 'u32[144,128]{1,0:T(1,128)}', space=vmem, size = 0x12000, scoped, tag = 'internal scratch']
  %s0 = inlined_call_operand.vmem [shape: bf16[128,512], index: 0, kind: input, shape index: {}]
  %s1 = inlined_call_operand.vmem [shape: bf16[512,64], index: 1, kind: input, shape index: {}]
  %s2 = inlined_call_operand.vmem [shape: f32[1,64], index: 2, kind: input, shape index: {}]
  %s3 = inlined_call_operand.vmem [shape: bf16[128,64], index: 3, kind: output, shape index: {}]
  %s4 = sld [smem:[#allocation0]]
  $region22: #{vae_forward.11} parent=0
    _
  %s6 = ssub.s32 1, %s4
  %s7 = scalar_select 0, %s6, %s4
  // Predicated region
  $region2: #{vae_forward.11} parent=0 // pred_check
    _
  $region3: #{vae_forward.11} parent=0 // pred_check_branch
    %9 = sbr.rel (0) target = $region5
  $region4: #{vae_forward.11} parent=0 // pred_region
    _
  $region5: #{vae_forward.11} parent=0 // pred_fallthru
    _
  // Predicated region
  $region6: #{vae_forward.11} parent=0 // pred_check
    _
  $region7: #{vae_forward.11} parent=0 // pred_check_branch
    %11 = sbr.rel (0) target = $region9
  $region8: #{vae_forward.11} parent=0 // pred_region
    _
  $region9: #{vae_forward.11} parent=0 // pred_fallthru
    _
  // Predicated region
  $region10: #{vae_forward.11} parent=0 // pred_check
    _
  $region11: #{vae_forward.11} parent=0 // pred_check_branch
    %13 = sbr.rel (0) target = $region13
  $region12: #{vae_forward.11} parent=0 // pred_region
    _
  $region13: #{vae_forward.11} parent=0 // pred_fallthru
    _
  %v15 = vld [vmem:[%s0] sm:$0xff]
  %v16 = vld [vmem:[%s0 + $0x8] sm:$0xff]
  %v17 = vld [vmem:[%s0 + $0x10] sm:$0xff]
  %v18 = vld [vmem:[%s0 + $0x18] sm:$0xff]
  %v19 = vld [vmem:[%s0 + $0x20] sm:$0xff]
  %v20 = vld [vmem:[%s0 + $0x28] sm:$0xff]
  %v21 = vld [vmem:[%s0 + $0x30] sm:$0xff]
  %v22 = vld [vmem:[%s0 + $0x38] sm:$0xff]
  %v23 = vld [vmem:[%s0 + $0x40] sm:$0xff]
  %v24 = vld [vmem:[%s0 + $0x48] sm:$0xff]
  %v25 = vld [vmem:[%s0 + $0x50] sm:$0xff]
  %v26 = vld [vmem:[%s0 + $0x58] sm:$0xff]
  %v27 = vld [vmem:[%s0 + $0x60] sm:$0xff]
  %v28 = vld [vmem:[%s0 + $0x68] sm:$0xff]
  %v29 = vld [vmem:[%s0 + $0x70] sm:$0xff]
  %v30 = vld [vmem:[%s0 + $0x78] sm:$0xff]
  %v31 = vld [vmem:[%s0 + $0x80] sm:$0xff]
  %v32 = vld [vmem:[%s0 + $0x88] sm:$0xff]
  %v33 = vld [vmem:[%s0 + $0x90] sm:$0xff]
  %v34 = vld [vmem:[%s0 + $0x98] sm:$0xff]
  %v35 = vld [vmem:[%s0 + $0xa0] sm:$0xff]
  %v36 = vld [vmem:[%s0 + $0xa8] sm:$0xff]
  %v37 = vld [vmem:[%s0 + $0xb0] sm:$0xff]
  %v38 = vld [vmem:[%s0 + $0xb8] sm:$0xff]
  %v39 = vld [vmem:[%s0 + $0xc0] sm:$0xff]
  %v40 = vld [vmem:[%s0 + $0xc8] sm:$0xff]
  %v41 = vld [vmem:[%s0 + $0xd0] sm:$0xff]
  %v42 = vld [vmem:[%s0 + $0xd8] sm:$0xff]
  %v43 = vld [vmem:[%s0 + $0xe0] sm:$0xff]
  %v44 = vld [vmem:[%s0 + $0xe8] sm:$0xff]
  %v45 = vld [vmem:[%s0 + $0xf0] sm:$0xff]
  %v46 = vld [vmem:[%s0 + $0xf8] sm:$0xff]
  %v47 = vld [vmem:[%s1] sm:$0xf]
  %v48 = vld [vmem:[%s1 + $0x4] sm:$0xf]
  %v49 = vld [vmem:[%s1 + $0x8] sm:$0xf]
  %v50 = vld [vmem:[%s1 + $0xc] sm:$0xf]
  %v51 = vld [vmem:[%s1 + $0x10] sm:$0xf]
  %v52 = vld [vmem:[%s1 + $0x14] sm:$0xf]
  %v53 = vld [vmem:[%s1 + $0x18] sm:$0xf]
  %v54 = vld [vmem:[%s1 + $0x1c] sm:$0xf]
  %v55 = vld [vmem:[%s1 + $0x20] sm:$0xf]
  %v56 = vld [vmem:[%s1 + $0x24] sm:$0xf]
  %v57 = vld [vmem:[%s1 + $0x28] sm:$0xf]
  %v58 = vld [vmem:[%s1 + $0x2c] sm:$0xf]
  %v59 = vld [vmem:[%s1 + $0x30] sm:$0xf]
  %v60 = vld [vmem:[%s1 + $0x34] sm:$0xf]
  %v61 = vld [vmem:[%s1 + $0x38] sm:$0xf]
  %v62 = vld [vmem:[%s1 + $0x3c] sm:$0xf]
  %v63 = vld [vmem:[%s1 + $0x40] sm:$0xf]
  %v64 = vld [vmem:[%s1 + $0x44] sm:$0xf]
  %v65 = vld [vmem:[%s1 + $0x48] sm:$0xf]
  %v66 = vld [vmem:[%s1 + $0x4c] sm:$0xf]
  %v67 = vld [vmem:[%s1 + $0x50] sm:$0xf]
  %v68 = vld [vmem:[%s1 + $0x54] sm:$0xf]
  %v69 = vld [vmem:[%s1 + $0x58] sm:$0xf]
  %v70 = vld [vmem:[%s1 + $0x5c] sm:$0xf]
  %v71 = vld [vmem:[%s1 + $0x60] sm:$0xf]
  %v72 = vld [vmem:[%s1 + $0x64] sm:$0xf]
  %v73 = vld [vmem:[%s1 + $0x68] sm:$0xf]
  %v74 = vld [vmem:[%s1 + $0x6c] sm:$0xf]
  %v75 = vld [vmem:[%s1 + $0x70] sm:$0xf]
  %v76 = vld [vmem:[%s1 + $0x74] sm:$0xf]
  %v77 = vld [vmem:[%s1 + $0x78] sm:$0xf]
  %v78 = vld [vmem:[%s1 + $0x7c] sm:$0xf]
  %v79 = vld [vmem:[%s1 + $0x80] sm:$0xf]
  %v80 = vld [vmem:[%s1 + $0x84] sm:$0xf]
  %v81 = vld [vmem:[%s1 + $0x88] sm:$0xf]
  %v82 = vld [vmem:[%s1 + $0x8c] sm:$0xf]
  %v83 = vld [vmem:[%s1 + $0x90] sm:$0xf]
  %v84 = vld [vmem:[%s1 + $0x94] sm:$0xf]
  %v85 = vld [vmem:[%s1 + $0x98] sm:$0xf]
  %v86 = vld [vmem:[%s1 + $0x9c] sm:$0xf]
  %v87 = vld [vmem:[%s1 + $0xa0] sm:$0xf]
  %v88 = vld [vmem:[%s1 + $0xa4] sm:$0xf]
  %v89 = vld [vmem:[%s1 + $0xa8] sm:$0xf]
  %v90 = vld [vmem:[%s1 + $0xac] sm:$0xf]
  %v91 = vld [vmem:[%s1 + $0xb0] sm:$0xf]
  %v92 = vld [vmem:[%s1 + $0xb4] sm:$0xf]
  %v93 = vld [vmem:[%s1 + $0xb8] sm:$0xf]
  %v94 = vld [vmem:[%s1 + $0xbc] sm:$0xf]
  %v95 = vld [vmem:[%s1 + $0xc0] sm:$0xf]
  %v96 = vld [vmem:[%s1 + $0xc4] sm:$0xf]
  %v97 = vld [vmem:[%s1 + $0xc8] sm:$0xf]
  %v98 = vld [vmem:[%s1 + $0xcc] sm:$0xf]
  %v99 = vld [vmem:[%s1 + $0xd0] sm:$0xf]
  %v100 = vld [vmem:[%s1 + $0xd4] sm:$0xf]
  %v101 = vld [vmem:[%s1 + $0xd8] sm:$0xf]
  %v102 = vld [vmem:[%s1 + $0xdc] sm:$0xf]
  %v103 = vld [vmem:[%s1 + $0xe0] sm:$0xf]
  %v104 = vld [vmem:[%s1 + $0xe4] sm:$0xf]
  %v105 = vld [vmem:[%s1 + $0xe8] sm:$0xf]
  %v106 = vld [vmem:[%s1 + $0xec] sm:$0xf]
  %v107 = vld [vmem:[%s1 + $0xf0] sm:$0xf]
  %v108 = vld [vmem:[%s1 + $0xf4] sm:$0xf]
  %v109 = vld [vmem:[%s1 + $0xf8] sm:$0xf]
  %v110 = vld [vmem:[%s1 + $0xfc] sm:$0xf]
  %v111 = vld [vmem:[%s2] sm:$0x1]
  %v113 = vlaneseq
  %v114 = vshrl.u32 %v113, 7
  %v115 = vsub.s32 0, %v114
  %v116 = vrot.slane %v111, %v115
  %v150 = vunpack.c.l.b16 %v15
  %v151 = vunpack.c.h.b16 %v15
  %v152 = vunpack.c.l.b16 %v16
  %v153 = vunpack.c.h.b16 %v16
  %v154 = vunpack.c.l.b16 %v17
  %v155 = vunpack.c.h.b16 %v17
  %v156 = vunpack.c.l.b16 %v18
  %v157 = vunpack.c.h.b16 %v18
  %v158 = vunpack.c.l.b16 %v19
  %v159 = vunpack.c.h.b16 %v19
  %v160 = vunpack.c.l.b16 %v20
  %v161 = vunpack.c.h.b16 %v20
  %v162 = vunpack.c.l.b16 %v21
  %v163 = vunpack.c.h.b16 %v21
  %v164 = vunpack.c.l.b16 %v22
  %v165 = vunpack.c.h.b16 %v22
  %v166 = vunpack.c.l.b16 %v23
  %v167 = vunpack.c.h.b16 %v23
  %v168 = vunpack.c.l.b16 %v24
  %v169 = vunpack.c.h.b16 %v24
  %v170 = vunpack.c.l.b16 %v25
  %v171 = vunpack.c.h.b16 %v25
  %v172 = vunpack.c.l.b16 %v26
  %v173 = vunpack.c.h.b16 %v26
  %v174 = vunpack.c.l.b16 %v27
  %v175 = vunpack.c.h.b16 %v27
  %v176 = vunpack.c.l.b16 %v28
  %v177 = vunpack.c.h.b16 %v28
  %v178 = vunpack.c.l.b16 %v29
  %v179 = vunpack.c.h.b16 %v29
  %v180 = vunpack.c.l.b16 %v30
  %v181 = vunpack.c.h.b16 %v30
  %v182 = vunpack.c.l.b16 %v31
  %v183 = vunpack.c.h.b16 %v31
  %v184 = vunpack.c.l.b16 %v32
  %v185 = vunpack.c.h.b16 %v32
  %v186 = vunpack.c.l.b16 %v33
  %v187 = vunpack.c.h.b16 %v33
  %v188 = vunpack.c.l.b16 %v34
  %v189 = vunpack.c.h.b16 %v34
  %v190 = vunpack.c.l.b16 %v35
  %v191 = vunpack.c.h.b16 %v35
  %v192 = vunpack.c.l.b16 %v36
  %v193 = vunpack.c.h.b16 %v36
  %v194 = vunpack.c.l.b16 %v37
  %v195 = vunpack.c.h.b16 %v37
  %v196 = vunpack.c.l.b16 %v38
  %v197 = vunpack.c.h.b16 %v38
  %v198 = vunpack.c.l.b16 %v39
  %v199 = vunpack.c.h.b16 %v39
  %v200 = vunpack.c.l.b16 %v40
  %v201 = vunpack.c.h.b16 %v40
  %v202 = vunpack.c.l.b16 %v41
  %v203 = vunpack.c.h.b16 %v41
  %v204 = vunpack.c.l.b16 %v42
  %v205 = vunpack.c.h.b16 %v42
  %v206 = vunpack.c.l.b16 %v43
  %v207 = vunpack.c.h.b16 %v43
  %v208 = vunpack.c.l.b16 %v44
  %v209 = vunpack.c.h.b16 %v44
  %v210 = vunpack.c.l.b16 %v45
  %v211 = vunpack.c.h.b16 %v45
  %v212 = vunpack.c.l.b16 %v46
  %v213 = vunpack.c.h.b16 %v46
  %v214 = vpack.c.b16 %v154, %v150
  %v215 = vpack.c.b16 %v155, %v151
  %v216 = vpack.c.b16 %v156, %v152
  %v217 = vpack.c.b16 %v157, %v153
  %v218 = vpack.c.b16 %v162, %v158
  %v219 = vpack.c.b16 %v163, %v159
  %v220 = vpack.c.b16 %v164, %v160
  %v221 = vpack.c.b16 %v165, %v161
  %v222 = vpack.c.b16 %v170, %v166
  %v223 = vpack.c.b16 %v171, %v167
  %v224 = vpack.c.b16 %v172, %v168
  %v225 = vpack.c.b16 %v173, %v169
  %v226 = vpack.c.b16 %v178, %v174
  %v227 = vpack.c.b16 %v179, %v175
  %v228 = vpack.c.b16 %v180, %v176
  %v229 = vpack.c.b16 %v181, %v177
  %v230 = vpack.c.b16 %v186, %v182
  %v231 = vpack.c.b16 %v187, %v183
  %v232 = vpack.c.b16 %v188, %v184
  %v233 = vpack.c.b16 %v189, %v185
  %v234 = vpack.c.b16 %v194, %v190
  %v235 = vpack.c.b16 %v195, %v191
  %v236 = vpack.c.b16 %v196, %v192
  %v237 = vpack.c.b16 %v197, %v193
  %v238 = vpack.c.b16 %v202, %v198
  %v239 = vpack.c.b16 %v203, %v199
  %v240 = vpack.c.b16 %v204, %v200
  %v241 = vpack.c.b16 %v205, %v201
  %v242 = vpack.c.b16 %v210, %v206
  %v243 = vpack.c.b16 %v211, %v207
  %v244 = vpack.c.b16 %v212, %v208
  %v245 = vpack.c.b16 %v213, %v209
  %v342 = vunpack.c.l.b16 %v47
  %v343 = vunpack.c.l.b16 %v48
  %v344 = vunpack.c.l.b16 %v49
  %v345 = vunpack.c.l.b16 %v50
  %v346 = vunpack.c.l.b16 %v51
  %v347 = vunpack.c.l.b16 %v52
  %v348 = vunpack.c.l.b16 %v53
  %v349 = vunpack.c.l.b16 %v54
  %v350 = vunpack.c.l.b16 %v55
  %v351 = vunpack.c.l.b16 %v56
  %v352 = vunpack.c.l.b16 %v57
  %v353 = vunpack.c.l.b16 %v58
  %v354 = vunpack.c.l.b16 %v59
  %v355 = vunpack.c.l.b16 %v60
  %v356 = vunpack.c.l.b16 %v61
  %v357 = vunpack.c.l.b16 %v62
  %v358 = vunpack.c.l.b16 %v63
  %v359 = vunpack.c.l.b16 %v64
  %v360 = vunpack.c.l.b16 %v65
  %v361 = vunpack.c.l.b16 %v66
  %v362 = vunpack.c.l.b16 %v67
  %v363 = vunpack.c.l.b16 %v68
  %v364 = vunpack.c.l.b16 %v69
  %v365 = vunpack.c.l.b16 %v70
  %v366 = vunpack.c.l.b16 %v71
  %v367 = vunpack.c.l.b16 %v72
  %v368 = vunpack.c.l.b16 %v73
  %v369 = vunpack.c.l.b16 %v74
  %v370 = vunpack.c.l.b16 %v75
  %v371 = vunpack.c.l.b16 %v76
  %v372 = vunpack.c.l.b16 %v77
  %v373 = vunpack.c.l.b16 %v78
  %v374 = vunpack.c.l.b16 %v79
  %v375 = vunpack.c.l.b16 %v80
  %v376 = vunpack.c.l.b16 %v81
  %v377 = vunpack.c.l.b16 %v82
  %v378 = vunpack.c.l.b16 %v83
  %v379 = vunpack.c.l.b16 %v84
  %v380 = vunpack.c.l.b16 %v85
  %v381 = vunpack.c.l.b16 %v86
  %v382 = vunpack.c.l.b16 %v87
  %v383 = vunpack.c.l.b16 %v88
  %v384 = vunpack.c.l.b16 %v89
  %v385 = vunpack.c.l.b16 %v90
  %v386 = vunpack.c.l.b16 %v91
  %v387 = vunpack.c.l.b16 %v92
  %v388 = vunpack.c.l.b16 %v93
  %v389 = vunpack.c.l.b16 %v94
  %v390 = vunpack.c.l.b16 %v95
  %v391 = vunpack.c.l.b16 %v96
  %v392 = vunpack.c.l.b16 %v97
  %v393 = vunpack.c.l.b16 %v98
  %v394 = vunpack.c.l.b16 %v99
  %v395 = vunpack.c.l.b16 %v100
  %v396 = vunpack.c.l.b16 %v101
  %v397 = vunpack.c.l.b16 %v102
  %v398 = vunpack.c.l.b16 %v103
  %v399 = vunpack.c.l.b16 %v104
  %v400 = vunpack.c.l.b16 %v105
  %v401 = vunpack.c.l.b16 %v106
  %v402 = vunpack.c.l.b16 %v107
  %v403 = vunpack.c.l.b16 %v108
  %v404 = vunpack.c.l.b16 %v109
  %v405 = vunpack.c.l.b16 %v110
  %v406 = vpack.c.b16 %v343, %v342
  %v407 = vpack.c.b16 %v345, %v344
  %v408 = vpack.c.b16 %v347, %v346
  %v409 = vpack.c.b16 %v349, %v348
  %v410 = vpack.c.b16 %v351, %v350
  %v411 = vpack.c.b16 %v353, %v352
  %v412 = vpack.c.b16 %v355, %v354
  %v413 = vpack.c.b16 %v357, %v356
  %v414 = vpack.c.b16 %v359, %v358
  %v415 = vpack.c.b16 %v361, %v360
  %v416 = vpack.c.b16 %v363, %v362
  %v417 = vpack.c.b16 %v365, %v364
  %v418 = vpack.c.b16 %v367, %v366
  %v419 = vpack.c.b16 %v369, %v368
  %v420 = vpack.c.b16 %v371, %v370
  %v421 = vpack.c.b16 %v373, %v372
  %v422 = vpack.c.b16 %v375, %v374
  %v423 = vpack.c.b16 %v377, %v376
  %v424 = vpack.c.b16 %v379, %v378
  %v425 = vpack.c.b16 %v381, %v380
  %v426 = vpack.c.b16 %v383, %v382
  %v427 = vpack.c.b16 %v385, %v384
  %v428 = vpack.c.b16 %v387, %v386
  %v429 = vpack.c.b16 %v389, %v388
  %v430 = vpack.c.b16 %v391, %v390
  %v431 = vpack.c.b16 %v393, %v392
  %v432 = vpack.c.b16 %v395, %v394
  %v433 = vpack.c.b16 %v397, %v396
  %v434 = vpack.c.b16 %v399, %v398
  %v435 = vpack.c.b16 %v401, %v400
  %v436 = vpack.c.b16 %v403, %v402
  %v437 = vpack.c.b16 %v405, %v404
  %470 = vmatprep.subr.bf16.mxu0 0
  %471 = vmatpush1.bf16.msra.mxu0 %v406
  %472 = vmatprep.subr.bf16.mxu0 0
  %473 = vmatpush1.bf16.msra.mxu0 %v407
  %474 = vmatprep.subr.bf16.mxu0 0
  %475 = vmatpush1.bf16.msra.mxu0 %v408
  %476 = vmatprep.subr.bf16.mxu0 0
  %477 = vmatpush1.bf16.msra.mxu0 %v409
  %478 = vmatprep.subr.bf16.mxu0 0
  %479 = vmatpush1.bf16.msra.mxu0 %v410
  %480 = vmatprep.subr.bf16.mxu0 0
  %481 = vmatpush1.bf16.msra.mxu0 %v411
  %482 = vmatprep.subr.bf16.mxu0 0
  %483 = vmatpush1.bf16.msra.mxu0 %v412
  %484 = vmatprep.subr.bf16.mxu0 0
  %485 = vmatpush1.bf16.msra.mxu0 %v413
  %486 = vmatprep.subr.bf16.mxu0 0
  %487 = vmatpush1.bf16.msra.mxu0 %v414
  %488 = vmatprep.subr.bf16.mxu0 0
  %489 = vmatpush1.bf16.msra.mxu0 %v415
  %490 = vmatprep.subr.bf16.mxu0 0
  %491 = vmatpush1.bf16.msra.mxu0 %v416
  %492 = vmatprep.subr.bf16.mxu0 0
  %493 = vmatpush1.bf16.msra.mxu0 %v417
  %494 = vmatprep.subr.bf16.mxu0 0
  %495 = vmatpush1.bf16.msra.mxu0 %v418
  %496 = vmatprep.subr.bf16.mxu0 0
  %497 = vmatpush1.bf16.msra.mxu0 %v419
  %498 = vmatprep.subr.bf16.mxu0 0
  %499 = vmatpush1.bf16.msra.mxu0 %v420
  %500 = vmatprep.subr.bf16.mxu0 0
  %501 = vmatpush1.bf16.msra.mxu0 %v421
  %502 = vmatprep.mubr.bf16.mxu0 %v215
  %503 = vmatmul.mubr.bf16.gmra.mrb[0].mxu0 %v214
  %v504 = vpop.f32.mrb[0].mxu0
  %v505 = vadd.f32 %v116, %v504
  %v506 = vpop.f32.mrb[0].mxu0
  %v507 = vpop.f32.mrb[0].mxu0
  %v508 = vadd.f32 %v116, %v507
  %v509 = vpop.f32.mrb[0].mxu0
  %510 = vmatprep.mubr.bf16.mxu0 %v219
  %511 = vmatmul.mubr.bf16.gmra.mrb[0].mxu0 %v218
  %v512 = vpop.f32.mrb[0].mxu0
  %v513 = vadd.f32 %v116, %v512
  %v514 = vpop.f32.mrb[0].mxu0
  %v515 = vpop.f32.mrb[0].mxu0
  %v516 = vadd.f32 %v116, %v515
  %v517 = vpop.f32.mrb[0].mxu0
  %518 = vmatprep.mubr.bf16.mxu0 %v223
  %519 = vmatmul.mubr.bf16.gmra.mrb[0].mxu0 %v222
  %v520 = vpop.f32.mrb[0].mxu0
  %v521 = vadd.f32 %v116, %v520
  %v522 = vpop.f32.mrb[0].mxu0
  %v523 = vpop.f32.mrb[0].mxu0
  %v524 = vadd.f32 %v116, %v523
  %v525 = vpop.f32.mrb[0].mxu0
  %526 = vmatprep.mubr.bf16.mxu0 %v227
  %527 = vmatmul.mubr.bf16.gmra.mrb[0].mxu0 %v226
  %v528 = vpop.f32.mrb[0].mxu0
  %v529 = vadd.f32 %v116, %v528
  %v530 = vpop.f32.mrb[0].mxu0
  %v531 = vpop.f32.mrb[0].mxu0
  %v532 = vadd.f32 %v116, %v531
  %v533 = vpop.f32.mrb[0].mxu0
  %534 = vmatprep.mubr.bf16.mxu0 %v231
  %535 = vmatmul.mubr.bf16.gmra.mrb[0].mxu0 %v230
  %v536 = vpop.f32.mrb[0].mxu0
  %v537 = vadd.f32 %v116, %v536
  %v538 = vpop.f32.mrb[0].mxu0
  %v539 = vpop.f32.mrb[0].mxu0
  %v540 = vadd.f32 %v116, %v539
  %v541 = vpop.f32.mrb[0].mxu0
  %542 = vmatprep.mubr.bf16.mxu0 %v235
  %543 = vmatmul.mubr.bf16.gmra.mrb[0].mxu0 %v234
  %v544 = vpop.f32.mrb[0].mxu0
  %v545 = vadd.f32 %v116, %v544
  %v546 = vpop.f32.mrb[0].mxu0
  %v547 = vpop.f32.mrb[0].mxu0
  %v548 = vadd.f32 %v116, %v547
  %v549 = vpop.f32.mrb[0].mxu0
  %550 = vmatprep.mubr.bf16.mxu0 %v239
  %551 = vmatmul.mubr.bf16.gmra.mrb[0].mxu0 %v238
  %v552 = vpop.f32.mrb[0].mxu0
  %v553 = vadd.f32 %v116, %v552
  %v554 = vpop.f32.mrb[0].mxu0
  %v555 = vpop.f32.mrb[0].mxu0
  %v556 = vadd.f32 %v116, %v555
  %v557 = vpop.f32.mrb[0].mxu0
  %558 = vmatprep.mubr.bf16.mxu0 %v243
  %559 = vmatmul.mubr.bf16.gmra.mrb[0].mxu0 %v242
  %v560 = vpop.f32.mrb[0].mxu0
  %v561 = vadd.f32 %v116, %v560
  %v562 = vpop.f32.mrb[0].mxu0
  %v563 = vpop.f32.mrb[0].mxu0
  %v564 = vadd.f32 %v116, %v563
  %v565 = vpop.f32.mrb[0].mxu0
  %566 = vdwg.mxu0
  %567 = vmatprep.subr.bf16.mxu0 0
  %568 = vmatpush1.bf16.msra.mxu0 %v422
  %569 = vmatprep.subr.bf16.mxu0 0
  %570 = vmatpush1.bf16.msra.mxu0 %v423
  %571 = vmatprep.subr.bf16.mxu0 0
  %572 = vmatpush1.bf16.msra.mxu0 %v424
  %573 = vmatprep.subr.bf16.mxu0 0
  %574 = vmatpush1.bf16.msra.mxu0 %v425
  %575 = vmatprep.subr.bf16.mxu0 0
  %576 = vmatpush1.bf16.msra.mxu0 %v426
  %577 = vmatprep.subr.bf16.mxu0 0
  %578 = vmatpush1.bf16.msra.mxu0 %v427
  %579 = vmatprep.subr.bf16.mxu0 0
  %580 = vmatpush1.bf16.msra.mxu0 %v428
  %581 = vmatprep.subr.bf16.mxu0 0
  %582 = vmatpush1.bf16.msra.mxu0 %v429
  %583 = vmatprep.subr.bf16.mxu0 0
  %584 = vmatpush1.bf16.msra.mxu0 %v430
  %585 = vmatprep.subr.bf16.mxu0 0
  %586 = vmatpush1.bf16.msra.mxu0 %v431
  %587 = vmatprep.subr.bf16.mxu0 0
  %588 = vmatpush1.bf16.msra.mxu0 %v432
  %589 = vmatprep.subr.bf16.mxu0 0
  %590 = vmatpush1.bf16.msra.mxu0 %v433
  %591 = vmatprep.subr.bf16.mxu0 0
  %592 = vmatpush1.bf16.msra.mxu0 %v434
  %593 = vmatprep.subr.bf16.mxu0 0
  %594 = vmatpush1.bf16.msra.mxu0 %v435
  %595 = vmatprep.subr.bf16.mxu0 0
  %596 = vmatpush1.bf16.msra.mxu0 %v436
  %597 = vmatprep.subr.bf16.mxu0 0
  %598 = vmatpush1.bf16.msra.mxu0 %v437
  %599 = vmatprep.mubr.bf16.mxu0 %v217
  %600 = vmatmul.mubr.bf16.gmra.mrb[0].mxu0 %v216
  %v601 = vpop.f32.mrb[0].mxu0
  %v602 = vadd.f32 %v505, %v601
  %v603 = vpop.f32.mrb[0].mxu0
  %v604 = vpop.f32.mrb[0].mxu0
  %v605 = vadd.f32 %v508, %v604
  %v606 = vpop.f32.mrb[0].mxu0
  %607 = vmatprep.mubr.bf16.mxu0 %v221
  %608 = vmatmul.mubr.bf16.gmra.mrb[0].mxu0 %v220
  %v609 = vpop.f32.mrb[0].mxu0
  %v610 = vadd.f32 %v513, %v609
  %v611 = vpop.f32.mrb[0].mxu0
  %v612 = vpop.f32.mrb[0].mxu0
  %v613 = vadd.f32 %v516, %v612
  %v614 = vpop.f32.mrb[0].mxu0
  %615 = vmatprep.mubr.bf16.mxu0 %v225
  %616 = vmatmul.mubr.bf16.gmra.mrb[0].mxu0 %v224
  %v617 = vpop.f32.mrb[0].mxu0
  %v618 = vadd.f32 %v521, %v617
  %v619 = vpop.f32.mrb[0].mxu0
  %v620 = vpop.f32.mrb[0].mxu0
  %v621 = vadd.f32 %v524, %v620
  %v622 = vpop.f32.mrb[0].mxu0
  %623 = vmatprep.mubr.bf16.mxu0 %v229
  %624 = vmatmul.mubr.bf16.gmra.mrb[0].mxu0 %v228
  %v625 = vpop.f32.mrb[0].mxu0
  %v626 = vadd.f32 %v529, %v625
  %v627 = vpop.f32.mrb[0].mxu0
  %v628 = vpop.f32.mrb[0].mxu0
  %v629 = vadd.f32 %v532, %v628
  %v630 = vpop.f32.mrb[0].mxu0
  %631 = vmatprep.mubr.bf16.mxu0 %v233
  %632 = vmatmul.mubr.bf16.gmra.mrb[0].mxu0 %v232
  %v633 = vpop.f32.mrb[0].mxu0
  %v634 = vadd.f32 %v537, %v633
  %v635 = vpop.f32.mrb[0].mxu0
  %v636 = vpop.f32.mrb[0].mxu0
  %v637 = vadd.f32 %v540, %v636
  %v638 = vpop.f32.mrb[0].mxu0
  %639 = vmatprep.mubr.bf16.mxu0 %v237
  %640 = vmatmul.mubr.bf16.gmra.mrb[0].mxu0 %v236
  %v641 = vpop.f32.mrb[0].mxu0
  %v642 = vadd.f32 %v545, %v641
  %v643 = vpop.f32.mrb[0].mxu0
  %v644 = vpop.f32.mrb[0].mxu0
  %v645 = vadd.f32 %v548, %v644
  %v646 = vpop.f32.mrb[0].mxu0
  %647 = vmatprep.mubr.bf16.mxu0 %v241
  %648 = vmatmul.mubr.bf16.gmra.mrb[0].mxu0 %v240
  %v649 = vpop.f32.mrb[0].mxu0
  %v650 = vadd.f32 %v553, %v649
  %v651 = vpop.f32.mrb[0].mxu0
  %v652 = vpop.f32.mrb[0].mxu0
  %v653 = vadd.f32 %v556, %v652
  %v654 = vpop.f32.mrb[0].mxu0
  %655 = vmatprep.mubr.bf16.mxu0 %v245
  %656 = vmatmul.mubr.bf16.gmra.mrb[0].mxu0 %v244
  %v657 = vpop.f32.mrb[0].mxu0
  %v658 = vadd.f32 %v561, %v657
  %v659 = vpop.f32.mrb[0].mxu0
  %v660 = vpop.f32.mrb[0].mxu0
  %v661 = vadd.f32 %v564, %v660
  %v662 = vpop.f32.mrb[0].mxu0
  %663 = vdwg.mxu0
  %v664 = vmax.f32 %v602, 0.0
  %v665 = vmax.f32 %v605, 0.0
  %v666 = vmax.f32 %v610, 0.0
  %v667 = vmax.f32 %v613, 0.0
  %v668 = vmax.f32 %v618, 0.0
  %v669 = vmax.f32 %v621, 0.0
  %v670 = vmax.f32 %v626, 0.0
  %v671 = vmax.f32 %v629, 0.0
  %v672 = vmax.f32 %v634, 0.0
  %v673 = vmax.f32 %v637, 0.0
  %v674 = vmax.f32 %v642, 0.0
  %v675 = vmax.f32 %v645, 0.0
  %v676 = vmax.f32 %v650, 0.0
  %v677 = vmax.f32 %v653, 0.0
  %v678 = vmax.f32 %v658, 0.0
  %v679 = vmax.f32 %v661, 0.0
  %v680 = vpack.c.bf16 %v665, %v664
  %v681 = vpack.c.bf16 %v667, %v666
  %v682 = vpack.c.bf16 %v669, %v668
  %v683 = vpack.c.bf16 %v671, %v670
  %v684 = vpack.c.bf16 %v673, %v672
  %v685 = vpack.c.bf16 %v675, %v674
  %v686 = vpack.c.bf16 %v677, %v676
  %v687 = vpack.c.bf16 %v679, %v678
  %v696 = vunpack.c.l.b16 %v680
  %v697 = vunpack.c.h.b16 %v680
  %v698 = vunpack.c.l.b16 %v681
  %v699 = vunpack.c.h.b16 %v681
  %v700 = vunpack.c.l.b16 %v682
  %v701 = vunpack.c.h.b16 %v682
  %v702 = vunpack.c.l.b16 %v683
  %v703 = vunpack.c.h.b16 %v683
  %v704 = vunpack.c.l.b16 %v684
  %v705 = vunpack.c.h.b16 %v684
  %v706 = vunpack.c.l.b16 %v685
  %v707 = vunpack.c.h.b16 %v685
  %v708 = vunpack.c.l.b16 %v686
  %v709 = vunpack.c.h.b16 %v686
  %v710 = vunpack.c.l.b16 %v687
  %v711 = vunpack.c.h.b16 %v687
  %v712 = vpack.c.b16 %v696, %v696
  %v713 = vpack.c.b16 %v697, %v697
  %v714 = vpack.c.b16 %v698, %v698
  %v715 = vpack.c.b16 %v699, %v699
  %v716 = vpack.c.b16 %v700, %v700
  %v717 = vpack.c.b16 %v701, %v701
  %v718 = vpack.c.b16 %v702, %v702
  %v719 = vpack.c.b16 %v703, %v703
  %v720 = vpack.c.b16 %v704, %v704
  %v721 = vpack.c.b16 %v705, %v705
  %v722 = vpack.c.b16 %v706, %v706
  %v723 = vpack.c.b16 %v707, %v707
  %v724 = vpack.c.b16 %v708, %v708
  %v725 = vpack.c.b16 %v709, %v709
  %v726 = vpack.c.b16 %v710, %v710
  %v727 = vpack.c.b16 %v711, %v711
  %vm744 = vcmask 519168
  %745 = vst.msk [vmem:[%s3] sm:$0xf] %vm744, %v712
  %746 = vst.msk [vmem:[%s3 + $0x4] sm:$0xf] %vm744, %v713
  %747 = vst.msk [vmem:[%s3 + $0x8] sm:$0xf] %vm744, %v714
  %748 = vst.msk [vmem:[%s3 + $0xc] sm:$0xf] %vm744, %v715
  %749 = vst.msk [vmem:[%s3 + $0x10] sm:$0xf] %vm744, %v716
  %750 = vst.msk [vmem:[%s3 + $0x14] sm:$0xf] %vm744, %v717
  %751 = vst.msk [vmem:[%s3 + $0x18] sm:$0xf] %vm744, %v718
  %752 = vst.msk [vmem:[%s3 + $0x1c] sm:$0xf] %vm744, %v719
  %753 = vst.msk [vmem:[%s3 + $0x20] sm:$0xf] %vm744, %v720
  %754 = vst.msk [vmem:[%s3 + $0x24] sm:$0xf] %vm744, %v721
  %755 = vst.msk [vmem:[%s3 + $0x28] sm:$0xf] %vm744, %v722
  %756 = vst.msk [vmem:[%s3 + $0x2c] sm:$0xf] %vm744, %v723
  %757 = vst.msk [vmem:[%s3 + $0x30] sm:$0xf] %vm744, %v724
  %758 = vst.msk [vmem:[%s3 + $0x34] sm:$0xf] %vm744, %v725
  %759 = vst.msk [vmem:[%s3 + $0x38] sm:$0xf] %vm744, %v726
  %760 = vst.msk [vmem:[%s3 + $0x3c] sm:$0xf] %vm744, %v727
  // Predicated region
  $region14: #{vae_forward.11} parent=0 // pred_check
    _
  $region15: #{vae_forward.11} parent=0 // pred_check_branch
    %762 = sbr.rel (0) target = $region17
  $region16: #{vae_forward.11} parent=0 // pred_region
    _
  $region17: #{vae_forward.11} parent=0 // pred_fallthru
    _
  // Predicated region
  $region18: #{vae_forward.11} parent=0 // pred_check
    _
  $region19: #{vae_forward.11} parent=0 // pred_check_branch
    %764 = sbr.rel (0) target = $region21
  $region20: #{vae_forward.11} parent=0 // pred_region
    _
  $region21: #{vae_forward.11} parent=0 // pred_fallthru
    _

// kernel: vae_forward.12
$region0: #{vae_forward.12}
  #allocation0 [shape = 'u32[]', space=smem, size = 0x4, offset = 0x4, fixed_abs, tag = 'smem constant byte address 0x4 - core index']
  #allocation1 [shape = 'u32[144,128]{1,0:T(1,128)}', space=vmem, size = 0x12000, scoped, tag = 'internal scratch']
  %s0 = inlined_call_operand.vmem [shape: bf16[32,1024], index: 0, kind: input, shape index: {}]
  %s1 = inlined_call_operand.vmem [shape: bf16[1024,64], index: 1, kind: input, shape index: {}]
  %s2 = inlined_call_operand.vmem [shape: f32[1,64], index: 2, kind: input, shape index: {}]
  %s3 = inlined_call_operand.vmem [shape: bf16[32,64], index: 3, kind: output, shape index: {}]
  %s4 = sld [smem:[#allocation0]]
  $region22: #{vae_forward.12} parent=0
    _
  %s6 = ssub.s32 1, %s4
  %s7 = scalar_select 0, %s6, %s4
  // Predicated region
  $region2: #{vae_forward.12} parent=0 // pred_check
    _
  $region3: #{vae_forward.12} parent=0 // pred_check_branch
    %9 = sbr.rel (0) target = $region5
  $region4: #{vae_forward.12} parent=0 // pred_region
    _
  $region5: #{vae_forward.12} parent=0 // pred_fallthru
    _
  // Predicated region
  $region6: #{vae_forward.12} parent=0 // pred_check
    _
  $region7: #{vae_forward.12} parent=0 // pred_check_branch
    %11 = sbr.rel (0) target = $region9
  $region8: #{vae_forward.12} parent=0 // pred_region
    _
  $region9: #{vae_forward.12} parent=0 // pred_fallthru
    _
  // Predicated region
  $region10: #{vae_forward.12} parent=0 // pred_check
    _
  $region11: #{vae_forward.12} parent=0 // pred_check_branch
    %13 = sbr.rel (0) target = $region13
  $region12: #{vae_forward.12} parent=0 // pred_region
    _
  $region13: #{vae_forward.12} parent=0 // pred_fallthru
    _
  %v15 = vld [vmem:[%s0] sm:$0xff]
  %v16 = vld [vmem:[%s0 + $0x8] sm:$0xff]
  %v17 = vld [vmem:[%s0 + $0x10] sm:$0xff]
  %v18 = vld [vmem:[%s0 + $0x18] sm:$0xff]
  %v19 = vld [vmem:[%s0 + $0x20] sm:$0xff]
  %v20 = vld [vmem:[%s0 + $0x28] sm:$0xff]
  %v21 = vld [vmem:[%s0 + $0x30] sm:$0xff]
  %v22 = vld [vmem:[%s0 + $0x38] sm:$0xff]
  %v23 = vld [vmem:[%s0 + $0x40] sm:$0xff]
  %v24 = vld [vmem:[%s0 + $0x48] sm:$0xff]
  %v25 = vld [vmem:[%s0 + $0x50] sm:$0xff]
  %v26 = vld [vmem:[%s0 + $0x58] sm:$0xff]
  %v27 = vld [vmem:[%s0 + $0x60] sm:$0xff]
  %v28 = vld [vmem:[%s0 + $0x68] sm:$0xff]
  %v29 = vld [vmem:[%s0 + $0x70] sm:$0xff]
  %v30 = vld [vmem:[%s0 + $0x78] sm:$0xff]
  %v31 = vld [vmem:[%s1] sm:$0xf]
  %v32 = vld [vmem:[%s1 + $0x4] sm:$0xf]
  %v33 = vld [vmem:[%s1 + $0x8] sm:$0xf]
  %v34 = vld [vmem:[%s1 + $0xc] sm:$0xf]
  %v35 = vld [vmem:[%s1 + $0x10] sm:$0xf]
  %v36 = vld [vmem:[%s1 + $0x14] sm:$0xf]
  %v37 = vld [vmem:[%s1 + $0x18] sm:$0xf]
  %v38 = vld [vmem:[%s1 + $0x1c] sm:$0xf]
  %v39 = vld [vmem:[%s1 + $0x20] sm:$0xf]
  %v40 = vld [vmem:[%s1 + $0x24] sm:$0xf]
  %v41 = vld [vmem:[%s1 + $0x28] sm:$0xf]
  %v42 = vld [vmem:[%s1 + $0x2c] sm:$0xf]
  %v43 = vld [vmem:[%s1 + $0x30] sm:$0xf]
  %v44 = vld [vmem:[%s1 + $0x34] sm:$0xf]
  %v45 = vld [vmem:[%s1 + $0x38] sm:$0xf]
  %v46 = vld [vmem:[%s1 + $0x3c] sm:$0xf]
  %v47 = vld [vmem:[%s1 + $0x40] sm:$0xf]
  %v48 = vld [vmem:[%s1 + $0x44] sm:$0xf]
  %v49 = vld [vmem:[%s1 + $0x48] sm:$0xf]
  %v50 = vld [vmem:[%s1 + $0x4c] sm:$0xf]
  %v51 = vld [vmem:[%s1 + $0x50] sm:$0xf]
  %v52 = vld [vmem:[%s1 + $0x54] sm:$0xf]
  %v53 = vld [vmem:[%s1 + $0x58] sm:$0xf]
  %v54 = vld [vmem:[%s1 + $0x5c] sm:$0xf]
  %v55 = vld [vmem:[%s1 + $0x60] sm:$0xf]
  %v56 = vld [vmem:[%s1 + $0x64] sm:$0xf]
  %v57 = vld [vmem:[%s1 + $0x68] sm:$0xf]
  %v58 = vld [vmem:[%s1 + $0x6c] sm:$0xf]
  %v59 = vld [vmem:[%s1 + $0x70] sm:$0xf]
  %v60 = vld [vmem:[%s1 + $0x74] sm:$0xf]
  %v61 = vld [vmem:[%s1 + $0x78] sm:$0xf]
  %v62 = vld [vmem:[%s1 + $0x7c] sm:$0xf]
  %v63 = vld [vmem:[%s1 + $0x80] sm:$0xf]
  %v64 = vld [vmem:[%s1 + $0x84] sm:$0xf]
  %v65 = vld [vmem:[%s1 + $0x88] sm:$0xf]
  %v66 = vld [vmem:[%s1 + $0x8c] sm:$0xf]
  %v67 = vld [vmem:[%s1 + $0x90] sm:$0xf]
  %v68 = vld [vmem:[%s1 + $0x94] sm:$0xf]
  %v69 = vld [vmem:[%s1 + $0x98] sm:$0xf]
  %v70 = vld [vmem:[%s1 + $0x9c] sm:$0xf]
  %v71 = vld [vmem:[%s1 + $0xa0] sm:$0xf]
  %v72 = vld [vmem:[%s1 + $0xa4] sm:$0xf]
  %v73 = vld [vmem:[%s1 + $0xa8] sm:$0xf]
  %v74 = vld [vmem:[%s1 + $0xac] sm:$0xf]
  %v75 = vld [vmem:[%s1 + $0xb0] sm:$0xf]
  %v76 = vld [vmem:[%s1 + $0xb4] sm:$0xf]
  %v77 = vld [vmem:[%s1 + $0xb8] sm:$0xf]
  %v78 = vld [vmem:[%s1 + $0xbc] sm:$0xf]
  %v79 = vld [vmem:[%s1 + $0xc0] sm:$0xf]
  %v80 = vld [vmem:[%s1 + $0xc4] sm:$0xf]
  %v81 = vld [vmem:[%s1 + $0xc8] sm:$0xf]
  %v82 = vld [vmem:[%s1 + $0xcc] sm:$0xf]
  %v83 = vld [vmem:[%s1 + $0xd0] sm:$0xf]
  %v84 = vld [vmem:[%s1 + $0xd4] sm:$0xf]
  %v85 = vld [vmem:[%s1 + $0xd8] sm:$0xf]
  %v86 = vld [vmem:[%s1 + $0xdc] sm:$0xf]
  %v87 = vld [vmem:[%s1 + $0xe0] sm:$0xf]
  %v88 = vld [vmem:[%s1 + $0xe4] sm:$0xf]
  %v89 = vld [vmem:[%s1 + $0xe8] sm:$0xf]
  %v90 = vld [vmem:[%s1 + $0xec] sm:$0xf]
  %v91 = vld [vmem:[%s1 + $0xf0] sm:$0xf]
  %v92 = vld [vmem:[%s1 + $0xf4] sm:$0xf]
  %v93 = vld [vmem:[%s1 + $0xf8] sm:$0xf]
  %v94 = vld [vmem:[%s1 + $0xfc] sm:$0xf]
  %v95 = vld [vmem:[%s1 + $0x100] sm:$0xf]
  %v96 = vld [vmem:[%s1 + $0x104] sm:$0xf]
  %v97 = vld [vmem:[%s1 + $0x108] sm:$0xf]
  %v98 = vld [vmem:[%s1 + $0x10c] sm:$0xf]
  %v99 = vld [vmem:[%s1 + $0x110] sm:$0xf]
  %v100 = vld [vmem:[%s1 + $0x114] sm:$0xf]
  %v101 = vld [vmem:[%s1 + $0x118] sm:$0xf]
  %v102 = vld [vmem:[%s1 + $0x11c] sm:$0xf]
  %v103 = vld [vmem:[%s1 + $0x120] sm:$0xf]
  %v104 = vld [vmem:[%s1 + $0x124] sm:$0xf]
  %v105 = vld [vmem:[%s1 + $0x128] sm:$0xf]
  %v106 = vld [vmem:[%s1 + $0x12c] sm:$0xf]
  %v107 = vld [vmem:[%s1 + $0x130] sm:$0xf]
  %v108 = vld [vmem:[%s1 + $0x134] sm:$0xf]
  %v109 = vld [vmem:[%s1 + $0x138] sm:$0xf]
  %v110 = vld [vmem:[%s1 + $0x13c] sm:$0xf]
  %v111 = vld [vmem:[%s1 + $0x140] sm:$0xf]
  %v112 = vld [vmem:[%s1 + $0x144] sm:$0xf]
  %v113 = vld [vmem:[%s1 + $0x148] sm:$0xf]
  %v114 = vld [vmem:[%s1 + $0x14c] sm:$0xf]
  %v115 = vld [vmem:[%s1 + $0x150] sm:$0xf]
  %v116 = vld [vmem:[%s1 + $0x154] sm:$0xf]
  %v117 = vld [vmem:[%s1 + $0x158] sm:$0xf]
  %v118 = vld [vmem:[%s1 + $0x15c] sm:$0xf]
  %v119 = vld [vmem:[%s1 + $0x160] sm:$0xf]
  %v120 = vld [vmem:[%s1 + $0x164] sm:$0xf]
  %v121 = vld [vmem:[%s1 + $0x168] sm:$0xf]
  %v122 = vld [vmem:[%s1 + $0x16c] sm:$0xf]
  %v123 = vld [vmem:[%s1 + $0x170] sm:$0xf]
  %v124 = vld [vmem:[%s1 + $0x174] sm:$0xf]
  %v125 = vld [vmem:[%s1 + $0x178] sm:$0xf]
  %v126 = vld [vmem:[%s1 + $0x17c] sm:$0xf]
  %v127 = vld [vmem:[%s1 + $0x180] sm:$0xf]
  %v128 = vld [vmem:[%s1 + $0x184] sm:$0xf]
  %v129 = vld [vmem:[%s1 + $0x188] sm:$0xf]
  %v130 = vld [vmem:[%s1 + $0x18c] sm:$0xf]
  %v131 = vld [vmem:[%s1 + $0x190] sm:$0xf]
  %v132 = vld [vmem:[%s1 + $0x194] sm:$0xf]
  %v133 = vld [vmem:[%s1 + $0x198] sm:$0xf]
  %v134 = vld [vmem:[%s1 + $0x19c] sm:$0xf]
  %v135 = vld [vmem:[%s1 + $0x1a0] sm:$0xf]
  %v136 = vld [vmem:[%s1 + $0x1a4] sm:$0xf]
  %v137 = vld [vmem:[%s1 + $0x1a8] sm:$0xf]
  %v138 = vld [vmem:[%s1 + $0x1ac] sm:$0xf]
  %v139 = vld [vmem:[%s1 + $0x1b0] sm:$0xf]
  %v140 = vld [vmem:[%s1 + $0x1b4] sm:$0xf]
  %v141 = vld [vmem:[%s1 + $0x1b8] sm:$0xf]
  %v142 = vld [vmem:[%s1 + $0x1bc] sm:$0xf]
  %v143 = vld [vmem:[%s1 + $0x1c0] sm:$0xf]
  %v144 = vld [vmem:[%s1 + $0x1c4] sm:$0xf]
  %v145 = vld [vmem:[%s1 + $0x1c8] sm:$0xf]
  %v146 = vld [vmem:[%s1 + $0x1cc] sm:$0xf]
  %v147 = vld [vmem:[%s1 + $0x1d0] sm:$0xf]
  %v148 = vld [vmem:[%s1 + $0x1d4] sm:$0xf]
  %v149 = vld [vmem:[%s1 + $0x1d8] sm:$0xf]
  %v150 = vld [vmem:[%s1 + $0x1dc] sm:$0xf]
  %v151 = vld [vmem:[%s1 + $0x1e0] sm:$0xf]
  %v152 = vld [vmem:[%s1 + $0x1e4] sm:$0xf]
  %v153 = vld [vmem:[%s1 + $0x1e8] sm:$0xf]
  %v154 = vld [vmem:[%s1 + $0x1ec] sm:$0xf]
  %v155 = vld [vmem:[%s1 + $0x1f0] sm:$0xf]
  %v156 = vld [vmem:[%s1 + $0x1f4] sm:$0xf]
  %v157 = vld [vmem:[%s1 + $0x1f8] sm:$0xf]
  %v158 = vld [vmem:[%s1 + $0x1fc] sm:$0xf]
  %v159 = vld [vmem:[%s2] sm:$0x1]
  %v161 = vlaneseq
  %v162 = vshrl.u32 %v161, 7
  %v163 = vsub.s32 0, %v162
  %v164 = vrot.slane %v159, %v163
  %v182 = vunpack.c.l.b16 %v15
  %v183 = vunpack.c.h.b16 %v15
  %v184 = vunpack.c.l.b16 %v16
  %v185 = vunpack.c.h.b16 %v16
  %v186 = vunpack.c.l.b16 %v17
  %v187 = vunpack.c.h.b16 %v17
  %v188 = vunpack.c.l.b16 %v18
  %v189 = vunpack.c.h.b16 %v18
  %v190 = vunpack.c.l.b16 %v19
  %v191 = vunpack.c.h.b16 %v19
  %v192 = vunpack.c.l.b16 %v20
  %v193 = vunpack.c.h.b16 %v20
  %v194 = vunpack.c.l.b16 %v21
  %v195 = vunpack.c.h.b16 %v21
  %v196 = vunpack.c.l.b16 %v22
  %v197 = vunpack.c.h.b16 %v22
  %v198 = vunpack.c.l.b16 %v23
  %v199 = vunpack.c.h.b16 %v23
  %v200 = vunpack.c.l.b16 %v24
  %v201 = vunpack.c.h.b16 %v24
  %v202 = vunpack.c.l.b16 %v25
  %v203 = vunpack.c.h.b16 %v25
  %v204 = vunpack.c.l.b16 %v26
  %v205 = vunpack.c.h.b16 %v26
  %v206 = vunpack.c.l.b16 %v27
  %v207 = vunpack.c.h.b16 %v27
  %v208 = vunpack.c.l.b16 %v28
  %v209 = vunpack.c.h.b16 %v28
  %v210 = vunpack.c.l.b16 %v29
  %v211 = vunpack.c.h.b16 %v29
  %v212 = vunpack.c.l.b16 %v30
  %v213 = vunpack.c.h.b16 %v30
  %v214 = vpack.c.b16 %v190, %v182
  %v215 = vpack.c.b16 %v191, %v183
  %v216 = vpack.c.b16 %v192, %v184
  %v217 = vpack.c.b16 %v193, %v185
  %v218 = vpack.c.b16 %v194, %v186
  %v219 = vpack.c.b16 %v195, %v187
  %v220 = vpack.c.b16 %v196, %v188
  %v221 = vpack.c.b16 %v197, %v189
  %v222 = vpack.c.b16 %v206, %v198
  %v223 = vpack.c.b16 %v207, %v199
  %v224 = vpack.c.b16 %v208, %v200
  %v225 = vpack.c.b16 %v209, %v201
  %v226 = vpack.c.b16 %v210, %v202
  %v227 = vpack.c.b16 %v211, %v203
  %v228 = vpack.c.b16 %v212, %v204
  %v229 = vpack.c.b16 %v213, %v205
  %v374 = vunpack.c.l.b16 %v31
  %v375 = vunpack.c.l.b16 %v32
  %v376 = vunpack.c.l.b16 %v33
  %v377 = vunpack.c.l.b16 %v34
  %v378 = vunpack.c.l.b16 %v35
  %v379 = vunpack.c.l.b16 %v36
  %v380 = vunpack.c.l.b16 %v37
  %v381 = vunpack.c.l.b16 %v38
  %v382 = vunpack.c.l.b16 %v39
  %v383 = vunpack.c.l.b16 %v40
  %v384 = vunpack.c.l.b16 %v41
  %v385 = vunpack.c.l.b16 %v42
  %v386 = vunpack.c.l.b16 %v43
  %v387 = vunpack.c.l.b16 %v44
  %v388 = vunpack.c.l.b16 %v45
  %v389 = vunpack.c.l.b16 %v46
  %v390 = vunpack.c.l.b16 %v47
  %v391 = vunpack.c.l.b16 %v48
  %v392 = vunpack.c.l.b16 %v49
  %v393 = vunpack.c.l.b16 %v50
  %v394 = vunpack.c.l.b16 %v51
  %v395 = vunpack.c.l.b16 %v52
  %v396 = vunpack.c.l.b16 %v53
  %v397 = vunpack.c.l.b16 %v54
  %v398 = vunpack.c.l.b16 %v55
  %v399 = vunpack.c.l.b16 %v56
  %v400 = vunpack.c.l.b16 %v57
  %v401 = vunpack.c.l.b16 %v58
  %v402 = vunpack.c.l.b16 %v59
  %v403 = vunpack.c.l.b16 %v60
  %v404 = vunpack.c.l.b16 %v61
  %v405 = vunpack.c.l.b16 %v62
  %v406 = vunpack.c.l.b16 %v63
  %v407 = vunpack.c.l.b16 %v64
  %v408 = vunpack.c.l.b16 %v65
  %v409 = vunpack.c.l.b16 %v66
  %v410 = vunpack.c.l.b16 %v67
  %v411 = vunpack.c.l.b16 %v68
  %v412 = vunpack.c.l.b16 %v69
  %v413 = vunpack.c.l.b16 %v70
  %v414 = vunpack.c.l.b16 %v71
  %v415 = vunpack.c.l.b16 %v72
  %v416 = vunpack.c.l.b16 %v73
  %v417 = vunpack.c.l.b16 %v74
  %v418 = vunpack.c.l.b16 %v75
  %v419 = vunpack.c.l.b16 %v76
  %v420 = vunpack.c.l.b16 %v77
  %v421 = vunpack.c.l.b16 %v78
  %v422 = vunpack.c.l.b16 %v79
  %v423 = vunpack.c.l.b16 %v80
  %v424 = vunpack.c.l.b16 %v81
  %v425 = vunpack.c.l.b16 %v82
  %v426 = vunpack.c.l.b16 %v83
  %v427 = vunpack.c.l.b16 %v84
  %v428 = vunpack.c.l.b16 %v85
  %v429 = vunpack.c.l.b16 %v86
  %v430 = vunpack.c.l.b16 %v87
  %v431 = vunpack.c.l.b16 %v88
  %v432 = vunpack.c.l.b16 %v89
  %v433 = vunpack.c.l.b16 %v90
  %v434 = vunpack.c.l.b16 %v91
  %v435 = vunpack.c.l.b16 %v92
  %v436 = vunpack.c.l.b16 %v93
  %v437 = vunpack.c.l.b16 %v94
  %v438 = vunpack.c.l.b16 %v95
  %v439 = vunpack.c.l.b16 %v96
  %v440 = vunpack.c.l.b16 %v97
  %v441 = vunpack.c.l.b16 %v98
  %v442 = vunpack.c.l.b16 %v99
  %v443 = vunpack.c.l.b16 %v100
  %v444 = vunpack.c.l.b16 %v101
  %v445 = vunpack.c.l.b16 %v102
  %v446 = vunpack.c.l.b16 %v103
  %v447 = vunpack.c.l.b16 %v104
  %v448 = vunpack.c.l.b16 %v105
  %v449 = vunpack.c.l.b16 %v106
  %v450 = vunpack.c.l.b16 %v107
  %v451 = vunpack.c.l.b16 %v108
  %v452 = vunpack.c.l.b16 %v109
  %v453 = vunpack.c.l.b16 %v110
  %v454 = vunpack.c.l.b16 %v111
  %v455 = vunpack.c.l.b16 %v112
  %v456 = vunpack.c.l.b16 %v113
  %v457 = vunpack.c.l.b16 %v114
  %v458 = vunpack.c.l.b16 %v115
  %v459 = vunpack.c.l.b16 %v116
  %v460 = vunpack.c.l.b16 %v117
  %v461 = vunpack.c.l.b16 %v118
  %v462 = vunpack.c.l.b16 %v119
  %v463 = vunpack.c.l.b16 %v120
  %v464 = vunpack.c.l.b16 %v121
  %v465 = vunpack.c.l.b16 %v122
  %v466 = vunpack.c.l.b16 %v123
  %v467 = vunpack.c.l.b16 %v124
  %v468 = vunpack.c.l.b16 %v125
  %v469 = vunpack.c.l.b16 %v126
  %v470 = vunpack.c.l.b16 %v127
  %v471 = vunpack.c.l.b16 %v128
  %v472 = vunpack.c.l.b16 %v129
  %v473 = vunpack.c.l.b16 %v130
  %v474 = vunpack.c.l.b16 %v131
  %v475 = vunpack.c.l.b16 %v132
  %v476 = vunpack.c.l.b16 %v133
  %v477 = vunpack.c.l.b16 %v134
  %v478 = vunpack.c.l.b16 %v135
  %v479 = vunpack.c.l.b16 %v136
  %v480 = vunpack.c.l.b16 %v137
  %v481 = vunpack.c.l.b16 %v138
  %v482 = vunpack.c.l.b16 %v139
  %v483 = vunpack.c.l.b16 %v140
  %v484 = vunpack.c.l.b16 %v141
  %v485 = vunpack.c.l.b16 %v142
  %v486 = vunpack.c.l.b16 %v143
  %v487 = vunpack.c.l.b16 %v144
  %v488 = vunpack.c.l.b16 %v145
  %v489 = vunpack.c.l.b16 %v146
  %v490 = vunpack.c.l.b16 %v147
  %v491 = vunpack.c.l.b16 %v148
  %v492 = vunpack.c.l.b16 %v149
  %v493 = vunpack.c.l.b16 %v150
  %v494 = vunpack.c.l.b16 %v151
  %v495 = vunpack.c.l.b16 %v152
  %v496 = vunpack.c.l.b16 %v153
  %v497 = vunpack.c.l.b16 %v154
  %v498 = vunpack.c.l.b16 %v155
  %v499 = vunpack.c.l.b16 %v156
  %v500 = vunpack.c.l.b16 %v157
  %v501 = vunpack.c.l.b16 %v158
  %v502 = vpack.c.b16 %v375, %v374
  %v503 = vpack.c.b16 %v377, %v376
  %v504 = vpack.c.b16 %v379, %v378
  %v505 = vpack.c.b16 %v381, %v380
  %v506 = vpack.c.b16 %v383, %v382
  %v507 = vpack.c.b16 %v385, %v384
  %v508 = vpack.c.b16 %v387, %v386
  %v509 = vpack.c.b16 %v389, %v388
  %v510 = vpack.c.b16 %v391, %v390
  %v511 = vpack.c.b16 %v393, %v392
  %v512 = vpack.c.b16 %v395, %v394
  %v513 = vpack.c.b16 %v397, %v396
  %v514 = vpack.c.b16 %v399, %v398
  %v515 = vpack.c.b16 %v401, %v400
  %v516 = vpack.c.b16 %v403, %v402
  %v517 = vpack.c.b16 %v405, %v404
  %v518 = vpack.c.b16 %v407, %v406
  %v519 = vpack.c.b16 %v409, %v408
  %v520 = vpack.c.b16 %v411, %v410
  %v521 = vpack.c.b16 %v413, %v412
  %v522 = vpack.c.b16 %v415, %v414
  %v523 = vpack.c.b16 %v417, %v416
  %v524 = vpack.c.b16 %v419, %v418
  %v525 = vpack.c.b16 %v421, %v420
  %v526 = vpack.c.b16 %v423, %v422
  %v527 = vpack.c.b16 %v425, %v424
  %v528 = vpack.c.b16 %v427, %v426
  %v529 = vpack.c.b16 %v429, %v428
  %v530 = vpack.c.b16 %v431, %v430
  %v531 = vpack.c.b16 %v433, %v432
  %v532 = vpack.c.b16 %v435, %v434
  %v533 = vpack.c.b16 %v437, %v436
  %v534 = vpack.c.b16 %v439, %v438
  %v535 = vpack.c.b16 %v441, %v440
  %v536 = vpack.c.b16 %v443, %v442
  %v537 = vpack.c.b16 %v445, %v444
  %v538 = vpack.c.b16 %v447, %v446
  %v539 = vpack.c.b16 %v449, %v448
  %v540 = vpack.c.b16 %v451, %v450
  %v541 = vpack.c.b16 %v453, %v452
  %v542 = vpack.c.b16 %v455, %v454
  %v543 = vpack.c.b16 %v457, %v456
  %v544 = vpack.c.b16 %v459, %v458
  %v545 = vpack.c.b16 %v461, %v460
  %v546 = vpack.c.b16 %v463, %v462
  %v547 = vpack.c.b16 %v465, %v464
  %v548 = vpack.c.b16 %v467, %v466
  %v549 = vpack.c.b16 %v469, %v468
  %v550 = vpack.c.b16 %v471, %v470
  %v551 = vpack.c.b16 %v473, %v472
  %v552 = vpack.c.b16 %v475, %v474
  %v553 = vpack.c.b16 %v477, %v476
  %v554 = vpack.c.b16 %v479, %v478
  %v555 = vpack.c.b16 %v481, %v480
  %v556 = vpack.c.b16 %v483, %v482
  %v557 = vpack.c.b16 %v485, %v484
  %v558 = vpack.c.b16 %v487, %v486
  %v559 = vpack.c.b16 %v489, %v488
  %v560 = vpack.c.b16 %v491, %v490
  %v561 = vpack.c.b16 %v493, %v492
  %v562 = vpack.c.b16 %v495, %v494
  %v563 = vpack.c.b16 %v497, %v496
  %v564 = vpack.c.b16 %v499, %v498
  %v565 = vpack.c.b16 %v501, %v500
  %630 = vmatprep.subr.bf16.mxu0 0
  %631 = vmatpush1.bf16.msra.mxu0 %v502
  %632 = vmatprep.subr.bf16.mxu0 0
  %633 = vmatpush1.bf16.msra.mxu0 %v503
  %634 = vmatprep.subr.bf16.mxu0 0
  %635 = vmatpush1.bf16.msra.mxu0 %v504
  %636 = vmatprep.subr.bf16.mxu0 0
  %637 = vmatpush1.bf16.msra.mxu0 %v505
  %638 = vmatprep.subr.bf16.mxu0 0
  %639 = vmatpush1.bf16.msra.mxu0 %v506
  %640 = vmatprep.subr.bf16.mxu0 0
  %641 = vmatpush1.bf16.msra.mxu0 %v507
  %642 = vmatprep.subr.bf16.mxu0 0
  %643 = vmatpush1.bf16.msra.mxu0 %v508
  %644 = vmatprep.subr.bf16.mxu0 0
  %645 = vmatpush1.bf16.msra.mxu0 %v509
  %646 = vmatprep.subr.bf16.mxu0 0
  %647 = vmatpush1.bf16.msra.mxu0 %v510
  %648 = vmatprep.subr.bf16.mxu0 0
  %649 = vmatpush1.bf16.msra.mxu0 %v511
  %650 = vmatprep.subr.bf16.mxu0 0
  %651 = vmatpush1.bf16.msra.mxu0 %v512
  %652 = vmatprep.subr.bf16.mxu0 0
  %653 = vmatpush1.bf16.msra.mxu0 %v513
  %654 = vmatprep.subr.bf16.mxu0 0
  %655 = vmatpush1.bf16.msra.mxu0 %v514
  %656 = vmatprep.subr.bf16.mxu0 0
  %657 = vmatpush1.bf16.msra.mxu0 %v515
  %658 = vmatprep.subr.bf16.mxu0 0
  %659 = vmatpush1.bf16.msra.mxu0 %v516
  %660 = vmatprep.subr.bf16.mxu0 0
  %661 = vmatpush1.bf16.msra.mxu0 %v517
  %662 = vmatprep.mubr.bf16.mxu0 %v215
  %663 = vmatmul.mubr.bf16.gmra.mrb[0].mxu0 %v214
  %v664 = vpop.f32.mrb[0].mxu0
  %v665 = vadd.f32 %v164, %v664
  %v666 = vpop.f32.mrb[0].mxu0
  %v667 = vpop.f32.mrb[0].mxu0
  %v668 = vadd.f32 %v164, %v667
  %v669 = vpop.f32.mrb[0].mxu0
  %670 = vmatprep.mubr.bf16.mxu0 %v223
  %671 = vmatmul.mubr.bf16.gmra.mrb[0].mxu0 %v222
  %v672 = vpop.f32.mrb[0].mxu0
  %v673 = vadd.f32 %v164, %v672
  %v674 = vpop.f32.mrb[0].mxu0
  %v675 = vpop.f32.mrb[0].mxu0
  %v676 = vadd.f32 %v164, %v675
  %v677 = vpop.f32.mrb[0].mxu0
  %678 = vdwg.mxu0
  %679 = vmatprep.subr.bf16.mxu0 0
  %680 = vmatpush1.bf16.msra.mxu0 %v518
  %681 = vmatprep.subr.bf16.mxu0 0
  %682 = vmatpush1.bf16.msra.mxu0 %v519
  %683 = vmatprep.subr.bf16.mxu0 0
  %684 = vmatpush1.bf16.msra.mxu0 %v520
  %685 = vmatprep.subr.bf16.mxu0 0
  %686 = vmatpush1.bf16.msra.mxu0 %v521
  %687 = vmatprep.subr.bf16.mxu0 0
  %688 = vmatpush1.bf16.msra.mxu0 %v522
  %689 = vmatprep.subr.bf16.mxu0 0
  %690 = vmatpush1.bf16.msra.mxu0 %v523
  %691 = vmatprep.subr.bf16.mxu0 0
  %692 = vmatpush1.bf16.msra.mxu0 %v524
  %693 = vmatprep.subr.bf16.mxu0 0
  %694 = vmatpush1.bf16.msra.mxu0 %v525
  %695 = vmatprep.subr.bf16.mxu0 0
  %696 = vmatpush1.bf16.msra.mxu0 %v526
  %697 = vmatprep.subr.bf16.mxu0 0
  %698 = vmatpush1.bf16.msra.mxu0 %v527
  %699 = vmatprep.subr.bf16.mxu0 0
  %700 = vmatpush1.bf16.msra.mxu0 %v528
  %701 = vmatprep.subr.bf16.mxu0 0
  %702 = vmatpush1.bf16.msra.mxu0 %v529
  %703 = vmatprep.subr.bf16.mxu0 0
  %704 = vmatpush1.bf16.msra.mxu0 %v530
  %705 = vmatprep.subr.bf16.mxu0 0
  %706 = vmatpush1.bf16.msra.mxu0 %v531
  %707 = vmatprep.subr.bf16.mxu0 0
  %708 = vmatpush1.bf16.msra.mxu0 %v532
  %709 = vmatprep.subr.bf16.mxu0 0
  %710 = vmatpush1.bf16.msra.mxu0 %v533
  %711 = vmatprep.mubr.bf16.mxu0 %v217
  %712 = vmatmul.mubr.bf16.gmra.mrb[0].mxu0 %v216
  %v713 = vpop.f32.mrb[0].mxu0
  %v714 = vadd.f32 %v665, %v713
  %v715 = vpop.f32.mrb[0].mxu0
  %v716 = vpop.f32.mrb[0].mxu0
  %v717 = vadd.f32 %v668, %v716
  %v718 = vpop.f32.mrb[0].mxu0
  %719 = vmatprep.mubr.bf16.mxu0 %v225
  %720 = vmatmul.mubr.bf16.gmra.mrb[0].mxu0 %v224
  %v721 = vpop.f32.mrb[0].mxu0
  %v722 = vadd.f32 %v673, %v721
  %v723 = vpop.f32.mrb[0].mxu0
  %v724 = vpop.f32.mrb[0].mxu0
  %v725 = vadd.f32 %v676, %v724
  %v726 = vpop.f32.mrb[0].mxu0
  %727 = vdwg.mxu0
  %728 = vmatprep.subr.bf16.mxu0 0
  %729 = vmatpush1.bf16.msra.mxu0 %v534
  %730 = vmatprep.subr.bf16.mxu0 0
  %731 = vmatpush1.bf16.msra.mxu0 %v535
  %732 = vmatprep.subr.bf16.mxu0 0
  %733 = vmatpush1.bf16.msra.mxu0 %v536
  %734 = vmatprep.subr.bf16.mxu0 0
  %735 = vmatpush1.bf16.msra.mxu0 %v537
  %736 = vmatprep.subr.bf16.mxu0 0
  %737 = vmatpush1.bf16.msra.mxu0 %v538
  %738 = vmatprep.subr.bf16.mxu0 0
  %739 = vmatpush1.bf16.msra.mxu0 %v539
  %740 = vmatprep.subr.bf16.mxu0 0
  %741 = vmatpush1.bf16.msra.mxu0 %v540
  %742 = vmatprep.subr.bf16.mxu0 0
  %743 = vmatpush1.bf16.msra.mxu0 %v541
  %744 = vmatprep.subr.bf16.mxu0 0
  %745 = vmatpush1.bf16.msra.mxu0 %v542
  %746 = vmatprep.subr.bf16.mxu0 0
  %747 = vmatpush1.bf16.msra.mxu0 %v543
  %748 = vmatprep.subr.bf16.mxu0 0
  %749 = vmatpush1.bf16.msra.mxu0 %v544
  %750 = vmatprep.subr.bf16.mxu0 0
  %751 = vmatpush1.bf16.msra.mxu0 %v545
  %752 = vmatprep.subr.bf16.mxu0 0
  %753 = vmatpush1.bf16.msra.mxu0 %v546
  %754 = vmatprep.subr.bf16.mxu0 0
  %755 = vmatpush1.bf16.msra.mxu0 %v547
  %756 = vmatprep.subr.bf16.mxu0 0
  %757 = vmatpush1.bf16.msra.mxu0 %v548
  %758 = vmatprep.subr.bf16.mxu0 0
  %759 = vmatpush1.bf16.msra.mxu0 %v549
  %760 = vmatprep.mubr.bf16.mxu0 %v219
  %761 = vmatmul.mubr.bf16.gmra.mrb[0].mxu0 %v218
  %v762 = vpop.f32.mrb[0].mxu0
  %v763 = vadd.f32 %v714, %v762
  %v764 = vpop.f32.mrb[0].mxu0
  %v765 = vpop.f32.mrb[0].mxu0
  %v766 = vadd.f32 %v717, %v765
  %v767 = vpop.f32.mrb[0].mxu0
  %768 = vmatprep.mubr.bf16.mxu0 %v227
  %769 = vmatmul.mubr.bf16.gmra.mrb[0].mxu0 %v226
  %v770 = vpop.f32.mrb[0].mxu0
  %v771 = vadd.f32 %v722, %v770
  %v772 = vpop.f32.mrb[0].mxu0
  %v773 = vpop.f32.mrb[0].mxu0
  %v774 = vadd.f32 %v725, %v773
  %v775 = vpop.f32.mrb[0].mxu0
  %776 = vdwg.mxu0
  %777 = vmatprep.subr.bf16.mxu0 0
  %778 = vmatpush1.bf16.msra.mxu0 %v550
  %779 = vmatprep.subr.bf16.mxu0 0
  %780 = vmatpush1.bf16.msra.mxu0 %v551
  %781 = vmatprep.subr.bf16.mxu0 0
  %782 = vmatpush1.bf16.msra.mxu0 %v552
  %783 = vmatprep.subr.bf16.mxu0 0
  %784 = vmatpush1.bf16.msra.mxu0 %v553
  %785 = vmatprep.subr.bf16.mxu0 0
  %786 = vmatpush1.bf16.msra.mxu0 %v554
  %787 = vmatprep.subr.bf16.mxu0 0
  %788 = vmatpush1.bf16.msra.mxu0 %v555
  %789 = vmatprep.subr.bf16.mxu0 0
  %790 = vmatpush1.bf16.msra.mxu0 %v556
  %791 = vmatprep.subr.bf16.mxu0 0
  %792 = vmatpush1.bf16.msra.mxu0 %v557
  %793 = vmatprep.subr.bf16.mxu0 0
  %794 = vmatpush1.bf16.msra.mxu0 %v558
  %795 = vmatprep.subr.bf16.mxu0 0
  %796 = vmatpush1.bf16.msra.mxu0 %v559
  %797 = vmatprep.subr.bf16.mxu0 0
  %798 = vmatpush1.bf16.msra.mxu0 %v560
  %799 = vmatprep.subr.bf16.mxu0 0
  %800 = vmatpush1.bf16.msra.mxu0 %v561
  %801 = vmatprep.subr.bf16.mxu0 0
  %802 = vmatpush1.bf16.msra.mxu0 %v562
  %803 = vmatprep.subr.bf16.mxu0 0
  %804 = vmatpush1.bf16.msra.mxu0 %v563
  %805 = vmatprep.subr.bf16.mxu0 0
  %806 = vmatpush1.bf16.msra.mxu0 %v564
  %807 = vmatprep.subr.bf16.mxu0 0
  %808 = vmatpush1.bf16.msra.mxu0 %v565
  %809 = vmatprep.mubr.bf16.mxu0 %v221
  %810 = vmatmul.mubr.bf16.gmra.mrb[0].mxu0 %v220
  %v811 = vpop.f32.mrb[0].mxu0
  %v812 = vadd.f32 %v763, %v811
  %v813 = vpop.f32.mrb[0].mxu0
  %v814 = vpop.f32.mrb[0].mxu0
  %v815 = vadd.f32 %v766, %v814
  %v816 = vpop.f32.mrb[0].mxu0
  %817 = vmatprep.mubr.bf16.mxu0 %v229
  %818 = vmatmul.mubr.bf16.gmra.mrb[0].mxu0 %v228
  %v819 = vpop.f32.mrb[0].mxu0
  %v820 = vadd.f32 %v771, %v819
  %v821 = vpop.f32.mrb[0].mxu0
  %v822 = vpop.f32.mrb[0].mxu0
  %v823 = vadd.f32 %v774, %v822
  %v824 = vpop.f32.mrb[0].mxu0
  %825 = vdwg.mxu0
  %v826 = vmax.f32 %v812, 0.0
  %v827 = vmax.f32 %v815, 0.0
  %v828 = vmax.f32 %v820, 0.0
  %v829 = vmax.f32 %v823, 0.0
  %v830 = vpack.c.bf16 %v827, %v826
  %v831 = vpack.c.bf16 %v829, %v828
  %v834 = vunpack.c.l.b16 %v830
  %v835 = vunpack.c.h.b16 %v830
  %v836 = vunpack.c.l.b16 %v831
  %v837 = vunpack.c.h.b16 %v831
  %v838 = vpack.c.b16 %v834, %v834
  %v839 = vpack.c.b16 %v835, %v835
  %v840 = vpack.c.b16 %v836, %v836
  %v841 = vpack.c.b16 %v837, %v837
  %vm846 = vcmask 519168
  %847 = vst.msk [vmem:[%s3] sm:$0xf] %vm846, %v838
  %848 = vst.msk [vmem:[%s3 + $0x4] sm:$0xf] %vm846, %v839
  %849 = vst.msk [vmem:[%s3 + $0x8] sm:$0xf] %vm846, %v840
  %850 = vst.msk [vmem:[%s3 + $0xc] sm:$0xf] %vm846, %v841
  // Predicated region
  $region14: #{vae_forward.12} parent=0 // pred_check
    _
  $region15: #{vae_forward.12} parent=0 // pred_check_branch
    %852 = sbr.rel (0) target = $region17
  $region16: #{vae_forward.12} parent=0 // pred_region
    _
  $region17: #{vae_forward.12} parent=0 // pred_fallthru
    _
  // Predicated region
  $region18: #{vae_forward.12} parent=0 // pred_check
    _
  $region19: #{vae_forward.12} parent=0 // pred_check_branch
    %854 = sbr.rel (0) target = $region21
  $region20: #{vae_forward.12} parent=0 // pred_region
    _
  $region21: #{vae_forward.12} parent=0 // pred_fallthru
    _

// kernel: vae_forward.14
$region0: #{vae_forward.14}
  #allocation0 [shape = 'u32[]', space=smem, size = 0x4, offset = 0x4, fixed_abs, tag = 'smem constant byte address 0x4 - core index']
  #allocation1 [shape = 'u32[144,128]{1,0:T(1,128)}', space=vmem, size = 0x12000, scoped, tag = 'internal scratch']
  %s0 = inlined_call_operand.vmem [shape: bf16[32,576], index: 0, kind: input, shape index: {}]
  %s1 = inlined_call_operand.vmem [shape: bf16[576,256], index: 1, kind: input, shape index: {}]
  %s2 = inlined_call_operand.vmem [shape: f32[1,256], index: 2, kind: input, shape index: {}]
  %s3 = inlined_call_operand.vmem [shape: bf16[32,256], index: 3, kind: output, shape index: {}]
  %s4 = sld [smem:[#allocation0]]
  $region22: #{vae_forward.14} parent=0
    _
  %s6 = ssub.s32 1, %s4
  %s7 = scalar_select 0, %s6, %s4
  // Predicated region
  $region2: #{vae_forward.14} parent=0 // pred_check
    _
  $region3: #{vae_forward.14} parent=0 // pred_check_branch
    %9 = sbr.rel (0) target = $region5
  $region4: #{vae_forward.14} parent=0 // pred_region
    _
  $region5: #{vae_forward.14} parent=0 // pred_fallthru
    _
  // Predicated region
  $region6: #{vae_forward.14} parent=0 // pred_check
    _
  $region7: #{vae_forward.14} parent=0 // pred_check_branch
    %11 = sbr.rel (0) target = $region9
  $region8: #{vae_forward.14} parent=0 // pred_region
    _
  $region9: #{vae_forward.14} parent=0 // pred_fallthru
    _
  // Predicated region
  $region10: #{vae_forward.14} parent=0 // pred_check
    _
  $region11: #{vae_forward.14} parent=0 // pred_check_branch
    %13 = sbr.rel (0) target = $region13
  $region12: #{vae_forward.14} parent=0 // pred_region
    _
  $region13: #{vae_forward.14} parent=0 // pred_fallthru
    _
  %v15 = vld [vmem:[%s0] sm:$0xff]
  %v16 = vld [vmem:[%s0 + $0x8] sm:$0xff]
  %v17 = vld [vmem:[%s0 + $0x10] sm:$0xf]
  %v18 = vld [vmem:[%s0 + $0x14] sm:$0xff]
  %v19 = vld [vmem:[%s0 + $0x1c] sm:$0xff]
  %v20 = vld [vmem:[%s0 + $0x24] sm:$0xf]
  %v21 = vld [vmem:[%s0 + $0x28] sm:$0xff]
  %v22 = vld [vmem:[%s0 + $0x30] sm:$0xff]
  %v23 = vld [vmem:[%s0 + $0x38] sm:$0xf]
  %v24 = vld [vmem:[%s0 + $0x3c] sm:$0xff]
  %v25 = vld [vmem:[%s0 + $0x44] sm:$0xff]
  %v26 = vld [vmem:[%s0 + $0x4c] sm:$0xf]
  %v27 = vld [vmem:[%s1] sm:$0xff]
  %v28 = vld [vmem:[%s1 + $0x8] sm:$0xff]
  %v29 = vld [vmem:[%s1 + $0x10] sm:$0xff]
  %v30 = vld [vmem:[%s1 + $0x18] sm:$0xff]
  %v31 = vld [vmem:[%s1 + $0x20] sm:$0xff]
  %v32 = vld [vmem:[%s1 + $0x28] sm:$0xff]
  %v33 = vld [vmem:[%s1 + $0x30] sm:$0xff]
  %v34 = vld [vmem:[%s1 + $0x38] sm:$0xff]
  %v35 = vld [vmem:[%s1 + $0x40] sm:$0xff]
  %v36 = vld [vmem:[%s1 + $0x48] sm:$0xff]
  %v37 = vld [vmem:[%s1 + $0x50] sm:$0xff]
  %v38 = vld [vmem:[%s1 + $0x58] sm:$0xff]
  %v39 = vld [vmem:[%s1 + $0x60] sm:$0xff]
  %v40 = vld [vmem:[%s1 + $0x68] sm:$0xff]
  %v41 = vld [vmem:[%s1 + $0x70] sm:$0xff]
  %v42 = vld [vmem:[%s1 + $0x78] sm:$0xff]
  %v43 = vld [vmem:[%s1 + $0x80] sm:$0xff]
  %v44 = vld [vmem:[%s1 + $0x88] sm:$0xff]
  %v45 = vld [vmem:[%s1 + $0x90] sm:$0xff]
  %v46 = vld [vmem:[%s1 + $0x98] sm:$0xff]
  %v47 = vld [vmem:[%s1 + $0xa0] sm:$0xff]
  %v48 = vld [vmem:[%s1 + $0xa8] sm:$0xff]
  %v49 = vld [vmem:[%s1 + $0xb0] sm:$0xff]
  %v50 = vld [vmem:[%s1 + $0xb8] sm:$0xff]
  %v51 = vld [vmem:[%s1 + $0xc0] sm:$0xff]
  %v52 = vld [vmem:[%s1 + $0xc8] sm:$0xff]
  %v53 = vld [vmem:[%s1 + $0xd0] sm:$0xff]
  %v54 = vld [vmem:[%s1 + $0xd8] sm:$0xff]
  %v55 = vld [vmem:[%s1 + $0xe0] sm:$0xff]
  %v56 = vld [vmem:[%s1 + $0xe8] sm:$0xff]
  %v57 = vld [vmem:[%s1 + $0xf0] sm:$0xff]
  %v58 = vld [vmem:[%s1 + $0xf8] sm:$0xff]
  %v59 = vld [vmem:[%s1 + $0x100] sm:$0xff]
  %v60 = vld [vmem:[%s1 + $0x108] sm:$0xff]
  %v61 = vld [vmem:[%s1 + $0x110] sm:$0xff]
  %v62 = vld [vmem:[%s1 + $0x118] sm:$0xff]
  %v63 = vld [vmem:[%s1 + $0x120] sm:$0xff]
  %v64 = vld [vmem:[%s1 + $0x128] sm:$0xff]
  %v65 = vld [vmem:[%s1 + $0x130] sm:$0xff]
  %v66 = vld [vmem:[%s1 + $0x138] sm:$0xff]
  %v67 = vld [vmem:[%s1 + $0x140] sm:$0xff]
  %v68 = vld [vmem:[%s1 + $0x148] sm:$0xff]
  %v69 = vld [vmem:[%s1 + $0x150] sm:$0xff]
  %v70 = vld [vmem:[%s1 + $0x158] sm:$0xff]
  %v71 = vld [vmem:[%s1 + $0x160] sm:$0xff]
  %v72 = vld [vmem:[%s1 + $0x168] sm:$0xff]
  %v73 = vld [vmem:[%s1 + $0x170] sm:$0xff]
  %v74 = vld [vmem:[%s1 + $0x178] sm:$0xff]
  %v75 = vld [vmem:[%s1 + $0x180] sm:$0xff]
  %v76 = vld [vmem:[%s1 + $0x188] sm:$0xff]
  %v77 = vld [vmem:[%s1 + $0x190] sm:$0xff]
  %v78 = vld [vmem:[%s1 + $0x198] sm:$0xff]
  %v79 = vld [vmem:[%s1 + $0x1a0] sm:$0xff]
  %v80 = vld [vmem:[%s1 + $0x1a8] sm:$0xff]
  %v81 = vld [vmem:[%s1 + $0x1b0] sm:$0xff]
  %v82 = vld [vmem:[%s1 + $0x1b8] sm:$0xff]
  %v83 = vld [vmem:[%s1 + $0x1c0] sm:$0xff]
  %v84 = vld [vmem:[%s1 + $0x1c8] sm:$0xff]
  %v85 = vld [vmem:[%s1 + $0x1d0] sm:$0xff]
  %v86 = vld [vmem:[%s1 + $0x1d8] sm:$0xff]
  %v87 = vld [vmem:[%s1 + $0x1e0] sm:$0xff]
  %v88 = vld [vmem:[%s1 + $0x1e8] sm:$0xff]
  %v89 = vld [vmem:[%s1 + $0x1f0] sm:$0xff]
  %v90 = vld [vmem:[%s1 + $0x1f8] sm:$0xff]
  %v91 = vld [vmem:[%s1 + $0x200] sm:$0xff]
  %v92 = vld [vmem:[%s1 + $0x208] sm:$0xff]
  %v93 = vld [vmem:[%s1 + $0x210] sm:$0xff]
  %v94 = vld [vmem:[%s1 + $0x218] sm:$0xff]
  %v95 = vld [vmem:[%s1 + $0x220] sm:$0xff]
  %v96 = vld [vmem:[%s1 + $0x228] sm:$0xff]
  %v97 = vld [vmem:[%s1 + $0x230] sm:$0xff]
  %v98 = vld [vmem:[%s1 + $0x238] sm:$0xff]
  %v99 = vld [vmem:[%s2] sm:$0x3]
  %v101 = vlaneseq
  %v102 = vshrl.u32 %v101, 7
  %v103 = vsub.s32 0, %v102
  %v104 = vrot.slane %v99, %v103
  %v105 = vlaneseq
  %v106 = vshrl.u32 %v105, 7
  %v107 = vsub.s32 1, %v106
  %v108 = vrot.slane %v99, %v107
  %v123 = vunpack.c.l.b16 %v15
  %v124 = vunpack.c.h.b16 %v15
  %v125 = vunpack.c.l.b16 %v16
  %v126 = vunpack.c.h.b16 %v16
  %v127 = vunpack.c.l.b16 %v17
  %v128 = vunpack.c.l.b16 %v18
  %v129 = vunpack.c.h.b16 %v18
  %v130 = vunpack.c.l.b16 %v19
  %v131 = vunpack.c.h.b16 %v19
  %v132 = vunpack.c.l.b16 %v20
  %v133 = vunpack.c.l.b16 %v21
  %v134 = vunpack.c.h.b16 %v21
  %v135 = vunpack.c.l.b16 %v22
  %v136 = vunpack.c.h.b16 %v22
  %v137 = vunpack.c.l.b16 %v23
  %v138 = vunpack.c.l.b16 %v24
  %v139 = vunpack.c.h.b16 %v24
  %v140 = vunpack.c.l.b16 %v25
  %v141 = vunpack.c.h.b16 %v25
  %v142 = vunpack.c.l.b16 %v26
  %v143 = vpack.c.b16 %v128, %v123
  %v144 = vpack.c.b16 %v129, %v124
  %v145 = vpack.c.b16 %v130, %v125
  %v146 = vpack.c.b16 %v131, %v126
  %v147 = vpack.c.b16 %v132, %v127
  %v148 = vpack.c.b16 %v138, %v133
  %v149 = vpack.c.b16 %v139, %v134
  %v150 = vpack.c.b16 %v140, %v135
  %v151 = vpack.c.b16 %v141, %v136
  %v152 = vpack.c.b16 %v142, %v137
  %v233 = vunpack.c.l.b16 %v27
  %v234 = vunpack.c.h.b16 %v27
  %v235 = vunpack.c.l.b16 %v28
  %v236 = vunpack.c.h.b16 %v28
  %v237 = vunpack.c.l.b16 %v29
  %v238 = vunpack.c.h.b16 %v29
  %v239 = vunpack.c.l.b16 %v30
  %v240 = vunpack.c.h.b16 %v30
  %v241 = vunpack.c.l.b16 %v31
  %v242 = vunpack.c.h.b16 %v31
  %v243 = vunpack.c.l.b16 %v32
  %v244 = vunpack.c.h.b16 %v32
  %v245 = vunpack.c.l.b16 %v33
  %v246 = vunpack.c.h.b16 %v33
  %v247 = vunpack.c.l.b16 %v34
  %v248 = vunpack.c.h.b16 %v34
  %v249 = vunpack.c.l.b16 %v35
  %v250 = vunpack.c.h.b16 %v35
  %v251 = vunpack.c.l.b16 %v36
  %v252 = vunpack.c.h.b16 %v36
  %v253 = vunpack.c.l.b16 %v37
  %v254 = vunpack.c.h.b16 %v37
  %v255 = vunpack.c.l.b16 %v38
  %v256 = vunpack.c.h.b16 %v38
  %v257 = vunpack.c.l.b16 %v39
  %v258 = vunpack.c.h.b16 %v39
  %v259 = vunpack.c.l.b16 %v40
  %v260 = vunpack.c.h.b16 %v40
  %v261 = vunpack.c.l.b16 %v41
  %v262 = vunpack.c.h.b16 %v41
  %v263 = vunpack.c.l.b16 %v42
  %v264 = vunpack.c.h.b16 %v42
  %v265 = vunpack.c.l.b16 %v43
  %v266 = vunpack.c.h.b16 %v43
  %v267 = vunpack.c.l.b16 %v44
  %v268 = vunpack.c.h.b16 %v44
  %v269 = vunpack.c.l.b16 %v45
  %v270 = vunpack.c.h.b16 %v45
  %v271 = vunpack.c.l.b16 %v46
  %v272 = vunpack.c.h.b16 %v46
  %v273 = vunpack.c.l.b16 %v47
  %v274 = vunpack.c.h.b16 %v47
  %v275 = vunpack.c.l.b16 %v48
  %v276 = vunpack.c.h.b16 %v48
  %v277 = vunpack.c.l.b16 %v49
  %v278 = vunpack.c.h.b16 %v49
  %v279 = vunpack.c.l.b16 %v50
  %v280 = vunpack.c.h.b16 %v50
  %v281 = vunpack.c.l.b16 %v51
  %v282 = vunpack.c.h.b16 %v51
  %v283 = vunpack.c.l.b16 %v52
  %v284 = vunpack.c.h.b16 %v52
  %v285 = vunpack.c.l.b16 %v53
  %v286 = vunpack.c.h.b16 %v53
  %v287 = vunpack.c.l.b16 %v54
  %v288 = vunpack.c.h.b16 %v54
  %v289 = vunpack.c.l.b16 %v55
  %v290 = vunpack.c.h.b16 %v55
  %v291 = vunpack.c.l.b16 %v56
  %v292 = vunpack.c.h.b16 %v56
  %v293 = vunpack.c.l.b16 %v57
  %v294 = vunpack.c.h.b16 %v57
  %v295 = vunpack.c.l.b16 %v58
  %v296 = vunpack.c.h.b16 %v58
  %v297 = vunpack.c.l.b16 %v59
  %v298 = vunpack.c.h.b16 %v59
  %v299 = vunpack.c.l.b16 %v60
  %v300 = vunpack.c.h.b16 %v60
  %v301 = vunpack.c.l.b16 %v61
  %v302 = vunpack.c.h.b16 %v61
  %v303 = vunpack.c.l.b16 %v62
  %v304 = vunpack.c.h.b16 %v62
  %v305 = vunpack.c.l.b16 %v63
  %v306 = vunpack.c.h.b16 %v63
  %v307 = vunpack.c.l.b16 %v64
  %v308 = vunpack.c.h.b16 %v64
  %v309 = vunpack.c.l.b16 %v65
  %v310 = vunpack.c.h.b16 %v65
  %v311 = vunpack.c.l.b16 %v66
  %v312 = vunpack.c.h.b16 %v66
  %v313 = vunpack.c.l.b16 %v67
  %v314 = vunpack.c.h.b16 %v67
  %v315 = vunpack.c.l.b16 %v68
  %v316 = vunpack.c.h.b16 %v68
  %v317 = vunpack.c.l.b16 %v69
  %v318 = vunpack.c.h.b16 %v69
  %v319 = vunpack.c.l.b16 %v70
  %v320 = vunpack.c.h.b16 %v70
  %v321 = vunpack.c.l.b16 %v71
  %v322 = vunpack.c.h.b16 %v71
  %v323 = vunpack.c.l.b16 %v72
  %v324 = vunpack.c.h.b16 %v72
  %v325 = vunpack.c.l.b16 %v73
  %v326 = vunpack.c.h.b16 %v73
  %v327 = vunpack.c.l.b16 %v74
  %v328 = vunpack.c.h.b16 %v74
  %v329 = vunpack.c.l.b16 %v75
  %v330 = vunpack.c.h.b16 %v75
  %v331 = vunpack.c.l.b16 %v76
  %v332 = vunpack.c.h.b16 %v76
  %v333 = vunpack.c.l.b16 %v77
  %v334 = vunpack.c.h.b16 %v77
  %v335 = vunpack.c.l.b16 %v78
  %v336 = vunpack.c.h.b16 %v78
  %v337 = vunpack.c.l.b16 %v79
  %v338 = vunpack.c.h.b16 %v79
  %v339 = vunpack.c.l.b16 %v80
  %v340 = vunpack.c.h.b16 %v80
  %v341 = vunpack.c.l.b16 %v81
  %v342 = vunpack.c.h.b16 %v81
  %v343 = vunpack.c.l.b16 %v82
  %v344 = vunpack.c.h.b16 %v82
  %v345 = vunpack.c.l.b16 %v83
  %v346 = vunpack.c.h.b16 %v83
  %v347 = vunpack.c.l.b16 %v84
  %v348 = vunpack.c.h.b16 %v84
  %v349 = vunpack.c.l.b16 %v85
  %v350 = vunpack.c.h.b16 %v85
  %v351 = vunpack.c.l.b16 %v86
  %v352 = vunpack.c.h.b16 %v86
  %v353 = vunpack.c.l.b16 %v87
  %v354 = vunpack.c.h.b16 %v87
  %v355 = vunpack.c.l.b16 %v88
  %v356 = vunpack.c.h.b16 %v88
  %v357 = vunpack.c.l.b16 %v89
  %v358 = vunpack.c.h.b16 %v89
  %v359 = vunpack.c.l.b16 %v90
  %v360 = vunpack.c.h.b16 %v90
  %v361 = vunpack.c.l.b16 %v91
  %v362 = vunpack.c.h.b16 %v91
  %v363 = vunpack.c.l.b16 %v92
  %v364 = vunpack.c.h.b16 %v92
  %v365 = vunpack.c.l.b16 %v93
  %v366 = vunpack.c.h.b16 %v93
  %v367 = vunpack.c.l.b16 %v94
  %v368 = vunpack.c.h.b16 %v94
  %v369 = vunpack.c.l.b16 %v95
  %v370 = vunpack.c.h.b16 %v95
  %v371 = vunpack.c.l.b16 %v96
  %v372 = vunpack.c.h.b16 %v96
  %v373 = vunpack.c.l.b16 %v97
  %v374 = vunpack.c.h.b16 %v97
  %v375 = vunpack.c.l.b16 %v98
  %v376 = vunpack.c.h.b16 %v98
  %v377 = vpack.c.b16 %v235, %v233
  %v378 = vpack.c.b16 %v236, %v234
  %v379 = vpack.c.b16 %v239, %v237
  %v380 = vpack.c.b16 %v240, %v238
  %v381 = vpack.c.b16 %v243, %v241
  %v382 = vpack.c.b16 %v244, %v242
  %v383 = vpack.c.b16 %v247, %v245
  %v384 = vpack.c.b16 %v248, %v246
  %v385 = vpack.c.b16 %v251, %v249
  %v386 = vpack.c.b16 %v252, %v250
  %v387 = vpack.c.b16 %v255, %v253
  %v388 = vpack.c.b16 %v256, %v254
  %v389 = vpack.c.b16 %v259, %v257
  %v390 = vpack.c.b16 %v260, %v258
  %v391 = vpack.c.b16 %v263, %v261
  %v392 = vpack.c.b16 %v264, %v262
  %v393 = vpack.c.b16 %v267, %v265
  %v394 = vpack.c.b16 %v268, %v266
  %v395 = vpack.c.b16 %v271, %v269
  %v396 = vpack.c.b16 %v272, %v270
  %v397 = vpack.c.b16 %v275, %v273
  %v398 = vpack.c.b16 %v276, %v274
  %v399 = vpack.c.b16 %v279, %v277
  %v400 = vpack.c.b16 %v280, %v278
  %v401 = vpack.c.b16 %v283, %v281
  %v402 = vpack.c.b16 %v284, %v282
  %v403 = vpack.c.b16 %v287, %v285
  %v404 = vpack.c.b16 %v288, %v286
  %v405 = vpack.c.b16 %v291, %v289
  %v406 = vpack.c.b16 %v292, %v290
  %v407 = vpack.c.b16 %v295, %v293
  %v408 = vpack.c.b16 %v296, %v294
  %v409 = vpack.c.b16 %v299, %v297
  %v410 = vpack.c.b16 %v300, %v298
  %v411 = vpack.c.b16 %v303, %v301
  %v412 = vpack.c.b16 %v304, %v302
  %v413 = vpack.c.b16 %v307, %v305
  %v414 = vpack.c.b16 %v308, %v306
  %v415 = vpack.c.b16 %v311, %v309
  %v416 = vpack.c.b16 %v312, %v310
  %v417 = vpack.c.b16 %v315, %v313
  %v418 = vpack.c.b16 %v316, %v314
  %v419 = vpack.c.b16 %v319, %v317
  %v420 = vpack.c.b16 %v320, %v318
  %v421 = vpack.c.b16 %v323, %v321
  %v422 = vpack.c.b16 %v324, %v322
  %v423 = vpack.c.b16 %v327, %v325
  %v424 = vpack.c.b16 %v328, %v326
  %v425 = vpack.c.b16 %v331, %v329
  %v426 = vpack.c.b16 %v332, %v330
  %v427 = vpack.c.b16 %v335, %v333
  %v428 = vpack.c.b16 %v336, %v334
  %v429 = vpack.c.b16 %v339, %v337
  %v430 = vpack.c.b16 %v340, %v338
  %v431 = vpack.c.b16 %v343, %v341
  %v432 = vpack.c.b16 %v344, %v342
  %v433 = vpack.c.b16 %v347, %v345
  %v434 = vpack.c.b16 %v348, %v346
  %v435 = vpack.c.b16 %v351, %v349
  %v436 = vpack.c.b16 %v352, %v350
  %v437 = vpack.c.b16 %v355, %v353
  %v438 = vpack.c.b16 %v356, %v354
  %v439 = vpack.c.b16 %v359, %v357
  %v440 = vpack.c.b16 %v360, %v358
  %v441 = vpack.c.b16 %v363, %v361
  %v442 = vpack.c.b16 %v364, %v362
  %v443 = vpack.c.b16 %v367, %v365
  %v444 = vpack.c.b16 %v368, %v366
  %v445 = vpack.c.b16 %v371, %v369
  %v446 = vpack.c.b16 %v372, %v370
  %v447 = vpack.c.b16 %v375, %v373
  %v448 = vpack.c.b16 %v376, %v374
  %vm521 = vcmask 523264
  %v523 = vsel %vm521, %v147, 0
  %v526 = vsel %vm521, %v152, 0
  %528 = vmatprep.subr.bf16.mxu0 %v378
  %529 = vmatpush1.bf16.msra.mxu0 %v377
  %530 = vmatprep.subr.bf16.mxu0 %v380
  %531 = vmatpush1.bf16.msra.mxu0 %v379
  %532 = vmatprep.subr.bf16.mxu0 %v382
  %533 = vmatpush1.bf16.msra.mxu0 %v381
  %534 = vmatprep.subr.bf16.mxu0 %v384
  %535 = vmatpush1.bf16.msra.mxu0 %v383
  %536 = vmatprep.subr.bf16.mxu0 %v386
  %537 = vmatpush1.bf16.msra.mxu0 %v385
  %538 = vmatprep.subr.bf16.mxu0 %v388
  %539 = vmatpush1.bf16.msra.mxu0 %v387
  %540 = vmatprep.subr.bf16.mxu0 %v390
  %541 = vmatpush1.bf16.msra.mxu0 %v389
  %542 = vmatprep.subr.bf16.mxu0 %v392
  %543 = vmatpush1.bf16.msra.mxu0 %v391
  %544 = vmatprep.subr.bf16.mxu0 %v394
  %545 = vmatpush1.bf16.msra.mxu0 %v393
  %546 = vmatprep.subr.bf16.mxu0 %v396
  %547 = vmatpush1.bf16.msra.mxu0 %v395
  %548 = vmatprep.subr.bf16.mxu0 %v398
  %549 = vmatpush1.bf16.msra.mxu0 %v397
  %550 = vmatprep.subr.bf16.mxu0 %v400
  %551 = vmatpush1.bf16.msra.mxu0 %v399
  %552 = vmatprep.subr.bf16.mxu0 %v402
  %553 = vmatpush1.bf16.msra.mxu0 %v401
  %554 = vmatprep.subr.bf16.mxu0 %v404
  %555 = vmatpush1.bf16.msra.mxu0 %v403
  %556 = vmatprep.subr.bf16.mxu0 %v406
  %557 = vmatpush1.bf16.msra.mxu0 %v405
  %558 = vmatprep.subr.bf16.mxu0 %v408
  %559 = vmatpush1.bf16.msra.mxu0 %v407
  %560 = vmatprep.mubr.bf16.mxu0 %v144
  %561 = vmatmul.mubr.bf16.gmra.mrb[0].mxu0 %v143
  %v562 = vpop.f32.mrb[0].mxu0
  %v563 = vadd.f32 %v104, %v562
  %v564 = vpop.f32.mrb[0].mxu0
  %v565 = vadd.f32 %v108, %v564
  %v566 = vpop.f32.mrb[0].mxu0
  %v567 = vadd.f32 %v104, %v566
  %v568 = vpop.f32.mrb[0].mxu0
  %v569 = vadd.f32 %v108, %v568
  %570 = vmatprep.mubr.bf16.mxu0 %v149
  %571 = vmatmul.mubr.bf16.gmra.mrb[0].mxu0 %v148
  %v572 = vpop.f32.mrb[0].mxu0
  %v573 = vadd.f32 %v104, %v572
  %v574 = vpop.f32.mrb[0].mxu0
  %v575 = vadd.f32 %v108, %v574
  %v576 = vpop.f32.mrb[0].mxu0
  %v577 = vadd.f32 %v104, %v576
  %v578 = vpop.f32.mrb[0].mxu0
  %v579 = vadd.f32 %v108, %v578
  %580 = vdwg.mxu0
  %581 = vmatprep.subr.bf16.mxu0 %v410
  %582 = vmatpush1.bf16.msra.mxu0 %v409
  %583 = vmatprep.subr.bf16.mxu0 %v412
  %584 = vmatpush1.bf16.msra.mxu0 %v411
  %585 = vmatprep.subr.bf16.mxu0 %v414
  %586 = vmatpush1.bf16.msra.mxu0 %v413
  %587 = vmatprep.subr.bf16.mxu0 %v416
  %588 = vmatpush1.bf16.msra.mxu0 %v415
  %589 = vmatprep.subr.bf16.mxu0 %v418
  %590 = vmatpush1.bf16.msra.mxu0 %v417
  %591 = vmatprep.subr.bf16.mxu0 %v420
  %592 = vmatpush1.bf16.msra.mxu0 %v419
  %593 = vmatprep.subr.bf16.mxu0 %v422
  %594 = vmatpush1.bf16.msra.mxu0 %v421
  %595 = vmatprep.subr.bf16.mxu0 %v424
  %596 = vmatpush1.bf16.msra.mxu0 %v423
  %597 = vmatprep.subr.bf16.mxu0 %v426
  %598 = vmatpush1.bf16.msra.mxu0 %v425
  %599 = vmatprep.subr.bf16.mxu0 %v428
  %600 = vmatpush1.bf16.msra.mxu0 %v427
  %601 = vmatprep.subr.bf16.mxu0 %v430
  %602 = vmatpush1.bf16.msra.mxu0 %v429
  %603 = vmatprep.subr.bf16.mxu0 %v432
  %604 = vmatpush1.bf16.msra.mxu0 %v431
  %605 = vmatprep.subr.bf16.mxu0 %v434
  %606 = vmatpush1.bf16.msra.mxu0 %v433
  %607 = vmatprep.subr.bf16.mxu0 %v436
  %608 = vmatpush1.bf16.msra.mxu0 %v435
  %609 = vmatprep.subr.bf16.mxu0 %v438
  %610 = vmatpush1.bf16.msra.mxu0 %v437
  %611 = vmatprep.subr.bf16.mxu0 %v440
  %612 = vmatpush1.bf16.msra.mxu0 %v439
  %613 = vmatprep.mubr.bf16.mxu0 %v146
  %614 = vmatmul.mubr.bf16.gmra.mrb[0].mxu0 %v145
  %v615 = vpop.f32.mrb[0].mxu0
  %v616 = vadd.f32 %v563, %v615
  %v617 = vpop.f32.mrb[0].mxu0
  %v618 = vadd.f32 %v565, %v617
  %v619 = vpop.f32.mrb[0].mxu0
  %v620 = vadd.f32 %v567, %v619
  %v621 = vpop.f32.mrb[0].mxu0
  %v622 = vadd.f32 %v569, %v621
  %623 = vmatprep.mubr.bf16.mxu0 %v151
  %624 = vmatmul.mubr.bf16.gmra.mrb[0].mxu0 %v150
  %v625 = vpop.f32.mrb[0].mxu0
  %v626 = vadd.f32 %v573, %v625
  %v627 = vpop.f32.mrb[0].mxu0
  %v628 = vadd.f32 %v575, %v627
  %v629 = vpop.f32.mrb[0].mxu0
  %v630 = vadd.f32 %v577, %v629
  %v631 = vpop.f32.mrb[0].mxu0
  %v632 = vadd.f32 %v579, %v631
  %633 = vdwg.mxu0
  %634 = vmatprep.subr.bf16.mxu0 %v442
  %635 = vmatpush1.bf16.msra.mxu0 %v441
  %636 = vmatprep.subr.bf16.mxu0 %v444
  %637 = vmatpush1.bf16.msra.mxu0 %v443
  %638 = vmatprep.subr.bf16.mxu0 %v446
  %639 = vmatpush1.bf16.msra.mxu0 %v445
  %640 = vmatprep.subr.bf16.mxu0 %v448
  %641 = vmatpush1.bf16.msra.mxu0 %v447
  %642 = vmatprep.subr.bf16.mxu0 0
  %643 = vmatpush1.bf16.msra.mxu0 0
  %644 = vmatprep.subr.bf16.mxu0 0
  %645 = vmatpush1.bf16.msra.mxu0 0
  %646 = vmatprep.subr.bf16.mxu0 0
  %647 = vmatpush1.bf16.msra.mxu0 0
  %648 = vmatprep.subr.bf16.mxu0 0
  %649 = vmatpush1.bf16.msra.mxu0 0
  %650 = vmatprep.subr.bf16.mxu0 0
  %651 = vmatpush1.bf16.msra.mxu0 0
  %652 = vmatprep.subr.bf16.mxu0 0
  %653 = vmatpush1.bf16.msra.mxu0 0
  %654 = vmatprep.subr.bf16.mxu0 0
  %655 = vmatpush1.bf16.msra.mxu0 0
  %656 = vmatprep.subr.bf16.mxu0 0
  %657 = vmatpush1.bf16.msra.mxu0 0
  %658 = vmatprep.subr.bf16.mxu0 0
  %659 = vmatpush1.bf16.msra.mxu0 0
  %660 = vmatprep.subr.bf16.mxu0 0
  %661 = vmatpush1.bf16.msra.mxu0 0
  %662 = vmatprep.subr.bf16.mxu0 0
  %663 = vmatpush1.bf16.msra.mxu0 0
  %664 = vmatprep.subr.bf16.mxu0 0
  %665 = vmatpush1.bf16.msra.mxu0 0
  %666 = vmatprep.mubr.bf16.mxu0 0
  %667 = vmatmul.mubr.bf16.gmra.mrb[0].mxu0 %v523
  %v668 = vpop.f32.mrb[0].mxu0
  %v669 = vadd.f32 %v616, %v668
  %v670 = vpop.f32.mrb[0].mxu0
  %v671 = vadd.f32 %v618, %v670
  %v672 = vpop.f32.mrb[0].mxu0
  %v673 = vadd.f32 %v620, %v672
  %v674 = vpop.f32.mrb[0].mxu0
  %v675 = vadd.f32 %v622, %v674
  %676 = vmatprep.mubr.bf16.mxu0 0
  %677 = vmatmul.mubr.bf16.gmra.mrb[0].mxu0 %v526
  %v678 = vpop.f32.mrb[0].mxu0
  %v679 = vadd.f32 %v626, %v678
  %v680 = vpop.f32.mrb[0].mxu0
  %v681 = vadd.f32 %v628, %v680
  %v682 = vpop.f32.mrb[0].mxu0
  %v683 = vadd.f32 %v630, %v682
  %v684 = vpop.f32.mrb[0].mxu0
  %v685 = vadd.f32 %v632, %v684
  %686 = vdwg.mxu0
  %v687 = vmax.f32 %v669, 0.0
  %v688 = vmax.f32 %v671, 0.0
  %v689 = vmax.f32 %v673, 0.0
  %v690 = vmax.f32 %v675, 0.0
  %v691 = vmax.f32 %v679, 0.0
  %v692 = vmax.f32 %v681, 0.0
  %v693 = vmax.f32 %v683, 0.0
  %v694 = vmax.f32 %v685, 0.0
  %v695 = vpack.c.bf16 %v689, %v687
  %v696 = vpack.c.bf16 %v690, %v688
  %v697 = vpack.c.bf16 %v693, %v691
  %v698 = vpack.c.bf16 %v694, %v692
  %v703 = vunpack.c.l.b16 %v695
  %v704 = vunpack.c.l.b16 %v696
  %v705 = vunpack.c.h.b16 %v695
  %v706 = vunpack.c.h.b16 %v696
  %v707 = vunpack.c.l.b16 %v697
  %v708 = vunpack.c.l.b16 %v698
  %v709 = vunpack.c.h.b16 %v697
  %v710 = vunpack.c.h.b16 %v698
  %v711 = vpack.c.b16 %v704, %v703
  %v712 = vpack.c.b16 %v706, %v705
  %v713 = vpack.c.b16 %v708, %v707
  %v714 = vpack.c.b16 %v710, %v709
  %719 = vst [vmem:[%s3] sm:$0xff] %v711
  %720 = vst [vmem:[%s3 + $0x8] sm:$0xff] %v712
  %721 = vst [vmem:[%s3 + $0x10] sm:$0xff] %v713
  %722 = vst [vmem:[%s3 + $0x18] sm:$0xff] %v714
  // Predicated region
  $region14: #{vae_forward.14} parent=0 // pred_check
    _
  $region15: #{vae_forward.14} parent=0 // pred_check_branch
    %724 = sbr.rel (0) target = $region17
  $region16: #{vae_forward.14} parent=0 // pred_region
    _
  $region17: #{vae_forward.14} parent=0 // pred_fallthru
    _
  // Predicated region
  $region18: #{vae_forward.14} parent=0 // pred_check
    _
  $region19: #{vae_forward.14} parent=0 // pred_check_branch
    %726 = sbr.rel (0) target = $region21
  $region20: #{vae_forward.14} parent=0 // pred_region
    _
  $region21: #{vae_forward.14} parent=0 // pred_fallthru
    _

// kernel: vae_forward.13
$region0: #{vae_forward.13}
  #allocation0 [shape = 'u32[]', space=smem, size = 0x4, offset = 0x4, fixed_abs, tag = 'smem constant byte address 0x4 - core index']
  #allocation1 [shape = 'u32[144,128]{1,0:T(1,128)}', space=vmem, size = 0x12000, scoped, tag = 'internal scratch']
  %s0 = inlined_call_operand.vmem [shape: bf16[2,1024], index: 0, kind: input, shape index: {}]
  %s1 = inlined_call_operand.vmem [shape: bf16[1024,256], index: 1, kind: input, shape index: {}]
  %s2 = inlined_call_operand.vmem [shape: f32[1,256], index: 2, kind: input, shape index: {}]
  %s3 = inlined_call_operand.vmem [shape: bf16[256,16], index: 3, kind: input, shape index: {}]
  %s4 = inlined_call_operand.vmem [shape: f32[1,16], index: 4, kind: input, shape index: {}]
  %s5 = inlined_call_operand.vmem [shape: bf16[256,16], index: 5, kind: input, shape index: {}]
  %s6 = inlined_call_operand.vmem [shape: f32[1,16], index: 6, kind: input, shape index: {}]
  %s7 = inlined_call_operand.vmem [shape: f32[2,16], index: 7, kind: input, shape index: {}]
  %s8 = inlined_call_operand.vmem [shape: bf16[16,256], index: 8, kind: input, shape index: {}]
  %s9 = inlined_call_operand.vmem [shape: f32[1,256], index: 9, kind: input, shape index: {}]
  %s10 = inlined_call_operand.vmem [shape: bf16[256,1024], index: 10, kind: input, shape index: {}]
  %s11 = inlined_call_operand.vmem [shape: f32[1,1024], index: 11, kind: input, shape index: {}]
  %s12 = inlined_call_operand.hbm [shape: f32[2,16], index: 12, kind: output, shape index: {0}]
  %s13 = inlined_call_operand.hbm [shape: f32[2,16], index: 13, kind: output, shape index: {1}]
  %s14 = inlined_call_operand.vmem [shape: bf16[2,1024], index: 14, kind: output, shape index: {2}]
  %15 = xla_tuple %s12, %s13, %s14
  %s16 = sld [smem:[#allocation0]]
  $region74: #{vae_forward.13} parent=0
    _
  %s18 = ssub.s32 1, %s16
  %s19 = scalar_select 0, %s18, %s16
  $region1: #{vae_forward.13} parent=0
    #allocation2 [shape = 'u8[1024]{0}', space=vmem, size = 0x400, scoped, tag = 'output window, operand 0, single buffered']
    #allocation3 [shape = 's32[1]{0}', space=sflag, size = 0x4, scoped, tag = 'scoped memory for vae_forward.13']
    #allocation4 [shape = 'u8[1024]{0}', space=vmem, size = 0x400, scoped, tag = 'output window, operand 1, single buffered']
    #allocation5 [shape = 's32[1]{0}', space=sflag, size = 0x4, scoped, tag = 'scoped memory for vae_forward.13']
    %20 = vsyncpa [#allocation3], 0
    %21 = vsyncpa [#allocation5], 0
    // Predicated region
    $region2: #{vae_forward.13} parent=1 // pred_check
      _
    $region3: #{vae_forward.13} parent=1 // pred_check_branch
      %23 = sbr.rel (0) target = $region5
    $region4: #{vae_forward.13} parent=1 // pred_region
      _
    $region5: #{vae_forward.13} parent=1 // pred_fallthru
      _
    // Predicated region
    $region6: #{vae_forward.13} parent=1 // pred_check
      _
    $region7: #{vae_forward.13} parent=1 // pred_check_branch
      %25 = sbr.rel (0) target = $region9
    $region8: #{vae_forward.13} parent=1 // pred_region
      _
    $region9: #{vae_forward.13} parent=1 // pred_fallthru
      _
    // Predicated region
    $region10: #{vae_forward.13} parent=1 // pred_check
      _
    $region11: #{vae_forward.13} parent=1 // pred_check_branch
      %27 = sbr.rel (0) target = $region13
    $region12: #{vae_forward.13} parent=1 // pred_region
      _
    $region13: #{vae_forward.13} parent=1 // pred_fallthru
      _
    // Predicated region
    $region14: #{vae_forward.13} parent=1 // pred_check
      _
    $region15: #{vae_forward.13} parent=1 // pred_check_branch
      %29 = sbr.rel (0) target = $region17
    $region16: #{vae_forward.13} parent=1 // pred_region
      _
    $region17: #{vae_forward.13} parent=1 // pred_fallthru
      _
    // Predicated region
    $region18: #{vae_forward.13} parent=1 // pred_check
      _
    $region19: #{vae_forward.13} parent=1 // pred_check_branch
      %31 = sbr.rel (0) target = $region21
    $region20: #{vae_forward.13} parent=1 // pred_region
      _
    $region21: #{vae_forward.13} parent=1 // pred_fallthru
      _
    // Predicated region
    $region22: #{vae_forward.13} parent=1 // pred_check
      _
    $region23: #{vae_forward.13} parent=1 // pred_check_branch
      %33 = sbr.rel (0) target = $region25
    $region24: #{vae_forward.13} parent=1 // pred_region
      _
    $region25: #{vae_forward.13} parent=1 // pred_fallthru
      _
    // Predicated region
    $region26: #{vae_forward.13} parent=1 // pred_check
      _
    $region27: #{vae_forward.13} parent=1 // pred_check_branch
      %35 = sbr.rel (0) target = $region29
    $region28: #{vae_forward.13} parent=1 // pred_region
      _
    $region29: #{vae_forward.13} parent=1 // pred_fallthru
      _
    // Predicated region
    $region30: #{vae_forward.13} parent=1 // pred_check
      _
    $region31: #{vae_forward.13} parent=1 // pred_check_branch
      %37 = sbr.rel (0) target = $region33
    $region32: #{vae_forward.13} parent=1 // pred_region
      _
    $region33: #{vae_forward.13} parent=1 // pred_fallthru
      _
    // Predicated region
    $region34: #{vae_forward.13} parent=1 // pred_check
      _
    $region35: #{vae_forward.13} parent=1 // pred_check_branch
      %39 = sbr.rel (0) target = $region37
    $region36: #{vae_forward.13} parent=1 // pred_region
      _
    $region37: #{vae_forward.13} parent=1 // pred_fallthru
      _
    // Predicated region
    $region38: #{vae_forward.13} parent=1 // pred_check
      _
    $region39: #{vae_forward.13} parent=1 // pred_check_branch
      %41 = sbr.rel (0) target = $region41
    $region40: #{vae_forward.13} parent=1 // pred_region
      _
    $region41: #{vae_forward.13} parent=1 // pred_fallthru
      _
    // Predicated region
    $region42: #{vae_forward.13} parent=1 // pred_check
      _
    $region43: #{vae_forward.13} parent=1 // pred_check_branch
      %43 = sbr.rel (0) target = $region45
    $region44: #{vae_forward.13} parent=1 // pred_region
      _
    $region45: #{vae_forward.13} parent=1 // pred_fallthru
      _
    // Predicated region
    $region46: #{vae_forward.13} parent=1 // pred_check
      _
    $region47: #{vae_forward.13} parent=1 // pred_check_branch
      %45 = sbr.rel (0) target = $region49
    $region48: #{vae_forward.13} parent=1 // pred_region
      _
    $region49: #{vae_forward.13} parent=1 // pred_fallthru
      _
    %v47 = vld [vmem:[%s0] sm:$0xff]
    %v48 = vld [vmem:[%s1] sm:$0xff]
    %v49 = vld [vmem:[%s1 + $0x8] sm:$0xff]
    %v50 = vld [vmem:[%s1 + $0x10] sm:$0xff]
    %v51 = vld [vmem:[%s1 + $0x18] sm:$0xff]
    %v52 = vld [vmem:[%s1 + $0x20] sm:$0xff]
    %v53 = vld [vmem:[%s1 + $0x28] sm:$0xff]
    %v54 = vld [vmem:[%s1 + $0x30] sm:$0xff]
    %v55 = vld [vmem:[%s1 + $0x38] sm:$0xff]
    %v56 = vld [vmem:[%s1 + $0x40] sm:$0xff]
    %v57 = vld [vmem:[%s1 + $0x48] sm:$0xff]
    %v58 = vld [vmem:[%s1 + $0x50] sm:$0xff]
    %v59 = vld [vmem:[%s1 + $0x58] sm:$0xff]
    %v60 = vld [vmem:[%s1 + $0x60] sm:$0xff]
    %v61 = vld [vmem:[%s1 + $0x68] sm:$0xff]
    %v62 = vld [vmem:[%s1 + $0x70] sm:$0xff]
    %v63 = vld [vmem:[%s1 + $0x78] sm:$0xff]
    %v64 = vld [vmem:[%s1 + $0x80] sm:$0xff]
    %v65 = vld [vmem:[%s1 + $0x88] sm:$0xff]
    %v66 = vld [vmem:[%s1 + $0x90] sm:$0xff]
    %v67 = vld [vmem:[%s1 + $0x98] sm:$0xff]
    %v68 = vld [vmem:[%s1 + $0xa0] sm:$0xff]
    %v69 = vld [vmem:[%s1 + $0xa8] sm:$0xff]
    %v70 = vld [vmem:[%s1 + $0xb0] sm:$0xff]
    %v71 = vld [vmem:[%s1 + $0xb8] sm:$0xff]
    %v72 = vld [vmem:[%s1 + $0xc0] sm:$0xff]
    %v73 = vld [vmem:[%s1 + $0xc8] sm:$0xff]
    %v74 = vld [vmem:[%s1 + $0xd0] sm:$0xff]
    %v75 = vld [vmem:[%s1 + $0xd8] sm:$0xff]
    %v76 = vld [vmem:[%s1 + $0xe0] sm:$0xff]
    %v77 = vld [vmem:[%s1 + $0xe8] sm:$0xff]
    %v78 = vld [vmem:[%s1 + $0xf0] sm:$0xff]
    %v79 = vld [vmem:[%s1 + $0xf8] sm:$0xff]
    %v80 = vld [vmem:[%s1 + $0x100] sm:$0xff]
    %v81 = vld [vmem:[%s1 + $0x108] sm:$0xff]
    %v82 = vld [vmem:[%s1 + $0x110] sm:$0xff]
    %v83 = vld [vmem:[%s1 + $0x118] sm:$0xff]
    %v84 = vld [vmem:[%s1 + $0x120] sm:$0xff]
    %v85 = vld [vmem:[%s1 + $0x128] sm:$0xff]
    %v86 = vld [vmem:[%s1 + $0x130] sm:$0xff]
    %v87 = vld [vmem:[%s1 + $0x138] sm:$0xff]
    %v88 = vld [vmem:[%s1 + $0x140] sm:$0xff]
    %v89 = vld [vmem:[%s1 + $0x148] sm:$0xff]
    %v90 = vld [vmem:[%s1 + $0x150] sm:$0xff]
    %v91 = vld [vmem:[%s1 + $0x158] sm:$0xff]
    %v92 = vld [vmem:[%s1 + $0x160] sm:$0xff]
    %v93 = vld [vmem:[%s1 + $0x168] sm:$0xff]
    %v94 = vld [vmem:[%s1 + $0x170] sm:$0xff]
    %v95 = vld [vmem:[%s1 + $0x178] sm:$0xff]
    %v96 = vld [vmem:[%s1 + $0x180] sm:$0xff]
    %v97 = vld [vmem:[%s1 + $0x188] sm:$0xff]
    %v98 = vld [vmem:[%s1 + $0x190] sm:$0xff]
    %v99 = vld [vmem:[%s1 + $0x198] sm:$0xff]
    %v100 = vld [vmem:[%s1 + $0x1a0] sm:$0xff]
    %v101 = vld [vmem:[%s1 + $0x1a8] sm:$0xff]
    %v102 = vld [vmem:[%s1 + $0x1b0] sm:$0xff]
    %v103 = vld [vmem:[%s1 + $0x1b8] sm:$0xff]
    %v104 = vld [vmem:[%s1 + $0x1c0] sm:$0xff]
    %v105 = vld [vmem:[%s1 + $0x1c8] sm:$0xff]
    %v106 = vld [vmem:[%s1 + $0x1d0] sm:$0xff]
    %v107 = vld [vmem:[%s1 + $0x1d8] sm:$0xff]
    %v108 = vld [vmem:[%s1 + $0x1e0] sm:$0xff]
    %v109 = vld [vmem:[%s1 + $0x1e8] sm:$0xff]
    %v110 = vld [vmem:[%s1 + $0x1f0] sm:$0xff]
    %v111 = vld [vmem:[%s1 + $0x1f8] sm:$0xff]
    %v112 = vld [vmem:[%s1 + $0x200] sm:$0xff]
    %v113 = vld [vmem:[%s1 + $0x208] sm:$0xff]
    %v114 = vld [vmem:[%s1 + $0x210] sm:$0xff]
    %v115 = vld [vmem:[%s1 + $0x218] sm:$0xff]
    %v116 = vld [vmem:[%s1 + $0x220] sm:$0xff]
    %v117 = vld [vmem:[%s1 + $0x228] sm:$0xff]
    %v118 = vld [vmem:[%s1 + $0x230] sm:$0xff]
    %v119 = vld [vmem:[%s1 + $0x238] sm:$0xff]
    %v120 = vld [vmem:[%s1 + $0x240] sm:$0xff]
    %v121 = vld [vmem:[%s1 + $0x248] sm:$0xff]
    %v122 = vld [vmem:[%s1 + $0x250] sm:$0xff]
    %v123 = vld [vmem:[%s1 + $0x258] sm:$0xff]
    %v124 = vld [vmem:[%s1 + $0x260] sm:$0xff]
    %v125 = vld [vmem:[%s1 + $0x268] sm:$0xff]
    %v126 = vld [vmem:[%s1 + $0x270] sm:$0xff]
    %v127 = vld [vmem:[%s1 + $0x278] sm:$0xff]
    %v128 = vld [vmem:[%s1 + $0x280] sm:$0xff]
    %v129 = vld [vmem:[%s1 + $0x288] sm:$0xff]
    %v130 = vld [vmem:[%s1 + $0x290] sm:$0xff]
    %v131 = vld [vmem:[%s1 + $0x298] sm:$0xff]
    %v132 = vld [vmem:[%s1 + $0x2a0] sm:$0xff]
    %v133 = vld [vmem:[%s1 + $0x2a8] sm:$0xff]
    %v134 = vld [vmem:[%s1 + $0x2b0] sm:$0xff]
    %v135 = vld [vmem:[%s1 + $0x2b8] sm:$0xff]
    %v136 = vld [vmem:[%s1 + $0x2c0] sm:$0xff]
    %v137 = vld [vmem:[%s1 + $0x2c8] sm:$0xff]
    %v138 = vld [vmem:[%s1 + $0x2d0] sm:$0xff]
    %v139 = vld [vmem:[%s1 + $0x2d8] sm:$0xff]
    %v140 = vld [vmem:[%s1 + $0x2e0] sm:$0xff]
    %v141 = vld [vmem:[%s1 + $0x2e8] sm:$0xff]
    %v142 = vld [vmem:[%s1 + $0x2f0] sm:$0xff]
    %v143 = vld [vmem:[%s1 + $0x2f8] sm:$0xff]
    %v144 = vld [vmem:[%s1 + $0x300] sm:$0xff]
    %v145 = vld [vmem:[%s1 + $0x308] sm:$0xff]
    %v146 = vld [vmem:[%s1 + $0x310] sm:$0xff]
    %v147 = vld [vmem:[%s1 + $0x318] sm:$0xff]
    %v148 = vld [vmem:[%s1 + $0x320] sm:$0xff]
    %v149 = vld [vmem:[%s1 + $0x328] sm:$0xff]
    %v150 = vld [vmem:[%s1 + $0x330] sm:$0xff]
    %v151 = vld [vmem:[%s1 + $0x338] sm:$0xff]
    %v152 = vld [vmem:[%s1 + $0x340] sm:$0xff]
    %v153 = vld [vmem:[%s1 + $0x348] sm:$0xff]
    %v154 = vld [vmem:[%s1 + $0x350] sm:$0xff]
    %v155 = vld [vmem:[%s1 + $0x358] sm:$0xff]
    %v156 = vld [vmem:[%s1 + $0x360] sm:$0xff]
    %v157 = vld [vmem:[%s1 + $0x368] sm:$0xff]
    %v158 = vld [vmem:[%s1 + $0x370] sm:$0xff]
    %v159 = vld [vmem:[%s1 + $0x378] sm:$0xff]
    %v160 = vld [vmem:[%s1 + $0x380] sm:$0xff]
    %v161 = vld [vmem:[%s1 + $0x388] sm:$0xff]
    %v162 = vld [vmem:[%s1 + $0x390] sm:$0xff]
    %v163 = vld [vmem:[%s1 + $0x398] sm:$0xff]
    %v164 = vld [vmem:[%s1 + $0x3a0] sm:$0xff]
    %v165 = vld [vmem:[%s1 + $0x3a8] sm:$0xff]
    %v166 = vld [vmem:[%s1 + $0x3b0] sm:$0xff]
    %v167 = vld [vmem:[%s1 + $0x3b8] sm:$0xff]
    %v168 = vld [vmem:[%s1 + $0x3c0] sm:$0xff]
    %v169 = vld [vmem:[%s1 + $0x3c8] sm:$0xff]
    %v170 = vld [vmem:[%s1 + $0x3d0] sm:$0xff]
    %v171 = vld [vmem:[%s1 + $0x3d8] sm:$0xff]
    %v172 = vld [vmem:[%s1 + $0x3e0] sm:$0xff]
    %v173 = vld [vmem:[%s1 + $0x3e8] sm:$0xff]
    %v174 = vld [vmem:[%s1 + $0x3f0] sm:$0xff]
    %v175 = vld [vmem:[%s1 + $0x3f8] sm:$0xff]
    %v176 = vld [vmem:[%s2] sm:$0x3]
    %v178 = vlaneseq
    %v179 = vshrl.u32 %v178, 7
    %v180 = vsub.s32 0, %v179
    %v181 = vrot.slane %v176, %v180
    %v182 = vlaneseq
    %v183 = vshrl.u32 %v182, 7
    %v184 = vsub.s32 1, %v183
    %v185 = vrot.slane %v176, %v184
    %v189 = vcombine.high %v47, %v47
    %v191 = vunpack.c.l.s4 1966171168
    %v192 = vunpack.c.0.s8 %v191
    %v193 = vlaneseq
    %v194 = vshrl.u32 %v193, 7
    %v195 = vsub.s32 %v192, %v194
    %v196 = vrot.slane %v47, %v195
    %v198 = vunpack.c.l.s4 1966171168
    %v199 = vunpack.c.0.s8 %v198
    %v200 = vlaneseq
    %v201 = vshrl.u32 %v200, 7
    %v202 = vsub.s32 %v199, %v201
    %v203 = vrot.slane %v189, %v202
    %v204 = vcombine.high %v196, %v196
    %v205 = vcombine.high %v203, %v203
    %v207 = vunpack.c.l.s4 1966171168
    %v208 = vunpack.c.0.s8 %v207
    %v209 = vlaneseq
    %v210 = vshrl.u32 %v209, 7
    %v211 = vsub.s32 %v208, %v210
    %v212 = vrot.slane %v196, %v211
    %v214 = vunpack.c.l.s4 1966171168
    %v215 = vunpack.c.0.s8 %v214
    %v216 = vlaneseq
    %v217 = vshrl.u32 %v216, 7
    %v218 = vsub.s32 %v215, %v217
    %v219 = vrot.slane %v203, %v218
    %v221 = vunpack.c.l.s4 1966171168
    %v222 = vunpack.c.0.s8 %v221
    %v223 = vlaneseq
    %v224 = vshrl.u32 %v223, 7
    %v225 = vsub.s32 %v222, %v224
    %v226 = vrot.slane %v204, %v225
    %v228 = vunpack.c.l.s4 1966171168
    %v229 = vunpack.c.0.s8 %v228
    %v230 = vlaneseq
    %v231 = vshrl.u32 %v230, 7
    %v232 = vsub.s32 %v229, %v231
    %v233 = vrot.slane %v205, %v232
    %v234 = vcombine.high %v212, %v212
    %v235 = vcombine.high %v219, %v219
    %v236 = vcombine.high %v226, %v226
    %v237 = vcombine.high %v233, %v233
    %v374 = vunpack.c.l.b16 %v48
    %v375 = vunpack.c.h.b16 %v48
    %v376 = vunpack.c.l.b16 %v49
    %v377 = vunpack.c.h.b16 %v49
    %v378 = vunpack.c.l.b16 %v50
    %v379 = vunpack.c.h.b16 %v50
    %v380 = vunpack.c.l.b16 %v51
    %v381 = vunpack.c.h.b16 %v51
    %v382 = vunpack.c.l.b16 %v52
    %v383 = vunpack.c.h.b16 %v52
    %v384 = vunpack.c.l.b16 %v53
    %v385 = vunpack.c.h.b16 %v53
    %v386 = vunpack.c.l.b16 %v54
    %v387 = vunpack.c.h.b16 %v54
    %v388 = vunpack.c.l.b16 %v55
    %v389 = vunpack.c.h.b16 %v55
    %v390 = vunpack.c.l.b16 %v56
    %v391 = vunpack.c.h.b16 %v56
    %v392 = vunpack.c.l.b16 %v57
    %v393 = vunpack.c.h.b16 %v57
    %v394 = vunpack.c.l.b16 %v58
    %v395 = vunpack.c.h.b16 %v58
    %v396 = vunpack.c.l.b16 %v59
    %v397 = vunpack.c.h.b16 %v59
    %v398 = vunpack.c.l.b16 %v60
    %v399 = vunpack.c.h.b16 %v60
    %v400 = vunpack.c.l.b16 %v61
    %v401 = vunpack.c.h.b16 %v61
    %v402 = vunpack.c.l.b16 %v62
    %v403 = vunpack.c.h.b16 %v62
    %v404 = vunpack.c.l.b16 %v63
    %v405 = vunpack.c.h.b16 %v63
    %v406 = vunpack.c.l.b16 %v64
    %v407 = vunpack.c.h.b16 %v64
    %v408 = vunpack.c.l.b16 %v65
    %v409 = vunpack.c.h.b16 %v65
    %v410 = vunpack.c.l.b16 %v66
    %v411 = vunpack.c.h.b16 %v66
    %v412 = vunpack.c.l.b16 %v67
    %v413 = vunpack.c.h.b16 %v67
    %v414 = vunpack.c.l.b16 %v68
    %v415 = vunpack.c.h.b16 %v68
    %v416 = vunpack.c.l.b16 %v69
    %v417 = vunpack.c.h.b16 %v69
    %v418 = vunpack.c.l.b16 %v70
    %v419 = vunpack.c.h.b16 %v70
    %v420 = vunpack.c.l.b16 %v71
    %v421 = vunpack.c.h.b16 %v71
    %v422 = vunpack.c.l.b16 %v72
    %v423 = vunpack.c.h.b16 %v72
    %v424 = vunpack.c.l.b16 %v73
    %v425 = vunpack.c.h.b16 %v73
    %v426 = vunpack.c.l.b16 %v74
    %v427 = vunpack.c.h.b16 %v74
    %v428 = vunpack.c.l.b16 %v75
    %v429 = vunpack.c.h.b16 %v75
    %v430 = vunpack.c.l.b16 %v76
    %v431 = vunpack.c.h.b16 %v76
    %v432 = vunpack.c.l.b16 %v77
    %v433 = vunpack.c.h.b16 %v77
    %v434 = vunpack.c.l.b16 %v78
    %v435 = vunpack.c.h.b16 %v78
    %v436 = vunpack.c.l.b16 %v79
    %v437 = vunpack.c.h.b16 %v79
    %v438 = vunpack.c.l.b16 %v80
    %v439 = vunpack.c.h.b16 %v80
    %v440 = vunpack.c.l.b16 %v81
    %v441 = vunpack.c.h.b16 %v81
    %v442 = vunpack.c.l.b16 %v82
    %v443 = vunpack.c.h.b16 %v82
    %v444 = vunpack.c.l.b16 %v83
    %v445 = vunpack.c.h.b16 %v83
    %v446 = vunpack.c.l.b16 %v84
    %v447 = vunpack.c.h.b16 %v84
    %v448 = vunpack.c.l.b16 %v85
    %v449 = vunpack.c.h.b16 %v85
    %v450 = vunpack.c.l.b16 %v86
    %v451 = vunpack.c.h.b16 %v86
    %v452 = vunpack.c.l.b16 %v87
    %v453 = vunpack.c.h.b16 %v87
    %v454 = vunpack.c.l.b16 %v88
    %v455 = vunpack.c.h.b16 %v88
    %v456 = vunpack.c.l.b16 %v89
    %v457 = vunpack.c.h.b16 %v89
    %v458 = vunpack.c.l.b16 %v90
    %v459 = vunpack.c.h.b16 %v90
    %v460 = vunpack.c.l.b16 %v91
    %v461 = vunpack.c.h.b16 %v91
    %v462 = vunpack.c.l.b16 %v92
    %v463 = vunpack.c.h.b16 %v92
    %v464 = vunpack.c.l.b16 %v93
    %v465 = vunpack.c.h.b16 %v93
    %v466 = vunpack.c.l.b16 %v94
    %v467 = vunpack.c.h.b16 %v94
    %v468 = vunpack.c.l.b16 %v95
    %v469 = vunpack.c.h.b16 %v95
    %v470 = vunpack.c.l.b16 %v96
    %v471 = vunpack.c.h.b16 %v96
    %v472 = vunpack.c.l.b16 %v97
    %v473 = vunpack.c.h.b16 %v97
    %v474 = vunpack.c.l.b16 %v98
    %v475 = vunpack.c.h.b16 %v98
    %v476 = vunpack.c.l.b16 %v99
    %v477 = vunpack.c.h.b16 %v99
    %v478 = vunpack.c.l.b16 %v100
    %v479 = vunpack.c.h.b16 %v100
    %v480 = vunpack.c.l.b16 %v101
    %v481 = vunpack.c.h.b16 %v101
    %v482 = vunpack.c.l.b16 %v102
    %v483 = vunpack.c.h.b16 %v102
    %v484 = vunpack.c.l.b16 %v103
    %v485 = vunpack.c.h.b16 %v103
    %v486 = vunpack.c.l.b16 %v104
    %v487 = vunpack.c.h.b16 %v104
    %v488 = vunpack.c.l.b16 %v105
    %v489 = vunpack.c.h.b16 %v105
    %v490 = vunpack.c.l.b16 %v106
    %v491 = vunpack.c.h.b16 %v106
    %v492 = vunpack.c.l.b16 %v107
    %v493 = vunpack.c.h.b16 %v107
    %v494 = vunpack.c.l.b16 %v108
    %v495 = vunpack.c.h.b16 %v108
    %v496 = vunpack.c.l.b16 %v109
    %v497 = vunpack.c.h.b16 %v109
    %v498 = vunpack.c.l.b16 %v110
    %v499 = vunpack.c.h.b16 %v110
    %v500 = vunpack.c.l.b16 %v111
    %v501 = vunpack.c.h.b16 %v111
    %v502 = vunpack.c.l.b16 %v112
    %v503 = vunpack.c.h.b16 %v112
    %v504 = vunpack.c.l.b16 %v113
    %v505 = vunpack.c.h.b16 %v113
    %v506 = vunpack.c.l.b16 %v114
    %v507 = vunpack.c.h.b16 %v114
    %v508 = vunpack.c.l.b16 %v115
    %v509 = vunpack.c.h.b16 %v115
    %v510 = vunpack.c.l.b16 %v116
    %v511 = vunpack.c.h.b16 %v116
    %v512 = vunpack.c.l.b16 %v117
    %v513 = vunpack.c.h.b16 %v117
    %v514 = vunpack.c.l.b16 %v118
    %v515 = vunpack.c.h.b16 %v118
    %v516 = vunpack.c.l.b16 %v119
    %v517 = vunpack.c.h.b16 %v119
    %v518 = vunpack.c.l.b16 %v120
    %v519 = vunpack.c.h.b16 %v120
    %v520 = vunpack.c.l.b16 %v121
    %v521 = vunpack.c.h.b16 %v121
    %v522 = vunpack.c.l.b16 %v122
    %v523 = vunpack.c.h.b16 %v122
    %v524 = vunpack.c.l.b16 %v123
    %v525 = vunpack.c.h.b16 %v123
    %v526 = vunpack.c.l.b16 %v124
    %v527 = vunpack.c.h.b16 %v124
    %v528 = vunpack.c.l.b16 %v125
    %v529 = vunpack.c.h.b16 %v125
    %v530 = vunpack.c.l.b16 %v126
    %v531 = vunpack.c.h.b16 %v126
    %v532 = vunpack.c.l.b16 %v127
    %v533 = vunpack.c.h.b16 %v127
    %v534 = vunpack.c.l.b16 %v128
    %v535 = vunpack.c.h.b16 %v128
    %v536 = vunpack.c.l.b16 %v129
    %v537 = vunpack.c.h.b16 %v129
    %v538 = vunpack.c.l.b16 %v130
    %v539 = vunpack.c.h.b16 %v130
    %v540 = vunpack.c.l.b16 %v131
    %v541 = vunpack.c.h.b16 %v131
    %v542 = vunpack.c.l.b16 %v132
    %v543 = vunpack.c.h.b16 %v132
    %v544 = vunpack.c.l.b16 %v133
    %v545 = vunpack.c.h.b16 %v133
    %v546 = vunpack.c.l.b16 %v134
    %v547 = vunpack.c.h.b16 %v134
    %v548 = vunpack.c.l.b16 %v135
    %v549 = vunpack.c.h.b16 %v135
    %v550 = vunpack.c.l.b16 %v136
    %v551 = vunpack.c.h.b16 %v136
    %v552 = vunpack.c.l.b16 %v137
    %v553 = vunpack.c.h.b16 %v137
    %v554 = vunpack.c.l.b16 %v138
    %v555 = vunpack.c.h.b16 %v138
    %v556 = vunpack.c.l.b16 %v139
    %v557 = vunpack.c.h.b16 %v139
    %v558 = vunpack.c.l.b16 %v140
    %v559 = vunpack.c.h.b16 %v140
    %v560 = vunpack.c.l.b16 %v141
    %v561 = vunpack.c.h.b16 %v141
    %v562 = vunpack.c.l.b16 %v142
    %v563 = vunpack.c.h.b16 %v142
    %v564 = vunpack.c.l.b16 %v143
    %v565 = vunpack.c.h.b16 %v143
    %v566 = vunpack.c.l.b16 %v144
    %v567 = vunpack.c.h.b16 %v144
    %v568 = vunpack.c.l.b16 %v145
    %v569 = vunpack.c.h.b16 %v145
    %v570 = vunpack.c.l.b16 %v146
    %v571 = vunpack.c.h.b16 %v146
    %v572 = vunpack.c.l.b16 %v147
    %v573 = vunpack.c.h.b16 %v147
    %v574 = vunpack.c.l.b16 %v148
    %v575 = vunpack.c.h.b16 %v148
    %v576 = vunpack.c.l.b16 %v149
    %v577 = vunpack.c.h.b16 %v149
    %v578 = vunpack.c.l.b16 %v150
    %v579 = vunpack.c.h.b16 %v150
    %v580 = vunpack.c.l.b16 %v151
    %v581 = vunpack.c.h.b16 %v151
    %v582 = vunpack.c.l.b16 %v152
    %v583 = vunpack.c.h.b16 %v152
    %v584 = vunpack.c.l.b16 %v153
    %v585 = vunpack.c.h.b16 %v153
    %v586 = vunpack.c.l.b16 %v154
    %v587 = vunpack.c.h.b16 %v154
    %v588 = vunpack.c.l.b16 %v155
    %v589 = vunpack.c.h.b16 %v155
    %v590 = vunpack.c.l.b16 %v156
    %v591 = vunpack.c.h.b16 %v156
    %v592 = vunpack.c.l.b16 %v157
    %v593 = vunpack.c.h.b16 %v157
    %v594 = vunpack.c.l.b16 %v158
    %v595 = vunpack.c.h.b16 %v158
    %v596 = vunpack.c.l.b16 %v159
    %v597 = vunpack.c.h.b16 %v159
    %v598 = vunpack.c.l.b16 %v160
    %v599 = vunpack.c.h.b16 %v160
    %v600 = vunpack.c.l.b16 %v161
    %v601 = vunpack.c.h.b16 %v161
    %v602 = vunpack.c.l.b16 %v162
    %v603 = vunpack.c.h.b16 %v162
    %v604 = vunpack.c.l.b16 %v163
    %v605 = vunpack.c.h.b16 %v163
    %v606 = vunpack.c.l.b16 %v164
    %v607 = vunpack.c.h.b16 %v164
    %v608 = vunpack.c.l.b16 %v165
    %v609 = vunpack.c.h.b16 %v165
    %v610 = vunpack.c.l.b16 %v166
    %v611 = vunpack.c.h.b16 %v166
    %v612 = vunpack.c.l.b16 %v167
    %v613 = vunpack.c.h.b16 %v167
    %v614 = vunpack.c.l.b16 %v168
    %v615 = vunpack.c.h.b16 %v168
    %v616 = vunpack.c.l.b16 %v169
    %v617 = vunpack.c.h.b16 %v169
    %v618 = vunpack.c.l.b16 %v170
    %v619 = vunpack.c.h.b16 %v170
    %v620 = vunpack.c.l.b16 %v171
    %v621 = vunpack.c.h.b16 %v171
    %v622 = vunpack.c.l.b16 %v172
    %v623 = vunpack.c.h.b16 %v172
    %v624 = vunpack.c.l.b16 %v173
    %v625 = vunpack.c.h.b16 %v173
    %v626 = vunpack.c.l.b16 %v174
    %v627 = vunpack.c.h.b16 %v174
    %v628 = vunpack.c.l.b16 %v175
    %v629 = vunpack.c.h.b16 %v175
    %v630 = vpack.c.b16 %v376, %v374
    %v631 = vpack.c.b16 %v377, %v375
    %v632 = vpack.c.b16 %v380, %v378
    %v633 = vpack.c.b16 %v381, %v379
    %v634 = vpack.c.b16 %v384, %v382
    %v635 = vpack.c.b16 %v385, %v383
    %v636 = vpack.c.b16 %v388, %v386
    %v637 = vpack.c.b16 %v389, %v387
    %v638 = vpack.c.b16 %v392, %v390
    %v639 = vpack.c.b16 %v393, %v391
    %v640 = vpack.c.b16 %v396, %v394
    %v641 = vpack.c.b16 %v397, %v395
    %v642 = vpack.c.b16 %v400, %v398
    %v643 = vpack.c.b16 %v401, %v399
    %v644 = vpack.c.b16 %v404, %v402
    %v645 = vpack.c.b16 %v405, %v403
    %v646 = vpack.c.b16 %v408, %v406
    %v647 = vpack.c.b16 %v409, %v407
    %v648 = vpack.c.b16 %v412, %v410
    %v649 = vpack.c.b16 %v413, %v411
    %v650 = vpack.c.b16 %v416, %v414
    %v651 = vpack.c.b16 %v417, %v415
    %v652 = vpack.c.b16 %v420, %v418
    %v653 = vpack.c.b16 %v421, %v419
    %v654 = vpack.c.b16 %v424, %v422
    %v655 = vpack.c.b16 %v425, %v423
    %v656 = vpack.c.b16 %v428, %v426
    %v657 = vpack.c.b16 %v429, %v427
    %v658 = vpack.c.b16 %v432, %v430
    %v659 = vpack.c.b16 %v433, %v431
    %v660 = vpack.c.b16 %v436, %v434
    %v661 = vpack.c.b16 %v437, %v435
    %v662 = vpack.c.b16 %v440, %v438
    %v663 = vpack.c.b16 %v441, %v439
    %v664 = vpack.c.b16 %v444, %v442
    %v665 = vpack.c.b16 %v445, %v443
    %v666 = vpack.c.b16 %v448, %v446
    %v667 = vpack.c.b16 %v449, %v447
    %v668 = vpack.c.b16 %v452, %v450
    %v669 = vpack.c.b16 %v453, %v451
    %v670 = vpack.c.b16 %v456, %v454
    %v671 = vpack.c.b16 %v457, %v455
    %v672 = vpack.c.b16 %v460, %v458
    %v673 = vpack.c.b16 %v461, %v459
    %v674 = vpack.c.b16 %v464, %v462
    %v675 = vpack.c.b16 %v465, %v463
    %v676 = vpack.c.b16 %v468, %v466
    %v677 = vpack.c.b16 %v469, %v467
    %v678 = vpack.c.b16 %v472, %v470
    %v679 = vpack.c.b16 %v473, %v471
    %v680 = vpack.c.b16 %v476, %v474
    %v681 = vpack.c.b16 %v477, %v475
    %v682 = vpack.c.b16 %v480, %v478
    %v683 = vpack.c.b16 %v481, %v479
    %v684 = vpack.c.b16 %v484, %v482
    %v685 = vpack.c.b16 %v485, %v483
    %v686 = vpack.c.b16 %v488, %v486
    %v687 = vpack.c.b16 %v489, %v487
    %v688 = vpack.c.b16 %v492, %v490
    %v689 = vpack.c.b16 %v493, %v491
    %v690 = vpack.c.b16 %v496, %v494
    %v691 = vpack.c.b16 %v497, %v495
    %v692 = vpack.c.b16 %v500, %v498
    %v693 = vpack.c.b16 %v501, %v499
    %v694 = vpack.c.b16 %v504, %v502
    %v695 = vpack.c.b16 %v505, %v503
    %v696 = vpack.c.b16 %v508, %v506
    %v697 = vpack.c.b16 %v509, %v507
    %v698 = vpack.c.b16 %v512, %v510
    %v699 = vpack.c.b16 %v513, %v511
    %v700 = vpack.c.b16 %v516, %v514
    %v701 = vpack.c.b16 %v517, %v515
    %v702 = vpack.c.b16 %v520, %v518
    %v703 = vpack.c.b16 %v521, %v519
    %v704 = vpack.c.b16 %v524, %v522
    %v705 = vpack.c.b16 %v525, %v523
    %v706 = vpack.c.b16 %v528, %v526
    %v707 = vpack.c.b16 %v529, %v527
    %v708 = vpack.c.b16 %v532, %v530
    %v709 = vpack.c.b16 %v533, %v531
    %v710 = vpack.c.b16 %v536, %v534
    %v711 = vpack.c.b16 %v537, %v535
    %v712 = vpack.c.b16 %v540, %v538
    %v713 = vpack.c.b16 %v541, %v539
    %v714 = vpack.c.b16 %v544, %v542
    %v715 = vpack.c.b16 %v545, %v543
    %v716 = vpack.c.b16 %v548, %v546
    %v717 = vpack.c.b16 %v549, %v547
    %v718 = vpack.c.b16 %v552, %v550
    %v719 = vpack.c.b16 %v553, %v551
    %v720 = vpack.c.b16 %v556, %v554
    %v721 = vpack.c.b16 %v557, %v555
    %v722 = vpack.c.b16 %v560, %v558
    %v723 = vpack.c.b16 %v561, %v559
    %v724 = vpack.c.b16 %v564, %v562
    %v725 = vpack.c.b16 %v565, %v563
    %v726 = vpack.c.b16 %v568, %v566
    %v727 = vpack.c.b16 %v569, %v567
    %v728 = vpack.c.b16 %v572, %v570
    %v729 = vpack.c.b16 %v573, %v571
    %v730 = vpack.c.b16 %v576, %v574
    %v731 = vpack.c.b16 %v577, %v575
    %v732 = vpack.c.b16 %v580, %v578
    %v733 = vpack.c.b16 %v581, %v579
    %v734 = vpack.c.b16 %v584, %v582
    %v735 = vpack.c.b16 %v585, %v583
    %v736 = vpack.c.b16 %v588, %v586
    %v737 = vpack.c.b16 %v589, %v587
    %v738 = vpack.c.b16 %v592, %v590
    %v739 = vpack.c.b16 %v593, %v591
    %v740 = vpack.c.b16 %v596, %v594
    %v741 = vpack.c.b16 %v597, %v595
    %v742 = vpack.c.b16 %v600, %v598
    %v743 = vpack.c.b16 %v601, %v599
    %v744 = vpack.c.b16 %v604, %v602
    %v745 = vpack.c.b16 %v605, %v603
    %v746 = vpack.c.b16 %v608, %v606
    %v747 = vpack.c.b16 %v609, %v607
    %v748 = vpack.c.b16 %v612, %v610
    %v749 = vpack.c.b16 %v613, %v611
    %v750 = vpack.c.b16 %v616, %v614
    %v751 = vpack.c.b16 %v617, %v615
    %v752 = vpack.c.b16 %v620, %v618
    %v753 = vpack.c.b16 %v621, %v619
    %v754 = vpack.c.b16 %v624, %v622
    %v755 = vpack.c.b16 %v625, %v623
    %v756 = vpack.c.b16 %v628, %v626
    %v757 = vpack.c.b16 %v629, %v627
    %886 = vmatprep.subr.bf16.mxu0 %v631
    %887 = vmatpush1.bf16.msra.mxu0 %v630
    %888 = vmatprep.subr.bf16.mxu0 %v633
    %889 = vmatpush1.bf16.msra.mxu0 %v632
    %890 = vmatprep.subr.bf16.mxu0 %v635
    %891 = vmatpush1.bf16.msra.mxu0 %v634
    %892 = vmatprep.subr.bf16.mxu0 %v637
    %893 = vmatpush1.bf16.msra.mxu0 %v636
    %894 = vmatprep.subr.bf16.mxu0 %v639
    %895 = vmatpush1.bf16.msra.mxu0 %v638
    %896 = vmatprep.subr.bf16.mxu0 %v641
    %897 = vmatpush1.bf16.msra.mxu0 %v640
    %898 = vmatprep.subr.bf16.mxu0 %v643
    %899 = vmatpush1.bf16.msra.mxu0 %v642
    %900 = vmatprep.subr.bf16.mxu0 %v645
    %901 = vmatpush1.bf16.msra.mxu0 %v644
    %902 = vmatprep.subr.bf16.mxu0 %v647
    %903 = vmatpush1.bf16.msra.mxu0 %v646
    %904 = vmatprep.subr.bf16.mxu0 %v649
    %905 = vmatpush1.bf16.msra.mxu0 %v648
    %906 = vmatprep.subr.bf16.mxu0 %v651
    %907 = vmatpush1.bf16.msra.mxu0 %v650
    %908 = vmatprep.subr.bf16.mxu0 %v653
    %909 = vmatpush1.bf16.msra.mxu0 %v652
    %910 = vmatprep.subr.bf16.mxu0 %v655
    %911 = vmatpush1.bf16.msra.mxu0 %v654
    %912 = vmatprep.subr.bf16.mxu0 %v657
    %913 = vmatpush1.bf16.msra.mxu0 %v656
    %914 = vmatprep.subr.bf16.mxu0 %v659
    %915 = vmatpush1.bf16.msra.mxu0 %v658
    %916 = vmatprep.subr.bf16.mxu0 %v661
    %917 = vmatpush1.bf16.msra.mxu0 %v660
    %918 = vmatprep.mubr.bf16.mxu0 %v226
    %919 = vmatmul.mubr.bf16.gmra.mrb[0].mxu0 %v212
    %v920 = vpop.f32.mrb[0].mxu0
    %v921 = vadd.f32 %v181, %v920
    %v922 = vpop.f32.mrb[0].mxu0
    %v923 = vadd.f32 %v185, %v922
    %v924 = vpop.f32.mrb[0].mxu0
    %v925 = vpop.f32.mrb[0].mxu0
    %926 = vdwg.mxu0
    %927 = vmatprep.subr.bf16.mxu0 %v663
    %928 = vmatpush1.bf16.msra.mxu0 %v662
    %929 = vmatprep.subr.bf16.mxu0 %v665
    %930 = vmatpush1.bf16.msra.mxu0 %v664
    %931 = vmatprep.subr.bf16.mxu0 %v667
    %932 = vmatpush1.bf16.msra.mxu0 %v666
    %933 = vmatprep.subr.bf16.mxu0 %v669
    %934 = vmatpush1.bf16.msra.mxu0 %v668
    %935 = vmatprep.subr.bf16.mxu0 %v671
    %936 = vmatpush1.bf16.msra.mxu0 %v670
    %937 = vmatprep.subr.bf16.mxu0 %v673
    %938 = vmatpush1.bf16.msra.mxu0 %v672
    %939 = vmatprep.subr.bf16.mxu0 %v675
    %940 = vmatpush1.bf16.msra.mxu0 %v674
    %941 = vmatprep.subr.bf16.mxu0 %v677
    %942 = vmatpush1.bf16.msra.mxu0 %v676
    %943 = vmatprep.subr.bf16.mxu0 %v679
    %944 = vmatpush1.bf16.msra.mxu0 %v678
    %945 = vmatprep.subr.bf16.mxu0 %v681
    %946 = vmatpush1.bf16.msra.mxu0 %v680
    %947 = vmatprep.subr.bf16.mxu0 %v683
    %948 = vmatpush1.bf16.msra.mxu0 %v682
    %949 = vmatprep.subr.bf16.mxu0 %v685
    %950 = vmatpush1.bf16.msra.mxu0 %v684
    %951 = vmatprep.subr.bf16.mxu0 %v687
    %952 = vmatpush1.bf16.msra.mxu0 %v686
    %953 = vmatprep.subr.bf16.mxu0 %v689
    %954 = vmatpush1.bf16.msra.mxu0 %v688
    %955 = vmatprep.subr.bf16.mxu0 %v691
    %956 = vmatpush1.bf16.msra.mxu0 %v690
    %957 = vmatprep.subr.bf16.mxu0 %v693
    %958 = vmatpush1.bf16.msra.mxu0 %v692
    %959 = vmatprep.mubr.bf16.mxu0 %v236
    %960 = vmatmul.mubr.bf16.gmra.mrb[0].mxu0 %v234
    %v961 = vpop.f32.mrb[0].mxu0
    %v962 = vadd.f32 %v921, %v961
    %v963 = vpop.f32.mrb[0].mxu0
    %v964 = vadd.f32 %v923, %v963
    %v965 = vpop.f32.mrb[0].mxu0
    %v966 = vpop.f32.mrb[0].mxu0
    %967 = vdwg.mxu0
    %968 = vmatprep.subr.bf16.mxu0 %v695
    %969 = vmatpush1.bf16.msra.mxu0 %v694
    %970 = vmatprep.subr.bf16.mxu0 %v697
    %971 = vmatpush1.bf16.msra.mxu0 %v696
    %972 = vmatprep.subr.bf16.mxu0 %v699
    %973 = vmatpush1.bf16.msra.mxu0 %v698
    %974 = vmatprep.subr.bf16.mxu0 %v701
    %975 = vmatpush1.bf16.msra.mxu0 %v700
    %976 = vmatprep.subr.bf16.mxu0 %v703
    %977 = vmatpush1.bf16.msra.mxu0 %v702
    %978 = vmatprep.subr.bf16.mxu0 %v705
    %979 = vmatpush1.bf16.msra.mxu0 %v704
    %980 = vmatprep.subr.bf16.mxu0 %v707
    %981 = vmatpush1.bf16.msra.mxu0 %v706
    %982 = vmatprep.subr.bf16.mxu0 %v709
    %983 = vmatpush1.bf16.msra.mxu0 %v708
    %984 = vmatprep.subr.bf16.mxu0 %v711
    %985 = vmatpush1.bf16.msra.mxu0 %v710
    %986 = vmatprep.subr.bf16.mxu0 %v713
    %987 = vmatpush1.bf16.msra.mxu0 %v712
    %988 = vmatprep.subr.bf16.mxu0 %v715
    %989 = vmatpush1.bf16.msra.mxu0 %v714
    %990 = vmatprep.subr.bf16.mxu0 %v717
    %991 = vmatpush1.bf16.msra.mxu0 %v716
    %992 = vmatprep.subr.bf16.mxu0 %v719
    %993 = vmatpush1.bf16.msra.mxu0 %v718
    %994 = vmatprep.subr.bf16.mxu0 %v721
    %995 = vmatpush1.bf16.msra.mxu0 %v720
    %996 = vmatprep.subr.bf16.mxu0 %v723
    %997 = vmatpush1.bf16.msra.mxu0 %v722
    %998 = vmatprep.subr.bf16.mxu0 %v725
    %999 = vmatpush1.bf16.msra.mxu0 %v724
    %1000 = vmatprep.mubr.bf16.mxu0 %v233
    %1001 = vmatmul.mubr.bf16.gmra.mrb[0].mxu0 %v219
    %v1002 = vpop.f32.mrb[0].mxu0
    %v1003 = vadd.f32 %v962, %v1002
    %v1004 = vpop.f32.mrb[0].mxu0
    %v1005 = vadd.f32 %v964, %v1004
    %v1006 = vpop.f32.mrb[0].mxu0
    %v1007 = vpop.f32.mrb[0].mxu0
    %1008 = vdwg.mxu0
    %1009 = vmatprep.subr.bf16.mxu0 %v727
    %1010 = vmatpush1.bf16.msra.mxu0 %v726
    %1011 = vmatprep.subr.bf16.mxu0 %v729
    %1012 = vmatpush1.bf16.msra.mxu0 %v728
    %1013 = vmatprep.subr.bf16.mxu0 %v731
    %1014 = vmatpush1.bf16.msra.mxu0 %v730
    %1015 = vmatprep.subr.bf16.mxu0 %v733
    %1016 = vmatpush1.bf16.msra.mxu0 %v732
    %1017 = vmatprep.subr.bf16.mxu0 %v735
    %1018 = vmatpush1.bf16.msra.mxu0 %v734
    %1019 = vmatprep.subr.bf16.mxu0 %v737
    %1020 = vmatpush1.bf16.msra.mxu0 %v736
    %1021 = vmatprep.subr.bf16.mxu0 %v739
    %1022 = vmatpush1.bf16.msra.mxu0 %v738
    %1023 = vmatprep.subr.bf16.mxu0 %v741
    %1024 = vmatpush1.bf16.msra.mxu0 %v740
    %1025 = vmatprep.subr.bf16.mxu0 %v743
    %1026 = vmatpush1.bf16.msra.mxu0 %v742
    %1027 = vmatprep.subr.bf16.mxu0 %v745
    %1028 = vmatpush1.bf16.msra.mxu0 %v744
    %1029 = vmatprep.subr.bf16.mxu0 %v747
    %1030 = vmatpush1.bf16.msra.mxu0 %v746
    %1031 = vmatprep.subr.bf16.mxu0 %v749
    %1032 = vmatpush1.bf16.msra.mxu0 %v748
    %1033 = vmatprep.subr.bf16.mxu0 %v751
    %1034 = vmatpush1.bf16.msra.mxu0 %v750
    %1035 = vmatprep.subr.bf16.mxu0 %v753
    %1036 = vmatpush1.bf16.msra.mxu0 %v752
    %1037 = vmatprep.subr.bf16.mxu0 %v755
    %1038 = vmatpush1.bf16.msra.mxu0 %v754
    %1039 = vmatprep.subr.bf16.mxu0 %v757
    %1040 = vmatpush1.bf16.msra.mxu0 %v756
    %1041 = vmatprep.mubr.bf16.mxu0 %v237
    %1042 = vmatmul.mubr.bf16.gmra.mrb[0].mxu0 %v235
    %v1043 = vpop.f32.mrb[0].mxu0
    %v1044 = vadd.f32 %v1003, %v1043
    %v1045 = vpop.f32.mrb[0].mxu0
    %v1046 = vadd.f32 %v1005, %v1045
    %v1047 = vpop.f32.mrb[0].mxu0
    %v1048 = vpop.f32.mrb[0].mxu0
    %1049 = vdwg.mxu0
    %v1050 = vmax.f32 %v1044, 0.0
    %v1051 = vmax.f32 %v1046, 0.0
    %v1052 = vpack.c.bf16 %v1050, %v1050
    %v1053 = vpack.c.bf16 %v1051, %v1051
    %v1054 = vld [vmem:[%s3] sm:$0xf]
    %v1055 = vld [vmem:[%s3 + $0x4] sm:$0xf]
    %v1056 = vld [vmem:[%s3 + $0x8] sm:$0xf]
    %v1057 = vld [vmem:[%s3 + $0xc] sm:$0xf]
    %v1058 = vld [vmem:[%s3 + $0x10] sm:$0xf]
    %v1059 = vld [vmem:[%s3 + $0x14] sm:$0xf]
    %v1060 = vld [vmem:[%s3 + $0x18] sm:$0xf]
    %v1061 = vld [vmem:[%s3 + $0x1c] sm:$0xf]
    %v1062 = vld [vmem:[%s3 + $0x20] sm:$0xf]
    %v1063 = vld [vmem:[%s3 + $0x24] sm:$0xf]
    %v1064 = vld [vmem:[%s3 + $0x28] sm:$0xf]
    %v1065 = vld [vmem:[%s3 + $0x2c] sm:$0xf]
    %v1066 = vld [vmem:[%s3 + $0x30] sm:$0xf]
    %v1067 = vld [vmem:[%s3 + $0x34] sm:$0xf]
    %v1068 = vld [vmem:[%s3 + $0x38] sm:$0xf]
    %v1069 = vld [vmem:[%s3 + $0x3c] sm:$0xf]
    %v1070 = vld [vmem:[%s3 + $0x40] sm:$0xf]
    %v1071 = vld [vmem:[%s3 + $0x44] sm:$0xf]
    %v1072 = vld [vmem:[%s3 + $0x48] sm:$0xf]
    %v1073 = vld [vmem:[%s3 + $0x4c] sm:$0xf]
    %v1074 = vld [vmem:[%s3 + $0x50] sm:$0xf]
    %v1075 = vld [vmem:[%s3 + $0x54] sm:$0xf]
    %v1076 = vld [vmem:[%s3 + $0x58] sm:$0xf]
    %v1077 = vld [vmem:[%s3 + $0x5c] sm:$0xf]
    %v1078 = vld [vmem:[%s3 + $0x60] sm:$0xf]
    %v1079 = vld [vmem:[%s3 + $0x64] sm:$0xf]
    %v1080 = vld [vmem:[%s3 + $0x68] sm:$0xf]
    %v1081 = vld [vmem:[%s3 + $0x6c] sm:$0xf]
    %v1082 = vld [vmem:[%s3 + $0x70] sm:$0xf]
    %v1083 = vld [vmem:[%s3 + $0x74] sm:$0xf]
    %v1084 = vld [vmem:[%s3 + $0x78] sm:$0xf]
    %v1085 = vld [vmem:[%s3 + $0x7c] sm:$0xf]
    %v1086 = vld [vmem:[%s4] sm:$0x1]
    %v1088 = vlaneseq
    %v1089 = vshrl.u32 %v1088, 7
    %v1090 = vsub.s32 0, %v1089
    %v1091 = vrot.slane %v1086, %v1090
    %v1125 = vunpack.c.l.b16 %v1054
    %v1126 = vunpack.c.l.b16 %v1055
    %v1127 = vunpack.c.l.b16 %v1056
    %v1128 = vunpack.c.l.b16 %v1057
    %v1129 = vunpack.c.l.b16 %v1058
    %v1130 = vunpack.c.l.b16 %v1059
    %v1131 = vunpack.c.l.b16 %v1060
    %v1132 = vunpack.c.l.b16 %v1061
    %v1133 = vunpack.c.l.b16 %v1062
    %v1134 = vunpack.c.l.b16 %v1063
    %v1135 = vunpack.c.l.b16 %v1064
    %v1136 = vunpack.c.l.b16 %v1065
    %v1137 = vunpack.c.l.b16 %v1066
    %v1138 = vunpack.c.l.b16 %v1067
    %v1139 = vunpack.c.l.b16 %v1068
    %v1140 = vunpack.c.l.b16 %v1069
    %v1141 = vunpack.c.l.b16 %v1070
    %v1142 = vunpack.c.l.b16 %v1071
    %v1143 = vunpack.c.l.b16 %v1072
    %v1144 = vunpack.c.l.b16 %v1073
    %v1145 = vunpack.c.l.b16 %v1074
    %v1146 = vunpack.c.l.b16 %v1075
    %v1147 = vunpack.c.l.b16 %v1076
    %v1148 = vunpack.c.l.b16 %v1077
    %v1149 = vunpack.c.l.b16 %v1078
    %v1150 = vunpack.c.l.b16 %v1079
    %v1151 = vunpack.c.l.b16 %v1080
    %v1152 = vunpack.c.l.b16 %v1081
    %v1153 = vunpack.c.l.b16 %v1082
    %v1154 = vunpack.c.l.b16 %v1083
    %v1155 = vunpack.c.l.b16 %v1084
    %v1156 = vunpack.c.l.b16 %v1085
    %v1157 = vpack.c.b16 %v1126, %v1125
    %v1158 = vpack.c.b16 %v1128, %v1127
    %v1159 = vpack.c.b16 %v1130, %v1129
    %v1160 = vpack.c.b16 %v1132, %v1131
    %v1161 = vpack.c.b16 %v1134, %v1133
    %v1162 = vpack.c.b16 %v1136, %v1135
    %v1163 = vpack.c.b16 %v1138, %v1137
    %v1164 = vpack.c.b16 %v1140, %v1139
    %v1165 = vpack.c.b16 %v1142, %v1141
    %v1166 = vpack.c.b16 %v1144, %v1143
    %v1167 = vpack.c.b16 %v1146, %v1145
    %v1168 = vpack.c.b16 %v1148, %v1147
    %v1169 = vpack.c.b16 %v1150, %v1149
    %v1170 = vpack.c.b16 %v1152, %v1151
    %v1171 = vpack.c.b16 %v1154, %v1153
    %v1172 = vpack.c.b16 %v1156, %v1155
    %1189 = vmatprep.subr.bf16.mxu0 0
    %1190 = vmatpush1.bf16.msra.mxu0 %v1157
    %1191 = vmatprep.subr.bf16.mxu0 0
    %1192 = vmatpush1.bf16.msra.mxu0 %v1158
    %1193 = vmatprep.subr.bf16.mxu0 0
    %1194 = vmatpush1.bf16.msra.mxu0 %v1159
    %1195 = vmatprep.subr.bf16.mxu0 0
    %1196 = vmatpush1.bf16.msra.mxu0 %v1160
    %1197 = vmatprep.subr.bf16.mxu0 0
    %1198 = vmatpush1.bf16.msra.mxu0 %v1161
    %1199 = vmatprep.subr.bf16.mxu0 0
    %1200 = vmatpush1.bf16.msra.mxu0 %v1162
    %1201 = vmatprep.subr.bf16.mxu0 0
    %1202 = vmatpush1.bf16.msra.mxu0 %v1163
    %1203 = vmatprep.subr.bf16.mxu0 0
    %1204 = vmatpush1.bf16.msra.mxu0 %v1164
    %1205 = vmatprep.subr.bf16.mxu0 0
    %1206 = vmatpush1.bf16.msra.mxu0 %v1165
    %1207 = vmatprep.subr.bf16.mxu0 0
    %1208 = vmatpush1.bf16.msra.mxu0 %v1166
    %1209 = vmatprep.subr.bf16.mxu0 0
    %1210 = vmatpush1.bf16.msra.mxu0 %v1167
    %1211 = vmatprep.subr.bf16.mxu0 0
    %1212 = vmatpush1.bf16.msra.mxu0 %v1168
    %1213 = vmatprep.subr.bf16.mxu0 0
    %1214 = vmatpush1.bf16.msra.mxu0 %v1169
    %1215 = vmatprep.subr.bf16.mxu0 0
    %1216 = vmatpush1.bf16.msra.mxu0 %v1170
    %1217 = vmatprep.subr.bf16.mxu0 0
    %1218 = vmatpush1.bf16.msra.mxu0 %v1171
    %1219 = vmatprep.subr.bf16.mxu0 0
    %1220 = vmatpush1.bf16.msra.mxu0 %v1172
    %1221 = vmatprep.mubr.bf16.mxu0 %v1053
    %1222 = vmatmul.mubr.bf16.gmra.mrb[0].mxu0 %v1052
    %v1223 = vpop.f32.mrb[0].mxu0
    %v1224 = vadd.f32 %v1091, %v1223
    %v1225 = vpop.f32.mrb[0].mxu0
    %v1226 = vpop.f32.mrb[0].mxu0
    %v1227 = vpop.f32.mrb[0].mxu0
    %1228 = vdwg.mxu0
    %v1229 = vld [vmem:[%s5] sm:$0xf]
    %v1230 = vld [vmem:[%s5 + $0x4] sm:$0xf]
    %v1231 = vld [vmem:[%s5 + $0x8] sm:$0xf]
    %v1232 = vld [vmem:[%s5 + $0xc] sm:$0xf]
    %v1233 = vld [vmem:[%s5 + $0x10] sm:$0xf]
    %v1234 = vld [vmem:[%s5 + $0x14] sm:$0xf]
    %v1235 = vld [vmem:[%s5 + $0x18] sm:$0xf]
    %v1236 = vld [vmem:[%s5 + $0x1c] sm:$0xf]
    %v1237 = vld [vmem:[%s5 + $0x20] sm:$0xf]
    %v1238 = vld [vmem:[%s5 + $0x24] sm:$0xf]
    %v1239 = vld [vmem:[%s5 + $0x28] sm:$0xf]
    %v1240 = vld [vmem:[%s5 + $0x2c] sm:$0xf]
    %v1241 = vld [vmem:[%s5 + $0x30] sm:$0xf]
    %v1242 = vld [vmem:[%s5 + $0x34] sm:$0xf]
    %v1243 = vld [vmem:[%s5 + $0x38] sm:$0xf]
    %v1244 = vld [vmem:[%s5 + $0x3c] sm:$0xf]
    %v1245 = vld [vmem:[%s5 + $0x40] sm:$0xf]
    %v1246 = vld [vmem:[%s5 + $0x44] sm:$0xf]
    %v1247 = vld [vmem:[%s5 + $0x48] sm:$0xf]
    %v1248 = vld [vmem:[%s5 + $0x4c] sm:$0xf]
    %v1249 = vld [vmem:[%s5 + $0x50] sm:$0xf]
    %v1250 = vld [vmem:[%s5 + $0x54] sm:$0xf]
    %v1251 = vld [vmem:[%s5 + $0x58] sm:$0xf]
    %v1252 = vld [vmem:[%s5 + $0x5c] sm:$0xf]
    %v1253 = vld [vmem:[%s5 + $0x60] sm:$0xf]
    %v1254 = vld [vmem:[%s5 + $0x64] sm:$0xf]
    %v1255 = vld [vmem:[%s5 + $0x68] sm:$0xf]
    %v1256 = vld [vmem:[%s5 + $0x6c] sm:$0xf]
    %v1257 = vld [vmem:[%s5 + $0x70] sm:$0xf]
    %v1258 = vld [vmem:[%s5 + $0x74] sm:$0xf]
    %v1259 = vld [vmem:[%s5 + $0x78] sm:$0xf]
    %v1260 = vld [vmem:[%s5 + $0x7c] sm:$0xf]
    %v1261 = vld [vmem:[%s6] sm:$0x1]
    %v1263 = vlaneseq
    %v1264 = vshrl.u32 %v1263, 7
    %v1265 = vsub.s32 0, %v1264
    %v1266 = vrot.slane %v1261, %v1265
    %v1300 = vunpack.c.l.b16 %v1229
    %v1301 = vunpack.c.l.b16 %v1230
    %v1302 = vunpack.c.l.b16 %v1231
    %v1303 = vunpack.c.l.b16 %v1232
    %v1304 = vunpack.c.l.b16 %v1233
    %v1305 = vunpack.c.l.b16 %v1234
    %v1306 = vunpack.c.l.b16 %v1235
    %v1307 = vunpack.c.l.b16 %v1236
    %v1308 = vunpack.c.l.b16 %v1237
    %v1309 = vunpack.c.l.b16 %v1238
    %v1310 = vunpack.c.l.b16 %v1239
    %v1311 = vunpack.c.l.b16 %v1240
    %v1312 = vunpack.c.l.b16 %v1241
    %v1313 = vunpack.c.l.b16 %v1242
    %v1314 = vunpack.c.l.b16 %v1243
    %v1315 = vunpack.c.l.b16 %v1244
    %v1316 = vunpack.c.l.b16 %v1245
    %v1317 = vunpack.c.l.b16 %v1246
    %v1318 = vunpack.c.l.b16 %v1247
    %v1319 = vunpack.c.l.b16 %v1248
    %v1320 = vunpack.c.l.b16 %v1249
    %v1321 = vunpack.c.l.b16 %v1250
    %v1322 = vunpack.c.l.b16 %v1251
    %v1323 = vunpack.c.l.b16 %v1252
    %v1324 = vunpack.c.l.b16 %v1253
    %v1325 = vunpack.c.l.b16 %v1254
    %v1326 = vunpack.c.l.b16 %v1255
    %v1327 = vunpack.c.l.b16 %v1256
    %v1328 = vunpack.c.l.b16 %v1257
    %v1329 = vunpack.c.l.b16 %v1258
    %v1330 = vunpack.c.l.b16 %v1259
    %v1331 = vunpack.c.l.b16 %v1260
    %v1332 = vpack.c.b16 %v1301, %v1300
    %v1333 = vpack.c.b16 %v1303, %v1302
    %v1334 = vpack.c.b16 %v1305, %v1304
    %v1335 = vpack.c.b16 %v1307, %v1306
    %v1336 = vpack.c.b16 %v1309, %v1308
    %v1337 = vpack.c.b16 %v1311, %v1310
    %v1338 = vpack.c.b16 %v1313, %v1312
    %v1339 = vpack.c.b16 %v1315, %v1314
    %v1340 = vpack.c.b16 %v1317, %v1316
    %v1341 = vpack.c.b16 %v1319, %v1318
    %v1342 = vpack.c.b16 %v1321, %v1320
    %v1343 = vpack.c.b16 %v1323, %v1322
    %v1344 = vpack.c.b16 %v1325, %v1324
    %v1345 = vpack.c.b16 %v1327, %v1326
    %v1346 = vpack.c.b16 %v1329, %v1328
    %v1347 = vpack.c.b16 %v1331, %v1330
    %1364 = vmatprep.subr.bf16.mxu0 0
    %1365 = vmatpush1.bf16.msra.mxu0 %v1332
    %1366 = vmatprep.subr.bf16.mxu0 0
    %1367 = vmatpush1.bf16.msra.mxu0 %v1333
    %1368 = vmatprep.subr.bf16.mxu0 0
    %1369 = vmatpush1.bf16.msra.mxu0 %v1334
    %1370 = vmatprep.subr.bf16.mxu0 0
    %1371 = vmatpush1.bf16.msra.mxu0 %v1335
    %1372 = vmatprep.subr.bf16.mxu0 0
    %1373 = vmatpush1.bf16.msra.mxu0 %v1336
    %1374 = vmatprep.subr.bf16.mxu0 0
    %1375 = vmatpush1.bf16.msra.mxu0 %v1337
    %1376 = vmatprep.subr.bf16.mxu0 0
    %1377 = vmatpush1.bf16.msra.mxu0 %v1338
    %1378 = vmatprep.subr.bf16.mxu0 0
    %1379 = vmatpush1.bf16.msra.mxu0 %v1339
    %1380 = vmatprep.subr.bf16.mxu0 0
    %1381 = vmatpush1.bf16.msra.mxu0 %v1340
    %1382 = vmatprep.subr.bf16.mxu0 0
    %1383 = vmatpush1.bf16.msra.mxu0 %v1341
    %1384 = vmatprep.subr.bf16.mxu0 0
    %1385 = vmatpush1.bf16.msra.mxu0 %v1342
    %1386 = vmatprep.subr.bf16.mxu0 0
    %1387 = vmatpush1.bf16.msra.mxu0 %v1343
    %1388 = vmatprep.subr.bf16.mxu0 0
    %1389 = vmatpush1.bf16.msra.mxu0 %v1344
    %1390 = vmatprep.subr.bf16.mxu0 0
    %1391 = vmatpush1.bf16.msra.mxu0 %v1345
    %1392 = vmatprep.subr.bf16.mxu0 0
    %1393 = vmatpush1.bf16.msra.mxu0 %v1346
    %1394 = vmatprep.subr.bf16.mxu0 0
    %1395 = vmatpush1.bf16.msra.mxu0 %v1347
    %1396 = vmatprep.mubr.bf16.mxu0 %v1053
    %1397 = vmatmul.mubr.bf16.gmra.mrb[0].mxu0 %v1052
    %v1398 = vpop.f32.mrb[0].mxu0
    %v1399 = vadd.f32 %v1266, %v1398
    %v1400 = vpop.f32.mrb[0].mxu0
    %v1401 = vpop.f32.mrb[0].mxu0
    %v1402 = vpop.f32.mrb[0].mxu0
    %1403 = vdwg.mxu0
    %v1404 = vmul.f32 %v1399, 1.442695
    %v1405 = vpow.pop %v1404
    %v1406 = vld [vmem:[%s7] sm:$0x3]
    %v1407 = vmul.f32 %v1405, %v1406
    %v1408 = vadd.f32 %v1224, %v1407
    %v1409 = vpack.c.bf16 %v1408, %v1408
    %v1410 = vld [vmem:[%s8] sm:$0xff]
    %v1411 = vld [vmem:[%s8 + $0x8] sm:$0xff]
    %v1412 = vld [vmem:[%s9] sm:$0x3]
    %v1414 = vlaneseq
    %v1415 = vshrl.u32 %v1414, 7
    %v1416 = vsub.s32 0, %v1415
    %v1417 = vrot.slane %v1412, %v1416
    %v1418 = vlaneseq
    %v1419 = vshrl.u32 %v1418, 7
    %v1420 = vsub.s32 1, %v1419
    %v1421 = vrot.slane %v1412, %v1420
    %v1426 = vunpack.c.l.b16 %v1410
    %v1427 = vunpack.c.h.b16 %v1410
    %v1428 = vunpack.c.l.b16 %v1411
    %v1429 = vunpack.c.h.b16 %v1411
    %v1430 = vpack.c.b16 %v1428, %v1426
    %v1431 = vpack.c.b16 %v1429, %v1427
    %vm1434 = vcmask 130048
    %v1436 = vsel %vm1434, %v1409, 0
    %1438 = vmatprep.subr.bf16.mxu0 %v1431
    %1439 = vmatpush1.bf16.msra.mxu0 %v1430
    %1440 = vmatprep.subr.bf16.mxu0 0
    %1441 = vmatpush1.bf16.msra.mxu0 0
    %1442 = vmatprep.subr.bf16.mxu0 0
    %1443 = vmatpush1.bf16.msra.mxu0 0
    %1444 = vmatprep.subr.bf16.mxu0 0
    %1445 = vmatpush1.bf16.msra.mxu0 0
    %1446 = vmatprep.subr.bf16.mxu0 0
    %1447 = vmatpush1.bf16.msra.mxu0 0
    %1448 = vmatprep.subr.bf16.mxu0 0
    %1449 = vmatpush1.bf16.msra.mxu0 0
    %1450 = vmatprep.subr.bf16.mxu0 0
    %1451 = vmatpush1.bf16.msra.mxu0 0
    %1452 = vmatprep.subr.bf16.mxu0 0
    %1453 = vmatpush1.bf16.msra.mxu0 0
    %1454 = vmatprep.subr.bf16.mxu0 0
    %1455 = vmatpush1.bf16.msra.mxu0 0
    %1456 = vmatprep.subr.bf16.mxu0 0
    %1457 = vmatpush1.bf16.msra.mxu0 0
    %1458 = vmatprep.subr.bf16.mxu0 0
    %1459 = vmatpush1.bf16.msra.mxu0 0
    %1460 = vmatprep.subr.bf16.mxu0 0
    %1461 = vmatpush1.bf16.msra.mxu0 0
    %1462 = vmatprep.subr.bf16.mxu0 0
    %1463 = vmatpush1.bf16.msra.mxu0 0
    %1464 = vmatprep.subr.bf16.mxu0 0
    %1465 = vmatpush1.bf16.msra.mxu0 0
    %1466 = vmatprep.subr.bf16.mxu0 0
    %1467 = vmatpush1.bf16.msra.mxu0 0
    %1468 = vmatprep.subr.bf16.mxu0 0
    %1469 = vmatpush1.bf16.msra.mxu0 0
    %1470 = vmatprep.mubr.bf16.mxu0 0
    %1471 = vmatmul.mubr.bf16.gmra.mrb[0].mxu0 %v1436
    %v1472 = vpop.f32.mrb[0].mxu0
    %v1473 = vadd.f32 %v1417, %v1472
    %v1474 = vpop.f32.mrb[0].mxu0
    %v1475 = vadd.f32 %v1421, %v1474
    %v1476 = vpop.f32.mrb[0].mxu0
    %v1477 = vpop.f32.mrb[0].mxu0
    %1478 = vdwg.mxu0
    %v1479 = vmax.f32 %v1473, 0.0
    %v1480 = vmax.f32 %v1475, 0.0
    %v1481 = vpack.c.bf16 %v1479, %v1479
    %v1482 = vpack.c.bf16 %v1480, %v1480
    %v1483 = vld [vmem:[%s10] sm:$0xff]
    %v1484 = vld [vmem:[%s10 + $0x8] sm:$0xff]
    %v1485 = vld [vmem:[%s10 + $0x10] sm:$0xff]
    %v1486 = vld [vmem:[%s10 + $0x18] sm:$0xff]
    %v1487 = vld [vmem:[%s10 + $0x20] sm:$0xff]
    %v1488 = vld [vmem:[%s10 + $0x28] sm:$0xff]
    %v1489 = vld [vmem:[%s10 + $0x30] sm:$0xff]
    %v1490 = vld [vmem:[%s10 + $0x38] sm:$0xff]
    %v1491 = vld [vmem:[%s10 + $0x40] sm:$0xff]
    %v1492 = vld [vmem:[%s10 + $0x48] sm:$0xff]
    %v1493 = vld [vmem:[%s10 + $0x50] sm:$0xff]
    %v1494 = vld [vmem:[%s10 + $0x58] sm:$0xff]
    %v1495 = vld [vmem:[%s10 + $0x60] sm:$0xff]
    %v1496 = vld [vmem:[%s10 + $0x68] sm:$0xff]
    %v1497 = vld [vmem:[%s10 + $0x70] sm:$0xff]
    %v1498 = vld [vmem:[%s10 + $0x78] sm:$0xff]
    %v1499 = vld [vmem:[%s10 + $0x80] sm:$0xff]
    %v1500 = vld [vmem:[%s10 + $0x88] sm:$0xff]
    %v1501 = vld [vmem:[%s10 + $0x90] sm:$0xff]
    %v1502 = vld [vmem:[%s10 + $0x98] sm:$0xff]
    %v1503 = vld [vmem:[%s10 + $0xa0] sm:$0xff]
    %v1504 = vld [vmem:[%s10 + $0xa8] sm:$0xff]
    %v1505 = vld [vmem:[%s10 + $0xb0] sm:$0xff]
    %v1506 = vld [vmem:[%s10 + $0xb8] sm:$0xff]
    %v1507 = vld [vmem:[%s10 + $0xc0] sm:$0xff]
    %v1508 = vld [vmem:[%s10 + $0xc8] sm:$0xff]
    %v1509 = vld [vmem:[%s10 + $0xd0] sm:$0xff]
    %v1510 = vld [vmem:[%s10 + $0xd8] sm:$0xff]
    %v1511 = vld [vmem:[%s10 + $0xe0] sm:$0xff]
    %v1512 = vld [vmem:[%s10 + $0xe8] sm:$0xff]
    %v1513 = vld [vmem:[%s10 + $0xf0] sm:$0xff]
    %v1514 = vld [vmem:[%s10 + $0xf8] sm:$0xff]
    %v1515 = vld [vmem:[%s10 + $0x100] sm:$0xff]
    %v1516 = vld [vmem:[%s10 + $0x108] sm:$0xff]
    %v1517 = vld [vmem:[%s10 + $0x110] sm:$0xff]
    %v1518 = vld [vmem:[%s10 + $0x118] sm:$0xff]
    %v1519 = vld [vmem:[%s10 + $0x120] sm:$0xff]
    %v1520 = vld [vmem:[%s10 + $0x128] sm:$0xff]
    %v1521 = vld [vmem:[%s10 + $0x130] sm:$0xff]
    %v1522 = vld [vmem:[%s10 + $0x138] sm:$0xff]
    %v1523 = vld [vmem:[%s10 + $0x140] sm:$0xff]
    %v1524 = vld [vmem:[%s10 + $0x148] sm:$0xff]
    %v1525 = vld [vmem:[%s10 + $0x150] sm:$0xff]
    %v1526 = vld [vmem:[%s10 + $0x158] sm:$0xff]
    %v1527 = vld [vmem:[%s10 + $0x160] sm:$0xff]
    %v1528 = vld [vmem:[%s10 + $0x168] sm:$0xff]
    %v1529 = vld [vmem:[%s10 + $0x170] sm:$0xff]
    %v1530 = vld [vmem:[%s10 + $0x178] sm:$0xff]
    %v1531 = vld [vmem:[%s10 + $0x180] sm:$0xff]
    %v1532 = vld [vmem:[%s10 + $0x188] sm:$0xff]
    %v1533 = vld [vmem:[%s10 + $0x190] sm:$0xff]
    %v1534 = vld [vmem:[%s10 + $0x198] sm:$0xff]
    %v1535 = vld [vmem:[%s10 + $0x1a0] sm:$0xff]
    %v1536 = vld [vmem:[%s10 + $0x1a8] sm:$0xff]
    %v1537 = vld [vmem:[%s10 + $0x1b0] sm:$0xff]
    %v1538 = vld [vmem:[%s10 + $0x1b8] sm:$0xff]
    %v1539 = vld [vmem:[%s10 + $0x1c0] sm:$0xff]
    %v1540 = vld [vmem:[%s10 + $0x1c8] sm:$0xff]
    %v1541 = vld [vmem:[%s10 + $0x1d0] sm:$0xff]
    %v1542 = vld [vmem:[%s10 + $0x1d8] sm:$0xff]
    %v1543 = vld [vmem:[%s10 + $0x1e0] sm:$0xff]
    %v1544 = vld [vmem:[%s10 + $0x1e8] sm:$0xff]
    %v1545 = vld [vmem:[%s10 + $0x1f0] sm:$0xff]
    %v1546 = vld [vmem:[%s10 + $0x1f8] sm:$0xff]
    %v1547 = vld [vmem:[%s10 + $0x200] sm:$0xff]
    %v1548 = vld [vmem:[%s10 + $0x208] sm:$0xff]
    %v1549 = vld [vmem:[%s10 + $0x210] sm:$0xff]
    %v1550 = vld [vmem:[%s10 + $0x218] sm:$0xff]
    %v1551 = vld [vmem:[%s10 + $0x220] sm:$0xff]
    %v1552 = vld [vmem:[%s10 + $0x228] sm:$0xff]
    %v1553 = vld [vmem:[%s10 + $0x230] sm:$0xff]
    %v1554 = vld [vmem:[%s10 + $0x238] sm:$0xff]
    %v1555 = vld [vmem:[%s10 + $0x240] sm:$0xff]
    %v1556 = vld [vmem:[%s10 + $0x248] sm:$0xff]
    %v1557 = vld [vmem:[%s10 + $0x250] sm:$0xff]
    %v1558 = vld [vmem:[%s10 + $0x258] sm:$0xff]
    %v1559 = vld [vmem:[%s10 + $0x260] sm:$0xff]
    %v1560 = vld [vmem:[%s10 + $0x268] sm:$0xff]
    %v1561 = vld [vmem:[%s10 + $0x270] sm:$0xff]
    %v1562 = vld [vmem:[%s10 + $0x278] sm:$0xff]
    %v1563 = vld [vmem:[%s10 + $0x280] sm:$0xff]
    %v1564 = vld [vmem:[%s10 + $0x288] sm:$0xff]
    %v1565 = vld [vmem:[%s10 + $0x290] sm:$0xff]
    %v1566 = vld [vmem:[%s10 + $0x298] sm:$0xff]
    %v1567 = vld [vmem:[%s10 + $0x2a0] sm:$0xff]
    %v1568 = vld [vmem:[%s10 + $0x2a8] sm:$0xff]
    %v1569 = vld [vmem:[%s10 + $0x2b0] sm:$0xff]
    %v1570 = vld [vmem:[%s10 + $0x2b8] sm:$0xff]
    %v1571 = vld [vmem:[%s10 + $0x2c0] sm:$0xff]
    %v1572 = vld [vmem:[%s10 + $0x2c8] sm:$0xff]
    %v1573 = vld [vmem:[%s10 + $0x2d0] sm:$0xff]
    %v1574 = vld [vmem:[%s10 + $0x2d8] sm:$0xff]
    %v1575 = vld [vmem:[%s10 + $0x2e0] sm:$0xff]
    %v1576 = vld [vmem:[%s10 + $0x2e8] sm:$0xff]
    %v1577 = vld [vmem:[%s10 + $0x2f0] sm:$0xff]
    %v1578 = vld [vmem:[%s10 + $0x2f8] sm:$0xff]
    %v1579 = vld [vmem:[%s10 + $0x300] sm:$0xff]
    %v1580 = vld [vmem:[%s10 + $0x308] sm:$0xff]
    %v1581 = vld [vmem:[%s10 + $0x310] sm:$0xff]
    %v1582 = vld [vmem:[%s10 + $0x318] sm:$0xff]
    %v1583 = vld [vmem:[%s10 + $0x320] sm:$0xff]
    %v1584 = vld [vmem:[%s10 + $0x328] sm:$0xff]
    %v1585 = vld [vmem:[%s10 + $0x330] sm:$0xff]
    %v1586 = vld [vmem:[%s10 + $0x338] sm:$0xff]
    %v1587 = vld [vmem:[%s10 + $0x340] sm:$0xff]
    %v1588 = vld [vmem:[%s10 + $0x348] sm:$0xff]
    %v1589 = vld [vmem:[%s10 + $0x350] sm:$0xff]
    %v1590 = vld [vmem:[%s10 + $0x358] sm:$0xff]
    %v1591 = vld [vmem:[%s10 + $0x360] sm:$0xff]
    %v1592 = vld [vmem:[%s10 + $0x368] sm:$0xff]
    %v1593 = vld [vmem:[%s10 + $0x370] sm:$0xff]
    %v1594 = vld [vmem:[%s10 + $0x378] sm:$0xff]
    %v1595 = vld [vmem:[%s10 + $0x380] sm:$0xff]
    %v1596 = vld [vmem:[%s10 + $0x388] sm:$0xff]
    %v1597 = vld [vmem:[%s10 + $0x390] sm:$0xff]
    %v1598 = vld [vmem:[%s10 + $0x398] sm:$0xff]
    %v1599 = vld [vmem:[%s10 + $0x3a0] sm:$0xff]
    %v1600 = vld [vmem:[%s10 + $0x3a8] sm:$0xff]
    %v1601 = vld [vmem:[%s10 + $0x3b0] sm:$0xff]
    %v1602 = vld [vmem:[%s10 + $0x3b8] sm:$0xff]
    %v1603 = vld [vmem:[%s10 + $0x3c0] sm:$0xff]
    %v1604 = vld [vmem:[%s10 + $0x3c8] sm:$0xff]
    %v1605 = vld [vmem:[%s10 + $0x3d0] sm:$0xff]
    %v1606 = vld [vmem:[%s10 + $0x3d8] sm:$0xff]
    %v1607 = vld [vmem:[%s10 + $0x3e0] sm:$0xff]
    %v1608 = vld [vmem:[%s10 + $0x3e8] sm:$0xff]
    %v1609 = vld [vmem:[%s10 + $0x3f0] sm:$0xff]
    %v1610 = vld [vmem:[%s10 + $0x3f8] sm:$0xff]
    %v1611 = vld [vmem:[%s11] sm:$0xff]
    %v1613 = vlaneseq
    %v1614 = vshrl.u32 %v1613, 7
    %v1615 = vsub.s32 0, %v1614
    %v1616 = vrot.slane %v1611, %v1615
    %v1617 = vlaneseq
    %v1618 = vshrl.u32 %v1617, 7
    %v1619 = vsub.s32 1, %v1618
    %v1620 = vrot.slane %v1611, %v1619
    %v1621 = vlaneseq
    %v1622 = vshrl.u32 %v1621, 7
    %v1623 = vsub.s32 2, %v1622
    %v1624 = vrot.slane %v1611, %v1623
    %v1625 = vlaneseq
    %v1626 = vshrl.u32 %v1625, 7
    %v1627 = vsub.s32 3, %v1626
    %v1628 = vrot.slane %v1611, %v1627
    %v1629 = vlaneseq
    %v1630 = vshrl.u32 %v1629, 7
    %v1631 = vsub.s32 4, %v1630
    %v1632 = vrot.slane %v1611, %v1631
    %v1633 = vlaneseq
    %v1634 = vshrl.u32 %v1633, 7
    %v1635 = vsub.s32 5, %v1634
    %v1636 = vrot.slane %v1611, %v1635
    %v1637 = vlaneseq
    %v1638 = vshrl.u32 %v1637, 7
    %v1639 = vsub.s32 6, %v1638
    %v1640 = vrot.slane %v1611, %v1639
    %v1641 = vlaneseq
    %v1642 = vshrl.u32 %v1641, 7
    %v1643 = vsub.s32 7, %v1642
    %v1644 = vrot.slane %v1611, %v1643
    %v1781 = vunpack.c.l.b16 %v1483
    %v1782 = vunpack.c.h.b16 %v1483
    %v1783 = vunpack.c.l.b16 %v1484
    %v1784 = vunpack.c.h.b16 %v1484
    %v1785 = vunpack.c.l.b16 %v1485
    %v1786 = vunpack.c.h.b16 %v1485
    %v1787 = vunpack.c.l.b16 %v1486
    %v1788 = vunpack.c.h.b16 %v1486
    %v1789 = vunpack.c.l.b16 %v1487
    %v1790 = vunpack.c.h.b16 %v1487
    %v1791 = vunpack.c.l.b16 %v1488
    %v1792 = vunpack.c.h.b16 %v1488
    %v1793 = vunpack.c.l.b16 %v1489
    %v1794 = vunpack.c.h.b16 %v1489
    %v1795 = vunpack.c.l.b16 %v1490
    %v1796 = vunpack.c.h.b16 %v1490
    %v1797 = vunpack.c.l.b16 %v1491
    %v1798 = vunpack.c.h.b16 %v1491
    %v1799 = vunpack.c.l.b16 %v1492
    %v1800 = vunpack.c.h.b16 %v1492
    %v1801 = vunpack.c.l.b16 %v1493
    %v1802 = vunpack.c.h.b16 %v1493
    %v1803 = vunpack.c.l.b16 %v1494
    %v1804 = vunpack.c.h.b16 %v1494
    %v1805 = vunpack.c.l.b16 %v1495
    %v1806 = vunpack.c.h.b16 %v1495
    %v1807 = vunpack.c.l.b16 %v1496
    %v1808 = vunpack.c.h.b16 %v1496
    %v1809 = vunpack.c.l.b16 %v1497
    %v1810 = vunpack.c.h.b16 %v1497
    %v1811 = vunpack.c.l.b16 %v1498
    %v1812 = vunpack.c.h.b16 %v1498
    %v1813 = vunpack.c.l.b16 %v1499
    %v1814 = vunpack.c.h.b16 %v1499
    %v1815 = vunpack.c.l.b16 %v1500
    %v1816 = vunpack.c.h.b16 %v1500
    %v1817 = vunpack.c.l.b16 %v1501
    %v1818 = vunpack.c.h.b16 %v1501
    %v1819 = vunpack.c.l.b16 %v1502
    %v1820 = vunpack.c.h.b16 %v1502
    %v1821 = vunpack.c.l.b16 %v1503
    %v1822 = vunpack.c.h.b16 %v1503
    %v1823 = vunpack.c.l.b16 %v1504
    %v1824 = vunpack.c.h.b16 %v1504
    %v1825 = vunpack.c.l.b16 %v1505
    %v1826 = vunpack.c.h.b16 %v1505
    %v1827 = vunpack.c.l.b16 %v1506
    %v1828 = vunpack.c.h.b16 %v1506
    %v1829 = vunpack.c.l.b16 %v1507
    %v1830 = vunpack.c.h.b16 %v1507
    %v1831 = vunpack.c.l.b16 %v1508
    %v1832 = vunpack.c.h.b16 %v1508
    %v1833 = vunpack.c.l.b16 %v1509
    %v1834 = vunpack.c.h.b16 %v1509
    %v1835 = vunpack.c.l.b16 %v1510
    %v1836 = vunpack.c.h.b16 %v1510
    %v1837 = vunpack.c.l.b16 %v1511
    %v1838 = vunpack.c.h.b16 %v1511
    %v1839 = vunpack.c.l.b16 %v1512
    %v1840 = vunpack.c.h.b16 %v1512
    %v1841 = vunpack.c.l.b16 %v1513
    %v1842 = vunpack.c.h.b16 %v1513
    %v1843 = vunpack.c.l.b16 %v1514
    %v1844 = vunpack.c.h.b16 %v1514
    %v1845 = vunpack.c.l.b16 %v1515
    %v1846 = vunpack.c.h.b16 %v1515
    %v1847 = vunpack.c.l.b16 %v1516
    %v1848 = vunpack.c.h.b16 %v1516
    %v1849 = vunpack.c.l.b16 %v1517
    %v1850 = vunpack.c.h.b16 %v1517
    %v1851 = vunpack.c.l.b16 %v1518
    %v1852 = vunpack.c.h.b16 %v1518
    %v1853 = vunpack.c.l.b16 %v1519
    %v1854 = vunpack.c.h.b16 %v1519
    %v1855 = vunpack.c.l.b16 %v1520
    %v1856 = vunpack.c.h.b16 %v1520
    %v1857 = vunpack.c.l.b16 %v1521
    %v1858 = vunpack.c.h.b16 %v1521
    %v1859 = vunpack.c.l.b16 %v1522
    %v1860 = vunpack.c.h.b16 %v1522
    %v1861 = vunpack.c.l.b16 %v1523
    %v1862 = vunpack.c.h.b16 %v1523
    %v1863 = vunpack.c.l.b16 %v1524
    %v1864 = vunpack.c.h.b16 %v1524
    %v1865 = vunpack.c.l.b16 %v1525
    %v1866 = vunpack.c.h.b16 %v1525
    %v1867 = vunpack.c.l.b16 %v1526
    %v1868 = vunpack.c.h.b16 %v1526
    %v1869 = vunpack.c.l.b16 %v1527
    %v1870 = vunpack.c.h.b16 %v1527
    %v1871 = vunpack.c.l.b16 %v1528
    %v1872 = vunpack.c.h.b16 %v1528
    %v1873 = vunpack.c.l.b16 %v1529
    %v1874 = vunpack.c.h.b16 %v1529
    %v1875 = vunpack.c.l.b16 %v1530
    %v1876 = vunpack.c.h.b16 %v1530
    %v1877 = vunpack.c.l.b16 %v1531
    %v1878 = vunpack.c.h.b16 %v1531
    %v1879 = vunpack.c.l.b16 %v1532
    %v1880 = vunpack.c.h.b16 %v1532
    %v1881 = vunpack.c.l.b16 %v1533
    %v1882 = vunpack.c.h.b16 %v1533
    %v1883 = vunpack.c.l.b16 %v1534
    %v1884 = vunpack.c.h.b16 %v1534
    %v1885 = vunpack.c.l.b16 %v1535
    %v1886 = vunpack.c.h.b16 %v1535
    %v1887 = vunpack.c.l.b16 %v1536
    %v1888 = vunpack.c.h.b16 %v1536
    %v1889 = vunpack.c.l.b16 %v1537
    %v1890 = vunpack.c.h.b16 %v1537
    %v1891 = vunpack.c.l.b16 %v1538
    %v1892 = vunpack.c.h.b16 %v1538
    %v1893 = vunpack.c.l.b16 %v1539
    %v1894 = vunpack.c.h.b16 %v1539
    %v1895 = vunpack.c.l.b16 %v1540
    %v1896 = vunpack.c.h.b16 %v1540
    %v1897 = vunpack.c.l.b16 %v1541
    %v1898 = vunpack.c.h.b16 %v1541
    %v1899 = vunpack.c.l.b16 %v1542
    %v1900 = vunpack.c.h.b16 %v1542
    %v1901 = vunpack.c.l.b16 %v1543
    %v1902 = vunpack.c.h.b16 %v1543
    %v1903 = vunpack.c.l.b16 %v1544
    %v1904 = vunpack.c.h.b16 %v1544
    %v1905 = vunpack.c.l.b16 %v1545
    %v1906 = vunpack.c.h.b16 %v1545
    %v1907 = vunpack.c.l.b16 %v1546
    %v1908 = vunpack.c.h.b16 %v1546
    %v1909 = vunpack.c.l.b16 %v1547
    %v1910 = vunpack.c.h.b16 %v1547
    %v1911 = vunpack.c.l.b16 %v1548
    %v1912 = vunpack.c.h.b16 %v1548
    %v1913 = vunpack.c.l.b16 %v1549
    %v1914 = vunpack.c.h.b16 %v1549
    %v1915 = vunpack.c.l.b16 %v1550
    %v1916 = vunpack.c.h.b16 %v1550
    %v1917 = vunpack.c.l.b16 %v1551
    %v1918 = vunpack.c.h.b16 %v1551
    %v1919 = vunpack.c.l.b16 %v1552
    %v1920 = vunpack.c.h.b16 %v1552
    %v1921 = vunpack.c.l.b16 %v1553
    %v1922 = vunpack.c.h.b16 %v1553
    %v1923 = vunpack.c.l.b16 %v1554
    %v1924 = vunpack.c.h.b16 %v1554
    %v1925 = vunpack.c.l.b16 %v1555
    %v1926 = vunpack.c.h.b16 %v1555
    %v1927 = vunpack.c.l.b16 %v1556
    %v1928 = vunpack.c.h.b16 %v1556
    %v1929 = vunpack.c.l.b16 %v1557
    %v1930 = vunpack.c.h.b16 %v1557
    %v1931 = vunpack.c.l.b16 %v1558
    %v1932 = vunpack.c.h.b16 %v1558
    %v1933 = vunpack.c.l.b16 %v1559
    %v1934 = vunpack.c.h.b16 %v1559
    %v1935 = vunpack.c.l.b16 %v1560
    %v1936 = vunpack.c.h.b16 %v1560
    %v1937 = vunpack.c.l.b16 %v1561
    %v1938 = vunpack.c.h.b16 %v1561
    %v1939 = vunpack.c.l.b16 %v1562
    %v1940 = vunpack.c.h.b16 %v1562
    %v1941 = vunpack.c.l.b16 %v1563
    %v1942 = vunpack.c.h.b16 %v1563
    %v1943 = vunpack.c.l.b16 %v1564
    %v1944 = vunpack.c.h.b16 %v1564
    %v1945 = vunpack.c.l.b16 %v1565
    %v1946 = vunpack.c.h.b16 %v1565
    %v1947 = vunpack.c.l.b16 %v1566
    %v1948 = vunpack.c.h.b16 %v1566
    %v1949 = vunpack.c.l.b16 %v1567
    %v1950 = vunpack.c.h.b16 %v1567
    %v1951 = vunpack.c.l.b16 %v1568
    %v1952 = vunpack.c.h.b16 %v1568
    %v1953 = vunpack.c.l.b16 %v1569
    %v1954 = vunpack.c.h.b16 %v1569
    %v1955 = vunpack.c.l.b16 %v1570
    %v1956 = vunpack.c.h.b16 %v1570
    %v1957 = vunpack.c.l.b16 %v1571
    %v1958 = vunpack.c.h.b16 %v1571
    %v1959 = vunpack.c.l.b16 %v1572
    %v1960 = vunpack.c.h.b16 %v1572
    %v1961 = vunpack.c.l.b16 %v1573
    %v1962 = vunpack.c.h.b16 %v1573
    %v1963 = vunpack.c.l.b16 %v1574
    %v1964 = vunpack.c.h.b16 %v1574
    %v1965 = vunpack.c.l.b16 %v1575
    %v1966 = vunpack.c.h.b16 %v1575
    %v1967 = vunpack.c.l.b16 %v1576
    %v1968 = vunpack.c.h.b16 %v1576
    %v1969 = vunpack.c.l.b16 %v1577
    %v1970 = vunpack.c.h.b16 %v1577
    %v1971 = vunpack.c.l.b16 %v1578
    %v1972 = vunpack.c.h.b16 %v1578
    %v1973 = vunpack.c.l.b16 %v1579
    %v1974 = vunpack.c.h.b16 %v1579
    %v1975 = vunpack.c.l.b16 %v1580
    %v1976 = vunpack.c.h.b16 %v1580
    %v1977 = vunpack.c.l.b16 %v1581
    %v1978 = vunpack.c.h.b16 %v1581
    %v1979 = vunpack.c.l.b16 %v1582
    %v1980 = vunpack.c.h.b16 %v1582
    %v1981 = vunpack.c.l.b16 %v1583
    %v1982 = vunpack.c.h.b16 %v1583
    %v1983 = vunpack.c.l.b16 %v1584
    %v1984 = vunpack.c.h.b16 %v1584
    %v1985 = vunpack.c.l.b16 %v1585
    %v1986 = vunpack.c.h.b16 %v1585
    %v1987 = vunpack.c.l.b16 %v1586
    %v1988 = vunpack.c.h.b16 %v1586
    %v1989 = vunpack.c.l.b16 %v1587
    %v1990 = vunpack.c.h.b16 %v1587
    %v1991 = vunpack.c.l.b16 %v1588
    %v1992 = vunpack.c.h.b16 %v1588
    %v1993 = vunpack.c.l.b16 %v1589
    %v1994 = vunpack.c.h.b16 %v1589
    %v1995 = vunpack.c.l.b16 %v1590
    %v1996 = vunpack.c.h.b16 %v1590
    %v1997 = vunpack.c.l.b16 %v1591
    %v1998 = vunpack.c.h.b16 %v1591
    %v1999 = vunpack.c.l.b16 %v1592
    %v2000 = vunpack.c.h.b16 %v1592
    %v2001 = vunpack.c.l.b16 %v1593
    %v2002 = vunpack.c.h.b16 %v1593
    %v2003 = vunpack.c.l.b16 %v1594
    %v2004 = vunpack.c.h.b16 %v1594
    %v2005 = vunpack.c.l.b16 %v1595
    %v2006 = vunpack.c.h.b16 %v1595
    %v2007 = vunpack.c.l.b16 %v1596
    %v2008 = vunpack.c.h.b16 %v1596
    %v2009 = vunpack.c.l.b16 %v1597
    %v2010 = vunpack.c.h.b16 %v1597
    %v2011 = vunpack.c.l.b16 %v1598
    %v2012 = vunpack.c.h.b16 %v1598
    %v2013 = vunpack.c.l.b16 %v1599
    %v2014 = vunpack.c.h.b16 %v1599
    %v2015 = vunpack.c.l.b16 %v1600
    %v2016 = vunpack.c.h.b16 %v1600
    %v2017 = vunpack.c.l.b16 %v1601
    %v2018 = vunpack.c.h.b16 %v1601
    %v2019 = vunpack.c.l.b16 %v1602
    %v2020 = vunpack.c.h.b16 %v1602
    %v2021 = vunpack.c.l.b16 %v1603
    %v2022 = vunpack.c.h.b16 %v1603
    %v2023 = vunpack.c.l.b16 %v1604
    %v2024 = vunpack.c.h.b16 %v1604
    %v2025 = vunpack.c.l.b16 %v1605
    %v2026 = vunpack.c.h.b16 %v1605
    %v2027 = vunpack.c.l.b16 %v1606
    %v2028 = vunpack.c.h.b16 %v1606
    %v2029 = vunpack.c.l.b16 %v1607
    %v2030 = vunpack.c.h.b16 %v1607
    %v2031 = vunpack.c.l.b16 %v1608
    %v2032 = vunpack.c.h.b16 %v1608
    %v2033 = vunpack.c.l.b16 %v1609
    %v2034 = vunpack.c.h.b16 %v1609
    %v2035 = vunpack.c.l.b16 %v1610
    %v2036 = vunpack.c.h.b16 %v1610
    %v2037 = vpack.c.b16 %v1789, %v1781
    %v2038 = vpack.c.b16 %v1790, %v1782
    %v2039 = vpack.c.b16 %v1791, %v1783
    %v2040 = vpack.c.b16 %v1792, %v1784
    %v2041 = vpack.c.b16 %v1793, %v1785
    %v2042 = vpack.c.b16 %v1794, %v1786
    %v2043 = vpack.c.b16 %v1795, %v1787
    %v2044 = vpack.c.b16 %v1796, %v1788
    %v2045 = vpack.c.b16 %v1805, %v1797
    %v2046 = vpack.c.b16 %v1806, %v1798
    %v2047 = vpack.c.b16 %v1807, %v1799
    %v2048 = vpack.c.b16 %v1808, %v1800
    %v2049 = vpack.c.b16 %v1809, %v1801
    %v2050 = vpack.c.b16 %v1810, %v1802
    %v2051 = vpack.c.b16 %v1811, %v1803
    %v2052 = vpack.c.b16 %v1812, %v1804
    %v2053 = vpack.c.b16 %v1821, %v1813
    %v2054 = vpack.c.b16 %v1822, %v1814
    %v2055 = vpack.c.b16 %v1823, %v1815
    %v2056 = vpack.c.b16 %v1824, %v1816
    %v2057 = vpack.c.b16 %v1825, %v1817
    %v2058 = vpack.c.b16 %v1826, %v1818
    %v2059 = vpack.c.b16 %v1827, %v1819
    %v2060 = vpack.c.b16 %v1828, %v1820
    %v2061 = vpack.c.b16 %v1837, %v1829
    %v2062 = vpack.c.b16 %v1838, %v1830
    %v2063 = vpack.c.b16 %v1839, %v1831
    %v2064 = vpack.c.b16 %v1840, %v1832
    %v2065 = vpack.c.b16 %v1841, %v1833
    %v2066 = vpack.c.b16 %v1842, %v1834
    %v2067 = vpack.c.b16 %v1843, %v1835
    %v2068 = vpack.c.b16 %v1844, %v1836
    %v2069 = vpack.c.b16 %v1853, %v1845
    %v2070 = vpack.c.b16 %v1854, %v1846
    %v2071 = vpack.c.b16 %v1855, %v1847
    %v2072 = vpack.c.b16 %v1856, %v1848
    %v2073 = vpack.c.b16 %v1857, %v1849
    %v2074 = vpack.c.b16 %v1858, %v1850
    %v2075 = vpack.c.b16 %v1859, %v1851
    %v2076 = vpack.c.b16 %v1860, %v1852
    %v2077 = vpack.c.b16 %v1869, %v1861
    %v2078 = vpack.c.b16 %v1870, %v1862
    %v2079 = vpack.c.b16 %v1871, %v1863
    %v2080 = vpack.c.b16 %v1872, %v1864
    %v2081 = vpack.c.b16 %v1873, %v1865
    %v2082 = vpack.c.b16 %v1874, %v1866
    %v2083 = vpack.c.b16 %v1875, %v1867
    %v2084 = vpack.c.b16 %v1876, %v1868
    %v2085 = vpack.c.b16 %v1885, %v1877
    %v2086 = vpack.c.b16 %v1886, %v1878
    %v2087 = vpack.c.b16 %v1887, %v1879
    %v2088 = vpack.c.b16 %v1888, %v1880
    %v2089 = vpack.c.b16 %v1889, %v1881
    %v2090 = vpack.c.b16 %v1890, %v1882
    %v2091 = vpack.c.b16 %v1891, %v1883
    %v2092 = vpack.c.b16 %v1892, %v1884
    %v2093 = vpack.c.b16 %v1901, %v1893
    %v2094 = vpack.c.b16 %v1902, %v1894
    %v2095 = vpack.c.b16 %v1903, %v1895
    %v2096 = vpack.c.b16 %v1904, %v1896
    %v2097 = vpack.c.b16 %v1905, %v1897
    %v2098 = vpack.c.b16 %v1906, %v1898
    %v2099 = vpack.c.b16 %v1907, %v1899
    %v2100 = vpack.c.b16 %v1908, %v1900
    %v2101 = vpack.c.b16 %v1917, %v1909
    %v2102 = vpack.c.b16 %v1918, %v1910
    %v2103 = vpack.c.b16 %v1919, %v1911
    %v2104 = vpack.c.b16 %v1920, %v1912
    %v2105 = vpack.c.b16 %v1921, %v1913
    %v2106 = vpack.c.b16 %v1922, %v1914
    %v2107 = vpack.c.b16 %v1923, %v1915
    %v2108 = vpack.c.b16 %v1924, %v1916
    %v2109 = vpack.c.b16 %v1933, %v1925
    %v2110 = vpack.c.b16 %v1934, %v1926
    %v2111 = vpack.c.b16 %v1935, %v1927
    %v2112 = vpack.c.b16 %v1936, %v1928
    %v2113 = vpack.c.b16 %v1937, %v1929
    %v2114 = vpack.c.b16 %v1938, %v1930
    %v2115 = vpack.c.b16 %v1939, %v1931
    %v2116 = vpack.c.b16 %v1940, %v1932
    %v2117 = vpack.c.b16 %v1949, %v1941
    %v2118 = vpack.c.b16 %v1950, %v1942
    %v2119 = vpack.c.b16 %v1951, %v1943
    %v2120 = vpack.c.b16 %v1952, %v1944
    %v2121 = vpack.c.b16 %v1953, %v1945
    %v2122 = vpack.c.b16 %v1954, %v1946
    %v2123 = vpack.c.b16 %v1955, %v1947
    %v2124 = vpack.c.b16 %v1956, %v1948
    %v2125 = vpack.c.b16 %v1965, %v1957
    %v2126 = vpack.c.b16 %v1966, %v1958
    %v2127 = vpack.c.b16 %v1967, %v1959
    %v2128 = vpack.c.b16 %v1968, %v1960
    %v2129 = vpack.c.b16 %v1969, %v1961
    %v2130 = vpack.c.b16 %v1970, %v1962
    %v2131 = vpack.c.b16 %v1971, %v1963
    %v2132 = vpack.c.b16 %v1972, %v1964
    %v2133 = vpack.c.b16 %v1981, %v1973
    %v2134 = vpack.c.b16 %v1982, %v1974
    %v2135 = vpack.c.b16 %v1983, %v1975
    %v2136 = vpack.c.b16 %v1984, %v1976
    %v2137 = vpack.c.b16 %v1985, %v1977
    %v2138 = vpack.c.b16 %v1986, %v1978
    %v2139 = vpack.c.b16 %v1987, %v1979
    %v2140 = vpack.c.b16 %v1988, %v1980
    %v2141 = vpack.c.b16 %v1997, %v1989
    %v2142 = vpack.c.b16 %v1998, %v1990
    %v2143 = vpack.c.b16 %v1999, %v1991
    %v2144 = vpack.c.b16 %v2000, %v1992
    %v2145 = vpack.c.b16 %v2001, %v1993
    %v2146 = vpack.c.b16 %v2002, %v1994
    %v2147 = vpack.c.b16 %v2003, %v1995
    %v2148 = vpack.c.b16 %v2004, %v1996
    %v2149 = vpack.c.b16 %v2013, %v2005
    %v2150 = vpack.c.b16 %v2014, %v2006
    %v2151 = vpack.c.b16 %v2015, %v2007
    %v2152 = vpack.c.b16 %v2016, %v2008
    %v2153 = vpack.c.b16 %v2017, %v2009
    %v2154 = vpack.c.b16 %v2018, %v2010
    %v2155 = vpack.c.b16 %v2019, %v2011
    %v2156 = vpack.c.b16 %v2020, %v2012
    %v2157 = vpack.c.b16 %v2029, %v2021
    %v2158 = vpack.c.b16 %v2030, %v2022
    %v2159 = vpack.c.b16 %v2031, %v2023
    %v2160 = vpack.c.b16 %v2032, %v2024
    %v2161 = vpack.c.b16 %v2033, %v2025
    %v2162 = vpack.c.b16 %v2034, %v2026
    %v2163 = vpack.c.b16 %v2035, %v2027
    %v2164 = vpack.c.b16 %v2036, %v2028
    %2293 = vmatprep.subr.bf16.mxu0 %v2038
    %2294 = vmatpush1.bf16.msra.mxu0 %v2037
    %2295 = vmatprep.subr.bf16.mxu0 %v2046
    %2296 = vmatpush1.bf16.msra.mxu0 %v2045
    %2297 = vmatprep.subr.bf16.mxu0 %v2054
    %2298 = vmatpush1.bf16.msra.mxu0 %v2053
    %2299 = vmatprep.subr.bf16.mxu0 %v2062
    %2300 = vmatpush1.bf16.msra.mxu0 %v2061
    %2301 = vmatprep.subr.bf16.mxu0 %v2070
    %2302 = vmatpush1.bf16.msra.mxu0 %v2069
    %2303 = vmatprep.subr.bf16.mxu0 %v2078
    %2304 = vmatpush1.bf16.msra.mxu0 %v2077
    %2305 = vmatprep.subr.bf16.mxu0 %v2086
    %2306 = vmatpush1.bf16.msra.mxu0 %v2085
    %2307 = vmatprep.subr.bf16.mxu0 %v2094
    %2308 = vmatpush1.bf16.msra.mxu0 %v2093
    %2309 = vmatprep.subr.bf16.mxu0 %v2102
    %2310 = vmatpush1.bf16.msra.mxu0 %v2101
    %2311 = vmatprep.subr.bf16.mxu0 %v2110
    %2312 = vmatpush1.bf16.msra.mxu0 %v2109
    %2313 = vmatprep.subr.bf16.mxu0 %v2118
    %2314 = vmatpush1.bf16.msra.mxu0 %v2117
    %2315 = vmatprep.subr.bf16.mxu0 %v2126
    %2316 = vmatpush1.bf16.msra.mxu0 %v2125
    %2317 = vmatprep.subr.bf16.mxu0 %v2134
    %2318 = vmatpush1.bf16.msra.mxu0 %v2133
    %2319 = vmatprep.subr.bf16.mxu0 %v2142
    %2320 = vmatpush1.bf16.msra.mxu0 %v2141
    %2321 = vmatprep.subr.bf16.mxu0 %v2150
    %2322 = vmatpush1.bf16.msra.mxu0 %v2149
    %2323 = vmatprep.subr.bf16.mxu0 %v2158
    %2324 = vmatpush1.bf16.msra.mxu0 %v2157
    %2325 = vmatprep.mubr.bf16.mxu0 %v1482
    %2326 = vmatmul.mubr.bf16.gmra.mrb[0].mxu0 %v1481
    %v2327 = vpop.f32.mrb[0].mxu0
    %v2328 = vadd.f32 %v1616, %v2327
    %v2329 = vpop.f32.mrb[0].mxu0
    %v2330 = vadd.f32 %v1620, %v2329
    %v2331 = vpop.f32.mrb[0].mxu0
    %v2332 = vpop.f32.mrb[0].mxu0
    %2333 = vdwg.mxu0
    %2334 = vmatprep.subr.bf16.mxu0 %v2040
    %2335 = vmatpush1.bf16.msra.mxu0 %v2039
    %2336 = vmatprep.subr.bf16.mxu0 %v2048
    %2337 = vmatpush1.bf16.msra.mxu0 %v2047
    %2338 = vmatprep.subr.bf16.mxu0 %v2056
    %2339 = vmatpush1.bf16.msra.mxu0 %v2055
    %2340 = vmatprep.subr.bf16.mxu0 %v2064
    %2341 = vmatpush1.bf16.msra.mxu0 %v2063
    %2342 = vmatprep.subr.bf16.mxu0 %v2072
    %2343 = vmatpush1.bf16.msra.mxu0 %v2071
    %2344 = vmatprep.subr.bf16.mxu0 %v2080
    %2345 = vmatpush1.bf16.msra.mxu0 %v2079
    %2346 = vmatprep.subr.bf16.mxu0 %v2088
    %2347 = vmatpush1.bf16.msra.mxu0 %v2087
    %2348 = vmatprep.subr.bf16.mxu0 %v2096
    %2349 = vmatpush1.bf16.msra.mxu0 %v2095
    %2350 = vmatprep.subr.bf16.mxu0 %v2104
    %2351 = vmatpush1.bf16.msra.mxu0 %v2103
    %2352 = vmatprep.subr.bf16.mxu0 %v2112
    %2353 = vmatpush1.bf16.msra.mxu0 %v2111
    %2354 = vmatprep.subr.bf16.mxu0 %v2120
    %2355 = vmatpush1.bf16.msra.mxu0 %v2119
    %2356 = vmatprep.subr.bf16.mxu0 %v2128
    %2357 = vmatpush1.bf16.msra.mxu0 %v2127
    %2358 = vmatprep.subr.bf16.mxu0 %v2136
    %2359 = vmatpush1.bf16.msra.mxu0 %v2135
    %2360 = vmatprep.subr.bf16.mxu0 %v2144
    %2361 = vmatpush1.bf16.msra.mxu0 %v2143
    %2362 = vmatprep.subr.bf16.mxu0 %v2152
    %2363 = vmatpush1.bf16.msra.mxu0 %v2151
    %2364 = vmatprep.subr.bf16.mxu0 %v2160
    %2365 = vmatpush1.bf16.msra.mxu0 %v2159
    %2366 = vmatprep.mubr.bf16.mxu0 %v1482
    %2367 = vmatmul.mubr.bf16.gmra.mrb[0].mxu0 %v1481
    %v2368 = vpop.f32.mrb[0].mxu0
    %v2369 = vadd.f32 %v1624, %v2368
    %v2370 = vpop.f32.mrb[0].mxu0
    %v2371 = vadd.f32 %v1628, %v2370
    %v2372 = vpop.f32.mrb[0].mxu0
    %v2373 = vpop.f32.mrb[0].mxu0
    %2374 = vdwg.mxu0
    %2375 = vmatprep.subr.bf16.mxu0 %v2042
    %2376 = vmatpush1.bf16.msra.mxu0 %v2041
    %2377 = vmatprep.subr.bf16.mxu0 %v2050
    %2378 = vmatpush1.bf16.msra.mxu0 %v2049
    %2379 = vmatprep.subr.bf16.mxu0 %v2058
    %2380 = vmatpush1.bf16.msra.mxu0 %v2057
    %2381 = vmatprep.subr.bf16.mxu0 %v2066
    %2382 = vmatpush1.bf16.msra.mxu0 %v2065
    %2383 = vmatprep.subr.bf16.mxu0 %v2074
    %2384 = vmatpush1.bf16.msra.mxu0 %v2073
    %2385 = vmatprep.subr.bf16.mxu0 %v2082
    %2386 = vmatpush1.bf16.msra.mxu0 %v2081
    %2387 = vmatprep.subr.bf16.mxu0 %v2090
    %2388 = vmatpush1.bf16.msra.mxu0 %v2089
    %2389 = vmatprep.subr.bf16.mxu0 %v2098
    %2390 = vmatpush1.bf16.msra.mxu0 %v2097
    %2391 = vmatprep.subr.bf16.mxu0 %v2106
    %2392 = vmatpush1.bf16.msra.mxu0 %v2105
    %2393 = vmatprep.subr.bf16.mxu0 %v2114
    %2394 = vmatpush1.bf16.msra.mxu0 %v2113
    %2395 = vmatprep.subr.bf16.mxu0 %v2122
    %2396 = vmatpush1.bf16.msra.mxu0 %v2121
    %2397 = vmatprep.subr.bf16.mxu0 %v2130
    %2398 = vmatpush1.bf16.msra.mxu0 %v2129
    %2399 = vmatprep.subr.bf16.mxu0 %v2138
    %2400 = vmatpush1.bf16.msra.mxu0 %v2137
    %2401 = vmatprep.subr.bf16.mxu0 %v2146
    %2402 = vmatpush1.bf16.msra.mxu0 %v2145
    %2403 = vmatprep.subr.bf16.mxu0 %v2154
    %2404 = vmatpush1.bf16.msra.mxu0 %v2153
    %2405 = vmatprep.subr.bf16.mxu0 %v2162
    %2406 = vmatpush1.bf16.msra.mxu0 %v2161
    %2407 = vmatprep.mubr.bf16.mxu0 %v1482
    %2408 = vmatmul.mubr.bf16.gmra.mrb[0].mxu0 %v1481
    %v2409 = vpop.f32.mrb[0].mxu0
    %v2410 = vadd.f32 %v1632, %v2409
    %v2411 = vpop.f32.mrb[0].mxu0
    %v2412 = vadd.f32 %v1636, %v2411
    %v2413 = vpop.f32.mrb[0].mxu0
    %v2414 = vpop.f32.mrb[0].mxu0
    %2415 = vdwg.mxu0
    %2416 = vmatprep.subr.bf16.mxu0 %v2044
    %2417 = vmatpush1.bf16.msra.mxu0 %v2043
    %2418 = vmatprep.subr.bf16.mxu0 %v2052
    %2419 = vmatpush1.bf16.msra.mxu0 %v2051
    %2420 = vmatprep.subr.bf16.mxu0 %v2060
    %2421 = vmatpush1.bf16.msra.mxu0 %v2059
    %2422 = vmatprep.subr.bf16.mxu0 %v2068
    %2423 = vmatpush1.bf16.msra.mxu0 %v2067
    %2424 = vmatprep.subr.bf16.mxu0 %v2076
    %2425 = vmatpush1.bf16.msra.mxu0 %v2075
    %2426 = vmatprep.subr.bf16.mxu0 %v2084
    %2427 = vmatpush1.bf16.msra.mxu0 %v2083
    %2428 = vmatprep.subr.bf16.mxu0 %v2092
    %2429 = vmatpush1.bf16.msra.mxu0 %v2091
    %2430 = vmatprep.subr.bf16.mxu0 %v2100
    %2431 = vmatpush1.bf16.msra.mxu0 %v2099
    %2432 = vmatprep.subr.bf16.mxu0 %v2108
    %2433 = vmatpush1.bf16.msra.mxu0 %v2107
    %2434 = vmatprep.subr.bf16.mxu0 %v2116
    %2435 = vmatpush1.bf16.msra.mxu0 %v2115
    %2436 = vmatprep.subr.bf16.mxu0 %v2124
    %2437 = vmatpush1.bf16.msra.mxu0 %v2123
    %2438 = vmatprep.subr.bf16.mxu0 %v2132
    %2439 = vmatpush1.bf16.msra.mxu0 %v2131
    %2440 = vmatprep.subr.bf16.mxu0 %v2140
    %2441 = vmatpush1.bf16.msra.mxu0 %v2139
    %2442 = vmatprep.subr.bf16.mxu0 %v2148
    %2443 = vmatpush1.bf16.msra.mxu0 %v2147
    %2444 = vmatprep.subr.bf16.mxu0 %v2156
    %2445 = vmatpush1.bf16.msra.mxu0 %v2155
    %2446 = vmatprep.subr.bf16.mxu0 %v2164
    %2447 = vmatpush1.bf16.msra.mxu0 %v2163
    %2448 = vmatprep.mubr.bf16.mxu0 %v1482
    %2449 = vmatmul.mubr.bf16.gmra.mrb[0].mxu0 %v1481
    %v2450 = vpop.f32.mrb[0].mxu0
    %v2451 = vadd.f32 %v1640, %v2450
    %v2452 = vpop.f32.mrb[0].mxu0
    %v2453 = vadd.f32 %v1644, %v2452
    %v2454 = vpop.f32.mrb[0].mxu0
    %v2455 = vpop.f32.mrb[0].mxu0
    %2456 = vdwg.mxu0
    %v2457 = vmax.f32 %v2328, 0.0
    %v2458 = vmax.f32 %v2330, 0.0
    %v2459 = vmax.f32 %v2369, 0.0
    %v2460 = vmax.f32 %v2371, 0.0
    %v2461 = vmax.f32 %v2410, 0.0
    %v2462 = vmax.f32 %v2412, 0.0
    %v2463 = vmax.f32 %v2451, 0.0
    %v2464 = vmax.f32 %v2453, 0.0
    %vm2465 = vcmask 123904
    %2466 = vst.msk [vmem:[#allocation2] sm:$0x3] %vm2465, %v1224
    %2467 = vst.msk [vmem:[#allocation4] sm:$0x3] %vm2465, %v1399
    %v2468 = vpack.c.bf16 %v2457, %v2457
    %v2469 = vpack.c.bf16 %v2458, %v2458
    %v2470 = vpack.c.bf16 %v2459, %v2459
    %v2471 = vpack.c.bf16 %v2460, %v2460
    %v2472 = vpack.c.bf16 %v2461, %v2461
    %v2473 = vpack.c.bf16 %v2462, %v2462
    %v2474 = vpack.c.bf16 %v2463, %v2463
    %v2475 = vpack.c.bf16 %v2464, %v2464
    %v2484 = vcombine.low %v2468, %v2469
    %v2485 = vcombine.low %v2470, %v2471
    %v2486 = vcombine.low %v2472, %v2473
    %v2487 = vcombine.low %v2474, %v2475
    %v2489 = vunpack.c.l.s4 1966171168
    %v2490 = vunpack.c.0.s8 %v2489
    %v2491 = vlaneseq
    %v2492 = vshrl.u32 %v2491, 7
    %v2493 = vsub.s32 %v2490, %v2492
    %v2494 = vrot.slane %v2484, %v2493
    %v2496 = vunpack.c.l.s4 1966171168
    %v2497 = vunpack.c.0.s8 %v2496
    %v2498 = vlaneseq
    %v2499 = vshrl.u32 %v2498, 7
    %v2500 = vsub.s32 %v2497, %v2499
    %v2501 = vrot.slane %v2485, %v2500
    %v2503 = vunpack.c.l.s4 1966171168
    %v2504 = vunpack.c.0.s8 %v2503
    %v2505 = vlaneseq
    %v2506 = vshrl.u32 %v2505, 7
    %v2507 = vsub.s32 %v2504, %v2506
    %v2508 = vrot.slane %v2486, %v2507
    %v2510 = vunpack.c.l.s4 1966171168
    %v2511 = vunpack.c.0.s8 %v2510
    %v2512 = vlaneseq
    %v2513 = vshrl.u32 %v2512, 7
    %v2514 = vsub.s32 %v2511, %v2513
    %v2515 = vrot.slane %v2487, %v2514
    %v2516 = vcombine.low %v2494, %v2501
    %v2517 = vcombine.low %v2508, %v2515
    %v2519 = vunpack.c.l.s4 1966171168
    %v2520 = vunpack.c.0.s8 %v2519
    %v2521 = vlaneseq
    %v2522 = vshrl.u32 %v2521, 7
    %v2523 = vsub.s32 %v2520, %v2522
    %v2524 = vrot.slane %v2516, %v2523
    %v2526 = vunpack.c.l.s4 1966171168
    %v2527 = vunpack.c.0.s8 %v2526
    %v2528 = vlaneseq
    %v2529 = vshrl.u32 %v2528, 7
    %v2530 = vsub.s32 %v2527, %v2529
    %v2531 = vrot.slane %v2517, %v2530
    %v2532 = vcombine.low %v2524, %v2531
    %2534 = vst [vmem:[%s14] sm:$0xff] %v2532
    // Predicated region
    $region50: #{vae_forward.13} parent=1 // pred_check
      _
    $region51: #{vae_forward.13} parent=1 // pred_check_branch
      %2536 = sbr.rel (0) target = $region53
    $region52: #{vae_forward.13} parent=1 // pred_region
      %s2538 = ssub.s32 32, 32
      %2539 = vsyncadd [#allocation3], %s2538
      %s2541 = sshll.u32 [#allocation2], 4
      %s2542 = int_to_ptr.vmem [resolvable:$true] %s2541
      %2544 = dma.vmem_to_hbm [thread:$0]  %s2542, 32, %s12, [#allocation3]
    $region53: #{vae_forward.13} parent=1 // pred_fallthru
      _
    // Predicated region
    $region54: #{vae_forward.13} parent=1 // pred_check
      _
    $region55: #{vae_forward.13} parent=1 // pred_check_branch
      %2546 = sbr.rel (0) target = $region57
    $region56: #{vae_forward.13} parent=1 // pred_region
      %s2548 = ssub.s32 32, 32
      %2549 = vsyncadd [#allocation5], %s2548
      %s2551 = sshll.u32 [#allocation4], 4
      %s2552 = int_to_ptr.vmem [resolvable:$true] %s2551
      %2554 = dma.vmem_to_hbm [thread:$0]  %s2552, 32, %s13, [#allocation5]
    $region57: #{vae_forward.13} parent=1 // pred_fallthru
      _
    // Predicated region
    $region58: #{vae_forward.13} parent=1 // pred_check
      _
    $region59: #{vae_forward.13} parent=1 // pred_check_branch
      %2556 = sbr.rel (0) target = $region61
    $region60: #{vae_forward.13} parent=1 // pred_region
      _
    $region61: #{vae_forward.13} parent=1 // pred_fallthru
      _
    // Predicated region
    $region62: #{vae_forward.13} parent=1 // pred_check
      _
    $region63: #{vae_forward.13} parent=1 // pred_check_branch
      %2558 = sbr.rel (0) target = $region65
    $region64: #{vae_forward.13} parent=1 // pred_region
      %2559 = dma.done [#allocation3], 32
    $region65: #{vae_forward.13} parent=1 // pred_fallthru
      _
    // Predicated region
    $region66: #{vae_forward.13} parent=1 // pred_check
      _
    $region67: #{vae_forward.13} parent=1 // pred_check_branch
      %2561 = sbr.rel (0) target = $region69
    $region68: #{vae_forward.13} parent=1 // pred_region
      %2562 = dma.done [#allocation5], 32
    $region69: #{vae_forward.13} parent=1 // pred_fallthru
      _
    // Predicated region
    $region70: #{vae_forward.13} parent=1 // pred_check
      _
    $region71: #{vae_forward.13} parent=1 // pred_check_branch
      %2564 = sbr.rel (0) target = $region73
    $region72: #{vae_forward.13} parent=1 // pred_region
      _
    $region73: #{vae_forward.13} parent=1 // pred_fallthru
      _
    %2565 = vsyncpa [#allocation3], 1
    %2566 = vsyncpa [#allocation5], 1

// kernel: vae_forward.15
$region0: #{vae_forward.15}
  #allocation0 [shape = 'u32[]', space=smem, size = 0x4, offset = 0x4, fixed_abs, tag = 'smem constant byte address 0x4 - core index']
  #allocation1 [shape = 'u32[144,128]{1,0:T(1,128)}', space=vmem, size = 0x12000, scoped, tag = 'internal scratch']
  %s0 = inlined_call_operand.vmem [shape: bf16[128,576], index: 0, kind: input, shape index: {}]
  %s1 = inlined_call_operand.vmem [shape: bf16[576,128], index: 1, kind: input, shape index: {}]
  %s2 = inlined_call_operand.vmem [shape: f32[1,128], index: 2, kind: input, shape index: {}]
  %s3 = inlined_call_operand.vmem [shape: bf16[128,128], index: 3, kind: output, shape index: {}]
  %s4 = sld [smem:[#allocation0]]
  $region22: #{vae_forward.15} parent=0
    _
  %s6 = ssub.s32 1, %s4
  %s7 = scalar_select 0, %s6, %s4
  // Predicated region
  $region2: #{vae_forward.15} parent=0 // pred_check
    _
  $region3: #{vae_forward.15} parent=0 // pred_check_branch
    %9 = sbr.rel (0) target = $region5
  $region4: #{vae_forward.15} parent=0 // pred_region
    _
  $region5: #{vae_forward.15} parent=0 // pred_fallthru
    _
  // Predicated region
  $region6: #{vae_forward.15} parent=0 // pred_check
    _
  $region7: #{vae_forward.15} parent=0 // pred_check_branch
    %11 = sbr.rel (0) target = $region9
  $region8: #{vae_forward.15} parent=0 // pred_region
    _
  $region9: #{vae_forward.15} parent=0 // pred_fallthru
    _
  // Predicated region
  $region10: #{vae_forward.15} parent=0 // pred_check
    _
  $region11: #{vae_forward.15} parent=0 // pred_check_branch
    %13 = sbr.rel (0) target = $region13
  $region12: #{vae_forward.15} parent=0 // pred_region
    _
  $region13: #{vae_forward.15} parent=0 // pred_fallthru
    _
  %v15 = vld [vmem:[%s0] sm:$0xff]
  %v16 = vld [vmem:[%s0 + $0x8] sm:$0xff]
  %v17 = vld [vmem:[%s0 + $0x10] sm:$0xf]
  %v18 = vld [vmem:[%s0 + $0x14] sm:$0xff]
  %v19 = vld [vmem:[%s0 + $0x1c] sm:$0xff]
  %v20 = vld [vmem:[%s0 + $0x24] sm:$0xf]
  %v21 = vld [vmem:[%s0 + $0x28] sm:$0xff]
  %v22 = vld [vmem:[%s0 + $0x30] sm:$0xff]
  %v23 = vld [vmem:[%s0 + $0x38] sm:$0xf]
  %v24 = vld [vmem:[%s0 + $0x3c] sm:$0xff]
  %v25 = vld [vmem:[%s0 + $0x44] sm:$0xff]
  %v26 = vld [vmem:[%s0 + $0x4c] sm:$0xf]
  %v27 = vld [vmem:[%s0 + $0x50] sm:$0xff]
  %v28 = vld [vmem:[%s0 + $0x58] sm:$0xff]
  %v29 = vld [vmem:[%s0 + $0x60] sm:$0xf]
  %v30 = vld [vmem:[%s0 + $0x64] sm:$0xff]
  %v31 = vld [vmem:[%s0 + $0x6c] sm:$0xff]
  %v32 = vld [vmem:[%s0 + $0x74] sm:$0xf]
  %v33 = vld [vmem:[%s0 + $0x78] sm:$0xff]
  %v34 = vld [vmem:[%s0 + $0x80] sm:$0xff]
  %v35 = vld [vmem:[%s0 + $0x88] sm:$0xf]
  %v36 = vld [vmem:[%s0 + $0x8c] sm:$0xff]
  %v37 = vld [vmem:[%s0 + $0x94] sm:$0xff]
  %v38 = vld [vmem:[%s0 + $0x9c] sm:$0xf]
  %v39 = vld [vmem:[%s0 + $0xa0] sm:$0xff]
  %v40 = vld [vmem:[%s0 + $0xa8] sm:$0xff]
  %v41 = vld [vmem:[%s0 + $0xb0] sm:$0xf]
  %v42 = vld [vmem:[%s0 + $0xb4] sm:$0xff]
  %v43 = vld [vmem:[%s0 + $0xbc] sm:$0xff]
  %v44 = vld [vmem:[%s0 + $0xc4] sm:$0xf]
  %v45 = vld [vmem:[%s0 + $0xc8] sm:$0xff]
  %v46 = vld [vmem:[%s0 + $0xd0] sm:$0xff]
  %v47 = vld [vmem:[%s0 + $0xd8] sm:$0xf]
  %v48 = vld [vmem:[%s0 + $0xdc] sm:$0xff]
  %v49 = vld [vmem:[%s0 + $0xe4] sm:$0xff]
  %v50 = vld [vmem:[%s0 + $0xec] sm:$0xf]
  %v51 = vld [vmem:[%s0 + $0xf0] sm:$0xff]
  %v52 = vld [vmem:[%s0 + $0xf8] sm:$0xff]
  %v53 = vld [vmem:[%s0 + $0x100] sm:$0xf]
  %v54 = vld [vmem:[%s0 + $0x104] sm:$0xff]
  %v55 = vld [vmem:[%s0 + $0x10c] sm:$0xff]
  %v56 = vld [vmem:[%s0 + $0x114] sm:$0xf]
  %v57 = vld [vmem:[%s0 + $0x118] sm:$0xff]
  %v58 = vld [vmem:[%s0 + $0x120] sm:$0xff]
  %v59 = vld [vmem:[%s0 + $0x128] sm:$0xf]
  %v60 = vld [vmem:[%s0 + $0x12c] sm:$0xff]
  %v61 = vld [vmem:[%s0 + $0x134] sm:$0xff]
  %v62 = vld [vmem:[%s0 + $0x13c] sm:$0xf]
  %v63 = vld [vmem:[%s1] sm:$0xf]
  %v64 = vld [vmem:[%s1 + $0x4] sm:$0xf]
  %v65 = vld [vmem:[%s1 + $0x8] sm:$0xf]
  %v66 = vld [vmem:[%s1 + $0xc] sm:$0xf]
  %v67 = vld [vmem:[%s1 + $0x10] sm:$0xf]
  %v68 = vld [vmem:[%s1 + $0x14] sm:$0xf]
  %v69 = vld [vmem:[%s1 + $0x18] sm:$0xf]
  %v70 = vld [vmem:[%s1 + $0x1c] sm:$0xf]
  %v71 = vld [vmem:[%s1 + $0x20] sm:$0xf]
  %v72 = vld [vmem:[%s1 + $0x24] sm:$0xf]
  %v73 = vld [vmem:[%s1 + $0x28] sm:$0xf]
  %v74 = vld [vmem:[%s1 + $0x2c] sm:$0xf]
  %v75 = vld [vmem:[%s1 + $0x30] sm:$0xf]
  %v76 = vld [vmem:[%s1 + $0x34] sm:$0xf]
  %v77 = vld [vmem:[%s1 + $0x38] sm:$0xf]
  %v78 = vld [vmem:[%s1 + $0x3c] sm:$0xf]
  %v79 = vld [vmem:[%s1 + $0x40] sm:$0xf]
  %v80 = vld [vmem:[%s1 + $0x44] sm:$0xf]
  %v81 = vld [vmem:[%s1 + $0x48] sm:$0xf]
  %v82 = vld [vmem:[%s1 + $0x4c] sm:$0xf]
  %v83 = vld [vmem:[%s1 + $0x50] sm:$0xf]
  %v84 = vld [vmem:[%s1 + $0x54] sm:$0xf]
  %v85 = vld [vmem:[%s1 + $0x58] sm:$0xf]
  %v86 = vld [vmem:[%s1 + $0x5c] sm:$0xf]
  %v87 = vld [vmem:[%s1 + $0x60] sm:$0xf]
  %v88 = vld [vmem:[%s1 + $0x64] sm:$0xf]
  %v89 = vld [vmem:[%s1 + $0x68] sm:$0xf]
  %v90 = vld [vmem:[%s1 + $0x6c] sm:$0xf]
  %v91 = vld [vmem:[%s1 + $0x70] sm:$0xf]
  %v92 = vld [vmem:[%s1 + $0x74] sm:$0xf]
  %v93 = vld [vmem:[%s1 + $0x78] sm:$0xf]
  %v94 = vld [vmem:[%s1 + $0x7c] sm:$0xf]
  %v95 = vld [vmem:[%s1 + $0x80] sm:$0xf]
  %v96 = vld [vmem:[%s1 + $0x84] sm:$0xf]
  %v97 = vld [vmem:[%s1 + $0x88] sm:$0xf]
  %v98 = vld [vmem:[%s1 + $0x8c] sm:$0xf]
  %v99 = vld [vmem:[%s1 + $0x90] sm:$0xf]
  %v100 = vld [vmem:[%s1 + $0x94] sm:$0xf]
  %v101 = vld [vmem:[%s1 + $0x98] sm:$0xf]
  %v102 = vld [vmem:[%s1 + $0x9c] sm:$0xf]
  %v103 = vld [vmem:[%s1 + $0xa0] sm:$0xf]
  %v104 = vld [vmem:[%s1 + $0xa4] sm:$0xf]
  %v105 = vld [vmem:[%s1 + $0xa8] sm:$0xf]
  %v106 = vld [vmem:[%s1 + $0xac] sm:$0xf]
  %v107 = vld [vmem:[%s1 + $0xb0] sm:$0xf]
  %v108 = vld [vmem:[%s1 + $0xb4] sm:$0xf]
  %v109 = vld [vmem:[%s1 + $0xb8] sm:$0xf]
  %v110 = vld [vmem:[%s1 + $0xbc] sm:$0xf]
  %v111 = vld [vmem:[%s1 + $0xc0] sm:$0xf]
  %v112 = vld [vmem:[%s1 + $0xc4] sm:$0xf]
  %v113 = vld [vmem:[%s1 + $0xc8] sm:$0xf]
  %v114 = vld [vmem:[%s1 + $0xcc] sm:$0xf]
  %v115 = vld [vmem:[%s1 + $0xd0] sm:$0xf]
  %v116 = vld [vmem:[%s1 + $0xd4] sm:$0xf]
  %v117 = vld [vmem:[%s1 + $0xd8] sm:$0xf]
  %v118 = vld [vmem:[%s1 + $0xdc] sm:$0xf]
  %v119 = vld [vmem:[%s1 + $0xe0] sm:$0xf]
  %v120 = vld [vmem:[%s1 + $0xe4] sm:$0xf]
  %v121 = vld [vmem:[%s1 + $0xe8] sm:$0xf]
  %v122 = vld [vmem:[%s1 + $0xec] sm:$0xf]
  %v123 = vld [vmem:[%s1 + $0xf0] sm:$0xf]
  %v124 = vld [vmem:[%s1 + $0xf4] sm:$0xf]
  %v125 = vld [vmem:[%s1 + $0xf8] sm:$0xf]
  %v126 = vld [vmem:[%s1 + $0xfc] sm:$0xf]
  %v127 = vld [vmem:[%s1 + $0x100] sm:$0xf]
  %v128 = vld [vmem:[%s1 + $0x104] sm:$0xf]
  %v129 = vld [vmem:[%s1 + $0x108] sm:$0xf]
  %v130 = vld [vmem:[%s1 + $0x10c] sm:$0xf]
  %v131 = vld [vmem:[%s1 + $0x110] sm:$0xf]
  %v132 = vld [vmem:[%s1 + $0x114] sm:$0xf]
  %v133 = vld [vmem:[%s1 + $0x118] sm:$0xf]
  %v134 = vld [vmem:[%s1 + $0x11c] sm:$0xf]
  %v135 = vld [vmem:[%s2] sm:$0x1]
  %v137 = vlaneseq
  %v138 = vshrl.u32 %v137, 7
  %v139 = vsub.s32 0, %v138
  %v140 = vrot.slane %v135, %v139
  %v190 = vunpack.c.l.b16 %v15
  %v191 = vunpack.c.h.b16 %v15
  %v192 = vunpack.c.l.b16 %v16
  %v193 = vunpack.c.h.b16 %v16
  %v194 = vunpack.c.l.b16 %v17
  %v195 = vunpack.c.l.b16 %v18
  %v196 = vunpack.c.h.b16 %v18
  %v197 = vunpack.c.l.b16 %v19
  %v198 = vunpack.c.h.b16 %v19
  %v199 = vunpack.c.l.b16 %v20
  %v200 = vunpack.c.l.b16 %v21
  %v201 = vunpack.c.h.b16 %v21
  %v202 = vunpack.c.l.b16 %v22
  %v203 = vunpack.c.h.b16 %v22
  %v204 = vunpack.c.l.b16 %v23
  %v205 = vunpack.c.l.b16 %v24
  %v206 = vunpack.c.h.b16 %v24
  %v207 = vunpack.c.l.b16 %v25
  %v208 = vunpack.c.h.b16 %v25
  %v209 = vunpack.c.l.b16 %v26
  %v210 = vunpack.c.l.b16 %v27
  %v211 = vunpack.c.h.b16 %v27
  %v212 = vunpack.c.l.b16 %v28
  %v213 = vunpack.c.h.b16 %v28
  %v214 = vunpack.c.l.b16 %v29
  %v215 = vunpack.c.l.b16 %v30
  %v216 = vunpack.c.h.b16 %v30
  %v217 = vunpack.c.l.b16 %v31
  %v218 = vunpack.c.h.b16 %v31
  %v219 = vunpack.c.l.b16 %v32
  %v220 = vunpack.c.l.b16 %v33
  %v221 = vunpack.c.h.b16 %v33
  %v222 = vunpack.c.l.b16 %v34
  %v223 = vunpack.c.h.b16 %v34
  %v224 = vunpack.c.l.b16 %v35
  %v225 = vunpack.c.l.b16 %v36
  %v226 = vunpack.c.h.b16 %v36
  %v227 = vunpack.c.l.b16 %v37
  %v228 = vunpack.c.h.b16 %v37
  %v229 = vunpack.c.l.b16 %v38
  %v230 = vunpack.c.l.b16 %v39
  %v231 = vunpack.c.h.b16 %v39
  %v232 = vunpack.c.l.b16 %v40
  %v233 = vunpack.c.h.b16 %v40
  %v234 = vunpack.c.l.b16 %v41
  %v235 = vunpack.c.l.b16 %v42
  %v236 = vunpack.c.h.b16 %v42
  %v237 = vunpack.c.l.b16 %v43
  %v238 = vunpack.c.h.b16 %v43
  %v239 = vunpack.c.l.b16 %v44
  %v240 = vunpack.c.l.b16 %v45
  %v241 = vunpack.c.h.b16 %v45
  %v242 = vunpack.c.l.b16 %v46
  %v243 = vunpack.c.h.b16 %v46
  %v244 = vunpack.c.l.b16 %v47
  %v245 = vunpack.c.l.b16 %v48
  %v246 = vunpack.c.h.b16 %v48
  %v247 = vunpack.c.l.b16 %v49
  %v248 = vunpack.c.h.b16 %v49
  %v249 = vunpack.c.l.b16 %v50
  %v250 = vunpack.c.l.b16 %v51
  %v251 = vunpack.c.h.b16 %v51
  %v252 = vunpack.c.l.b16 %v52
  %v253 = vunpack.c.h.b16 %v52
  %v254 = vunpack.c.l.b16 %v53
  %v255 = vunpack.c.l.b16 %v54
  %v256 = vunpack.c.h.b16 %v54
  %v257 = vunpack.c.l.b16 %v55
  %v258 = vunpack.c.h.b16 %v55
  %v259 = vunpack.c.l.b16 %v56
  %v260 = vunpack.c.l.b16 %v57
  %v261 = vunpack.c.h.b16 %v57
  %v262 = vunpack.c.l.b16 %v58
  %v263 = vunpack.c.h.b16 %v58
  %v264 = vunpack.c.l.b16 %v59
  %v265 = vunpack.c.l.b16 %v60
  %v266 = vunpack.c.h.b16 %v60
  %v267 = vunpack.c.l.b16 %v61
  %v268 = vunpack.c.h.b16 %v61
  %v269 = vunpack.c.l.b16 %v62
  %v270 = vpack.c.b16 %v195, %v190
  %v271 = vpack.c.b16 %v196, %v191
  %v272 = vpack.c.b16 %v197, %v192
  %v273 = vpack.c.b16 %v198, %v193
  %v274 = vpack.c.b16 %v199, %v194
  %v275 = vpack.c.b16 %v205, %v200
  %v276 = vpack.c.b16 %v206, %v201
  %v277 = vpack.c.b16 %v207, %v202
  %v278 = vpack.c.b16 %v208, %v203
  %v279 = vpack.c.b16 %v209, %v204
  %v280 = vpack.c.b16 %v215, %v210
  %v281 = vpack.c.b16 %v216, %v211
  %v282 = vpack.c.b16 %v217, %v212
  %v283 = vpack.c.b16 %v218, %v213
  %v284 = vpack.c.b16 %v219, %v214
  %v285 = vpack.c.b16 %v225, %v220
  %v286 = vpack.c.b16 %v226, %v221
  %v287 = vpack.c.b16 %v227, %v222
  %v288 = vpack.c.b16 %v228, %v223
  %v289 = vpack.c.b16 %v229, %v224
  %v290 = vpack.c.b16 %v235, %v230
  %v291 = vpack.c.b16 %v236, %v231
  %v292 = vpack.c.b16 %v237, %v232
  %v293 = vpack.c.b16 %v238, %v233
  %v294 = vpack.c.b16 %v239, %v234
  %v295 = vpack.c.b16 %v245, %v240
  %v296 = vpack.c.b16 %v246, %v241
  %v297 = vpack.c.b16 %v247, %v242
  %v298 = vpack.c.b16 %v248, %v243
  %v299 = vpack.c.b16 %v249, %v244
  %v300 = vpack.c.b16 %v255, %v250
  %v301 = vpack.c.b16 %v256, %v251
  %v302 = vpack.c.b16 %v257, %v252
  %v303 = vpack.c.b16 %v258, %v253
  %v304 = vpack.c.b16 %v259, %v254
  %v305 = vpack.c.b16 %v265, %v260
  %v306 = vpack.c.b16 %v266, %v261
  %v307 = vpack.c.b16 %v267, %v262
  %v308 = vpack.c.b16 %v268, %v263
  %v309 = vpack.c.b16 %v269, %v264
  %v414 = vunpack.c.l.b16 %v63
  %v415 = vunpack.c.l.b16 %v64
  %v416 = vunpack.c.l.b16 %v65
  %v417 = vunpack.c.l.b16 %v66
  %v418 = vunpack.c.l.b16 %v67
  %v419 = vunpack.c.l.b16 %v68
  %v420 = vunpack.c.l.b16 %v69
  %v421 = vunpack.c.l.b16 %v70
  %v422 = vunpack.c.l.b16 %v71
  %v423 = vunpack.c.l.b16 %v72
  %v424 = vunpack.c.l.b16 %v73
  %v425 = vunpack.c.l.b16 %v74
  %v426 = vunpack.c.l.b16 %v75
  %v427 = vunpack.c.l.b16 %v76
  %v428 = vunpack.c.l.b16 %v77
  %v429 = vunpack.c.l.b16 %v78
  %v430 = vunpack.c.l.b16 %v79
  %v431 = vunpack.c.l.b16 %v80
  %v432 = vunpack.c.l.b16 %v81
  %v433 = vunpack.c.l.b16 %v82
  %v434 = vunpack.c.l.b16 %v83
  %v435 = vunpack.c.l.b16 %v84
  %v436 = vunpack.c.l.b16 %v85
  %v437 = vunpack.c.l.b16 %v86
  %v438 = vunpack.c.l.b16 %v87
  %v439 = vunpack.c.l.b16 %v88
  %v440 = vunpack.c.l.b16 %v89
  %v441 = vunpack.c.l.b16 %v90
  %v442 = vunpack.c.l.b16 %v91
  %v443 = vunpack.c.l.b16 %v92
  %v444 = vunpack.c.l.b16 %v93
  %v445 = vunpack.c.l.b16 %v94
  %v446 = vunpack.c.l.b16 %v95
  %v447 = vunpack.c.l.b16 %v96
  %v448 = vunpack.c.l.b16 %v97
  %v449 = vunpack.c.l.b16 %v98
  %v450 = vunpack.c.l.b16 %v99
  %v451 = vunpack.c.l.b16 %v100
  %v452 = vunpack.c.l.b16 %v101
  %v453 = vunpack.c.l.b16 %v102
  %v454 = vunpack.c.l.b16 %v103
  %v455 = vunpack.c.l.b16 %v104
  %v456 = vunpack.c.l.b16 %v105
  %v457 = vunpack.c.l.b16 %v106
  %v458 = vunpack.c.l.b16 %v107
  %v459 = vunpack.c.l.b16 %v108
  %v460 = vunpack.c.l.b16 %v109
  %v461 = vunpack.c.l.b16 %v110
  %v462 = vunpack.c.l.b16 %v111
  %v463 = vunpack.c.l.b16 %v112
  %v464 = vunpack.c.l.b16 %v113
  %v465 = vunpack.c.l.b16 %v114
  %v466 = vunpack.c.l.b16 %v115
  %v467 = vunpack.c.l.b16 %v116
  %v468 = vunpack.c.l.b16 %v117
  %v469 = vunpack.c.l.b16 %v118
  %v470 = vunpack.c.l.b16 %v119
  %v471 = vunpack.c.l.b16 %v120
  %v472 = vunpack.c.l.b16 %v121
  %v473 = vunpack.c.l.b16 %v122
  %v474 = vunpack.c.l.b16 %v123
  %v475 = vunpack.c.l.b16 %v124
  %v476 = vunpack.c.l.b16 %v125
  %v477 = vunpack.c.l.b16 %v126
  %v478 = vunpack.c.l.b16 %v127
  %v479 = vunpack.c.l.b16 %v128
  %v480 = vunpack.c.l.b16 %v129
  %v481 = vunpack.c.l.b16 %v130
  %v482 = vunpack.c.l.b16 %v131
  %v483 = vunpack.c.l.b16 %v132
  %v484 = vunpack.c.l.b16 %v133
  %v485 = vunpack.c.l.b16 %v134
  %v486 = vpack.c.b16 %v415, %v414
  %v487 = vpack.c.b16 %v417, %v416
  %v488 = vpack.c.b16 %v419, %v418
  %v489 = vpack.c.b16 %v421, %v420
  %v490 = vpack.c.b16 %v423, %v422
  %v491 = vpack.c.b16 %v425, %v424
  %v492 = vpack.c.b16 %v427, %v426
  %v493 = vpack.c.b16 %v429, %v428
  %v494 = vpack.c.b16 %v431, %v430
  %v495 = vpack.c.b16 %v433, %v432
  %v496 = vpack.c.b16 %v435, %v434
  %v497 = vpack.c.b16 %v437, %v436
  %v498 = vpack.c.b16 %v439, %v438
  %v499 = vpack.c.b16 %v441, %v440
  %v500 = vpack.c.b16 %v443, %v442
  %v501 = vpack.c.b16 %v445, %v444
  %v502 = vpack.c.b16 %v447, %v446
  %v503 = vpack.c.b16 %v449, %v448
  %v504 = vpack.c.b16 %v451, %v450
  %v505 = vpack.c.b16 %v453, %v452
  %v506 = vpack.c.b16 %v455, %v454
  %v507 = vpack.c.b16 %v457, %v456
  %v508 = vpack.c.b16 %v459, %v458
  %v509 = vpack.c.b16 %v461, %v460
  %v510 = vpack.c.b16 %v463, %v462
  %v511 = vpack.c.b16 %v465, %v464
  %v512 = vpack.c.b16 %v467, %v466
  %v513 = vpack.c.b16 %v469, %v468
  %v514 = vpack.c.b16 %v471, %v470
  %v515 = vpack.c.b16 %v473, %v472
  %v516 = vpack.c.b16 %v475, %v474
  %v517 = vpack.c.b16 %v477, %v476
  %v518 = vpack.c.b16 %v479, %v478
  %v519 = vpack.c.b16 %v481, %v480
  %v520 = vpack.c.b16 %v483, %v482
  %v521 = vpack.c.b16 %v485, %v484
  %vm558 = vcmask 523264
  %v560 = vsel %vm558, %v274, 0
  %v563 = vsel %vm558, %v279, 0
  %v566 = vsel %vm558, %v284, 0
  %v569 = vsel %vm558, %v289, 0
  %v572 = vsel %vm558, %v294, 0
  %v575 = vsel %vm558, %v299, 0
  %v578 = vsel %vm558, %v304, 0
  %v581 = vsel %vm558, %v309, 0
  %583 = vmatprep.subr.bf16.mxu0 0
  %584 = vmatpush1.bf16.msra.mxu0 %v486
  %585 = vmatprep.subr.bf16.mxu0 0
  %586 = vmatpush1.bf16.msra.mxu0 %v487
  %587 = vmatprep.subr.bf16.mxu0 0
  %588 = vmatpush1.bf16.msra.mxu0 %v488
  %589 = vmatprep.subr.bf16.mxu0 0
  %590 = vmatpush1.bf16.msra.mxu0 %v489
  %591 = vmatprep.subr.bf16.mxu0 0
  %592 = vmatpush1.bf16.msra.mxu0 %v490
  %593 = vmatprep.subr.bf16.mxu0 0
  %594 = vmatpush1.bf16.msra.mxu0 %v491
  %595 = vmatprep.subr.bf16.mxu0 0
  %596 = vmatpush1.bf16.msra.mxu0 %v492
  %597 = vmatprep.subr.bf16.mxu0 0
  %598 = vmatpush1.bf16.msra.mxu0 %v493
  %599 = vmatprep.subr.bf16.mxu0 0
  %600 = vmatpush1.bf16.msra.mxu0 %v494
  %601 = vmatprep.subr.bf16.mxu0 0
  %602 = vmatpush1.bf16.msra.mxu0 %v495
  %603 = vmatprep.subr.bf16.mxu0 0
  %604 = vmatpush1.bf16.msra.mxu0 %v496
  %605 = vmatprep.subr.bf16.mxu0 0
  %606 = vmatpush1.bf16.msra.mxu0 %v497
  %607 = vmatprep.subr.bf16.mxu0 0
  %608 = vmatpush1.bf16.msra.mxu0 %v498
  %609 = vmatprep.subr.bf16.mxu0 0
  %610 = vmatpush1.bf16.msra.mxu0 %v499
  %611 = vmatprep.subr.bf16.mxu0 0
  %612 = vmatpush1.bf16.msra.mxu0 %v500
  %613 = vmatprep.subr.bf16.mxu0 0
  %614 = vmatpush1.bf16.msra.mxu0 %v501
  %615 = vmatprep.mubr.bf16.mxu0 %v271
  %616 = vmatmul.mubr.bf16.gmra.mrb[0].mxu0 %v270
  %v617 = vpop.f32.mrb[0].mxu0
  %v618 = vadd.f32 %v140, %v617
  %v619 = vpop.f32.mrb[0].mxu0
  %v620 = vpop.f32.mrb[0].mxu0
  %v621 = vadd.f32 %v140, %v620
  %v622 = vpop.f32.mrb[0].mxu0
  %623 = vmatprep.mubr.bf16.mxu0 %v276
  %624 = vmatmul.mubr.bf16.gmra.mrb[0].mxu0 %v275
  %v625 = vpop.f32.mrb[0].mxu0
  %v626 = vadd.f32 %v140, %v625
  %v627 = vpop.f32.mrb[0].mxu0
  %v628 = vpop.f32.mrb[0].mxu0
  %v629 = vadd.f32 %v140, %v628
  %v630 = vpop.f32.mrb[0].mxu0
  %631 = vmatprep.mubr.bf16.mxu0 %v281
  %632 = vmatmul.mubr.bf16.gmra.mrb[0].mxu0 %v280
  %v633 = vpop.f32.mrb[0].mxu0
  %v634 = vadd.f32 %v140, %v633
  %v635 = vpop.f32.mrb[0].mxu0
  %v636 = vpop.f32.mrb[0].mxu0
  %v637 = vadd.f32 %v140, %v636
  %v638 = vpop.f32.mrb[0].mxu0
  %639 = vmatprep.mubr.bf16.mxu0 %v286
  %640 = vmatmul.mubr.bf16.gmra.mrb[0].mxu0 %v285
  %v641 = vpop.f32.mrb[0].mxu0
  %v642 = vadd.f32 %v140, %v641
  %v643 = vpop.f32.mrb[0].mxu0
  %v644 = vpop.f32.mrb[0].mxu0
  %v645 = vadd.f32 %v140, %v644
  %v646 = vpop.f32.mrb[0].mxu0
  %647 = vmatprep.mubr.bf16.mxu0 %v291
  %648 = vmatmul.mubr.bf16.gmra.mrb[0].mxu0 %v290
  %v649 = vpop.f32.mrb[0].mxu0
  %v650 = vadd.f32 %v140, %v649
  %v651 = vpop.f32.mrb[0].mxu0
  %v652 = vpop.f32.mrb[0].mxu0
  %v653 = vadd.f32 %v140, %v652
  %v654 = vpop.f32.mrb[0].mxu0
  %655 = vmatprep.mubr.bf16.mxu0 %v296
  %656 = vmatmul.mubr.bf16.gmra.mrb[0].mxu0 %v295
  %v657 = vpop.f32.mrb[0].mxu0
  %v658 = vadd.f32 %v140, %v657
  %v659 = vpop.f32.mrb[0].mxu0
  %v660 = vpop.f32.mrb[0].mxu0
  %v661 = vadd.f32 %v140, %v660
  %v662 = vpop.f32.mrb[0].mxu0
  %663 = vmatprep.mubr.bf16.mxu0 %v301
  %664 = vmatmul.mubr.bf16.gmra.mrb[0].mxu0 %v300
  %v665 = vpop.f32.mrb[0].mxu0
  %v666 = vadd.f32 %v140, %v665
  %v667 = vpop.f32.mrb[0].mxu0
  %v668 = vpop.f32.mrb[0].mxu0
  %v669 = vadd.f32 %v140, %v668
  %v670 = vpop.f32.mrb[0].mxu0
  %671 = vmatprep.mubr.bf16.mxu0 %v306
  %672 = vmatmul.mubr.bf16.gmra.mrb[0].mxu0 %v305
  %v673 = vpop.f32.mrb[0].mxu0
  %v674 = vadd.f32 %v140, %v673
  %v675 = vpop.f32.mrb[0].mxu0
  %v676 = vpop.f32.mrb[0].mxu0
  %v677 = vadd.f32 %v140, %v676
  %v678 = vpop.f32.mrb[0].mxu0
  %679 = vdwg.mxu0
  %680 = vmatprep.subr.bf16.mxu0 0
  %681 = vmatpush1.bf16.msra.mxu0 %v502
  %682 = vmatprep.subr.bf16.mxu0 0
  %683 = vmatpush1.bf16.msra.mxu0 %v503
  %684 = vmatprep.subr.bf16.mxu0 0
  %685 = vmatpush1.bf16.msra.mxu0 %v504
  %686 = vmatprep.subr.bf16.mxu0 0
  %687 = vmatpush1.bf16.msra.mxu0 %v505
  %688 = vmatprep.subr.bf16.mxu0 0
  %689 = vmatpush1.bf16.msra.mxu0 %v506
  %690 = vmatprep.subr.bf16.mxu0 0
  %691 = vmatpush1.bf16.msra.mxu0 %v507
  %692 = vmatprep.subr.bf16.mxu0 0
  %693 = vmatpush1.bf16.msra.mxu0 %v508
  %694 = vmatprep.subr.bf16.mxu0 0
  %695 = vmatpush1.bf16.msra.mxu0 %v509
  %696 = vmatprep.subr.bf16.mxu0 0
  %697 = vmatpush1.bf16.msra.mxu0 %v510
  %698 = vmatprep.subr.bf16.mxu0 0
  %699 = vmatpush1.bf16.msra.mxu0 %v511
  %700 = vmatprep.subr.bf16.mxu0 0
  %701 = vmatpush1.bf16.msra.mxu0 %v512
  %702 = vmatprep.subr.bf16.mxu0 0
  %703 = vmatpush1.bf16.msra.mxu0 %v513
  %704 = vmatprep.subr.bf16.mxu0 0
  %705 = vmatpush1.bf16.msra.mxu0 %v514
  %706 = vmatprep.subr.bf16.mxu0 0
  %707 = vmatpush1.bf16.msra.mxu0 %v515
  %708 = vmatprep.subr.bf16.mxu0 0
  %709 = vmatpush1.bf16.msra.mxu0 %v516
  %710 = vmatprep.subr.bf16.mxu0 0
  %711 = vmatpush1.bf16.msra.mxu0 %v517
  %712 = vmatprep.mubr.bf16.mxu0 %v273
  %713 = vmatmul.mubr.bf16.gmra.mrb[0].mxu0 %v272
  %v714 = vpop.f32.mrb[0].mxu0
  %v715 = vadd.f32 %v618, %v714
  %v716 = vpop.f32.mrb[0].mxu0
  %v717 = vpop.f32.mrb[0].mxu0
  %v718 = vadd.f32 %v621, %v717
  %v719 = vpop.f32.mrb[0].mxu0
  %720 = vmatprep.mubr.bf16.mxu0 %v278
  %721 = vmatmul.mubr.bf16.gmra.mrb[0].mxu0 %v277
  %v722 = vpop.f32.mrb[0].mxu0
  %v723 = vadd.f32 %v626, %v722
  %v724 = vpop.f32.mrb[0].mxu0
  %v725 = vpop.f32.mrb[0].mxu0
  %v726 = vadd.f32 %v629, %v725
  %v727 = vpop.f32.mrb[0].mxu0
  %728 = vmatprep.mubr.bf16.mxu0 %v283
  %729 = vmatmul.mubr.bf16.gmra.mrb[0].mxu0 %v282
  %v730 = vpop.f32.mrb[0].mxu0
  %v731 = vadd.f32 %v634, %v730
  %v732 = vpop.f32.mrb[0].mxu0
  %v733 = vpop.f32.mrb[0].mxu0
  %v734 = vadd.f32 %v637, %v733
  %v735 = vpop.f32.mrb[0].mxu0
  %736 = vmatprep.mubr.bf16.mxu0 %v288
  %737 = vmatmul.mubr.bf16.gmra.mrb[0].mxu0 %v287
  %v738 = vpop.f32.mrb[0].mxu0
  %v739 = vadd.f32 %v642, %v738
  %v740 = vpop.f32.mrb[0].mxu0
  %v741 = vpop.f32.mrb[0].mxu0
  %v742 = vadd.f32 %v645, %v741
  %v743 = vpop.f32.mrb[0].mxu0
  %744 = vmatprep.mubr.bf16.mxu0 %v293
  %745 = vmatmul.mubr.bf16.gmra.mrb[0].mxu0 %v292
  %v746 = vpop.f32.mrb[0].mxu0
  %v747 = vadd.f32 %v650, %v746
  %v748 = vpop.f32.mrb[0].mxu0
  %v749 = vpop.f32.mrb[0].mxu0
  %v750 = vadd.f32 %v653, %v749
  %v751 = vpop.f32.mrb[0].mxu0
  %752 = vmatprep.mubr.bf16.mxu0 %v298
  %753 = vmatmul.mubr.bf16.gmra.mrb[0].mxu0 %v297
  %v754 = vpop.f32.mrb[0].mxu0
  %v755 = vadd.f32 %v658, %v754
  %v756 = vpop.f32.mrb[0].mxu0
  %v757 = vpop.f32.mrb[0].mxu0
  %v758 = vadd.f32 %v661, %v757
  %v759 = vpop.f32.mrb[0].mxu0
  %760 = vmatprep.mubr.bf16.mxu0 %v303
  %761 = vmatmul.mubr.bf16.gmra.mrb[0].mxu0 %v302
  %v762 = vpop.f32.mrb[0].mxu0
  %v763 = vadd.f32 %v666, %v762
  %v764 = vpop.f32.mrb[0].mxu0
  %v765 = vpop.f32.mrb[0].mxu0
  %v766 = vadd.f32 %v669, %v765
  %v767 = vpop.f32.mrb[0].mxu0
  %768 = vmatprep.mubr.bf16.mxu0 %v308
  %769 = vmatmul.mubr.bf16.gmra.mrb[0].mxu0 %v307
  %v770 = vpop.f32.mrb[0].mxu0
  %v771 = vadd.f32 %v674, %v770
  %v772 = vpop.f32.mrb[0].mxu0
  %v773 = vpop.f32.mrb[0].mxu0
  %v774 = vadd.f32 %v677, %v773
  %v775 = vpop.f32.mrb[0].mxu0
  %776 = vdwg.mxu0
  %777 = vmatprep.subr.bf16.mxu0 0
  %778 = vmatpush1.bf16.msra.mxu0 %v518
  %779 = vmatprep.subr.bf16.mxu0 0
  %780 = vmatpush1.bf16.msra.mxu0 %v519
  %781 = vmatprep.subr.bf16.mxu0 0
  %782 = vmatpush1.bf16.msra.mxu0 %v520
  %783 = vmatprep.subr.bf16.mxu0 0
  %784 = vmatpush1.bf16.msra.mxu0 %v521
  %785 = vmatprep.subr.bf16.mxu0 0
  %786 = vmatpush1.bf16.msra.mxu0 0
  %787 = vmatprep.subr.bf16.mxu0 0
  %788 = vmatpush1.bf16.msra.mxu0 0
  %789 = vmatprep.subr.bf16.mxu0 0
  %790 = vmatpush1.bf16.msra.mxu0 0
  %791 = vmatprep.subr.bf16.mxu0 0
  %792 = vmatpush1.bf16.msra.mxu0 0
  %793 = vmatprep.subr.bf16.mxu0 0
  %794 = vmatpush1.bf16.msra.mxu0 0
  %795 = vmatprep.subr.bf16.mxu0 0
  %796 = vmatpush1.bf16.msra.mxu0 0
  %797 = vmatprep.subr.bf16.mxu0 0
  %798 = vmatpush1.bf16.msra.mxu0 0
  %799 = vmatprep.subr.bf16.mxu0 0
  %800 = vmatpush1.bf16.msra.mxu0 0
  %801 = vmatprep.subr.bf16.mxu0 0
  %802 = vmatpush1.bf16.msra.mxu0 0
  %803 = vmatprep.subr.bf16.mxu0 0
  %804 = vmatpush1.bf16.msra.mxu0 0
  %805 = vmatprep.subr.bf16.mxu0 0
  %806 = vmatpush1.bf16.msra.mxu0 0
  %807 = vmatprep.subr.bf16.mxu0 0
  %808 = vmatpush1.bf16.msra.mxu0 0
  %809 = vmatprep.mubr.bf16.mxu0 0
  %810 = vmatmul.mubr.bf16.gmra.mrb[0].mxu0 %v560
  %v811 = vpop.f32.mrb[0].mxu0
  %v812 = vadd.f32 %v715, %v811
  %v813 = vpop.f32.mrb[0].mxu0
  %v814 = vpop.f32.mrb[0].mxu0
  %v815 = vadd.f32 %v718, %v814
  %v816 = vpop.f32.mrb[0].mxu0
  %817 = vmatprep.mubr.bf16.mxu0 0
  %818 = vmatmul.mubr.bf16.gmra.mrb[0].mxu0 %v563
  %v819 = vpop.f32.mrb[0].mxu0
  %v820 = vadd.f32 %v723, %v819
  %v821 = vpop.f32.mrb[0].mxu0
  %v822 = vpop.f32.mrb[0].mxu0
  %v823 = vadd.f32 %v726, %v822
  %v824 = vpop.f32.mrb[0].mxu0
  %825 = vmatprep.mubr.bf16.mxu0 0
  %826 = vmatmul.mubr.bf16.gmra.mrb[0].mxu0 %v566
  %v827 = vpop.f32.mrb[0].mxu0
  %v828 = vadd.f32 %v731, %v827
  %v829 = vpop.f32.mrb[0].mxu0
  %v830 = vpop.f32.mrb[0].mxu0
  %v831 = vadd.f32 %v734, %v830
  %v832 = vpop.f32.mrb[0].mxu0
  %833 = vmatprep.mubr.bf16.mxu0 0
  %834 = vmatmul.mubr.bf16.gmra.mrb[0].mxu0 %v569
  %v835 = vpop.f32.mrb[0].mxu0
  %v836 = vadd.f32 %v739, %v835
  %v837 = vpop.f32.mrb[0].mxu0
  %v838 = vpop.f32.mrb[0].mxu0
  %v839 = vadd.f32 %v742, %v838
  %v840 = vpop.f32.mrb[0].mxu0
  %841 = vmatprep.mubr.bf16.mxu0 0
  %842 = vmatmul.mubr.bf16.gmra.mrb[0].mxu0 %v572
  %v843 = vpop.f32.mrb[0].mxu0
  %v844 = vadd.f32 %v747, %v843
  %v845 = vpop.f32.mrb[0].mxu0
  %v846 = vpop.f32.mrb[0].mxu0
  %v847 = vadd.f32 %v750, %v846
  %v848 = vpop.f32.mrb[0].mxu0
  %849 = vmatprep.mubr.bf16.mxu0 0
  %850 = vmatmul.mubr.bf16.gmra.mrb[0].mxu0 %v575
  %v851 = vpop.f32.mrb[0].mxu0
  %v852 = vadd.f32 %v755, %v851
  %v853 = vpop.f32.mrb[0].mxu0
  %v854 = vpop.f32.mrb[0].mxu0
  %v855 = vadd.f32 %v758, %v854
  %v856 = vpop.f32.mrb[0].mxu0
  %857 = vmatprep.mubr.bf16.mxu0 0
  %858 = vmatmul.mubr.bf16.gmra.mrb[0].mxu0 %v578
  %v859 = vpop.f32.mrb[0].mxu0
  %v860 = vadd.f32 %v763, %v859
  %v861 = vpop.f32.mrb[0].mxu0
  %v862 = vpop.f32.mrb[0].mxu0
  %v863 = vadd.f32 %v766, %v862
  %v864 = vpop.f32.mrb[0].mxu0
  %865 = vmatprep.mubr.bf16.mxu0 0
  %866 = vmatmul.mubr.bf16.gmra.mrb[0].mxu0 %v581
  %v867 = vpop.f32.mrb[0].mxu0
  %v868 = vadd.f32 %v771, %v867
  %v869 = vpop.f32.mrb[0].mxu0
  %v870 = vpop.f32.mrb[0].mxu0
  %v871 = vadd.f32 %v774, %v870
  %v872 = vpop.f32.mrb[0].mxu0
  %873 = vdwg.mxu0
  %v874 = vmax.f32 %v812, 0.0
  %v875 = vmax.f32 %v815, 0.0
  %v876 = vmax.f32 %v820, 0.0
  %v877 = vmax.f32 %v823, 0.0
  %v878 = vmax.f32 %v828, 0.0
  %v879 = vmax.f32 %v831, 0.0
  %v880 = vmax.f32 %v836, 0.0
  %v881 = vmax.f32 %v839, 0.0
  %v882 = vmax.f32 %v844, 0.0
  %v883 = vmax.f32 %v847, 0.0
  %v884 = vmax.f32 %v852, 0.0
  %v885 = vmax.f32 %v855, 0.0
  %v886 = vmax.f32 %v860, 0.0
  %v887 = vmax.f32 %v863, 0.0
  %v888 = vmax.f32 %v868, 0.0
  %v889 = vmax.f32 %v871, 0.0
  %v890 = vpack.c.bf16 %v875, %v874
  %v891 = vpack.c.bf16 %v877, %v876
  %v892 = vpack.c.bf16 %v879, %v878
  %v893 = vpack.c.bf16 %v881, %v880
  %v894 = vpack.c.bf16 %v883, %v882
  %v895 = vpack.c.bf16 %v885, %v884
  %v896 = vpack.c.bf16 %v887, %v886
  %v897 = vpack.c.bf16 %v889, %v888
  %v906 = vunpack.c.l.b16 %v890
  %v907 = vunpack.c.h.b16 %v890
  %v908 = vunpack.c.l.b16 %v891
  %v909 = vunpack.c.h.b16 %v891
  %v910 = vunpack.c.l.b16 %v892
  %v911 = vunpack.c.h.b16 %v892
  %v912 = vunpack.c.l.b16 %v893
  %v913 = vunpack.c.h.b16 %v893
  %v914 = vunpack.c.l.b16 %v894
  %v915 = vunpack.c.h.b16 %v894
  %v916 = vunpack.c.l.b16 %v895
  %v917 = vunpack.c.h.b16 %v895
  %v918 = vunpack.c.l.b16 %v896
  %v919 = vunpack.c.h.b16 %v896
  %v920 = vunpack.c.l.b16 %v897
  %v921 = vunpack.c.h.b16 %v897
  %v922 = vpack.c.b16 %v906, %v906
  %v923 = vpack.c.b16 %v907, %v907
  %v924 = vpack.c.b16 %v908, %v908
  %v925 = vpack.c.b16 %v909, %v909
  %v926 = vpack.c.b16 %v910, %v910
  %v927 = vpack.c.b16 %v911, %v911
  %v928 = vpack.c.b16 %v912, %v912
  %v929 = vpack.c.b16 %v913, %v913
  %v930 = vpack.c.b16 %v914, %v914
  %v931 = vpack.c.b16 %v915, %v915
  %v932 = vpack.c.b16 %v916, %v916
  %v933 = vpack.c.b16 %v917, %v917
  %v934 = vpack.c.b16 %v918, %v918
  %v935 = vpack.c.b16 %v919, %v919
  %v936 = vpack.c.b16 %v920, %v920
  %v937 = vpack.c.b16 %v921, %v921
  %954 = vst [vmem:[%s3] sm:$0xf] %v922
  %955 = vst [vmem:[%s3 + $0x4] sm:$0xf] %v923
  %956 = vst [vmem:[%s3 + $0x8] sm:$0xf] %v924
  %957 = vst [vmem:[%s3 + $0xc] sm:$0xf] %v925
  %958 = vst [vmem:[%s3 + $0x10] sm:$0xf] %v926
  %959 = vst [vmem:[%s3 + $0x14] sm:$0xf] %v927
  %960 = vst [vmem:[%s3 + $0x18] sm:$0xf] %v928
  %961 = vst [vmem:[%s3 + $0x1c] sm:$0xf] %v929
  %962 = vst [vmem:[%s3 + $0x20] sm:$0xf] %v930
  %963 = vst [vmem:[%s3 + $0x24] sm:$0xf] %v931
  %964 = vst [vmem:[%s3 + $0x28] sm:$0xf] %v932
  %965 = vst [vmem:[%s3 + $0x2c] sm:$0xf] %v933
  %966 = vst [vmem:[%s3 + $0x30] sm:$0xf] %v934
  %967 = vst [vmem:[%s3 + $0x34] sm:$0xf] %v935
  %968 = vst [vmem:[%s3 + $0x38] sm:$0xf] %v936
  %969 = vst [vmem:[%s3 + $0x3c] sm:$0xf] %v937
  // Predicated region
  $region14: #{vae_forward.15} parent=0 // pred_check
    _
  $region15: #{vae_forward.15} parent=0 // pred_check_branch
    %971 = sbr.rel (0) target = $region17
  $region16: #{vae_forward.15} parent=0 // pred_region
    _
  $region17: #{vae_forward.15} parent=0 // pred_fallthru
    _
  // Predicated region
  $region18: #{vae_forward.15} parent=0 // pred_check
    _
  $region19: #{vae_forward.15} parent=0 // pred_check_branch
    %973 = sbr.rel (0) target = $region21
  $region20: #{vae_forward.15} parent=0 // pred_region
    _
  $region21: #{vae_forward.15} parent=0 // pred_fallthru
    _

// kernel: vae_forward.16
$region0: #{vae_forward.16}
  #allocation0 [shape = 'u32[]', space=smem, size = 0x4, offset = 0x4, fixed_abs, tag = 'smem constant byte address 0x4 - core index']
  #allocation1 [shape = 'u32[144,128]{1,0:T(1,128)}', space=vmem, size = 0x12000, scoped, tag = 'internal scratch']
  %s0 = inlined_call_operand.vmem [shape: bf16[512,288], index: 0, kind: input, shape index: {}]
  %s1 = inlined_call_operand.vmem [shape: bf16[288,128], index: 1, kind: input, shape index: {}]
  %s2 = inlined_call_operand.vmem [shape: f32[1,128], index: 2, kind: input, shape index: {}]
  %s3 = inlined_call_operand.vmem [shape: bf16[512,128], index: 3, kind: output, shape index: {}]
  %s4 = sld [smem:[#allocation0]]
  $region45: #{vae_forward.16} parent=0
    _
  %s6 = ssub.s32 1, %s4
  %s7 = scalar_select 0, %s6, %s4
  loop: start=0, step=1, limit=4
  $region2: #{vae_forward.16} parent=0 // loop_pre_header
    _
  $region3: #{vae_forward.16} parent=0 // loop_header
    %s9 = sphi 0, %s13
    %p10 = scmp.ge.s32.totalorder %s9, 4
    %s19 = sphi 0, %s21
    %s22 = sphi 0, %s19
    %s23 = sphi 0, %s22
    %s39 = sphi 0, %s23
    %s43 = sphi 0, %s43
    %s45 = sphi 0, %s43
    %s46 = sphi 0, %s45
    %s60 = sphi 0, %s46
    %s64 = sphi 0, %s64
    %s66 = sphi 0, %s64
    %s67 = sphi 0, %s66
    %s81 = sphi 0, %s67
    %s87 = sphi 0, %s89
    %s90 = sphi 0, %s87
    %s91 = sphi 0, %s90
    %s107 = sphi 0, %s91
  $region4: #{vae_forward.16} parent=0 // loop_header_branch
    %12 = sbr.rel (%p10) target = $region8
  $region5: #{vae_forward.16} parent=0 // loop_body
    %s14 = ssub.s32 %s9, 1
    %s15 = ssub.s32 %s9, 2
    %s16 = sadd.s32 %s9, 1
    %s17 = ssub.s32 %s9, %s16
    %p18 = scmp.eq.s32.totalorder %s17, 0
    %s20 = sadd.s32 %s19, 1
    %s21 = scalar_select %p18, %s19, %s20
    %p24 = pneg %p18
    %p25 = scmp.eq.s32.totalorder %s9, 1
    %p26 = por %p24, %p25
    %p27 = scmp.ne.s32.totalorder %s19, %s22
    %p28 = scmp.eq.s32.totalorder %s9, 0
    %p29 = por %p27, %p28
    %p30 = scmp.ne.s32.totalorder %s19, %s22
    %p31 = scmp.eq.s32.totalorder %s14, 1
    %p32 = por %p30, %p31
    %p33 = scmp.ne.s32.totalorder %s22, %s23
    %p34 = scmp.eq.s32.totalorder %s14, 0
    %p35 = por %p33, %p34
    %p36 = scmp.ne.s32.totalorder %s22, %s23
    %p37 = scmp.eq.s32.totalorder %s15, 1
    %p38 = por %p36, %p37
    %p40 = scmp.ne.s32.totalorder %s23, %s39
    %p41 = scmp.eq.s32.totalorder %s15, 0
    %p42 = por %p40, %p41
    %s44 = sadd.s32 %s43, 1
    %p47 = scmp.eq.s32.totalorder %s9, 1
    %p48 = scmp.ne.s32.totalorder %s43, %s45
    %p49 = scmp.eq.s32.totalorder %s9, 0
    %p50 = por %p48, %p49
    %p51 = scmp.ne.s32.totalorder %s43, %s45
    %p52 = scmp.eq.s32.totalorder %s14, 1
    %p53 = por %p51, %p52
    %p54 = scmp.ne.s32.totalorder %s45, %s46
    %p55 = scmp.eq.s32.totalorder %s14, 0
    %p56 = por %p54, %p55
    %p57 = scmp.ne.s32.totalorder %s45, %s46
    %p58 = scmp.eq.s32.totalorder %s15, 1
    %p59 = por %p57, %p58
    %p61 = scmp.ne.s32.totalorder %s46, %s60
    %p62 = scmp.eq.s32.totalorder %s15, 0
    %p63 = por %p61, %p62
    %s65 = sadd.s32 %s64, 1
    %p68 = scmp.eq.s32.totalorder %s9, 1
    %p69 = scmp.ne.s32.totalorder %s64, %s66
    %p70 = scmp.eq.s32.totalorder %s9, 0
    %p71 = por %p69, %p70
    %p72 = scmp.ne.s32.totalorder %s64, %s66
    %p73 = scmp.eq.s32.totalorder %s14, 1
    %p74 = por %p72, %p73
    %p75 = scmp.ne.s32.totalorder %s66, %s67
    %p76 = scmp.eq.s32.totalorder %s14, 0
    %p77 = por %p75, %p76
    %p78 = scmp.ne.s32.totalorder %s66, %s67
    %p79 = scmp.eq.s32.totalorder %s15, 1
    %p80 = por %p78, %p79
    %p82 = scmp.ne.s32.totalorder %s67, %s81
    %p83 = scmp.eq.s32.totalorder %s15, 0
    %p84 = por %p82, %p83
    %s85 = ssub.s32 %s9, %s16
    %p86 = scmp.eq.s32.totalorder %s85, 0
    %s88 = sadd.s32 %s87, 1
    %s89 = scalar_select %p86, %s87, %s88
    %p92 = pneg %p86
    %p93 = scmp.eq.s32.totalorder %s9, 1
    %p94 = por %p92, %p93
    %p95 = scmp.ne.s32.totalorder %s87, %s90
    %p96 = scmp.eq.s32.totalorder %s9, 0
    %p97 = por %p95, %p96
    %p98 = scmp.ne.s32.totalorder %s87, %s90
    %p99 = scmp.eq.s32.totalorder %s14, 1
    %p100 = por %p98, %p99
    %p101 = scmp.ne.s32.totalorder %s90, %s91
    %p102 = scmp.eq.s32.totalorder %s14, 0
    %p103 = por %p101, %p102
    %p104 = scmp.ne.s32.totalorder %s90, %s91
    %p105 = scmp.eq.s32.totalorder %s15, 1
    %p106 = por %p104, %p105
    %p108 = scmp.ne.s32.totalorder %s91, %s107
    %p109 = scmp.eq.s32.totalorder %s15, 0
    %p110 = por %p108, %p109
    %p111 = scmp.le.s32.totalorder 1, %s9
    %p112 = scmp.lt.s32.totalorder %s9, 3
    %p113 = pnand %p111, %p112
    %p114 = pneg %p113
    // Predicated region
    $region9: #{vae_forward.16} parent=5 // pred_check
      _
    $region10: #{vae_forward.16} parent=5 // pred_check_branch
      %116 = sbr.rel (%p113) target = $region12
    $region11: #{vae_forward.16} parent=5 // pred_region
      %s117 = ssub.s32 %s9, 1
      // Predicated region
      $region13: #{vae_forward.16} parent=11 // pred_check
        %p118 = pneg %p56
      $region14: #{vae_forward.16} parent=11 // pred_check_branch
        %120 = sbr.rel (%p118) target = $region16
      $region15: #{vae_forward.16} parent=11 // pred_region
        _
      $region16: #{vae_forward.16} parent=11 // pred_fallthru
        _
      // Predicated region
      $region17: #{vae_forward.16} parent=11 // pred_check
        %p121 = pneg %p77
      $region18: #{vae_forward.16} parent=11 // pred_check_branch
        %123 = sbr.rel (%p121) target = $region20
      $region19: #{vae_forward.16} parent=11 // pred_region
        _
      $region20: #{vae_forward.16} parent=11 // pred_fallthru
        _
    $region12: #{vae_forward.16} parent=5 // pred_fallthru
      _
    %p124 = scmp.lt.s32.totalorder %s9, 2
    // Predicated region
    $region21: #{vae_forward.16} parent=5 // pred_check
      %p125 = pneg %p124
    $region22: #{vae_forward.16} parent=5 // pred_check_branch
      %127 = sbr.rel (%p125) target = $region24
    $region23: #{vae_forward.16} parent=5 // pred_region
      // Predicated region
      $region25: #{vae_forward.16} parent=23 // pred_check
        %p128 = pneg %p29
      $region26: #{vae_forward.16} parent=23 // pred_check_branch
        %130 = sbr.rel (%p128) target = $region28
      $region27: #{vae_forward.16} parent=23 // pred_region
        %s131 = smul.u32 32, %s9
        %p132 = scmp.lt.s32.totalorder %s131, 63
        %s133 = scalar_select %p132, %s131, 63
        %s134 = smul.addr %s133, 3
        %s135 = smul.addr %s134, 4
        %s136 = scalar_lea.vmem %s0, %s135
        %s137 = smul.u32 32, %s9
      $region28: #{vae_forward.16} parent=23 // pred_fallthru
        _
    $region24: #{vae_forward.16} parent=5 // pred_fallthru
      _
    %p138 = scmp.le.s32.totalorder 1, %s9
    %p139 = scmp.lt.s32.totalorder %s9, 3
    %p140 = pnand %p138, %p139
    %p141 = pneg %p140
    // Predicated region
    $region29: #{vae_forward.16} parent=5 // pred_check
      _
    $region30: #{vae_forward.16} parent=5 // pred_check_branch
      %143 = sbr.rel (%p140) target = $region32
    $region31: #{vae_forward.16} parent=5 // pred_region
      %s144 = ssub.s32 %s9, 1
      %s145 = smul.u32 32, %s14
      %p146 = scmp.lt.s32.totalorder %s145, 63
      %s147 = scalar_select %p146, %s145, 63
      %s148 = smul.addr %s147, 3
      %s149 = smul.addr %s148, 4
      %s150 = scalar_lea.vmem %s0, %s149
      %p151 = pneg %p35
      %p152 = pneg %p32
      %p153 = pneg %p56
      %p154 = pneg %p53
      %p155 = pneg %p77
      %p156 = pneg %p74
      %p157 = pneg %p103
      %p158 = pneg %p100
      %s159 = smul.u32 32, %s14
      %p160 = scmp.lt.s32.totalorder %s159, 63
      %s161 = scalar_select %p160, %s159, 63
      %s162 = smul.addr %s161, 4
      %s163 = scalar_lea.vmem %s3, %s162
      %s164 = smul.u32 32, %s14
      %p165 = scmp.lt.s32.totalorder %s164, 63
      %s166 = scalar_select %p165, %s164, 63
      %s167 = smul.addr %s166, 3
      %s168 = smul.addr %s167, 4
      %s169 = scalar_lea.vmem %s0, %s168
      %s170 = smul.u32 32, %s14
      %s171 = smul.u32 32, %s14
      %p172 = scmp.lt.s32.totalorder %s171, 63
      %s173 = scalar_select %p172, %s171, 63
      %s174 = smul.addr %s173, 4
      %s175 = scalar_lea.vmem %s3, %s174
      %s176 = smul.u32 32, %s14
      %v178 = vld [vmem:[%s169] sm:$0xff]
      %v179 = vld [vmem:[%s169 + $0x8] sm:$0xf]
      %v180 = vld [vmem:[%s169 + $0xc] sm:$0xff]
      %v181 = vld [vmem:[%s169 + $0x14] sm:$0xf]
      %v182 = vld [vmem:[%s169 + $0x18] sm:$0xff]
      %v183 = vld [vmem:[%s169 + $0x20] sm:$0xf]
      %v184 = vld [vmem:[%s169 + $0x24] sm:$0xff]
      %v185 = vld [vmem:[%s169 + $0x2c] sm:$0xf]
      %v186 = vld [vmem:[%s169 + $0x30] sm:$0xff]
      %v187 = vld [vmem:[%s169 + $0x38] sm:$0xf]
      %v188 = vld [vmem:[%s169 + $0x3c] sm:$0xff]
      %v189 = vld [vmem:[%s169 + $0x44] sm:$0xf]
      %v190 = vld [vmem:[%s169 + $0x48] sm:$0xff]
      %v191 = vld [vmem:[%s169 + $0x50] sm:$0xf]
      %v192 = vld [vmem:[%s169 + $0x54] sm:$0xff]
      %v193 = vld [vmem:[%s169 + $0x5c] sm:$0xf]
      %v194 = vld [vmem:[%s169 + $0x60] sm:$0xff]
      %v195 = vld [vmem:[%s169 + $0x68] sm:$0xf]
      %v196 = vld [vmem:[%s169 + $0x6c] sm:$0xff]
      %v197 = vld [vmem:[%s169 + $0x74] sm:$0xf]
      %v198 = vld [vmem:[%s169 + $0x78] sm:$0xff]
      %v199 = vld [vmem:[%s169 + $0x80] sm:$0xf]
      %v200 = vld [vmem:[%s169 + $0x84] sm:$0xff]
      %v201 = vld [vmem:[%s169 + $0x8c] sm:$0xf]
      %v202 = vld [vmem:[%s169 + $0x90] sm:$0xff]
      %v203 = vld [vmem:[%s169 + $0x98] sm:$0xf]
      %v204 = vld [vmem:[%s169 + $0x9c] sm:$0xff]
      %v205 = vld [vmem:[%s169 + $0xa4] sm:$0xf]
      %v206 = vld [vmem:[%s169 + $0xa8] sm:$0xff]
      %v207 = vld [vmem:[%s169 + $0xb0] sm:$0xf]
      %v208 = vld [vmem:[%s169 + $0xb4] sm:$0xff]
      %v209 = vld [vmem:[%s169 + $0xbc] sm:$0xf]
      %v210 = vld [vmem:[%s169 + $0xc0] sm:$0xff]
      %v211 = vld [vmem:[%s169 + $0xc8] sm:$0xf]
      %v212 = vld [vmem:[%s169 + $0xcc] sm:$0xff]
      %v213 = vld [vmem:[%s169 + $0xd4] sm:$0xf]
      %v214 = vld [vmem:[%s169 + $0xd8] sm:$0xff]
      %v215 = vld [vmem:[%s169 + $0xe0] sm:$0xf]
      %v216 = vld [vmem:[%s169 + $0xe4] sm:$0xff]
      %v217 = vld [vmem:[%s169 + $0xec] sm:$0xf]
      %v218 = vld [vmem:[%s169 + $0xf0] sm:$0xff]
      %v219 = vld [vmem:[%s169 + $0xf8] sm:$0xf]
      %v220 = vld [vmem:[%s169 + $0xfc] sm:$0xff]
      %v221 = vld [vmem:[%s169 + $0x104] sm:$0xf]
      %v222 = vld [vmem:[%s169 + $0x108] sm:$0xff]
      %v223 = vld [vmem:[%s169 + $0x110] sm:$0xf]
      %v224 = vld [vmem:[%s169 + $0x114] sm:$0xff]
      %v225 = vld [vmem:[%s169 + $0x11c] sm:$0xf]
      %v226 = vld [vmem:[%s169 + $0x120] sm:$0xff]
      %v227 = vld [vmem:[%s169 + $0x128] sm:$0xf]
      %v228 = vld [vmem:[%s169 + $0x12c] sm:$0xff]
      %v229 = vld [vmem:[%s169 + $0x134] sm:$0xf]
      %v230 = vld [vmem:[%s169 + $0x138] sm:$0xff]
      %v231 = vld [vmem:[%s169 + $0x140] sm:$0xf]
      %v232 = vld [vmem:[%s169 + $0x144] sm:$0xff]
      %v233 = vld [vmem:[%s169 + $0x14c] sm:$0xf]
      %v234 = vld [vmem:[%s169 + $0x150] sm:$0xff]
      %v235 = vld [vmem:[%s169 + $0x158] sm:$0xf]
      %v236 = vld [vmem:[%s169 + $0x15c] sm:$0xff]
      %v237 = vld [vmem:[%s169 + $0x164] sm:$0xf]
      %v238 = vld [vmem:[%s169 + $0x168] sm:$0xff]
      %v239 = vld [vmem:[%s169 + $0x170] sm:$0xf]
      %v240 = vld [vmem:[%s169 + $0x174] sm:$0xff]
      %v241 = vld [vmem:[%s169 + $0x17c] sm:$0xf]
      %v242 = vld [vmem:[%s1] sm:$0xf]
      %v243 = vld [vmem:[%s1 + $0x4] sm:$0xf]
      %v244 = vld [vmem:[%s1 + $0x8] sm:$0xf]
      %v245 = vld [vmem:[%s1 + $0xc] sm:$0xf]
      %v246 = vld [vmem:[%s1 + $0x10] sm:$0xf]
      %v247 = vld [vmem:[%s1 + $0x14] sm:$0xf]
      %v248 = vld [vmem:[%s1 + $0x18] sm:$0xf]
      %v249 = vld [vmem:[%s1 + $0x1c] sm:$0xf]
      %v250 = vld [vmem:[%s1 + $0x20] sm:$0xf]
      %v251 = vld [vmem:[%s1 + $0x24] sm:$0xf]
      %v252 = vld [vmem:[%s1 + $0x28] sm:$0xf]
      %v253 = vld [vmem:[%s1 + $0x2c] sm:$0xf]
      %v254 = vld [vmem:[%s1 + $0x30] sm:$0xf]
      %v255 = vld [vmem:[%s1 + $0x34] sm:$0xf]
      %v256 = vld [vmem:[%s1 + $0x38] sm:$0xf]
      %v257 = vld [vmem:[%s1 + $0x3c] sm:$0xf]
      %v258 = vld [vmem:[%s1 + $0x40] sm:$0xf]
      %v259 = vld [vmem:[%s1 + $0x44] sm:$0xf]
      %v260 = vld [vmem:[%s1 + $0x48] sm:$0xf]
      %v261 = vld [vmem:[%s1 + $0x4c] sm:$0xf]
      %v262 = vld [vmem:[%s1 + $0x50] sm:$0xf]
      %v263 = vld [vmem:[%s1 + $0x54] sm:$0xf]
      %v264 = vld [vmem:[%s1 + $0x58] sm:$0xf]
      %v265 = vld [vmem:[%s1 + $0x5c] sm:$0xf]
      %v266 = vld [vmem:[%s1 + $0x60] sm:$0xf]
      %v267 = vld [vmem:[%s1 + $0x64] sm:$0xf]
      %v268 = vld [vmem:[%s1 + $0x68] sm:$0xf]
      %v269 = vld [vmem:[%s1 + $0x6c] sm:$0xf]
      %v270 = vld [vmem:[%s1 + $0x70] sm:$0xf]
      %v271 = vld [vmem:[%s1 + $0x74] sm:$0xf]
      %v272 = vld [vmem:[%s1 + $0x78] sm:$0xf]
      %v273 = vld [vmem:[%s1 + $0x7c] sm:$0xf]
      %v274 = vld [vmem:[%s1 + $0x80] sm:$0xf]
      %v275 = vld [vmem:[%s1 + $0x84] sm:$0xf]
      %v276 = vld [vmem:[%s1 + $0x88] sm:$0xf]
      %v277 = vld [vmem:[%s1 + $0x8c] sm:$0xf]
      %v278 = vld [vmem:[%s2] sm:$0x1]
      %v280 = vlaneseq
      %v281 = vshrl.u32 %v280, 7
      %v282 = vsub.s32 0, %v281
      %v283 = vrot.slane %v278, %v282
      %v349 = vunpack.c.l.b16 %v178
      %v350 = vunpack.c.h.b16 %v178
      %v351 = vunpack.c.l.b16 %v179
      %v352 = vunpack.c.l.b16 %v180
      %v353 = vunpack.c.h.b16 %v180
      %v354 = vunpack.c.l.b16 %v181
      %v355 = vunpack.c.l.b16 %v182
      %v356 = vunpack.c.h.b16 %v182
      %v357 = vunpack.c.l.b16 %v183
      %v358 = vunpack.c.l.b16 %v184
      %v359 = vunpack.c.h.b16 %v184
      %v360 = vunpack.c.l.b16 %v185
      %v361 = vunpack.c.l.b16 %v186
      %v362 = vunpack.c.h.b16 %v186
      %v363 = vunpack.c.l.b16 %v187
      %v364 = vunpack.c.l.b16 %v188
      %v365 = vunpack.c.h.b16 %v188
      %v366 = vunpack.c.l.b16 %v189
      %v367 = vunpack.c.l.b16 %v190
      %v368 = vunpack.c.h.b16 %v190
      %v369 = vunpack.c.l.b16 %v191
      %v370 = vunpack.c.l.b16 %v192
      %v371 = vunpack.c.h.b16 %v192
      %v372 = vunpack.c.l.b16 %v193
      %v373 = vunpack.c.l.b16 %v194
      %v374 = vunpack.c.h.b16 %v194
      %v375 = vunpack.c.l.b16 %v195
      %v376 = vunpack.c.l.b16 %v196
      %v377 = vunpack.c.h.b16 %v196
      %v378 = vunpack.c.l.b16 %v197
      %v379 = vunpack.c.l.b16 %v198
      %v380 = vunpack.c.h.b16 %v198
      %v381 = vunpack.c.l.b16 %v199
      %v382 = vunpack.c.l.b16 %v200
      %v383 = vunpack.c.h.b16 %v200
      %v384 = vunpack.c.l.b16 %v201
      %v385 = vunpack.c.l.b16 %v202
      %v386 = vunpack.c.h.b16 %v202
      %v387 = vunpack.c.l.b16 %v203
      %v388 = vunpack.c.l.b16 %v204
      %v389 = vunpack.c.h.b16 %v204
      %v390 = vunpack.c.l.b16 %v205
      %v391 = vunpack.c.l.b16 %v206
      %v392 = vunpack.c.h.b16 %v206
      %v393 = vunpack.c.l.b16 %v207
      %v394 = vunpack.c.l.b16 %v208
      %v395 = vunpack.c.h.b16 %v208
      %v396 = vunpack.c.l.b16 %v209
      %v397 = vunpack.c.l.b16 %v210
      %v398 = vunpack.c.h.b16 %v210
      %v399 = vunpack.c.l.b16 %v211
      %v400 = vunpack.c.l.b16 %v212
      %v401 = vunpack.c.h.b16 %v212
      %v402 = vunpack.c.l.b16 %v213
      %v403 = vunpack.c.l.b16 %v214
      %v404 = vunpack.c.h.b16 %v214
      %v405 = vunpack.c.l.b16 %v215
      %v406 = vunpack.c.l.b16 %v216
      %v407 = vunpack.c.h.b16 %v216
      %v408 = vunpack.c.l.b16 %v217
      %v409 = vunpack.c.l.b16 %v218
      %v410 = vunpack.c.h.b16 %v218
      %v411 = vunpack.c.l.b16 %v219
      %v412 = vunpack.c.l.b16 %v220
      %v413 = vunpack.c.h.b16 %v220
      %v414 = vunpack.c.l.b16 %v221
      %v415 = vunpack.c.l.b16 %v222
      %v416 = vunpack.c.h.b16 %v222
      %v417 = vunpack.c.l.b16 %v223
      %v418 = vunpack.c.l.b16 %v224
      %v419 = vunpack.c.h.b16 %v224
      %v420 = vunpack.c.l.b16 %v225
      %v421 = vunpack.c.l.b16 %v226
      %v422 = vunpack.c.h.b16 %v226
      %v423 = vunpack.c.l.b16 %v227
      %v424 = vunpack.c.l.b16 %v228
      %v425 = vunpack.c.h.b16 %v228
      %v426 = vunpack.c.l.b16 %v229
      %v427 = vunpack.c.l.b16 %v230
      %v428 = vunpack.c.h.b16 %v230
      %v429 = vunpack.c.l.b16 %v231
      %v430 = vunpack.c.l.b16 %v232
      %v431 = vunpack.c.h.b16 %v232
      %v432 = vunpack.c.l.b16 %v233
      %v433 = vunpack.c.l.b16 %v234
      %v434 = vunpack.c.h.b16 %v234
      %v435 = vunpack.c.l.b16 %v235
      %v436 = vunpack.c.l.b16 %v236
      %v437 = vunpack.c.h.b16 %v236
      %v438 = vunpack.c.l.b16 %v237
      %v439 = vunpack.c.l.b16 %v238
      %v440 = vunpack.c.h.b16 %v238
      %v441 = vunpack.c.l.b16 %v239
      %v442 = vunpack.c.l.b16 %v240
      %v443 = vunpack.c.h.b16 %v240
      %v444 = vunpack.c.l.b16 %v241
      %v445 = vpack.c.b16 %v352, %v349
      %v446 = vpack.c.b16 %v353, %v350
      %v447 = vpack.c.b16 %v354, %v351
      %v448 = vpack.c.b16 %v358, %v355
      %v449 = vpack.c.b16 %v359, %v356
      %v450 = vpack.c.b16 %v360, %v357
      %v451 = vpack.c.b16 %v364, %v361
      %v452 = vpack.c.b16 %v365, %v362
      %v453 = vpack.c.b16 %v366, %v363
      %v454 = vpack.c.b16 %v370, %v367
      %v455 = vpack.c.b16 %v371, %v368
      %v456 = vpack.c.b16 %v372, %v369
      %v457 = vpack.c.b16 %v376, %v373
      %v458 = vpack.c.b16 %v377, %v374
      %v459 = vpack.c.b16 %v378, %v375
      %v460 = vpack.c.b16 %v382, %v379
      %v461 = vpack.c.b16 %v383, %v380
      %v462 = vpack.c.b16 %v384, %v381
      %v463 = vpack.c.b16 %v388, %v385
      %v464 = vpack.c.b16 %v389, %v386
      %v465 = vpack.c.b16 %v390, %v387
      %v466 = vpack.c.b16 %v394, %v391
      %v467 = vpack.c.b16 %v395, %v392
      %v468 = vpack.c.b16 %v396, %v393
      %v469 = vpack.c.b16 %v400, %v397
      %v470 = vpack.c.b16 %v401, %v398
      %v471 = vpack.c.b16 %v402, %v399
      %v472 = vpack.c.b16 %v406, %v403
      %v473 = vpack.c.b16 %v407, %v404
      %v474 = vpack.c.b16 %v408, %v405
      %v475 = vpack.c.b16 %v412, %v409
      %v476 = vpack.c.b16 %v413, %v410
      %v477 = vpack.c.b16 %v414, %v411
      %v478 = vpack.c.b16 %v418, %v415
      %v479 = vpack.c.b16 %v419, %v416
      %v480 = vpack.c.b16 %v420, %v417
      %v481 = vpack.c.b16 %v424, %v421
      %v482 = vpack.c.b16 %v425, %v422
      %v483 = vpack.c.b16 %v426, %v423
      %v484 = vpack.c.b16 %v430, %v427
      %v485 = vpack.c.b16 %v431, %v428
      %v486 = vpack.c.b16 %v432, %v429
      %v487 = vpack.c.b16 %v436, %v433
      %v488 = vpack.c.b16 %v437, %v434
      %v489 = vpack.c.b16 %v438, %v435
      %v490 = vpack.c.b16 %v442, %v439
      %v491 = vpack.c.b16 %v443, %v440
      %v492 = vpack.c.b16 %v444, %v441
      %v561 = vunpack.c.l.b16 %v242
      %v562 = vunpack.c.l.b16 %v243
      %v563 = vunpack.c.l.b16 %v244
      %v564 = vunpack.c.l.b16 %v245
      %v565 = vunpack.c.l.b16 %v246
      %v566 = vunpack.c.l.b16 %v247
      %v567 = vunpack.c.l.b16 %v248
      %v568 = vunpack.c.l.b16 %v249
      %v569 = vunpack.c.l.b16 %v250
      %v570 = vunpack.c.l.b16 %v251
      %v571 = vunpack.c.l.b16 %v252
      %v572 = vunpack.c.l.b16 %v253
      %v573 = vunpack.c.l.b16 %v254
      %v574 = vunpack.c.l.b16 %v255
      %v575 = vunpack.c.l.b16 %v256
      %v576 = vunpack.c.l.b16 %v257
      %v577 = vunpack.c.l.b16 %v258
      %v578 = vunpack.c.l.b16 %v259
      %v579 = vunpack.c.l.b16 %v260
      %v580 = vunpack.c.l.b16 %v261
      %v581 = vunpack.c.l.b16 %v262
      %v582 = vunpack.c.l.b16 %v263
      %v583 = vunpack.c.l.b16 %v264
      %v584 = vunpack.c.l.b16 %v265
      %v585 = vunpack.c.l.b16 %v266
      %v586 = vunpack.c.l.b16 %v267
      %v587 = vunpack.c.l.b16 %v268
      %v588 = vunpack.c.l.b16 %v269
      %v589 = vunpack.c.l.b16 %v270
      %v590 = vunpack.c.l.b16 %v271
      %v591 = vunpack.c.l.b16 %v272
      %v592 = vunpack.c.l.b16 %v273
      %v593 = vunpack.c.l.b16 %v274
      %v594 = vunpack.c.l.b16 %v275
      %v595 = vunpack.c.l.b16 %v276
      %v596 = vunpack.c.l.b16 %v277
      %v597 = vpack.c.b16 %v562, %v561
      %v598 = vpack.c.b16 %v564, %v563
      %v599 = vpack.c.b16 %v566, %v565
      %v600 = vpack.c.b16 %v568, %v567
      %v601 = vpack.c.b16 %v570, %v569
      %v602 = vpack.c.b16 %v572, %v571
      %v603 = vpack.c.b16 %v574, %v573
      %v604 = vpack.c.b16 %v576, %v575
      %v605 = vpack.c.b16 %v578, %v577
      %v606 = vpack.c.b16 %v580, %v579
      %v607 = vpack.c.b16 %v582, %v581
      %v608 = vpack.c.b16 %v584, %v583
      %v609 = vpack.c.b16 %v586, %v585
      %v610 = vpack.c.b16 %v588, %v587
      %v611 = vpack.c.b16 %v590, %v589
      %v612 = vpack.c.b16 %v592, %v591
      %v613 = vpack.c.b16 %v594, %v593
      %v614 = vpack.c.b16 %v596, %v595
      %vm633 = vcmask 261120
      %v635 = vsel %vm633, %v447, 0
      %v638 = vsel %vm633, %v450, 0
      %v641 = vsel %vm633, %v453, 0
      %v644 = vsel %vm633, %v456, 0
      %v647 = vsel %vm633, %v459, 0
      %v650 = vsel %vm633, %v462, 0
      %v653 = vsel %vm633, %v465, 0
      %v656 = vsel %vm633, %v468, 0
      %v659 = vsel %vm633, %v471, 0
      %v662 = vsel %vm633, %v474, 0
      %v665 = vsel %vm633, %v477, 0
      %v668 = vsel %vm633, %v480, 0
      %v671 = vsel %vm633, %v483, 0
      %v674 = vsel %vm633, %v486, 0
      %v677 = vsel %vm633, %v489, 0
      %v680 = vsel %vm633, %v492, 0
      %682 = vmatprep.subr.bf16.mxu0 0
      %683 = vmatpush1.bf16.msra.mxu0 %v597
      %684 = vmatprep.subr.bf16.mxu0 0
      %685 = vmatpush1.bf16.msra.mxu0 %v598
      %686 = vmatprep.subr.bf16.mxu0 0
      %687 = vmatpush1.bf16.msra.mxu0 %v599
      %688 = vmatprep.subr.bf16.mxu0 0
      %689 = vmatpush1.bf16.msra.mxu0 %v600
      %690 = vmatprep.subr.bf16.mxu0 0
      %691 = vmatpush1.bf16.msra.mxu0 %v601
      %692 = vmatprep.subr.bf16.mxu0 0
      %693 = vmatpush1.bf16.msra.mxu0 %v602
      %694 = vmatprep.subr.bf16.mxu0 0
      %695 = vmatpush1.bf16.msra.mxu0 %v603
      %696 = vmatprep.subr.bf16.mxu0 0
      %697 = vmatpush1.bf16.msra.mxu0 %v604
      %698 = vmatprep.subr.bf16.mxu0 0
      %699 = vmatpush1.bf16.msra.mxu0 %v605
      %700 = vmatprep.subr.bf16.mxu0 0
      %701 = vmatpush1.bf16.msra.mxu0 %v606
      %702 = vmatprep.subr.bf16.mxu0 0
      %703 = vmatpush1.bf16.msra.mxu0 %v607
      %704 = vmatprep.subr.bf16.mxu0 0
      %705 = vmatpush1.bf16.msra.mxu0 %v608
      %706 = vmatprep.subr.bf16.mxu0 0
      %707 = vmatpush1.bf16.msra.mxu0 %v609
      %708 = vmatprep.subr.bf16.mxu0 0
      %709 = vmatpush1.bf16.msra.mxu0 %v610
      %710 = vmatprep.subr.bf16.mxu0 0
      %711 = vmatpush1.bf16.msra.mxu0 %v611
      %712 = vmatprep.subr.bf16.mxu0 0
      %713 = vmatpush1.bf16.msra.mxu0 %v612
      %714 = vmatprep.mubr.bf16.mxu0 %v446
      %715 = vmatmul.mubr.bf16.gmra.mrb[0].mxu0 %v445
      %v716 = vpop.f32.mrb[0].mxu0
      %v717 = vadd.f32 %v283, %v716
      %v718 = vpop.f32.mrb[0].mxu0
      %v719 = vpop.f32.mrb[0].mxu0
      %v720 = vadd.f32 %v283, %v719
      %v721 = vpop.f32.mrb[0].mxu0
      %722 = vmatprep.mubr.bf16.mxu0 %v449
      %723 = vmatmul.mubr.bf16.gmra.mrb[0].mxu0 %v448
      %v724 = vpop.f32.mrb[0].mxu0
      %v725 = vadd.f32 %v283, %v724
      %v726 = vpop.f32.mrb[0].mxu0
      %v727 = vpop.f32.mrb[0].mxu0
      %v728 = vadd.f32 %v283, %v727
      %v729 = vpop.f32.mrb[0].mxu0
      %730 = vmatprep.mubr.bf16.mxu0 %v452
      %731 = vmatmul.mubr.bf16.gmra.mrb[0].mxu0 %v451
      %v732 = vpop.f32.mrb[0].mxu0
      %v733 = vadd.f32 %v283, %v732
      %v734 = vpop.f32.mrb[0].mxu0
      %v735 = vpop.f32.mrb[0].mxu0
      %v736 = vadd.f32 %v283, %v735
      %v737 = vpop.f32.mrb[0].mxu0
      %738 = vmatprep.mubr.bf16.mxu0 %v455
      %739 = vmatmul.mubr.bf16.gmra.mrb[0].mxu0 %v454
      %v740 = vpop.f32.mrb[0].mxu0
      %v741 = vadd.f32 %v283, %v740
      %v742 = vpop.f32.mrb[0].mxu0
      %v743 = vpop.f32.mrb[0].mxu0
      %v744 = vadd.f32 %v283, %v743
      %v745 = vpop.f32.mrb[0].mxu0
      %746 = vmatprep.mubr.bf16.mxu0 %v458
      %747 = vmatmul.mubr.bf16.gmra.mrb[0].mxu0 %v457
      %v748 = vpop.f32.mrb[0].mxu0
      %v749 = vadd.f32 %v283, %v748
      %v750 = vpop.f32.mrb[0].mxu0
      %v751 = vpop.f32.mrb[0].mxu0
      %v752 = vadd.f32 %v283, %v751
      %v753 = vpop.f32.mrb[0].mxu0
      %754 = vmatprep.mubr.bf16.mxu0 %v461
      %755 = vmatmul.mubr.bf16.gmra.mrb[0].mxu0 %v460
      %v756 = vpop.f32.mrb[0].mxu0
      %v757 = vadd.f32 %v283, %v756
      %v758 = vpop.f32.mrb[0].mxu0
      %v759 = vpop.f32.mrb[0].mxu0
      %v760 = vadd.f32 %v283, %v759
      %v761 = vpop.f32.mrb[0].mxu0
      %762 = vmatprep.mubr.bf16.mxu0 %v464
      %763 = vmatmul.mubr.bf16.gmra.mrb[0].mxu0 %v463
      %v764 = vpop.f32.mrb[0].mxu0
      %v765 = vadd.f32 %v283, %v764
      %v766 = vpop.f32.mrb[0].mxu0
      %v767 = vpop.f32.mrb[0].mxu0
      %v768 = vadd.f32 %v283, %v767
      %v769 = vpop.f32.mrb[0].mxu0
      %770 = vmatprep.mubr.bf16.mxu0 %v467
      %771 = vmatmul.mubr.bf16.gmra.mrb[0].mxu0 %v466
      %v772 = vpop.f32.mrb[0].mxu0
      %v773 = vadd.f32 %v283, %v772
      %v774 = vpop.f32.mrb[0].mxu0
      %v775 = vpop.f32.mrb[0].mxu0
      %v776 = vadd.f32 %v283, %v775
      %v777 = vpop.f32.mrb[0].mxu0
      %778 = vmatprep.mubr.bf16.mxu0 %v470
      %779 = vmatmul.mubr.bf16.gmra.mrb[0].mxu0 %v469
      %v780 = vpop.f32.mrb[0].mxu0
      %v781 = vadd.f32 %v283, %v780
      %v782 = vpop.f32.mrb[0].mxu0
      %v783 = vpop.f32.mrb[0].mxu0
      %v784 = vadd.f32 %v283, %v783
      %v785 = vpop.f32.mrb[0].mxu0
      %786 = vmatprep.mubr.bf16.mxu0 %v473
      %787 = vmatmul.mubr.bf16.gmra.mrb[0].mxu0 %v472
      %v788 = vpop.f32.mrb[0].mxu0
      %v789 = vadd.f32 %v283, %v788
      %v790 = vpop.f32.mrb[0].mxu0
      %v791 = vpop.f32.mrb[0].mxu0
      %v792 = vadd.f32 %v283, %v791
      %v793 = vpop.f32.mrb[0].mxu0
      %794 = vmatprep.mubr.bf16.mxu0 %v476
      %795 = vmatmul.mubr.bf16.gmra.mrb[0].mxu0 %v475
      %v796 = vpop.f32.mrb[0].mxu0
      %v797 = vadd.f32 %v283, %v796
      %v798 = vpop.f32.mrb[0].mxu0
      %v799 = vpop.f32.mrb[0].mxu0
      %v800 = vadd.f32 %v283, %v799
      %v801 = vpop.f32.mrb[0].mxu0
      %802 = vmatprep.mubr.bf16.mxu0 %v479
      %803 = vmatmul.mubr.bf16.gmra.mrb[0].mxu0 %v478
      %v804 = vpop.f32.mrb[0].mxu0
      %v805 = vadd.f32 %v283, %v804
      %v806 = vpop.f32.mrb[0].mxu0
      %v807 = vpop.f32.mrb[0].mxu0
      %v808 = vadd.f32 %v283, %v807
      %v809 = vpop.f32.mrb[0].mxu0
      %810 = vmatprep.mubr.bf16.mxu0 %v482
      %811 = vmatmul.mubr.bf16.gmra.mrb[0].mxu0 %v481
      %v812 = vpop.f32.mrb[0].mxu0
      %v813 = vadd.f32 %v283, %v812
      %v814 = vpop.f32.mrb[0].mxu0
      %v815 = vpop.f32.mrb[0].mxu0
      %v816 = vadd.f32 %v283, %v815
      %v817 = vpop.f32.mrb[0].mxu0
      %818 = vmatprep.mubr.bf16.mxu0 %v485
      %819 = vmatmul.mubr.bf16.gmra.mrb[0].mxu0 %v484
      %v820 = vpop.f32.mrb[0].mxu0
      %v821 = vadd.f32 %v283, %v820
      %v822 = vpop.f32.mrb[0].mxu0
      %v823 = vpop.f32.mrb[0].mxu0
      %v824 = vadd.f32 %v283, %v823
      %v825 = vpop.f32.mrb[0].mxu0
      %826 = vmatprep.mubr.bf16.mxu0 %v488
      %827 = vmatmul.mubr.bf16.gmra.mrb[0].mxu0 %v487
      %v828 = vpop.f32.mrb[0].mxu0
      %v829 = vadd.f32 %v283, %v828
      %v830 = vpop.f32.mrb[0].mxu0
      %v831 = vpop.f32.mrb[0].mxu0
      %v832 = vadd.f32 %v283, %v831
      %v833 = vpop.f32.mrb[0].mxu0
      %834 = vmatprep.mubr.bf16.mxu0 %v491
      %835 = vmatmul.mubr.bf16.gmra.mrb[0].mxu0 %v490
      %v836 = vpop.f32.mrb[0].mxu0
      %v837 = vadd.f32 %v283, %v836
      %v838 = vpop.f32.mrb[0].mxu0
      %v839 = vpop.f32.mrb[0].mxu0
      %v840 = vadd.f32 %v283, %v839
      %v841 = vpop.f32.mrb[0].mxu0
      %842 = vdwg.mxu0
      %843 = vmatprep.subr.bf16.mxu0 0
      %844 = vmatpush1.bf16.msra.mxu0 %v613
      %845 = vmatprep.subr.bf16.mxu0 0
      %846 = vmatpush1.bf16.msra.mxu0 %v614
      %847 = vmatprep.subr.bf16.mxu0 0
      %848 = vmatpush1.bf16.msra.mxu0 0
      %849 = vmatprep.subr.bf16.mxu0 0
      %850 = vmatpush1.bf16.msra.mxu0 0
      %851 = vmatprep.subr.bf16.mxu0 0
      %852 = vmatpush1.bf16.msra.mxu0 0
      %853 = vmatprep.subr.bf16.mxu0 0
      %854 = vmatpush1.bf16.msra.mxu0 0
      %855 = vmatprep.subr.bf16.mxu0 0
      %856 = vmatpush1.bf16.msra.mxu0 0
      %857 = vmatprep.subr.bf16.mxu0 0
      %858 = vmatpush1.bf16.msra.mxu0 0
      %859 = vmatprep.subr.bf16.mxu0 0
      %860 = vmatpush1.bf16.msra.mxu0 0
      %861 = vmatprep.subr.bf16.mxu0 0
      %862 = vmatpush1.bf16.msra.mxu0 0
      %863 = vmatprep.subr.bf16.mxu0 0
      %864 = vmatpush1.bf16.msra.mxu0 0
      %865 = vmatprep.subr.bf16.mxu0 0
      %866 = vmatpush1.bf16.msra.mxu0 0
      %867 = vmatprep.subr.bf16.mxu0 0
      %868 = vmatpush1.bf16.msra.mxu0 0
      %869 = vmatprep.subr.bf16.mxu0 0
      %870 = vmatpush1.bf16.msra.mxu0 0
      %871 = vmatprep.subr.bf16.mxu0 0
      %872 = vmatpush1.bf16.msra.mxu0 0
      %873 = vmatprep.subr.bf16.mxu0 0
      %874 = vmatpush1.bf16.msra.mxu0 0
      %875 = vmatprep.mubr.bf16.mxu0 0
      %876 = vmatmul.mubr.bf16.gmra.mrb[0].mxu0 %v635
      %v877 = vpop.f32.mrb[0].mxu0
      %v878 = vadd.f32 %v717, %v877
      %v879 = vpop.f32.mrb[0].mxu0
      %v880 = vpop.f32.mrb[0].mxu0
      %v881 = vadd.f32 %v720, %v880
      %v882 = vpop.f32.mrb[0].mxu0
      %883 = vmatprep.mubr.bf16.mxu0 0
      %884 = vmatmul.mubr.bf16.gmra.mrb[0].mxu0 %v638
      %v885 = vpop.f32.mrb[0].mxu0
      %v886 = vadd.f32 %v725, %v885
      %v887 = vpop.f32.mrb[0].mxu0
      %v888 = vpop.f32.mrb[0].mxu0
      %v889 = vadd.f32 %v728, %v888
      %v890 = vpop.f32.mrb[0].mxu0
      %891 = vmatprep.mubr.bf16.mxu0 0
      %892 = vmatmul.mubr.bf16.gmra.mrb[0].mxu0 %v641
      %v893 = vpop.f32.mrb[0].mxu0
      %v894 = vadd.f32 %v733, %v893
      %v895 = vpop.f32.mrb[0].mxu0
      %v896 = vpop.f32.mrb[0].mxu0
      %v897 = vadd.f32 %v736, %v896
      %v898 = vpop.f32.mrb[0].mxu0
      %899 = vmatprep.mubr.bf16.mxu0 0
      %900 = vmatmul.mubr.bf16.gmra.mrb[0].mxu0 %v644
      %v901 = vpop.f32.mrb[0].mxu0
      %v902 = vadd.f32 %v741, %v901
      %v903 = vpop.f32.mrb[0].mxu0
      %v904 = vpop.f32.mrb[0].mxu0
      %v905 = vadd.f32 %v744, %v904
      %v906 = vpop.f32.mrb[0].mxu0
      %907 = vmatprep.mubr.bf16.mxu0 0
      %908 = vmatmul.mubr.bf16.gmra.mrb[0].mxu0 %v647
      %v909 = vpop.f32.mrb[0].mxu0
      %v910 = vadd.f32 %v749, %v909
      %v911 = vpop.f32.mrb[0].mxu0
      %v912 = vpop.f32.mrb[0].mxu0
      %v913 = vadd.f32 %v752, %v912
      %v914 = vpop.f32.mrb[0].mxu0
      %915 = vmatprep.mubr.bf16.mxu0 0
      %916 = vmatmul.mubr.bf16.gmra.mrb[0].mxu0 %v650
      %v917 = vpop.f32.mrb[0].mxu0
      %v918 = vadd.f32 %v757, %v917
      %v919 = vpop.f32.mrb[0].mxu0
      %v920 = vpop.f32.mrb[0].mxu0
      %v921 = vadd.f32 %v760, %v920
      %v922 = vpop.f32.mrb[0].mxu0
      %923 = vmatprep.mubr.bf16.mxu0 0
      %924 = vmatmul.mubr.bf16.gmra.mrb[0].mxu0 %v653
      %v925 = vpop.f32.mrb[0].mxu0
      %v926 = vadd.f32 %v765, %v925
      %v927 = vpop.f32.mrb[0].mxu0
      %v928 = vpop.f32.mrb[0].mxu0
      %v929 = vadd.f32 %v768, %v928
      %v930 = vpop.f32.mrb[0].mxu0
      %931 = vmatprep.mubr.bf16.mxu0 0
      %932 = vmatmul.mubr.bf16.gmra.mrb[0].mxu0 %v656
      %v933 = vpop.f32.mrb[0].mxu0
      %v934 = vadd.f32 %v773, %v933
      %v935 = vpop.f32.mrb[0].mxu0
      %v936 = vpop.f32.mrb[0].mxu0
      %v937 = vadd.f32 %v776, %v936
      %v938 = vpop.f32.mrb[0].mxu0
      %939 = vmatprep.mubr.bf16.mxu0 0
      %940 = vmatmul.mubr.bf16.gmra.mrb[0].mxu0 %v659
      %v941 = vpop.f32.mrb[0].mxu0
      %v942 = vadd.f32 %v781, %v941
      %v943 = vpop.f32.mrb[0].mxu0
      %v944 = vpop.f32.mrb[0].mxu0
      %v945 = vadd.f32 %v784, %v944
      %v946 = vpop.f32.mrb[0].mxu0
      %947 = vmatprep.mubr.bf16.mxu0 0
      %948 = vmatmul.mubr.bf16.gmra.mrb[0].mxu0 %v662
      %v949 = vpop.f32.mrb[0].mxu0
      %v950 = vadd.f32 %v789, %v949
      %v951 = vpop.f32.mrb[0].mxu0
      %v952 = vpop.f32.mrb[0].mxu0
      %v953 = vadd.f32 %v792, %v952
      %v954 = vpop.f32.mrb[0].mxu0
      %955 = vmatprep.mubr.bf16.mxu0 0
      %956 = vmatmul.mubr.bf16.gmra.mrb[0].mxu0 %v665
      %v957 = vpop.f32.mrb[0].mxu0
      %v958 = vadd.f32 %v797, %v957
      %v959 = vpop.f32.mrb[0].mxu0
      %v960 = vpop.f32.mrb[0].mxu0
      %v961 = vadd.f32 %v800, %v960
      %v962 = vpop.f32.mrb[0].mxu0
      %963 = vmatprep.mubr.bf16.mxu0 0
      %964 = vmatmul.mubr.bf16.gmra.mrb[0].mxu0 %v668
      %v965 = vpop.f32.mrb[0].mxu0
      %v966 = vadd.f32 %v805, %v965
      %v967 = vpop.f32.mrb[0].mxu0
      %v968 = vpop.f32.mrb[0].mxu0
      %v969 = vadd.f32 %v808, %v968
      %v970 = vpop.f32.mrb[0].mxu0
      %971 = vmatprep.mubr.bf16.mxu0 0
      %972 = vmatmul.mubr.bf16.gmra.mrb[0].mxu0 %v671
      %v973 = vpop.f32.mrb[0].mxu0
      %v974 = vadd.f32 %v813, %v973
      %v975 = vpop.f32.mrb[0].mxu0
      %v976 = vpop.f32.mrb[0].mxu0
      %v977 = vadd.f32 %v816, %v976
      %v978 = vpop.f32.mrb[0].mxu0
      %979 = vmatprep.mubr.bf16.mxu0 0
      %980 = vmatmul.mubr.bf16.gmra.mrb[0].mxu0 %v674
      %v981 = vpop.f32.mrb[0].mxu0
      %v982 = vadd.f32 %v821, %v981
      %v983 = vpop.f32.mrb[0].mxu0
      %v984 = vpop.f32.mrb[0].mxu0
      %v985 = vadd.f32 %v824, %v984
      %v986 = vpop.f32.mrb[0].mxu0
      %987 = vmatprep.mubr.bf16.mxu0 0
      %988 = vmatmul.mubr.bf16.gmra.mrb[0].mxu0 %v677
      %v989 = vpop.f32.mrb[0].mxu0
      %v990 = vadd.f32 %v829, %v989
      %v991 = vpop.f32.mrb[0].mxu0
      %v992 = vpop.f32.mrb[0].mxu0
      %v993 = vadd.f32 %v832, %v992
      %v994 = vpop.f32.mrb[0].mxu0
      %995 = vmatprep.mubr.bf16.mxu0 0
      %996 = vmatmul.mubr.bf16.gmra.mrb[0].mxu0 %v680
      %v997 = vpop.f32.mrb[0].mxu0
      %v998 = vadd.f32 %v837, %v997
      %v999 = vpop.f32.mrb[0].mxu0
      %v1000 = vpop.f32.mrb[0].mxu0
      %v1001 = vadd.f32 %v840, %v1000
      %v1002 = vpop.f32.mrb[0].mxu0
      %1003 = vdwg.mxu0
      %v1004 = vmax.f32 %v878, 0.0
      %v1005 = vmax.f32 %v881, 0.0
      %v1006 = vmax.f32 %v886, 0.0
      %v1007 = vmax.f32 %v889, 0.0
      %v1008 = vmax.f32 %v894, 0.0
      %v1009 = vmax.f32 %v897, 0.0
      %v1010 = vmax.f32 %v902, 0.0
      %v1011 = vmax.f32 %v905, 0.0
      %v1012 = vmax.f32 %v910, 0.0
      %v1013 = vmax.f32 %v913, 0.0
      %v1014 = vmax.f32 %v918, 0.0
      %v1015 = vmax.f32 %v921, 0.0
      %v1016 = vmax.f32 %v926, 0.0
      %v1017 = vmax.f32 %v929, 0.0
      %v1018 = vmax.f32 %v934, 0.0
      %v1019 = vmax.f32 %v937, 0.0
      %v1020 = vmax.f32 %v942, 0.0
      %v1021 = vmax.f32 %v945, 0.0
      %v1022 = vmax.f32 %v950, 0.0
      %v1023 = vmax.f32 %v953, 0.0
      %v1024 = vmax.f32 %v958, 0.0
      %v1025 = vmax.f32 %v961, 0.0
      %v1026 = vmax.f32 %v966, 0.0
      %v1027 = vmax.f32 %v969, 0.0
      %v1028 = vmax.f32 %v974, 0.0
      %v1029 = vmax.f32 %v977, 0.0
      %v1030 = vmax.f32 %v982, 0.0
      %v1031 = vmax.f32 %v985, 0.0
      %v1032 = vmax.f32 %v990, 0.0
      %v1033 = vmax.f32 %v993, 0.0
      %v1034 = vmax.f32 %v998, 0.0
      %v1035 = vmax.f32 %v1001, 0.0
      %v1036 = vpack.c.bf16 %v1005, %v1004
      %v1037 = vpack.c.bf16 %v1007, %v1006
      %v1038 = vpack.c.bf16 %v1009, %v1008
      %v1039 = vpack.c.bf16 %v1011, %v1010
      %v1040 = vpack.c.bf16 %v1013, %v1012
      %v1041 = vpack.c.bf16 %v1015, %v1014
      %v1042 = vpack.c.bf16 %v1017, %v1016
      %v1043 = vpack.c.bf16 %v1019, %v1018
      %v1044 = vpack.c.bf16 %v1021, %v1020
      %v1045 = vpack.c.bf16 %v1023, %v1022
      %v1046 = vpack.c.bf16 %v1025, %v1024
      %v1047 = vpack.c.bf16 %v1027, %v1026
      %v1048 = vpack.c.bf16 %v1029, %v1028
      %v1049 = vpack.c.bf16 %v1031, %v1030
      %v1050 = vpack.c.bf16 %v1033, %v1032
      %v1051 = vpack.c.bf16 %v1035, %v1034
      %v1068 = vunpack.c.l.b16 %v1036
      %v1069 = vunpack.c.h.b16 %v1036
      %v1070 = vunpack.c.l.b16 %v1037
      %v1071 = vunpack.c.h.b16 %v1037
      %v1072 = vunpack.c.l.b16 %v1038
      %v1073 = vunpack.c.h.b16 %v1038
      %v1074 = vunpack.c.l.b16 %v1039
      %v1075 = vunpack.c.h.b16 %v1039
      %v1076 = vunpack.c.l.b16 %v1040
      %v1077 = vunpack.c.h.b16 %v1040
      %v1078 = vunpack.c.l.b16 %v1041
      %v1079 = vunpack.c.h.b16 %v1041
      %v1080 = vunpack.c.l.b16 %v1042
      %v1081 = vunpack.c.h.b16 %v1042
      %v1082 = vunpack.c.l.b16 %v1043
      %v1083 = vunpack.c.h.b16 %v1043
      %v1084 = vunpack.c.l.b16 %v1044
      %v1085 = vunpack.c.h.b16 %v1044
      %v1086 = vunpack.c.l.b16 %v1045
      %v1087 = vunpack.c.h.b16 %v1045
      %v1088 = vunpack.c.l.b16 %v1046
      %v1089 = vunpack.c.h.b16 %v1046
      %v1090 = vunpack.c.l.b16 %v1047
      %v1091 = vunpack.c.h.b16 %v1047
      %v1092 = vunpack.c.l.b16 %v1048
      %v1093 = vunpack.c.h.b16 %v1048
      %v1094 = vunpack.c.l.b16 %v1049
      %v1095 = vunpack.c.h.b16 %v1049
      %v1096 = vunpack.c.l.b16 %v1050
      %v1097 = vunpack.c.h.b16 %v1050
      %v1098 = vunpack.c.l.b16 %v1051
      %v1099 = vunpack.c.h.b16 %v1051
      %v1100 = vpack.c.b16 %v1068, %v1068
      %v1101 = vpack.c.b16 %v1069, %v1069
      %v1102 = vpack.c.b16 %v1070, %v1070
      %v1103 = vpack.c.b16 %v1071, %v1071
      %v1104 = vpack.c.b16 %v1072, %v1072
      %v1105 = vpack.c.b16 %v1073, %v1073
      %v1106 = vpack.c.b16 %v1074, %v1074
      %v1107 = vpack.c.b16 %v1075, %v1075
      %v1108 = vpack.c.b16 %v1076, %v1076
      %v1109 = vpack.c.b16 %v1077, %v1077
      %v1110 = vpack.c.b16 %v1078, %v1078
      %v1111 = vpack.c.b16 %v1079, %v1079
      %v1112 = vpack.c.b16 %v1080, %v1080
      %v1113 = vpack.c.b16 %v1081, %v1081
      %v1114 = vpack.c.b16 %v1082, %v1082
      %v1115 = vpack.c.b16 %v1083, %v1083
      %v1116 = vpack.c.b16 %v1084, %v1084
      %v1117 = vpack.c.b16 %v1085, %v1085
      %v1118 = vpack.c.b16 %v1086, %v1086
      %v1119 = vpack.c.b16 %v1087, %v1087
      %v1120 = vpack.c.b16 %v1088, %v1088
      %v1121 = vpack.c.b16 %v1089, %v1089
      %v1122 = vpack.c.b16 %v1090, %v1090
      %v1123 = vpack.c.b16 %v1091, %v1091
      %v1124 = vpack.c.b16 %v1092, %v1092
      %v1125 = vpack.c.b16 %v1093, %v1093
      %v1126 = vpack.c.b16 %v1094, %v1094
      %v1127 = vpack.c.b16 %v1095, %v1095
      %v1128 = vpack.c.b16 %v1096, %v1096
      %v1129 = vpack.c.b16 %v1097, %v1097
      %v1130 = vpack.c.b16 %v1098, %v1098
      %v1131 = vpack.c.b16 %v1099, %v1099
      %1164 = vst [vmem:[%s175] sm:$0xf] %v1100
      %1165 = vst [vmem:[%s175 + $0x4] sm:$0xf] %v1101
      %1166 = vst [vmem:[%s175 + $0x8] sm:$0xf] %v1102
      %1167 = vst [vmem:[%s175 + $0xc] sm:$0xf] %v1103
      %1168 = vst [vmem:[%s175 + $0x10] sm:$0xf] %v1104
      %1169 = vst [vmem:[%s175 + $0x14] sm:$0xf] %v1105
      %1170 = vst [vmem:[%s175 + $0x18] sm:$0xf] %v1106
      %1171 = vst [vmem:[%s175 + $0x1c] sm:$0xf] %v1107
      %1172 = vst [vmem:[%s175 + $0x20] sm:$0xf] %v1108
      %1173 = vst [vmem:[%s175 + $0x24] sm:$0xf] %v1109
      %1174 = vst [vmem:[%s175 + $0x28] sm:$0xf] %v1110
      %1175 = vst [vmem:[%s175 + $0x2c] sm:$0xf] %v1111
      %1176 = vst [vmem:[%s175 + $0x30] sm:$0xf] %v1112
      %1177 = vst [vmem:[%s175 + $0x34] sm:$0xf] %v1113
      %1178 = vst [vmem:[%s175 + $0x38] sm:$0xf] %v1114
      %1179 = vst [vmem:[%s175 + $0x3c] sm:$0xf] %v1115
      %1180 = vst [vmem:[%s175 + $0x40] sm:$0xf] %v1116
      %1181 = vst [vmem:[%s175 + $0x44] sm:$0xf] %v1117
      %1182 = vst [vmem:[%s175 + $0x48] sm:$0xf] %v1118
      %1183 = vst [vmem:[%s175 + $0x4c] sm:$0xf] %v1119
      %1184 = vst [vmem:[%s175 + $0x50] sm:$0xf] %v1120
      %1185 = vst [vmem:[%s175 + $0x54] sm:$0xf] %v1121
      %1186 = vst [vmem:[%s175 + $0x58] sm:$0xf] %v1122
      %1187 = vst [vmem:[%s175 + $0x5c] sm:$0xf] %v1123
      %1188 = vst [vmem:[%s175 + $0x60] sm:$0xf] %v1124
      %1189 = vst [vmem:[%s175 + $0x64] sm:$0xf] %v1125
      %1190 = vst [vmem:[%s175 + $0x68] sm:$0xf] %v1126
      %1191 = vst [vmem:[%s175 + $0x6c] sm:$0xf] %v1127
      %1192 = vst [vmem:[%s175 + $0x70] sm:$0xf] %v1128
      %1193 = vst [vmem:[%s175 + $0x74] sm:$0xf] %v1129
      %1194 = vst [vmem:[%s175 + $0x78] sm:$0xf] %v1130
      %1195 = vst [vmem:[%s175 + $0x7c] sm:$0xf] %v1131
      %s1196 = smul.u32 32, %s14
      %p1197 = scmp.lt.s32.totalorder %s1196, 63
      %s1198 = scalar_select %p1197, %s1196, 63
      %s1199 = smul.addr %s1198, 4
      %s1200 = scalar_lea.vmem %s3, %s1199
      // Predicated region
      $region33: #{vae_forward.16} parent=31 // pred_check
        %p1201 = pneg %p100
      $region34: #{vae_forward.16} parent=31 // pred_check_branch
        %1203 = sbr.rel (%p1201) target = $region36
      $region35: #{vae_forward.16} parent=31 // pred_region
        %s1204 = smul.u32 32, %s14
      $region36: #{vae_forward.16} parent=31 // pred_fallthru
        _
    $region32: #{vae_forward.16} parent=5 // pred_fallthru
      _
    %p1205 = scmp.le.s32.totalorder 2, %s9
    // Predicated region
    $region37: #{vae_forward.16} parent=5 // pred_check
      %p1206 = pneg %p1205
    $region38: #{vae_forward.16} parent=5 // pred_check_branch
      %1208 = sbr.rel (%p1206) target = $region40
    $region39: #{vae_forward.16} parent=5 // pred_region
      %s1209 = ssub.s32 %s9, 2
      // Predicated region
      $region41: #{vae_forward.16} parent=39 // pred_check
        %p1210 = pneg %p106
      $region42: #{vae_forward.16} parent=39 // pred_check_branch
        %1212 = sbr.rel (%p1210) target = $region44
      $region43: #{vae_forward.16} parent=39 // pred_region
        %s1213 = smul.u32 32, %s15
        %p1214 = scmp.lt.s32.totalorder %s1213, 63
        %s1215 = scalar_select %p1214, %s1213, 63
        %s1216 = smul.addr %s1215, 4
        %s1217 = scalar_lea.vmem %s3, %s1216
      $region44: #{vae_forward.16} parent=39 // pred_fallthru
        _
    $region40: #{vae_forward.16} parent=5 // pred_fallthru
      _
  $region6: #{vae_forward.16} parent=0 // loop_footer
    %s13 = sadd.s32 1, %s9
  $region7: #{vae_forward.16} parent=0 // loop_footer_branch
    %8 = sbr.rel target = $region3
  $region8: #{vae_forward.16} parent=0 // loop_exit
    _

// kernel: vae_forward.17
$region0: #{vae_forward.17}
  #allocation0 [shape = 'u32[]', space=smem, size = 0x4, offset = 0x4, fixed_abs, tag = 'smem constant byte address 0x4 - core index']
  #allocation1 [shape = 'u32[144,128]{1,0:T(1,128)}', space=vmem, size = 0x12000, scoped, tag = 'internal scratch']
  %s0 = inlined_call_operand.vmem [shape: bf16[2048,288], index: 0, kind: input, shape index: {}]
  %s1 = inlined_call_operand.vmem [shape: bf16[288,12], index: 1, kind: input, shape index: {}]
  %s2 = inlined_call_operand.vmem [shape: f32[1,12], index: 2, kind: input, shape index: {}]
  %s3 = inlined_call_operand.vmem [shape: f32[2048,12], index: 3, kind: output, shape index: {}]
  %s4 = sld [smem:[#allocation0]]
  $region45: #{vae_forward.17} parent=0
    _
  %s6 = ssub.s32 1, %s4
  %s7 = scalar_select 0, %s6, %s4
  loop: start=0, step=1, limit=6
  $region2: #{vae_forward.17} parent=0 // loop_pre_header
    _
  $region3: #{vae_forward.17} parent=0 // loop_header
    %s9 = sphi 0, %s13
    %p10 = scmp.ge.s32.totalorder %s9, 6
    %s19 = sphi 0, %s21
    %s22 = sphi 0, %s19
    %s23 = sphi 0, %s22
    %s39 = sphi 0, %s23
    %s43 = sphi 0, %s43
    %s45 = sphi 0, %s43
    %s46 = sphi 0, %s45
    %s60 = sphi 0, %s46
    %s64 = sphi 0, %s64
    %s66 = sphi 0, %s64
    %s67 = sphi 0, %s66
    %s81 = sphi 0, %s67
    %s87 = sphi 0, %s89
    %s90 = sphi 0, %s87
    %s91 = sphi 0, %s90
    %s107 = sphi 0, %s91
  $region4: #{vae_forward.17} parent=0 // loop_header_branch
    %12 = sbr.rel (%p10) target = $region8
  $region5: #{vae_forward.17} parent=0 // loop_body
    %s14 = ssub.s32 %s9, 1
    %s15 = ssub.s32 %s9, 2
    %s16 = sadd.s32 %s9, 1
    %s17 = ssub.s32 %s9, %s16
    %p18 = scmp.eq.s32.totalorder %s17, 0
    %s20 = sadd.s32 %s19, 1
    %s21 = scalar_select %p18, %s19, %s20
    %p24 = pneg %p18
    %p25 = scmp.eq.s32.totalorder %s9, 3
    %p26 = por %p24, %p25
    %p27 = scmp.ne.s32.totalorder %s19, %s22
    %p28 = scmp.eq.s32.totalorder %s9, 0
    %p29 = por %p27, %p28
    %p30 = scmp.ne.s32.totalorder %s19, %s22
    %p31 = scmp.eq.s32.totalorder %s14, 3
    %p32 = por %p30, %p31
    %p33 = scmp.ne.s32.totalorder %s22, %s23
    %p34 = scmp.eq.s32.totalorder %s14, 0
    %p35 = por %p33, %p34
    %p36 = scmp.ne.s32.totalorder %s22, %s23
    %p37 = scmp.eq.s32.totalorder %s15, 3
    %p38 = por %p36, %p37
    %p40 = scmp.ne.s32.totalorder %s23, %s39
    %p41 = scmp.eq.s32.totalorder %s15, 0
    %p42 = por %p40, %p41
    %s44 = sadd.s32 %s43, 1
    %p47 = scmp.eq.s32.totalorder %s9, 3
    %p48 = scmp.ne.s32.totalorder %s43, %s45
    %p49 = scmp.eq.s32.totalorder %s9, 0
    %p50 = por %p48, %p49
    %p51 = scmp.ne.s32.totalorder %s43, %s45
    %p52 = scmp.eq.s32.totalorder %s14, 3
    %p53 = por %p51, %p52
    %p54 = scmp.ne.s32.totalorder %s45, %s46
    %p55 = scmp.eq.s32.totalorder %s14, 0
    %p56 = por %p54, %p55
    %p57 = scmp.ne.s32.totalorder %s45, %s46
    %p58 = scmp.eq.s32.totalorder %s15, 3
    %p59 = por %p57, %p58
    %p61 = scmp.ne.s32.totalorder %s46, %s60
    %p62 = scmp.eq.s32.totalorder %s15, 0
    %p63 = por %p61, %p62
    %s65 = sadd.s32 %s64, 1
    %p68 = scmp.eq.s32.totalorder %s9, 3
    %p69 = scmp.ne.s32.totalorder %s64, %s66
    %p70 = scmp.eq.s32.totalorder %s9, 0
    %p71 = por %p69, %p70
    %p72 = scmp.ne.s32.totalorder %s64, %s66
    %p73 = scmp.eq.s32.totalorder %s14, 3
    %p74 = por %p72, %p73
    %p75 = scmp.ne.s32.totalorder %s66, %s67
    %p76 = scmp.eq.s32.totalorder %s14, 0
    %p77 = por %p75, %p76
    %p78 = scmp.ne.s32.totalorder %s66, %s67
    %p79 = scmp.eq.s32.totalorder %s15, 3
    %p80 = por %p78, %p79
    %p82 = scmp.ne.s32.totalorder %s67, %s81
    %p83 = scmp.eq.s32.totalorder %s15, 0
    %p84 = por %p82, %p83
    %s85 = ssub.s32 %s9, %s16
    %p86 = scmp.eq.s32.totalorder %s85, 0
    %s88 = sadd.s32 %s87, 1
    %s89 = scalar_select %p86, %s87, %s88
    %p92 = pneg %p86
    %p93 = scmp.eq.s32.totalorder %s9, 3
    %p94 = por %p92, %p93
    %p95 = scmp.ne.s32.totalorder %s87, %s90
    %p96 = scmp.eq.s32.totalorder %s9, 0
    %p97 = por %p95, %p96
    %p98 = scmp.ne.s32.totalorder %s87, %s90
    %p99 = scmp.eq.s32.totalorder %s14, 3
    %p100 = por %p98, %p99
    %p101 = scmp.ne.s32.totalorder %s90, %s91
    %p102 = scmp.eq.s32.totalorder %s14, 0
    %p103 = por %p101, %p102
    %p104 = scmp.ne.s32.totalorder %s90, %s91
    %p105 = scmp.eq.s32.totalorder %s15, 3
    %p106 = por %p104, %p105
    %p108 = scmp.ne.s32.totalorder %s91, %s107
    %p109 = scmp.eq.s32.totalorder %s15, 0
    %p110 = por %p108, %p109
    %p111 = scmp.le.s32.totalorder 1, %s9
    %p112 = scmp.lt.s32.totalorder %s9, 5
    %p113 = pnand %p111, %p112
    %p114 = pneg %p113
    // Predicated region
    $region9: #{vae_forward.17} parent=5 // pred_check
      _
    $region10: #{vae_forward.17} parent=5 // pred_check_branch
      %116 = sbr.rel (%p113) target = $region12
    $region11: #{vae_forward.17} parent=5 // pred_region
      %s117 = ssub.s32 %s9, 1
      // Predicated region
      $region13: #{vae_forward.17} parent=11 // pred_check
        %p118 = pneg %p56
      $region14: #{vae_forward.17} parent=11 // pred_check_branch
        %120 = sbr.rel (%p118) target = $region16
      $region15: #{vae_forward.17} parent=11 // pred_region
        _
      $region16: #{vae_forward.17} parent=11 // pred_fallthru
        _
      // Predicated region
      $region17: #{vae_forward.17} parent=11 // pred_check
        %p121 = pneg %p77
      $region18: #{vae_forward.17} parent=11 // pred_check_branch
        %123 = sbr.rel (%p121) target = $region20
      $region19: #{vae_forward.17} parent=11 // pred_region
        _
      $region20: #{vae_forward.17} parent=11 // pred_fallthru
        _
    $region12: #{vae_forward.17} parent=5 // pred_fallthru
      _
    %p124 = scmp.lt.s32.totalorder %s9, 4
    // Predicated region
    $region21: #{vae_forward.17} parent=5 // pred_check
      %p125 = pneg %p124
    $region22: #{vae_forward.17} parent=5 // pred_check_branch
      %127 = sbr.rel (%p125) target = $region24
    $region23: #{vae_forward.17} parent=5 // pred_region
      // Predicated region
      $region25: #{vae_forward.17} parent=23 // pred_check
        %p128 = pneg %p29
      $region26: #{vae_forward.17} parent=23 // pred_check_branch
        %130 = sbr.rel (%p128) target = $region28
      $region27: #{vae_forward.17} parent=23 // pred_region
        %s131 = smul.u32 64, %s9
        %p132 = scmp.lt.s32.totalorder %s131, 255
        %s133 = scalar_select %p132, %s131, 255
        %s134 = smul.addr %s133, 3
        %s135 = smul.addr %s134, 4
        %s136 = scalar_lea.vmem %s0, %s135
        %s137 = smul.u32 64, %s9
      $region28: #{vae_forward.17} parent=23 // pred_fallthru
        _
    $region24: #{vae_forward.17} parent=5 // pred_fallthru
      _
    %p138 = scmp.le.s32.totalorder 1, %s9
    %p139 = scmp.lt.s32.totalorder %s9, 5
    %p140 = pnand %p138, %p139
    %p141 = pneg %p140
    // Predicated region
    $region29: #{vae_forward.17} parent=5 // pred_check
      _
    $region30: #{vae_forward.17} parent=5 // pred_check_branch
      %143 = sbr.rel (%p140) target = $region32
    $region31: #{vae_forward.17} parent=5 // pred_region
      %s144 = ssub.s32 %s9, 1
      %s145 = smul.u32 64, %s14
      %p146 = scmp.lt.s32.totalorder %s145, 255
      %s147 = scalar_select %p146, %s145, 255
      %s148 = smul.addr %s147, 3
      %s149 = smul.addr %s148, 4
      %s150 = scalar_lea.vmem %s0, %s149
      %p151 = pneg %p35
      %p152 = pneg %p32
      %p153 = pneg %p56
      %p154 = pneg %p53
      %p155 = pneg %p77
      %p156 = pneg %p74
      %p157 = pneg %p103
      %p158 = pneg %p100
      %s159 = smul.u32 64, %s14
      %p160 = scmp.lt.s32.totalorder %s159, 255
      %s161 = scalar_select %p160, %s159, 255
      %s162 = smul.addr %s161, 8
      %s163 = scalar_lea.vmem %s3, %s162
      %s164 = smul.u32 64, %s14
      %p165 = scmp.lt.s32.totalorder %s164, 255
      %s166 = scalar_select %p165, %s164, 255
      %s167 = smul.addr %s166, 3
      %s168 = smul.addr %s167, 4
      %s169 = scalar_lea.vmem %s0, %s168
      %s170 = smul.u32 64, %s14
      %s171 = smul.u32 64, %s14
      %p172 = scmp.lt.s32.totalorder %s171, 255
      %s173 = scalar_select %p172, %s171, 255
      %s174 = smul.addr %s173, 8
      %s175 = scalar_lea.vmem %s3, %s174
      %s176 = smul.u32 64, %s14
      %v178 = vld [vmem:[%s169] sm:$0xff]
      %v179 = vld [vmem:[%s169 + $0x8] sm:$0xf]
      %v180 = vld [vmem:[%s169 + $0xc] sm:$0xff]
      %v181 = vld [vmem:[%s169 + $0x14] sm:$0xf]
      %v182 = vld [vmem:[%s169 + $0x18] sm:$0xff]
      %v183 = vld [vmem:[%s169 + $0x20] sm:$0xf]
      %v184 = vld [vmem:[%s169 + $0x24] sm:$0xff]
      %v185 = vld [vmem:[%s169 + $0x2c] sm:$0xf]
      %v186 = vld [vmem:[%s169 + $0x30] sm:$0xff]
      %v187 = vld [vmem:[%s169 + $0x38] sm:$0xf]
      %v188 = vld [vmem:[%s169 + $0x3c] sm:$0xff]
      %v189 = vld [vmem:[%s169 + $0x44] sm:$0xf]
      %v190 = vld [vmem:[%s169 + $0x48] sm:$0xff]
      %v191 = vld [vmem:[%s169 + $0x50] sm:$0xf]
      %v192 = vld [vmem:[%s169 + $0x54] sm:$0xff]
      %v193 = vld [vmem:[%s169 + $0x5c] sm:$0xf]
      %v194 = vld [vmem:[%s169 + $0x60] sm:$0xff]
      %v195 = vld [vmem:[%s169 + $0x68] sm:$0xf]
      %v196 = vld [vmem:[%s169 + $0x6c] sm:$0xff]
      %v197 = vld [vmem:[%s169 + $0x74] sm:$0xf]
      %v198 = vld [vmem:[%s169 + $0x78] sm:$0xff]
      %v199 = vld [vmem:[%s169 + $0x80] sm:$0xf]
      %v200 = vld [vmem:[%s169 + $0x84] sm:$0xff]
      %v201 = vld [vmem:[%s169 + $0x8c] sm:$0xf]
      %v202 = vld [vmem:[%s169 + $0x90] sm:$0xff]
      %v203 = vld [vmem:[%s169 + $0x98] sm:$0xf]
      %v204 = vld [vmem:[%s169 + $0x9c] sm:$0xff]
      %v205 = vld [vmem:[%s169 + $0xa4] sm:$0xf]
      %v206 = vld [vmem:[%s169 + $0xa8] sm:$0xff]
      %v207 = vld [vmem:[%s169 + $0xb0] sm:$0xf]
      %v208 = vld [vmem:[%s169 + $0xb4] sm:$0xff]
      %v209 = vld [vmem:[%s169 + $0xbc] sm:$0xf]
      %v210 = vld [vmem:[%s169 + $0xc0] sm:$0xff]
      %v211 = vld [vmem:[%s169 + $0xc8] sm:$0xf]
      %v212 = vld [vmem:[%s169 + $0xcc] sm:$0xff]
      %v213 = vld [vmem:[%s169 + $0xd4] sm:$0xf]
      %v214 = vld [vmem:[%s169 + $0xd8] sm:$0xff]
      %v215 = vld [vmem:[%s169 + $0xe0] sm:$0xf]
      %v216 = vld [vmem:[%s169 + $0xe4] sm:$0xff]
      %v217 = vld [vmem:[%s169 + $0xec] sm:$0xf]
      %v218 = vld [vmem:[%s169 + $0xf0] sm:$0xff]
      %v219 = vld [vmem:[%s169 + $0xf8] sm:$0xf]
      %v220 = vld [vmem:[%s169 + $0xfc] sm:$0xff]
      %v221 = vld [vmem:[%s169 + $0x104] sm:$0xf]
      %v222 = vld [vmem:[%s169 + $0x108] sm:$0xff]
      %v223 = vld [vmem:[%s169 + $0x110] sm:$0xf]
      %v224 = vld [vmem:[%s169 + $0x114] sm:$0xff]
      %v225 = vld [vmem:[%s169 + $0x11c] sm:$0xf]
      %v226 = vld [vmem:[%s169 + $0x120] sm:$0xff]
      %v227 = vld [vmem:[%s169 + $0x128] sm:$0xf]
      %v228 = vld [vmem:[%s169 + $0x12c] sm:$0xff]
      %v229 = vld [vmem:[%s169 + $0x134] sm:$0xf]
      %v230 = vld [vmem:[%s169 + $0x138] sm:$0xff]
      %v231 = vld [vmem:[%s169 + $0x140] sm:$0xf]
      %v232 = vld [vmem:[%s169 + $0x144] sm:$0xff]
      %v233 = vld [vmem:[%s169 + $0x14c] sm:$0xf]
      %v234 = vld [vmem:[%s169 + $0x150] sm:$0xff]
      %v235 = vld [vmem:[%s169 + $0x158] sm:$0xf]
      %v236 = vld [vmem:[%s169 + $0x15c] sm:$0xff]
      %v237 = vld [vmem:[%s169 + $0x164] sm:$0xf]
      %v238 = vld [vmem:[%s169 + $0x168] sm:$0xff]
      %v239 = vld [vmem:[%s169 + $0x170] sm:$0xf]
      %v240 = vld [vmem:[%s169 + $0x174] sm:$0xff]
      %v241 = vld [vmem:[%s169 + $0x17c] sm:$0xf]
      %v242 = vld [vmem:[%s169 + $0x180] sm:$0xff]
      %v243 = vld [vmem:[%s169 + $0x188] sm:$0xf]
      %v244 = vld [vmem:[%s169 + $0x18c] sm:$0xff]
      %v245 = vld [vmem:[%s169 + $0x194] sm:$0xf]
      %v246 = vld [vmem:[%s169 + $0x198] sm:$0xff]
      %v247 = vld [vmem:[%s169 + $0x1a0] sm:$0xf]
      %v248 = vld [vmem:[%s169 + $0x1a4] sm:$0xff]
      %v249 = vld [vmem:[%s169 + $0x1ac] sm:$0xf]
      %v250 = vld [vmem:[%s169 + $0x1b0] sm:$0xff]
      %v251 = vld [vmem:[%s169 + $0x1b8] sm:$0xf]
      %v252 = vld [vmem:[%s169 + $0x1bc] sm:$0xff]
      %v253 = vld [vmem:[%s169 + $0x1c4] sm:$0xf]
      %v254 = vld [vmem:[%s169 + $0x1c8] sm:$0xff]
      %v255 = vld [vmem:[%s169 + $0x1d0] sm:$0xf]
      %v256 = vld [vmem:[%s169 + $0x1d4] sm:$0xff]
      %v257 = vld [vmem:[%s169 + $0x1dc] sm:$0xf]
      %v258 = vld [vmem:[%s169 + $0x1e0] sm:$0xff]
      %v259 = vld [vmem:[%s169 + $0x1e8] sm:$0xf]
      %v260 = vld [vmem:[%s169 + $0x1ec] sm:$0xff]
      %v261 = vld [vmem:[%s169 + $0x1f4] sm:$0xf]
      %v262 = vld [vmem:[%s169 + $0x1f8] sm:$0xff]
      %v263 = vld [vmem:[%s169 + $0x200] sm:$0xf]
      %v264 = vld [vmem:[%s169 + $0x204] sm:$0xff]
      %v265 = vld [vmem:[%s169 + $0x20c] sm:$0xf]
      %v266 = vld [vmem:[%s169 + $0x210] sm:$0xff]
      %v267 = vld [vmem:[%s169 + $0x218] sm:$0xf]
      %v268 = vld [vmem:[%s169 + $0x21c] sm:$0xff]
      %v269 = vld [vmem:[%s169 + $0x224] sm:$0xf]
      %v270 = vld [vmem:[%s169 + $0x228] sm:$0xff]
      %v271 = vld [vmem:[%s169 + $0x230] sm:$0xf]
      %v272 = vld [vmem:[%s169 + $0x234] sm:$0xff]
      %v273 = vld [vmem:[%s169 + $0x23c] sm:$0xf]
      %v274 = vld [vmem:[%s169 + $0x240] sm:$0xff]
      %v275 = vld [vmem:[%s169 + $0x248] sm:$0xf]
      %v276 = vld [vmem:[%s169 + $0x24c] sm:$0xff]
      %v277 = vld [vmem:[%s169 + $0x254] sm:$0xf]
      %v278 = vld [vmem:[%s169 + $0x258] sm:$0xff]
      %v279 = vld [vmem:[%s169 + $0x260] sm:$0xf]
      %v280 = vld [vmem:[%s169 + $0x264] sm:$0xff]
      %v281 = vld [vmem:[%s169 + $0x26c] sm:$0xf]
      %v282 = vld [vmem:[%s169 + $0x270] sm:$0xff]
      %v283 = vld [vmem:[%s169 + $0x278] sm:$0xf]
      %v284 = vld [vmem:[%s169 + $0x27c] sm:$0xff]
      %v285 = vld [vmem:[%s169 + $0x284] sm:$0xf]
      %v286 = vld [vmem:[%s169 + $0x288] sm:$0xff]
      %v287 = vld [vmem:[%s169 + $0x290] sm:$0xf]
      %v288 = vld [vmem:[%s169 + $0x294] sm:$0xff]
      %v289 = vld [vmem:[%s169 + $0x29c] sm:$0xf]
      %v290 = vld [vmem:[%s169 + $0x2a0] sm:$0xff]
      %v291 = vld [vmem:[%s169 + $0x2a8] sm:$0xf]
      %v292 = vld [vmem:[%s169 + $0x2ac] sm:$0xff]
      %v293 = vld [vmem:[%s169 + $0x2b4] sm:$0xf]
      %v294 = vld [vmem:[%s169 + $0x2b8] sm:$0xff]
      %v295 = vld [vmem:[%s169 + $0x2c0] sm:$0xf]
      %v296 = vld [vmem:[%s169 + $0x2c4] sm:$0xff]
      %v297 = vld [vmem:[%s169 + $0x2cc] sm:$0xf]
      %v298 = vld [vmem:[%s169 + $0x2d0] sm:$0xff]
      %v299 = vld [vmem:[%s169 + $0x2d8] sm:$0xf]
      %v300 = vld [vmem:[%s169 + $0x2dc] sm:$0xff]
      %v301 = vld [vmem:[%s169 + $0x2e4] sm:$0xf]
      %v302 = vld [vmem:[%s169 + $0x2e8] sm:$0xff]
      %v303 = vld [vmem:[%s169 + $0x2f0] sm:$0xf]
      %v304 = vld [vmem:[%s169 + $0x2f4] sm:$0xff]
      %v305 = vld [vmem:[%s169 + $0x2fc] sm:$0xf]
      %v306 = vld [vmem:[%s1] sm:$0xf]
      %v307 = vld [vmem:[%s1 + $0x4] sm:$0xf]
      %v308 = vld [vmem:[%s1 + $0x8] sm:$0xf]
      %v309 = vld [vmem:[%s1 + $0xc] sm:$0xf]
      %v310 = vld [vmem:[%s1 + $0x10] sm:$0xf]
      %v311 = vld [vmem:[%s1 + $0x14] sm:$0xf]
      %v312 = vld [vmem:[%s1 + $0x18] sm:$0xf]
      %v313 = vld [vmem:[%s1 + $0x1c] sm:$0xf]
      %v314 = vld [vmem:[%s1 + $0x20] sm:$0xf]
      %v315 = vld [vmem:[%s1 + $0x24] sm:$0xf]
      %v316 = vld [vmem:[%s1 + $0x28] sm:$0xf]
      %v317 = vld [vmem:[%s1 + $0x2c] sm:$0xf]
      %v318 = vld [vmem:[%s1 + $0x30] sm:$0xf]
      %v319 = vld [vmem:[%s1 + $0x34] sm:$0xf]
      %v320 = vld [vmem:[%s1 + $0x38] sm:$0xf]
      %v321 = vld [vmem:[%s1 + $0x3c] sm:$0xf]
      %v322 = vld [vmem:[%s1 + $0x40] sm:$0xf]
      %v323 = vld [vmem:[%s1 + $0x44] sm:$0xf]
      %v324 = vld [vmem:[%s1 + $0x48] sm:$0xf]
      %v325 = vld [vmem:[%s1 + $0x4c] sm:$0xf]
      %v326 = vld [vmem:[%s1 + $0x50] sm:$0xf]
      %v327 = vld [vmem:[%s1 + $0x54] sm:$0xf]
      %v328 = vld [vmem:[%s1 + $0x58] sm:$0xf]
      %v329 = vld [vmem:[%s1 + $0x5c] sm:$0xf]
      %v330 = vld [vmem:[%s1 + $0x60] sm:$0xf]
      %v331 = vld [vmem:[%s1 + $0x64] sm:$0xf]
      %v332 = vld [vmem:[%s1 + $0x68] sm:$0xf]
      %v333 = vld [vmem:[%s1 + $0x6c] sm:$0xf]
      %v334 = vld [vmem:[%s1 + $0x70] sm:$0xf]
      %v335 = vld [vmem:[%s1 + $0x74] sm:$0xf]
      %v336 = vld [vmem:[%s1 + $0x78] sm:$0xf]
      %v337 = vld [vmem:[%s1 + $0x7c] sm:$0xf]
      %v338 = vld [vmem:[%s1 + $0x80] sm:$0xf]
      %v339 = vld [vmem:[%s1 + $0x84] sm:$0xf]
      %v340 = vld [vmem:[%s1 + $0x88] sm:$0xf]
      %v341 = vld [vmem:[%s1 + $0x8c] sm:$0xf]
      %v342 = vld [vmem:[%s2] sm:$0x1]
      %v344 = vlaneseq
      %v345 = vshrl.u32 %v344, 7
      %v346 = vsub.s32 0, %v345
      %v347 = vrot.slane %v342, %v346
      %v477 = vunpack.c.l.b16 %v178
      %v478 = vunpack.c.h.b16 %v178
      %v479 = vunpack.c.l.b16 %v179
      %v480 = vunpack.c.l.b16 %v180
      %v481 = vunpack.c.h.b16 %v180
      %v482 = vunpack.c.l.b16 %v181
      %v483 = vunpack.c.l.b16 %v182
      %v484 = vunpack.c.h.b16 %v182
      %v485 = vunpack.c.l.b16 %v183
      %v486 = vunpack.c.l.b16 %v184
      %v487 = vunpack.c.h.b16 %v184
      %v488 = vunpack.c.l.b16 %v185
      %v489 = vunpack.c.l.b16 %v186
      %v490 = vunpack.c.h.b16 %v186
      %v491 = vunpack.c.l.b16 %v187
      %v492 = vunpack.c.l.b16 %v188
      %v493 = vunpack.c.h.b16 %v188
      %v494 = vunpack.c.l.b16 %v189
      %v495 = vunpack.c.l.b16 %v190
      %v496 = vunpack.c.h.b16 %v190
      %v497 = vunpack.c.l.b16 %v191
      %v498 = vunpack.c.l.b16 %v192
      %v499 = vunpack.c.h.b16 %v192
      %v500 = vunpack.c.l.b16 %v193
      %v501 = vunpack.c.l.b16 %v194
      %v502 = vunpack.c.h.b16 %v194
      %v503 = vunpack.c.l.b16 %v195
      %v504 = vunpack.c.l.b16 %v196
      %v505 = vunpack.c.h.b16 %v196
      %v506 = vunpack.c.l.b16 %v197
      %v507 = vunpack.c.l.b16 %v198
      %v508 = vunpack.c.h.b16 %v198
      %v509 = vunpack.c.l.b16 %v199
      %v510 = vunpack.c.l.b16 %v200
      %v511 = vunpack.c.h.b16 %v200
      %v512 = vunpack.c.l.b16 %v201
      %v513 = vunpack.c.l.b16 %v202
      %v514 = vunpack.c.h.b16 %v202
      %v515 = vunpack.c.l.b16 %v203
      %v516 = vunpack.c.l.b16 %v204
      %v517 = vunpack.c.h.b16 %v204
      %v518 = vunpack.c.l.b16 %v205
      %v519 = vunpack.c.l.b16 %v206
      %v520 = vunpack.c.h.b16 %v206
      %v521 = vunpack.c.l.b16 %v207
      %v522 = vunpack.c.l.b16 %v208
      %v523 = vunpack.c.h.b16 %v208
      %v524 = vunpack.c.l.b16 %v209
      %v525 = vunpack.c.l.b16 %v210
      %v526 = vunpack.c.h.b16 %v210
      %v527 = vunpack.c.l.b16 %v211
      %v528 = vunpack.c.l.b16 %v212
      %v529 = vunpack.c.h.b16 %v212
      %v530 = vunpack.c.l.b16 %v213
      %v531 = vunpack.c.l.b16 %v214
      %v532 = vunpack.c.h.b16 %v214
      %v533 = vunpack.c.l.b16 %v215
      %v534 = vunpack.c.l.b16 %v216
      %v535 = vunpack.c.h.b16 %v216
      %v536 = vunpack.c.l.b16 %v217
      %v537 = vunpack.c.l.b16 %v218
      %v538 = vunpack.c.h.b16 %v218
      %v539 = vunpack.c.l.b16 %v219
      %v540 = vunpack.c.l.b16 %v220
      %v541 = vunpack.c.h.b16 %v220
      %v542 = vunpack.c.l.b16 %v221
      %v543 = vunpack.c.l.b16 %v222
      %v544 = vunpack.c.h.b16 %v222
      %v545 = vunpack.c.l.b16 %v223
      %v546 = vunpack.c.l.b16 %v224
      %v547 = vunpack.c.h.b16 %v224
      %v548 = vunpack.c.l.b16 %v225
      %v549 = vunpack.c.l.b16 %v226
      %v550 = vunpack.c.h.b16 %v226
      %v551 = vunpack.c.l.b16 %v227
      %v552 = vunpack.c.l.b16 %v228
      %v553 = vunpack.c.h.b16 %v228
      %v554 = vunpack.c.l.b16 %v229
      %v555 = vunpack.c.l.b16 %v230
      %v556 = vunpack.c.h.b16 %v230
      %v557 = vunpack.c.l.b16 %v231
      %v558 = vunpack.c.l.b16 %v232
      %v559 = vunpack.c.h.b16 %v232
      %v560 = vunpack.c.l.b16 %v233
      %v561 = vunpack.c.l.b16 %v234
      %v562 = vunpack.c.h.b16 %v234
      %v563 = vunpack.c.l.b16 %v235
      %v564 = vunpack.c.l.b16 %v236
      %v565 = vunpack.c.h.b16 %v236
      %v566 = vunpack.c.l.b16 %v237
      %v567 = vunpack.c.l.b16 %v238
      %v568 = vunpack.c.h.b16 %v238
      %v569 = vunpack.c.l.b16 %v239
      %v570 = vunpack.c.l.b16 %v240
      %v571 = vunpack.c.h.b16 %v240
      %v572 = vunpack.c.l.b16 %v241
      %v573 = vunpack.c.l.b16 %v242
      %v574 = vunpack.c.h.b16 %v242
      %v575 = vunpack.c.l.b16 %v243
      %v576 = vunpack.c.l.b16 %v244
      %v577 = vunpack.c.h.b16 %v244
      %v578 = vunpack.c.l.b16 %v245
      %v579 = vunpack.c.l.b16 %v246
      %v580 = vunpack.c.h.b16 %v246
      %v581 = vunpack.c.l.b16 %v247
      %v582 = vunpack.c.l.b16 %v248
      %v583 = vunpack.c.h.b16 %v248
      %v584 = vunpack.c.l.b16 %v249
      %v585 = vunpack.c.l.b16 %v250
      %v586 = vunpack.c.h.b16 %v250
      %v587 = vunpack.c.l.b16 %v251
      %v588 = vunpack.c.l.b16 %v252
      %v589 = vunpack.c.h.b16 %v252
      %v590 = vunpack.c.l.b16 %v253
      %v591 = vunpack.c.l.b16 %v254
      %v592 = vunpack.c.h.b16 %v254
      %v593 = vunpack.c.l.b16 %v255
      %v594 = vunpack.c.l.b16 %v256
      %v595 = vunpack.c.h.b16 %v256
      %v596 = vunpack.c.l.b16 %v257
      %v597 = vunpack.c.l.b16 %v258
      %v598 = vunpack.c.h.b16 %v258
      %v599 = vunpack.c.l.b16 %v259
      %v600 = vunpack.c.l.b16 %v260
      %v601 = vunpack.c.h.b16 %v260
      %v602 = vunpack.c.l.b16 %v261
      %v603 = vunpack.c.l.b16 %v262
      %v604 = vunpack.c.h.b16 %v262
      %v605 = vunpack.c.l.b16 %v263
      %v606 = vunpack.c.l.b16 %v264
      %v607 = vunpack.c.h.b16 %v264
      %v608 = vunpack.c.l.b16 %v265
      %v609 = vunpack.c.l.b16 %v266
      %v610 = vunpack.c.h.b16 %v266
      %v611 = vunpack.c.l.b16 %v267
      %v612 = vunpack.c.l.b16 %v268
      %v613 = vunpack.c.h.b16 %v268
      %v614 = vunpack.c.l.b16 %v269
      %v615 = vunpack.c.l.b16 %v270
      %v616 = vunpack.c.h.b16 %v270
      %v617 = vunpack.c.l.b16 %v271
      %v618 = vunpack.c.l.b16 %v272
      %v619 = vunpack.c.h.b16 %v272
      %v620 = vunpack.c.l.b16 %v273
      %v621 = vunpack.c.l.b16 %v274
      %v622 = vunpack.c.h.b16 %v274
      %v623 = vunpack.c.l.b16 %v275
      %v624 = vunpack.c.l.b16 %v276
      %v625 = vunpack.c.h.b16 %v276
      %v626 = vunpack.c.l.b16 %v277
      %v627 = vunpack.c.l.b16 %v278
      %v628 = vunpack.c.h.b16 %v278
      %v629 = vunpack.c.l.b16 %v279
      %v630 = vunpack.c.l.b16 %v280
      %v631 = vunpack.c.h.b16 %v280
      %v632 = vunpack.c.l.b16 %v281
      %v633 = vunpack.c.l.b16 %v282
      %v634 = vunpack.c.h.b16 %v282
      %v635 = vunpack.c.l.b16 %v283
      %v636 = vunpack.c.l.b16 %v284
      %v637 = vunpack.c.h.b16 %v284
      %v638 = vunpack.c.l.b16 %v285
      %v639 = vunpack.c.l.b16 %v286
      %v640 = vunpack.c.h.b16 %v286
      %v641 = vunpack.c.l.b16 %v287
      %v642 = vunpack.c.l.b16 %v288
      %v643 = vunpack.c.h.b16 %v288
      %v644 = vunpack.c.l.b16 %v289
      %v645 = vunpack.c.l.b16 %v290
      %v646 = vunpack.c.h.b16 %v290
      %v647 = vunpack.c.l.b16 %v291
      %v648 = vunpack.c.l.b16 %v292
      %v649 = vunpack.c.h.b16 %v292
      %v650 = vunpack.c.l.b16 %v293
      %v651 = vunpack.c.l.b16 %v294
      %v652 = vunpack.c.h.b16 %v294
      %v653 = vunpack.c.l.b16 %v295
      %v654 = vunpack.c.l.b16 %v296
      %v655 = vunpack.c.h.b16 %v296
      %v656 = vunpack.c.l.b16 %v297
      %v657 = vunpack.c.l.b16 %v298
      %v658 = vunpack.c.h.b16 %v298
      %v659 = vunpack.c.l.b16 %v299
      %v660 = vunpack.c.l.b16 %v300
      %v661 = vunpack.c.h.b16 %v300
      %v662 = vunpack.c.l.b16 %v301
      %v663 = vunpack.c.l.b16 %v302
      %v664 = vunpack.c.h.b16 %v302
      %v665 = vunpack.c.l.b16 %v303
      %v666 = vunpack.c.l.b16 %v304
      %v667 = vunpack.c.h.b16 %v304
      %v668 = vunpack.c.l.b16 %v305
      %v669 = vpack.c.b16 %v480, %v477
      %v670 = vpack.c.b16 %v481, %v478
      %v671 = vpack.c.b16 %v482, %v479
      %v672 = vpack.c.b16 %v486, %v483
      %v673 = vpack.c.b16 %v487, %v484
      %v674 = vpack.c.b16 %v488, %v485
      %v675 = vpack.c.b16 %v492, %v489
      %v676 = vpack.c.b16 %v493, %v490
      %v677 = vpack.c.b16 %v494, %v491
      %v678 = vpack.c.b16 %v498, %v495
      %v679 = vpack.c.b16 %v499, %v496
      %v680 = vpack.c.b16 %v500, %v497
      %v681 = vpack.c.b16 %v504, %v501
      %v682 = vpack.c.b16 %v505, %v502
      %v683 = vpack.c.b16 %v506, %v503
      %v684 = vpack.c.b16 %v510, %v507
      %v685 = vpack.c.b16 %v511, %v508
      %v686 = vpack.c.b16 %v512, %v509
      %v687 = vpack.c.b16 %v516, %v513
      %v688 = vpack.c.b16 %v517, %v514
      %v689 = vpack.c.b16 %v518, %v515
      %v690 = vpack.c.b16 %v522, %v519
      %v691 = vpack.c.b16 %v523, %v520
      %v692 = vpack.c.b16 %v524, %v521
      %v693 = vpack.c.b16 %v528, %v525
      %v694 = vpack.c.b16 %v529, %v526
      %v695 = vpack.c.b16 %v530, %v527
      %v696 = vpack.c.b16 %v534, %v531
      %v697 = vpack.c.b16 %v535, %v532
      %v698 = vpack.c.b16 %v536, %v533
      %v699 = vpack.c.b16 %v540, %v537
      %v700 = vpack.c.b16 %v541, %v538
      %v701 = vpack.c.b16 %v542, %v539
      %v702 = vpack.c.b16 %v546, %v543
      %v703 = vpack.c.b16 %v547, %v544
      %v704 = vpack.c.b16 %v548, %v545
      %v705 = vpack.c.b16 %v552, %v549
      %v706 = vpack.c.b16 %v553, %v550
      %v707 = vpack.c.b16 %v554, %v551
      %v708 = vpack.c.b16 %v558, %v555
      %v709 = vpack.c.b16 %v559, %v556
      %v710 = vpack.c.b16 %v560, %v557
      %v711 = vpack.c.b16 %v564, %v561
      %v712 = vpack.c.b16 %v565, %v562
      %v713 = vpack.c.b16 %v566, %v563
      %v714 = vpack.c.b16 %v570, %v567
      %v715 = vpack.c.b16 %v571, %v568
      %v716 = vpack.c.b16 %v572, %v569
      %v717 = vpack.c.b16 %v576, %v573
      %v718 = vpack.c.b16 %v577, %v574
      %v719 = vpack.c.b16 %v578, %v575
      %v720 = vpack.c.b16 %v582, %v579
      %v721 = vpack.c.b16 %v583, %v580
      %v722 = vpack.c.b16 %v584, %v581
      %v723 = vpack.c.b16 %v588, %v585
      %v724 = vpack.c.b16 %v589, %v586
      %v725 = vpack.c.b16 %v590, %v587
      %v726 = vpack.c.b16 %v594, %v591
      %v727 = vpack.c.b16 %v595, %v592
      %v728 = vpack.c.b16 %v596, %v593
      %v729 = vpack.c.b16 %v600, %v597
      %v730 = vpack.c.b16 %v601, %v598
      %v731 = vpack.c.b16 %v602, %v599
      %v732 = vpack.c.b16 %v606, %v603
      %v733 = vpack.c.b16 %v607, %v604
      %v734 = vpack.c.b16 %v608, %v605
      %v735 = vpack.c.b16 %v612, %v609
      %v736 = vpack.c.b16 %v613, %v610
      %v737 = vpack.c.b16 %v614, %v611
      %v738 = vpack.c.b16 %v618, %v615
      %v739 = vpack.c.b16 %v619, %v616
      %v740 = vpack.c.b16 %v620, %v617
      %v741 = vpack.c.b16 %v624, %v621
      %v742 = vpack.c.b16 %v625, %v622
      %v743 = vpack.c.b16 %v626, %v623
      %v744 = vpack.c.b16 %v630, %v627
      %v745 = vpack.c.b16 %v631, %v628
      %v746 = vpack.c.b16 %v632, %v629
      %v747 = vpack.c.b16 %v636, %v633
      %v748 = vpack.c.b16 %v637, %v634
      %v749 = vpack.c.b16 %v638, %v635
      %v750 = vpack.c.b16 %v642, %v639
      %v751 = vpack.c.b16 %v643, %v640
      %v752 = vpack.c.b16 %v644, %v641
      %v753 = vpack.c.b16 %v648, %v645
      %v754 = vpack.c.b16 %v649, %v646
      %v755 = vpack.c.b16 %v650, %v647
      %v756 = vpack.c.b16 %v654, %v651
      %v757 = vpack.c.b16 %v655, %v652
      %v758 = vpack.c.b16 %v656, %v653
      %v759 = vpack.c.b16 %v660, %v657
      %v760 = vpack.c.b16 %v661, %v658
      %v761 = vpack.c.b16 %v662, %v659
      %v762 = vpack.c.b16 %v666, %v663
      %v763 = vpack.c.b16 %v667, %v664
      %v764 = vpack.c.b16 %v668, %v665
      %v865 = vunpack.c.l.b16 %v306
      %v866 = vunpack.c.l.b16 %v307
      %v867 = vunpack.c.l.b16 %v308
      %v868 = vunpack.c.l.b16 %v309
      %v869 = vunpack.c.l.b16 %v310
      %v870 = vunpack.c.l.b16 %v311
      %v871 = vunpack.c.l.b16 %v312
      %v872 = vunpack.c.l.b16 %v313
      %v873 = vunpack.c.l.b16 %v314
      %v874 = vunpack.c.l.b16 %v315
      %v875 = vunpack.c.l.b16 %v316
      %v876 = vunpack.c.l.b16 %v317
      %v877 = vunpack.c.l.b16 %v318
      %v878 = vunpack.c.l.b16 %v319
      %v879 = vunpack.c.l.b16 %v320
      %v880 = vunpack.c.l.b16 %v321
      %v881 = vunpack.c.l.b16 %v322
      %v882 = vunpack.c.l.b16 %v323
      %v883 = vunpack.c.l.b16 %v324
      %v884 = vunpack.c.l.b16 %v325
      %v885 = vunpack.c.l.b16 %v326
      %v886 = vunpack.c.l.b16 %v327
      %v887 = vunpack.c.l.b16 %v328
      %v888 = vunpack.c.l.b16 %v329
      %v889 = vunpack.c.l.b16 %v330
      %v890 = vunpack.c.l.b16 %v331
      %v891 = vunpack.c.l.b16 %v332
      %v892 = vunpack.c.l.b16 %v333
      %v893 = vunpack.c.l.b16 %v334
      %v894 = vunpack.c.l.b16 %v335
      %v895 = vunpack.c.l.b16 %v336
      %v896 = vunpack.c.l.b16 %v337
      %v897 = vunpack.c.l.b16 %v338
      %v898 = vunpack.c.l.b16 %v339
      %v899 = vunpack.c.l.b16 %v340
      %v900 = vunpack.c.l.b16 %v341
      %v901 = vpack.c.b16 %v866, %v865
      %v902 = vpack.c.b16 %v868, %v867
      %v903 = vpack.c.b16 %v870, %v869
      %v904 = vpack.c.b16 %v872, %v871
      %v905 = vpack.c.b16 %v874, %v873
      %v906 = vpack.c.b16 %v876, %v875
      %v907 = vpack.c.b16 %v878, %v877
      %v908 = vpack.c.b16 %v880, %v879
      %v909 = vpack.c.b16 %v882, %v881
      %v910 = vpack.c.b16 %v884, %v883
      %v911 = vpack.c.b16 %v886, %v885
      %v912 = vpack.c.b16 %v888, %v887
      %v913 = vpack.c.b16 %v890, %v889
      %v914 = vpack.c.b16 %v892, %v891
      %v915 = vpack.c.b16 %v894, %v893
      %v916 = vpack.c.b16 %v896, %v895
      %v917 = vpack.c.b16 %v898, %v897
      %v918 = vpack.c.b16 %v900, %v899
      %vm937 = vcmask 261120
      %v939 = vsel %vm937, %v671, 0
      %v942 = vsel %vm937, %v674, 0
      %v945 = vsel %vm937, %v677, 0
      %v948 = vsel %vm937, %v680, 0
      %v951 = vsel %vm937, %v683, 0
      %v954 = vsel %vm937, %v686, 0
      %v957 = vsel %vm937, %v689, 0
      %v960 = vsel %vm937, %v692, 0
      %v963 = vsel %vm937, %v695, 0
      %v966 = vsel %vm937, %v698, 0
      %v969 = vsel %vm937, %v701, 0
      %v972 = vsel %vm937, %v704, 0
      %v975 = vsel %vm937, %v707, 0
      %v978 = vsel %vm937, %v710, 0
      %v981 = vsel %vm937, %v713, 0
      %v984 = vsel %vm937, %v716, 0
      %v987 = vsel %vm937, %v719, 0
      %v990 = vsel %vm937, %v722, 0
      %v993 = vsel %vm937, %v725, 0
      %v996 = vsel %vm937, %v728, 0
      %v999 = vsel %vm937, %v731, 0
      %v1002 = vsel %vm937, %v734, 0
      %v1005 = vsel %vm937, %v737, 0
      %v1008 = vsel %vm937, %v740, 0
      %v1011 = vsel %vm937, %v743, 0
      %v1014 = vsel %vm937, %v746, 0
      %v1017 = vsel %vm937, %v749, 0
      %v1020 = vsel %vm937, %v752, 0
      %v1023 = vsel %vm937, %v755, 0
      %v1026 = vsel %vm937, %v758, 0
      %v1029 = vsel %vm937, %v761, 0
      %v1032 = vsel %vm937, %v764, 0
      %1034 = vmatprep.subr.bf16.mxu0 0
      %1035 = vmatpush1.bf16.msra.mxu0 %v901
      %1036 = vmatprep.subr.bf16.mxu0 0
      %1037 = vmatpush1.bf16.msra.mxu0 %v902
      %1038 = vmatprep.subr.bf16.mxu0 0
      %1039 = vmatpush1.bf16.msra.mxu0 %v903
      %1040 = vmatprep.subr.bf16.mxu0 0
      %1041 = vmatpush1.bf16.msra.mxu0 %v904
      %1042 = vmatprep.subr.bf16.mxu0 0
      %1043 = vmatpush1.bf16.msra.mxu0 %v905
      %1044 = vmatprep.subr.bf16.mxu0 0
      %1045 = vmatpush1.bf16.msra.mxu0 %v906
      %1046 = vmatprep.subr.bf16.mxu0 0
      %1047 = vmatpush1.bf16.msra.mxu0 %v907
      %1048 = vmatprep.subr.bf16.mxu0 0
      %1049 = vmatpush1.bf16.msra.mxu0 %v908
      %1050 = vmatprep.subr.bf16.mxu0 0
      %1051 = vmatpush1.bf16.msra.mxu0 %v909
      %1052 = vmatprep.subr.bf16.mxu0 0
      %1053 = vmatpush1.bf16.msra.mxu0 %v910
      %1054 = vmatprep.subr.bf16.mxu0 0
      %1055 = vmatpush1.bf16.msra.mxu0 %v911
      %1056 = vmatprep.subr.bf16.mxu0 0
      %1057 = vmatpush1.bf16.msra.mxu0 %v912
      %1058 = vmatprep.subr.bf16.mxu0 0
      %1059 = vmatpush1.bf16.msra.mxu0 %v913
      %1060 = vmatprep.subr.bf16.mxu0 0
      %1061 = vmatpush1.bf16.msra.mxu0 %v914
      %1062 = vmatprep.subr.bf16.mxu0 0
      %1063 = vmatpush1.bf16.msra.mxu0 %v915
      %1064 = vmatprep.subr.bf16.mxu0 0
      %1065 = vmatpush1.bf16.msra.mxu0 %v916
      %1066 = vmatprep.mubr.bf16.mxu0 %v670
      %1067 = vmatmul.mubr.bf16.gmra.mrb[0].mxu0 %v669
      %v1068 = vpop.f32.mrb[0].mxu0
      %v1069 = vadd.f32 %v347, %v1068
      %v1070 = vpop.f32.mrb[0].mxu0
      %v1071 = vpop.f32.mrb[0].mxu0
      %v1072 = vadd.f32 %v347, %v1071
      %v1073 = vpop.f32.mrb[0].mxu0
      %1074 = vmatprep.mubr.bf16.mxu0 %v673
      %1075 = vmatmul.mubr.bf16.gmra.mrb[0].mxu0 %v672
      %v1076 = vpop.f32.mrb[0].mxu0
      %v1077 = vadd.f32 %v347, %v1076
      %v1078 = vpop.f32.mrb[0].mxu0
      %v1079 = vpop.f32.mrb[0].mxu0
      %v1080 = vadd.f32 %v347, %v1079
      %v1081 = vpop.f32.mrb[0].mxu0
      %1082 = vmatprep.mubr.bf16.mxu0 %v676
      %1083 = vmatmul.mubr.bf16.gmra.mrb[0].mxu0 %v675
      %v1084 = vpop.f32.mrb[0].mxu0
      %v1085 = vadd.f32 %v347, %v1084
      %v1086 = vpop.f32.mrb[0].mxu0
      %v1087 = vpop.f32.mrb[0].mxu0
      %v1088 = vadd.f32 %v347, %v1087
      %v1089 = vpop.f32.mrb[0].mxu0
      %1090 = vmatprep.mubr.bf16.mxu0 %v679
      %1091 = vmatmul.mubr.bf16.gmra.mrb[0].mxu0 %v678
      %v1092 = vpop.f32.mrb[0].mxu0
      %v1093 = vadd.f32 %v347, %v1092
      %v1094 = vpop.f32.mrb[0].mxu0
      %v1095 = vpop.f32.mrb[0].mxu0
      %v1096 = vadd.f32 %v347, %v1095
      %v1097 = vpop.f32.mrb[0].mxu0
      %1098 = vmatprep.mubr.bf16.mxu0 %v682
      %1099 = vmatmul.mubr.bf16.gmra.mrb[0].mxu0 %v681
      %v1100 = vpop.f32.mrb[0].mxu0
      %v1101 = vadd.f32 %v347, %v1100
      %v1102 = vpop.f32.mrb[0].mxu0
      %v1103 = vpop.f32.mrb[0].mxu0
      %v1104 = vadd.f32 %v347, %v1103
      %v1105 = vpop.f32.mrb[0].mxu0
      %1106 = vmatprep.mubr.bf16.mxu0 %v685
      %1107 = vmatmul.mubr.bf16.gmra.mrb[0].mxu0 %v684
      %v1108 = vpop.f32.mrb[0].mxu0
      %v1109 = vadd.f32 %v347, %v1108
      %v1110 = vpop.f32.mrb[0].mxu0
      %v1111 = vpop.f32.mrb[0].mxu0
      %v1112 = vadd.f32 %v347, %v1111
      %v1113 = vpop.f32.mrb[0].mxu0
      %1114 = vmatprep.mubr.bf16.mxu0 %v688
      %1115 = vmatmul.mubr.bf16.gmra.mrb[0].mxu0 %v687
      %v1116 = vpop.f32.mrb[0].mxu0
      %v1117 = vadd.f32 %v347, %v1116
      %v1118 = vpop.f32.mrb[0].mxu0
      %v1119 = vpop.f32.mrb[0].mxu0
      %v1120 = vadd.f32 %v347, %v1119
      %v1121 = vpop.f32.mrb[0].mxu0
      %1122 = vmatprep.mubr.bf16.mxu0 %v691
      %1123 = vmatmul.mubr.bf16.gmra.mrb[0].mxu0 %v690
      %v1124 = vpop.f32.mrb[0].mxu0
      %v1125 = vadd.f32 %v347, %v1124
      %v1126 = vpop.f32.mrb[0].mxu0
      %v1127 = vpop.f32.mrb[0].mxu0
      %v1128 = vadd.f32 %v347, %v1127
      %v1129 = vpop.f32.mrb[0].mxu0
      %1130 = vmatprep.mubr.bf16.mxu0 %v694
      %1131 = vmatmul.mubr.bf16.gmra.mrb[0].mxu0 %v693
      %v1132 = vpop.f32.mrb[0].mxu0
      %v1133 = vadd.f32 %v347, %v1132
      %v1134 = vpop.f32.mrb[0].mxu0
      %v1135 = vpop.f32.mrb[0].mxu0
      %v1136 = vadd.f32 %v347, %v1135
      %v1137 = vpop.f32.mrb[0].mxu0
      %1138 = vmatprep.mubr.bf16.mxu0 %v697
      %1139 = vmatmul.mubr.bf16.gmra.mrb[0].mxu0 %v696
      %v1140 = vpop.f32.mrb[0].mxu0
      %v1141 = vadd.f32 %v347, %v1140
      %v1142 = vpop.f32.mrb[0].mxu0
      %v1143 = vpop.f32.mrb[0].mxu0
      %v1144 = vadd.f32 %v347, %v1143
      %v1145 = vpop.f32.mrb[0].mxu0
      %1146 = vmatprep.mubr.bf16.mxu0 %v700
      %1147 = vmatmul.mubr.bf16.gmra.mrb[0].mxu0 %v699
      %v1148 = vpop.f32.mrb[0].mxu0
      %v1149 = vadd.f32 %v347, %v1148
      %v1150 = vpop.f32.mrb[0].mxu0
      %v1151 = vpop.f32.mrb[0].mxu0
      %v1152 = vadd.f32 %v347, %v1151
      %v1153 = vpop.f32.mrb[0].mxu0
      %1154 = vmatprep.mubr.bf16.mxu0 %v703
      %1155 = vmatmul.mubr.bf16.gmra.mrb[0].mxu0 %v702
      %v1156 = vpop.f32.mrb[0].mxu0
      %v1157 = vadd.f32 %v347, %v1156
      %v1158 = vpop.f32.mrb[0].mxu0
      %v1159 = vpop.f32.mrb[0].mxu0
      %v1160 = vadd.f32 %v347, %v1159
      %v1161 = vpop.f32.mrb[0].mxu0
      %1162 = vmatprep.mubr.bf16.mxu0 %v706
      %1163 = vmatmul.mubr.bf16.gmra.mrb[0].mxu0 %v705
      %v1164 = vpop.f32.mrb[0].mxu0
      %v1165 = vadd.f32 %v347, %v1164
      %v1166 = vpop.f32.mrb[0].mxu0
      %v1167 = vpop.f32.mrb[0].mxu0
      %v1168 = vadd.f32 %v347, %v1167
      %v1169 = vpop.f32.mrb[0].mxu0
      %1170 = vmatprep.mubr.bf16.mxu0 %v709
      %1171 = vmatmul.mubr.bf16.gmra.mrb[0].mxu0 %v708
      %v1172 = vpop.f32.mrb[0].mxu0
      %v1173 = vadd.f32 %v347, %v1172
      %v1174 = vpop.f32.mrb[0].mxu0
      %v1175 = vpop.f32.mrb[0].mxu0
      %v1176 = vadd.f32 %v347, %v1175
      %v1177 = vpop.f32.mrb[0].mxu0
      %1178 = vmatprep.mubr.bf16.mxu0 %v712
      %1179 = vmatmul.mubr.bf16.gmra.mrb[0].mxu0 %v711
      %v1180 = vpop.f32.mrb[0].mxu0
      %v1181 = vadd.f32 %v347, %v1180
      %v1182 = vpop.f32.mrb[0].mxu0
      %v1183 = vpop.f32.mrb[0].mxu0
      %v1184 = vadd.f32 %v347, %v1183
      %v1185 = vpop.f32.mrb[0].mxu0
      %1186 = vmatprep.mubr.bf16.mxu0 %v715
      %1187 = vmatmul.mubr.bf16.gmra.mrb[0].mxu0 %v714
      %v1188 = vpop.f32.mrb[0].mxu0
      %v1189 = vadd.f32 %v347, %v1188
      %v1190 = vpop.f32.mrb[0].mxu0
      %v1191 = vpop.f32.mrb[0].mxu0
      %v1192 = vadd.f32 %v347, %v1191
      %v1193 = vpop.f32.mrb[0].mxu0
      %1194 = vmatprep.mubr.bf16.mxu0 %v718
      %1195 = vmatmul.mubr.bf16.gmra.mrb[0].mxu0 %v717
      %v1196 = vpop.f32.mrb[0].mxu0
      %v1197 = vadd.f32 %v347, %v1196
      %v1198 = vpop.f32.mrb[0].mxu0
      %v1199 = vpop.f32.mrb[0].mxu0
      %v1200 = vadd.f32 %v347, %v1199
      %v1201 = vpop.f32.mrb[0].mxu0
      %1202 = vmatprep.mubr.bf16.mxu0 %v721
      %1203 = vmatmul.mubr.bf16.gmra.mrb[0].mxu0 %v720
      %v1204 = vpop.f32.mrb[0].mxu0
      %v1205 = vadd.f32 %v347, %v1204
      %v1206 = vpop.f32.mrb[0].mxu0
      %v1207 = vpop.f32.mrb[0].mxu0
      %v1208 = vadd.f32 %v347, %v1207
      %v1209 = vpop.f32.mrb[0].mxu0
      %1210 = vmatprep.mubr.bf16.mxu0 %v724
      %1211 = vmatmul.mubr.bf16.gmra.mrb[0].mxu0 %v723
      %v1212 = vpop.f32.mrb[0].mxu0
      %v1213 = vadd.f32 %v347, %v1212
      %v1214 = vpop.f32.mrb[0].mxu0
      %v1215 = vpop.f32.mrb[0].mxu0
      %v1216 = vadd.f32 %v347, %v1215
      %v1217 = vpop.f32.mrb[0].mxu0
      %1218 = vmatprep.mubr.bf16.mxu0 %v727
      %1219 = vmatmul.mubr.bf16.gmra.mrb[0].mxu0 %v726
      %v1220 = vpop.f32.mrb[0].mxu0
      %v1221 = vadd.f32 %v347, %v1220
      %v1222 = vpop.f32.mrb[0].mxu0
      %v1223 = vpop.f32.mrb[0].mxu0
      %v1224 = vadd.f32 %v347, %v1223
      %v1225 = vpop.f32.mrb[0].mxu0
      %1226 = vmatprep.mubr.bf16.mxu0 %v730
      %1227 = vmatmul.mubr.bf16.gmra.mrb[0].mxu0 %v729
      %v1228 = vpop.f32.mrb[0].mxu0
      %v1229 = vadd.f32 %v347, %v1228
      %v1230 = vpop.f32.mrb[0].mxu0
      %v1231 = vpop.f32.mrb[0].mxu0
      %v1232 = vadd.f32 %v347, %v1231
      %v1233 = vpop.f32.mrb[0].mxu0
      %1234 = vmatprep.mubr.bf16.mxu0 %v733
      %1235 = vmatmul.mubr.bf16.gmra.mrb[0].mxu0 %v732
      %v1236 = vpop.f32.mrb[0].mxu0
      %v1237 = vadd.f32 %v347, %v1236
      %v1238 = vpop.f32.mrb[0].mxu0
      %v1239 = vpop.f32.mrb[0].mxu0
      %v1240 = vadd.f32 %v347, %v1239
      %v1241 = vpop.f32.mrb[0].mxu0
      %1242 = vmatprep.mubr.bf16.mxu0 %v736
      %1243 = vmatmul.mubr.bf16.gmra.mrb[0].mxu0 %v735
      %v1244 = vpop.f32.mrb[0].mxu0
      %v1245 = vadd.f32 %v347, %v1244
      %v1246 = vpop.f32.mrb[0].mxu0
      %v1247 = vpop.f32.mrb[0].mxu0
      %v1248 = vadd.f32 %v347, %v1247
      %v1249 = vpop.f32.mrb[0].mxu0
      %1250 = vmatprep.mubr.bf16.mxu0 %v739
      %1251 = vmatmul.mubr.bf16.gmra.mrb[0].mxu0 %v738
      %v1252 = vpop.f32.mrb[0].mxu0
      %v1253 = vadd.f32 %v347, %v1252
      %v1254 = vpop.f32.mrb[0].mxu0
      %v1255 = vpop.f32.mrb[0].mxu0
      %v1256 = vadd.f32 %v347, %v1255
      %v1257 = vpop.f32.mrb[0].mxu0
      %1258 = vmatprep.mubr.bf16.mxu0 %v742
      %1259 = vmatmul.mubr.bf16.gmra.mrb[0].mxu0 %v741
      %v1260 = vpop.f32.mrb[0].mxu0
      %v1261 = vadd.f32 %v347, %v1260
      %v1262 = vpop.f32.mrb[0].mxu0
      %v1263 = vpop.f32.mrb[0].mxu0
      %v1264 = vadd.f32 %v347, %v1263
      %v1265 = vpop.f32.mrb[0].mxu0
      %1266 = vmatprep.mubr.bf16.mxu0 %v745
      %1267 = vmatmul.mubr.bf16.gmra.mrb[0].mxu0 %v744
      %v1268 = vpop.f32.mrb[0].mxu0
      %v1269 = vadd.f32 %v347, %v1268
      %v1270 = vpop.f32.mrb[0].mxu0
      %v1271 = vpop.f32.mrb[0].mxu0
      %v1272 = vadd.f32 %v347, %v1271
      %v1273 = vpop.f32.mrb[0].mxu0
      %1274 = vmatprep.mubr.bf16.mxu0 %v748
      %1275 = vmatmul.mubr.bf16.gmra.mrb[0].mxu0 %v747
      %v1276 = vpop.f32.mrb[0].mxu0
      %v1277 = vadd.f32 %v347, %v1276
      %v1278 = vpop.f32.mrb[0].mxu0
      %v1279 = vpop.f32.mrb[0].mxu0
      %v1280 = vadd.f32 %v347, %v1279
      %v1281 = vpop.f32.mrb[0].mxu0
      %1282 = vmatprep.mubr.bf16.mxu0 %v751
      %1283 = vmatmul.mubr.bf16.gmra.mrb[0].mxu0 %v750
      %v1284 = vpop.f32.mrb[0].mxu0
      %v1285 = vadd.f32 %v347, %v1284
      %v1286 = vpop.f32.mrb[0].mxu0
      %v1287 = vpop.f32.mrb[0].mxu0
      %v1288 = vadd.f32 %v347, %v1287
      %v1289 = vpop.f32.mrb[0].mxu0
      %1290 = vmatprep.mubr.bf16.mxu0 %v754
      %1291 = vmatmul.mubr.bf16.gmra.mrb[0].mxu0 %v753
      %v1292 = vpop.f32.mrb[0].mxu0
      %v1293 = vadd.f32 %v347, %v1292
      %v1294 = vpop.f32.mrb[0].mxu0
      %v1295 = vpop.f32.mrb[0].mxu0
      %v1296 = vadd.f32 %v347, %v1295
      %v1297 = vpop.f32.mrb[0].mxu0
      %1298 = vmatprep.mubr.bf16.mxu0 %v757
      %1299 = vmatmul.mubr.bf16.gmra.mrb[0].mxu0 %v756
      %v1300 = vpop.f32.mrb[0].mxu0
      %v1301 = vadd.f32 %v347, %v1300
      %v1302 = vpop.f32.mrb[0].mxu0
      %v1303 = vpop.f32.mrb[0].mxu0
      %v1304 = vadd.f32 %v347, %v1303
      %v1305 = vpop.f32.mrb[0].mxu0
      %1306 = vmatprep.mubr.bf16.mxu0 %v760
      %1307 = vmatmul.mubr.bf16.gmra.mrb[0].mxu0 %v759
      %v1308 = vpop.f32.mrb[0].mxu0
      %v1309 = vadd.f32 %v347, %v1308
      %v1310 = vpop.f32.mrb[0].mxu0
      %v1311 = vpop.f32.mrb[0].mxu0
      %v1312 = vadd.f32 %v347, %v1311
      %v1313 = vpop.f32.mrb[0].mxu0
      %1314 = vmatprep.mubr.bf16.mxu0 %v763
      %1315 = vmatmul.mubr.bf16.gmra.mrb[0].mxu0 %v762
      %v1316 = vpop.f32.mrb[0].mxu0
      %v1317 = vadd.f32 %v347, %v1316
      %v1318 = vpop.f32.mrb[0].mxu0
      %v1319 = vpop.f32.mrb[0].mxu0
      %v1320 = vadd.f32 %v347, %v1319
      %v1321 = vpop.f32.mrb[0].mxu0
      %1322 = vdwg.mxu0
      %1323 = vmatprep.subr.bf16.mxu0 0
      %1324 = vmatpush1.bf16.msra.mxu0 %v917
      %1325 = vmatprep.subr.bf16.mxu0 0
      %1326 = vmatpush1.bf16.msra.mxu0 %v918
      %1327 = vmatprep.subr.bf16.mxu0 0
      %1328 = vmatpush1.bf16.msra.mxu0 0
      %1329 = vmatprep.subr.bf16.mxu0 0
      %1330 = vmatpush1.bf16.msra.mxu0 0
      %1331 = vmatprep.subr.bf16.mxu0 0
      %1332 = vmatpush1.bf16.msra.mxu0 0
      %1333 = vmatprep.subr.bf16.mxu0 0
      %1334 = vmatpush1.bf16.msra.mxu0 0
      %1335 = vmatprep.subr.bf16.mxu0 0
      %1336 = vmatpush1.bf16.msra.mxu0 0
      %1337 = vmatprep.subr.bf16.mxu0 0
      %1338 = vmatpush1.bf16.msra.mxu0 0
      %1339 = vmatprep.subr.bf16.mxu0 0
      %1340 = vmatpush1.bf16.msra.mxu0 0
      %1341 = vmatprep.subr.bf16.mxu0 0
      %1342 = vmatpush1.bf16.msra.mxu0 0
      %1343 = vmatprep.subr.bf16.mxu0 0
      %1344 = vmatpush1.bf16.msra.mxu0 0
      %1345 = vmatprep.subr.bf16.mxu0 0
      %1346 = vmatpush1.bf16.msra.mxu0 0
      %1347 = vmatprep.subr.bf16.mxu0 0
      %1348 = vmatpush1.bf16.msra.mxu0 0
      %1349 = vmatprep.subr.bf16.mxu0 0
      %1350 = vmatpush1.bf16.msra.mxu0 0
      %1351 = vmatprep.subr.bf16.mxu0 0
      %1352 = vmatpush1.bf16.msra.mxu0 0
      %1353 = vmatprep.subr.bf16.mxu0 0
      %1354 = vmatpush1.bf16.msra.mxu0 0
      %1355 = vmatprep.mubr.bf16.mxu0 0
      %1356 = vmatmul.mubr.bf16.gmra.mrb[0].mxu0 %v939
      %v1357 = vpop.f32.mrb[0].mxu0
      %v1358 = vadd.f32 %v1069, %v1357
      %v1359 = vpop.f32.mrb[0].mxu0
      %v1360 = vpop.f32.mrb[0].mxu0
      %v1361 = vadd.f32 %v1072, %v1360
      %v1362 = vpop.f32.mrb[0].mxu0
      %1363 = vmatprep.mubr.bf16.mxu0 0
      %1364 = vmatmul.mubr.bf16.gmra.mrb[0].mxu0 %v942
      %v1365 = vpop.f32.mrb[0].mxu0
      %v1366 = vadd.f32 %v1077, %v1365
      %v1367 = vpop.f32.mrb[0].mxu0
      %v1368 = vpop.f32.mrb[0].mxu0
      %v1369 = vadd.f32 %v1080, %v1368
      %v1370 = vpop.f32.mrb[0].mxu0
      %1371 = vmatprep.mubr.bf16.mxu0 0
      %1372 = vmatmul.mubr.bf16.gmra.mrb[0].mxu0 %v945
      %v1373 = vpop.f32.mrb[0].mxu0
      %v1374 = vadd.f32 %v1085, %v1373
      %v1375 = vpop.f32.mrb[0].mxu0
      %v1376 = vpop.f32.mrb[0].mxu0
      %v1377 = vadd.f32 %v1088, %v1376
      %v1378 = vpop.f32.mrb[0].mxu0
      %1379 = vmatprep.mubr.bf16.mxu0 0
      %1380 = vmatmul.mubr.bf16.gmra.mrb[0].mxu0 %v948
      %v1381 = vpop.f32.mrb[0].mxu0
      %v1382 = vadd.f32 %v1093, %v1381
      %v1383 = vpop.f32.mrb[0].mxu0
      %v1384 = vpop.f32.mrb[0].mxu0
      %v1385 = vadd.f32 %v1096, %v1384
      %v1386 = vpop.f32.mrb[0].mxu0
      %1387 = vmatprep.mubr.bf16.mxu0 0
      %1388 = vmatmul.mubr.bf16.gmra.mrb[0].mxu0 %v951
      %v1389 = vpop.f32.mrb[0].mxu0
      %v1390 = vadd.f32 %v1101, %v1389
      %v1391 = vpop.f32.mrb[0].mxu0
      %v1392 = vpop.f32.mrb[0].mxu0
      %v1393 = vadd.f32 %v1104, %v1392
      %v1394 = vpop.f32.mrb[0].mxu0
      %1395 = vmatprep.mubr.bf16.mxu0 0
      %1396 = vmatmul.mubr.bf16.gmra.mrb[0].mxu0 %v954
      %v1397 = vpop.f32.mrb[0].mxu0
      %v1398 = vadd.f32 %v1109, %v1397
      %v1399 = vpop.f32.mrb[0].mxu0
      %v1400 = vpop.f32.mrb[0].mxu0
      %v1401 = vadd.f32 %v1112, %v1400
      %v1402 = vpop.f32.mrb[0].mxu0
      %1403 = vmatprep.mubr.bf16.mxu0 0
      %1404 = vmatmul.mubr.bf16.gmra.mrb[0].mxu0 %v957
      %v1405 = vpop.f32.mrb[0].mxu0
      %v1406 = vadd.f32 %v1117, %v1405
      %v1407 = vpop.f32.mrb[0].mxu0
      %v1408 = vpop.f32.mrb[0].mxu0
      %v1409 = vadd.f32 %v1120, %v1408
      %v1410 = vpop.f32.mrb[0].mxu0
      %1411 = vmatprep.mubr.bf16.mxu0 0
      %1412 = vmatmul.mubr.bf16.gmra.mrb[0].mxu0 %v960
      %v1413 = vpop.f32.mrb[0].mxu0
      %v1414 = vadd.f32 %v1125, %v1413
      %v1415 = vpop.f32.mrb[0].mxu0
      %v1416 = vpop.f32.mrb[0].mxu0
      %v1417 = vadd.f32 %v1128, %v1416
      %v1418 = vpop.f32.mrb[0].mxu0
      %1419 = vmatprep.mubr.bf16.mxu0 0
      %1420 = vmatmul.mubr.bf16.gmra.mrb[0].mxu0 %v963
      %v1421 = vpop.f32.mrb[0].mxu0
      %v1422 = vadd.f32 %v1133, %v1421
      %v1423 = vpop.f32.mrb[0].mxu0
      %v1424 = vpop.f32.mrb[0].mxu0
      %v1425 = vadd.f32 %v1136, %v1424
      %v1426 = vpop.f32.mrb[0].mxu0
      %1427 = vmatprep.mubr.bf16.mxu0 0
      %1428 = vmatmul.mubr.bf16.gmra.mrb[0].mxu0 %v966
      %v1429 = vpop.f32.mrb[0].mxu0
      %v1430 = vadd.f32 %v1141, %v1429
      %v1431 = vpop.f32.mrb[0].mxu0
      %v1432 = vpop.f32.mrb[0].mxu0
      %v1433 = vadd.f32 %v1144, %v1432
      %v1434 = vpop.f32.mrb[0].mxu0
      %1435 = vmatprep.mubr.bf16.mxu0 0
      %1436 = vmatmul.mubr.bf16.gmra.mrb[0].mxu0 %v969
      %v1437 = vpop.f32.mrb[0].mxu0
      %v1438 = vadd.f32 %v1149, %v1437
      %v1439 = vpop.f32.mrb[0].mxu0
      %v1440 = vpop.f32.mrb[0].mxu0
      %v1441 = vadd.f32 %v1152, %v1440
      %v1442 = vpop.f32.mrb[0].mxu0
      %1443 = vmatprep.mubr.bf16.mxu0 0
      %1444 = vmatmul.mubr.bf16.gmra.mrb[0].mxu0 %v972
      %v1445 = vpop.f32.mrb[0].mxu0
      %v1446 = vadd.f32 %v1157, %v1445
      %v1447 = vpop.f32.mrb[0].mxu0
      %v1448 = vpop.f32.mrb[0].mxu0
      %v1449 = vadd.f32 %v1160, %v1448
      %v1450 = vpop.f32.mrb[0].mxu0
      %1451 = vmatprep.mubr.bf16.mxu0 0
      %1452 = vmatmul.mubr.bf16.gmra.mrb[0].mxu0 %v975
      %v1453 = vpop.f32.mrb[0].mxu0
      %v1454 = vadd.f32 %v1165, %v1453
      %v1455 = vpop.f32.mrb[0].mxu0
      %v1456 = vpop.f32.mrb[0].mxu0
      %v1457 = vadd.f32 %v1168, %v1456
      %v1458 = vpop.f32.mrb[0].mxu0
      %1459 = vmatprep.mubr.bf16.mxu0 0
      %1460 = vmatmul.mubr.bf16.gmra.mrb[0].mxu0 %v978
      %v1461 = vpop.f32.mrb[0].mxu0
      %v1462 = vadd.f32 %v1173, %v1461
      %v1463 = vpop.f32.mrb[0].mxu0
      %v1464 = vpop.f32.mrb[0].mxu0
      %v1465 = vadd.f32 %v1176, %v1464
      %v1466 = vpop.f32.mrb[0].mxu0
      %1467 = vmatprep.mubr.bf16.mxu0 0
      %1468 = vmatmul.mubr.bf16.gmra.mrb[0].mxu0 %v981
      %v1469 = vpop.f32.mrb[0].mxu0
      %v1470 = vadd.f32 %v1181, %v1469
      %v1471 = vpop.f32.mrb[0].mxu0
      %v1472 = vpop.f32.mrb[0].mxu0
      %v1473 = vadd.f32 %v1184, %v1472
      %v1474 = vpop.f32.mrb[0].mxu0
      %1475 = vmatprep.mubr.bf16.mxu0 0
      %1476 = vmatmul.mubr.bf16.gmra.mrb[0].mxu0 %v984
      %v1477 = vpop.f32.mrb[0].mxu0
      %v1478 = vadd.f32 %v1189, %v1477
      %v1479 = vpop.f32.mrb[0].mxu0
      %v1480 = vpop.f32.mrb[0].mxu0
      %v1481 = vadd.f32 %v1192, %v1480
      %v1482 = vpop.f32.mrb[0].mxu0
      %1483 = vmatprep.mubr.bf16.mxu0 0
      %1484 = vmatmul.mubr.bf16.gmra.mrb[0].mxu0 %v987
      %v1485 = vpop.f32.mrb[0].mxu0
      %v1486 = vadd.f32 %v1197, %v1485
      %v1487 = vpop.f32.mrb[0].mxu0
      %v1488 = vpop.f32.mrb[0].mxu0
      %v1489 = vadd.f32 %v1200, %v1488
      %v1490 = vpop.f32.mrb[0].mxu0
      %1491 = vmatprep.mubr.bf16.mxu0 0
      %1492 = vmatmul.mubr.bf16.gmra.mrb[0].mxu0 %v990
      %v1493 = vpop.f32.mrb[0].mxu0
      %v1494 = vadd.f32 %v1205, %v1493
      %v1495 = vpop.f32.mrb[0].mxu0
      %v1496 = vpop.f32.mrb[0].mxu0
      %v1497 = vadd.f32 %v1208, %v1496
      %v1498 = vpop.f32.mrb[0].mxu0
      %1499 = vmatprep.mubr.bf16.mxu0 0
      %1500 = vmatmul.mubr.bf16.gmra.mrb[0].mxu0 %v993
      %v1501 = vpop.f32.mrb[0].mxu0
      %v1502 = vadd.f32 %v1213, %v1501
      %v1503 = vpop.f32.mrb[0].mxu0
      %v1504 = vpop.f32.mrb[0].mxu0
      %v1505 = vadd.f32 %v1216, %v1504
      %v1506 = vpop.f32.mrb[0].mxu0
      %1507 = vmatprep.mubr.bf16.mxu0 0
      %1508 = vmatmul.mubr.bf16.gmra.mrb[0].mxu0 %v996
      %v1509 = vpop.f32.mrb[0].mxu0
      %v1510 = vadd.f32 %v1221, %v1509
      %v1511 = vpop.f32.mrb[0].mxu0
      %v1512 = vpop.f32.mrb[0].mxu0
      %v1513 = vadd.f32 %v1224, %v1512
      %v1514 = vpop.f32.mrb[0].mxu0
      %1515 = vmatprep.mubr.bf16.mxu0 0
      %1516 = vmatmul.mubr.bf16.gmra.mrb[0].mxu0 %v999
      %v1517 = vpop.f32.mrb[0].mxu0
      %v1518 = vadd.f32 %v1229, %v1517
      %v1519 = vpop.f32.mrb[0].mxu0
      %v1520 = vpop.f32.mrb[0].mxu0
      %v1521 = vadd.f32 %v1232, %v1520
      %v1522 = vpop.f32.mrb[0].mxu0
      %1523 = vmatprep.mubr.bf16.mxu0 0
      %1524 = vmatmul.mubr.bf16.gmra.mrb[0].mxu0 %v1002
      %v1525 = vpop.f32.mrb[0].mxu0
      %v1526 = vadd.f32 %v1237, %v1525
      %v1527 = vpop.f32.mrb[0].mxu0
      %v1528 = vpop.f32.mrb[0].mxu0
      %v1529 = vadd.f32 %v1240, %v1528
      %v1530 = vpop.f32.mrb[0].mxu0
      %1531 = vmatprep.mubr.bf16.mxu0 0
      %1532 = vmatmul.mubr.bf16.gmra.mrb[0].mxu0 %v1005
      %v1533 = vpop.f32.mrb[0].mxu0
      %v1534 = vadd.f32 %v1245, %v1533
      %v1535 = vpop.f32.mrb[0].mxu0
      %v1536 = vpop.f32.mrb[0].mxu0
      %v1537 = vadd.f32 %v1248, %v1536
      %v1538 = vpop.f32.mrb[0].mxu0
      %1539 = vmatprep.mubr.bf16.mxu0 0
      %1540 = vmatmul.mubr.bf16.gmra.mrb[0].mxu0 %v1008
      %v1541 = vpop.f32.mrb[0].mxu0
      %v1542 = vadd.f32 %v1253, %v1541
      %v1543 = vpop.f32.mrb[0].mxu0
      %v1544 = vpop.f32.mrb[0].mxu0
      %v1545 = vadd.f32 %v1256, %v1544
      %v1546 = vpop.f32.mrb[0].mxu0
      %1547 = vmatprep.mubr.bf16.mxu0 0
      %1548 = vmatmul.mubr.bf16.gmra.mrb[0].mxu0 %v1011
      %v1549 = vpop.f32.mrb[0].mxu0
      %v1550 = vadd.f32 %v1261, %v1549
      %v1551 = vpop.f32.mrb[0].mxu0
      %v1552 = vpop.f32.mrb[0].mxu0
      %v1553 = vadd.f32 %v1264, %v1552
      %v1554 = vpop.f32.mrb[0].mxu0
      %1555 = vmatprep.mubr.bf16.mxu0 0
      %1556 = vmatmul.mubr.bf16.gmra.mrb[0].mxu0 %v1014
      %v1557 = vpop.f32.mrb[0].mxu0
      %v1558 = vadd.f32 %v1269, %v1557
      %v1559 = vpop.f32.mrb[0].mxu0
      %v1560 = vpop.f32.mrb[0].mxu0
      %v1561 = vadd.f32 %v1272, %v1560
      %v1562 = vpop.f32.mrb[0].mxu0
      %1563 = vmatprep.mubr.bf16.mxu0 0
      %1564 = vmatmul.mubr.bf16.gmra.mrb[0].mxu0 %v1017
      %v1565 = vpop.f32.mrb[0].mxu0
      %v1566 = vadd.f32 %v1277, %v1565
      %v1567 = vpop.f32.mrb[0].mxu0
      %v1568 = vpop.f32.mrb[0].mxu0
      %v1569 = vadd.f32 %v1280, %v1568
      %v1570 = vpop.f32.mrb[0].mxu0
      %1571 = vmatprep.mubr.bf16.mxu0 0
      %1572 = vmatmul.mubr.bf16.gmra.mrb[0].mxu0 %v1020
      %v1573 = vpop.f32.mrb[0].mxu0
      %v1574 = vadd.f32 %v1285, %v1573
      %v1575 = vpop.f32.mrb[0].mxu0
      %v1576 = vpop.f32.mrb[0].mxu0
      %v1577 = vadd.f32 %v1288, %v1576
      %v1578 = vpop.f32.mrb[0].mxu0
      %1579 = vmatprep.mubr.bf16.mxu0 0
      %1580 = vmatmul.mubr.bf16.gmra.mrb[0].mxu0 %v1023
      %v1581 = vpop.f32.mrb[0].mxu0
      %v1582 = vadd.f32 %v1293, %v1581
      %v1583 = vpop.f32.mrb[0].mxu0
      %v1584 = vpop.f32.mrb[0].mxu0
      %v1585 = vadd.f32 %v1296, %v1584
      %v1586 = vpop.f32.mrb[0].mxu0
      %1587 = vmatprep.mubr.bf16.mxu0 0
      %1588 = vmatmul.mubr.bf16.gmra.mrb[0].mxu0 %v1026
      %v1589 = vpop.f32.mrb[0].mxu0
      %v1590 = vadd.f32 %v1301, %v1589
      %v1591 = vpop.f32.mrb[0].mxu0
      %v1592 = vpop.f32.mrb[0].mxu0
      %v1593 = vadd.f32 %v1304, %v1592
      %v1594 = vpop.f32.mrb[0].mxu0
      %1595 = vmatprep.mubr.bf16.mxu0 0
      %1596 = vmatmul.mubr.bf16.gmra.mrb[0].mxu0 %v1029
      %v1597 = vpop.f32.mrb[0].mxu0
      %v1598 = vadd.f32 %v1309, %v1597
      %v1599 = vpop.f32.mrb[0].mxu0
      %v1600 = vpop.f32.mrb[0].mxu0
      %v1601 = vadd.f32 %v1312, %v1600
      %v1602 = vpop.f32.mrb[0].mxu0
      %1603 = vmatprep.mubr.bf16.mxu0 0
      %1604 = vmatmul.mubr.bf16.gmra.mrb[0].mxu0 %v1032
      %v1605 = vpop.f32.mrb[0].mxu0
      %v1606 = vadd.f32 %v1317, %v1605
      %v1607 = vpop.f32.mrb[0].mxu0
      %v1608 = vpop.f32.mrb[0].mxu0
      %v1609 = vadd.f32 %v1320, %v1608
      %v1610 = vpop.f32.mrb[0].mxu0
      %1611 = vdwg.mxu0
      %vm1612 = vcmask 97280
      %1613 = vst.msk [vmem:[%s175] sm:$0xff] %vm1612, %v1358
      %1614 = vst.msk [vmem:[%s175 + $0x8] sm:$0xff] %vm1612, %v1361
      %1615 = vst.msk [vmem:[%s175 + $0x10] sm:$0xff] %vm1612, %v1366
      %1616 = vst.msk [vmem:[%s175 + $0x18] sm:$0xff] %vm1612, %v1369
      %1617 = vst.msk [vmem:[%s175 + $0x20] sm:$0xff] %vm1612, %v1374
      %1618 = vst.msk [vmem:[%s175 + $0x28] sm:$0xff] %vm1612, %v1377
      %1619 = vst.msk [vmem:[%s175 + $0x30] sm:$0xff] %vm1612, %v1382
      %1620 = vst.msk [vmem:[%s175 + $0x38] sm:$0xff] %vm1612, %v1385
      %1621 = vst.msk [vmem:[%s175 + $0x40] sm:$0xff] %vm1612, %v1390
      %1622 = vst.msk [vmem:[%s175 + $0x48] sm:$0xff] %vm1612, %v1393
      %1623 = vst.msk [vmem:[%s175 + $0x50] sm:$0xff] %vm1612, %v1398
      %1624 = vst.msk [vmem:[%s175 + $0x58] sm:$0xff] %vm1612, %v1401
      %1625 = vst.msk [vmem:[%s175 + $0x60] sm:$0xff] %vm1612, %v1406
      %1626 = vst.msk [vmem:[%s175 + $0x68] sm:$0xff] %vm1612, %v1409
      %1627 = vst.msk [vmem:[%s175 + $0x70] sm:$0xff] %vm1612, %v1414
      %1628 = vst.msk [vmem:[%s175 + $0x78] sm:$0xff] %vm1612, %v1417
      %1629 = vst.msk [vmem:[%s175 + $0x80] sm:$0xff] %vm1612, %v1422
      %1630 = vst.msk [vmem:[%s175 + $0x88] sm:$0xff] %vm1612, %v1425
      %1631 = vst.msk [vmem:[%s175 + $0x90] sm:$0xff] %vm1612, %v1430
      %1632 = vst.msk [vmem:[%s175 + $0x98] sm:$0xff] %vm1612, %v1433
      %1633 = vst.msk [vmem:[%s175 + $0xa0] sm:$0xff] %vm1612, %v1438
      %1634 = vst.msk [vmem:[%s175 + $0xa8] sm:$0xff] %vm1612, %v1441
      %1635 = vst.msk [vmem:[%s175 + $0xb0] sm:$0xff] %vm1612, %v1446
      %1636 = vst.msk [vmem:[%s175 + $0xb8] sm:$0xff] %vm1612, %v1449
      %1637 = vst.msk [vmem:[%s175 + $0xc0] sm:$0xff] %vm1612, %v1454
      %1638 = vst.msk [vmem:[%s175 + $0xc8] sm:$0xff] %vm1612, %v1457
      %1639 = vst.msk [vmem:[%s175 + $0xd0] sm:$0xff] %vm1612, %v1462
      %1640 = vst.msk [vmem:[%s175 + $0xd8] sm:$0xff] %vm1612, %v1465
      %1641 = vst.msk [vmem:[%s175 + $0xe0] sm:$0xff] %vm1612, %v1470
      %1642 = vst.msk [vmem:[%s175 + $0xe8] sm:$0xff] %vm1612, %v1473
      %1643 = vst.msk [vmem:[%s175 + $0xf0] sm:$0xff] %vm1612, %v1478
      %1644 = vst.msk [vmem:[%s175 + $0xf8] sm:$0xff] %vm1612, %v1481
      %1645 = vst.msk [vmem:[%s175 + $0x100] sm:$0xff] %vm1612, %v1486
      %1646 = vst.msk [vmem:[%s175 + $0x108] sm:$0xff] %vm1612, %v1489
      %1647 = vst.msk [vmem:[%s175 + $0x110] sm:$0xff] %vm1612, %v1494
      %1648 = vst.msk [vmem:[%s175 + $0x118] sm:$0xff] %vm1612, %v1497
      %1649 = vst.msk [vmem:[%s175 + $0x120] sm:$0xff] %vm1612, %v1502
      %1650 = vst.msk [vmem:[%s175 + $0x128] sm:$0xff] %vm1612, %v1505
      %1651 = vst.msk [vmem:[%s175 + $0x130] sm:$0xff] %vm1612, %v1510
      %1652 = vst.msk [vmem:[%s175 + $0x138] sm:$0xff] %vm1612, %v1513
      %1653 = vst.msk [vmem:[%s175 + $0x140] sm:$0xff] %vm1612, %v1518
      %1654 = vst.msk [vmem:[%s175 + $0x148] sm:$0xff] %vm1612, %v1521
      %1655 = vst.msk [vmem:[%s175 + $0x150] sm:$0xff] %vm1612, %v1526
      %1656 = vst.msk [vmem:[%s175 + $0x158] sm:$0xff] %vm1612, %v1529
      %1657 = vst.msk [vmem:[%s175 + $0x160] sm:$0xff] %vm1612, %v1534
      %1658 = vst.msk [vmem:[%s175 + $0x168] sm:$0xff] %vm1612, %v1537
      %1659 = vst.msk [vmem:[%s175 + $0x170] sm:$0xff] %vm1612, %v1542
      %1660 = vst.msk [vmem:[%s175 + $0x178] sm:$0xff] %vm1612, %v1545
      %1661 = vst.msk [vmem:[%s175 + $0x180] sm:$0xff] %vm1612, %v1550
      %1662 = vst.msk [vmem:[%s175 + $0x188] sm:$0xff] %vm1612, %v1553
      %1663 = vst.msk [vmem:[%s175 + $0x190] sm:$0xff] %vm1612, %v1558
      %1664 = vst.msk [vmem:[%s175 + $0x198] sm:$0xff] %vm1612, %v1561
      %1665 = vst.msk [vmem:[%s175 + $0x1a0] sm:$0xff] %vm1612, %v1566
      %1666 = vst.msk [vmem:[%s175 + $0x1a8] sm:$0xff] %vm1612, %v1569
      %1667 = vst.msk [vmem:[%s175 + $0x1b0] sm:$0xff] %vm1612, %v1574
      %1668 = vst.msk [vmem:[%s175 + $0x1b8] sm:$0xff] %vm1612, %v1577
      %1669 = vst.msk [vmem:[%s175 + $0x1c0] sm:$0xff] %vm1612, %v1582
      %1670 = vst.msk [vmem:[%s175 + $0x1c8] sm:$0xff] %vm1612, %v1585
      %1671 = vst.msk [vmem:[%s175 + $0x1d0] sm:$0xff] %vm1612, %v1590
      %1672 = vst.msk [vmem:[%s175 + $0x1d8] sm:$0xff] %vm1612, %v1593
      %1673 = vst.msk [vmem:[%s175 + $0x1e0] sm:$0xff] %vm1612, %v1598
      %1674 = vst.msk [vmem:[%s175 + $0x1e8] sm:$0xff] %vm1612, %v1601
      %1675 = vst.msk [vmem:[%s175 + $0x1f0] sm:$0xff] %vm1612, %v1606
      %1676 = vst.msk [vmem:[%s175 + $0x1f8] sm:$0xff] %vm1612, %v1609
      %s1677 = smul.u32 64, %s14
      %p1678 = scmp.lt.s32.totalorder %s1677, 255
      %s1679 = scalar_select %p1678, %s1677, 255
      %s1680 = smul.addr %s1679, 8
      %s1681 = scalar_lea.vmem %s3, %s1680
      // Predicated region
      $region33: #{vae_forward.17} parent=31 // pred_check
        %p1682 = pneg %p100
      $region34: #{vae_forward.17} parent=31 // pred_check_branch
        %1684 = sbr.rel (%p1682) target = $region36
      $region35: #{vae_forward.17} parent=31 // pred_region
        %s1685 = smul.u32 64, %s14
      $region36: #{vae_forward.17} parent=31 // pred_fallthru
        _
    $region32: #{vae_forward.17} parent=5 // pred_fallthru
      _
    %p1686 = scmp.le.s32.totalorder 2, %s9
    // Predicated region
    $region37: #{vae_forward.17} parent=5 // pred_check
      %p1687 = pneg %p1686
    $region38: #{vae_forward.17} parent=5 // pred_check_branch
      %1689 = sbr.rel (%p1687) target = $region40
    $region39: #{vae_forward.17} parent=5 // pred_region
      %s1690 = ssub.s32 %s9, 2
      // Predicated region
      $region41: #{vae_forward.17} parent=39 // pred_check
        %p1691 = pneg %p106
      $region42: #{vae_forward.17} parent=39 // pred_check_branch
        %1693 = sbr.rel (%p1691) target = $region44
      $region43: #{vae_forward.17} parent=39 // pred_region
        %s1694 = smul.u32 64, %s15
        %p1695 = scmp.lt.s32.totalorder %s1694, 255
        %s1696 = scalar_select %p1695, %s1694, 255
        %s1697 = smul.addr %s1696, 8
        %s1698 = scalar_lea.vmem %s3, %s1697
      $region44: #{vae_forward.17} parent=39 // pred_fallthru
        _
    $region40: #{vae_forward.17} parent=5 // pred_fallthru
      _
  $region6: #{vae_forward.17} parent=0 // loop_footer
    %s13 = sadd.s32 1, %s9
  $region7: #{vae_forward.17} parent=0 // loop_footer_branch
    %8 = sbr.rel target = $region3
  $region8: #{vae_forward.17} parent=0 // loop_exit
    _

</llo_original>
